<compile_context>
chip_gen: v7x
topology: tpu7x:2x2x1
jax: 0.10.0
libtpu: 0.0.40
codegen_flags: <defaults>
</compile_context>

<pallas_src>
import jax
import jax.numpy as jnp
from jax.experimental import pallas as pl
from jax.experimental.pallas import tpu as pltpu


LEAKY_SLOPE = 0.01  # nn.LeakyReLU default negative_slope
LANE = 128


def _round_up(n, m):
    return ((n + m - 1) // m) * m


def _leaky_relu(x):
    # One vmul + vmax per vreg instead of compare + select.
    return jnp.maximum(x, LEAKY_SLOPE * x)


def autoencoder_kernel(x_ref,
                       w1_ref, b1_ref,   # encoder Linear(input -> hidden)
                       w2_ref, b2_ref,   # encoder Linear(hidden -> z)
                       w3_ref, b3_ref,   # decoder Linear(z -> hidden)
                       w4_ref, b4_ref,   # decoder Linear(hidden -> input)
                       dec_ref, z_ref):
    # --- encoder ---  (Dropout(0.25) is identity in eval mode)
    x = x_ref[...]                                                # bf16 [TB, in_pad]
    h = jnp.dot(x, w1_ref[...], preferred_element_type=jnp.float32) + b1_ref[...]
    h = _leaky_relu(h)                                            # f32 VPU work
    z = jnp.dot(h.astype(w2_ref.dtype), w2_ref[...],
                preferred_element_type=jnp.float32) + b2_ref[...]
    z = _leaky_relu(z)                                            # padded lanes stay 0
    z_ref[...] = z.astype(z_ref.dtype)

    # --- decoder ---
    d = jnp.dot(z.astype(w3_ref.dtype), w3_ref[...],
                preferred_element_type=jnp.float32) + b3_ref[...]
    d = _leaky_relu(d)
    d = jnp.dot(d.astype(w4_ref.dtype), w4_ref[...],
                preferred_element_type=jnp.float32) + b4_ref[...]
    # Sigmoid as exp(-d) (EUP) + approximate reciprocal (EUP) -> no VPU divide.
    dec = pl.reciprocal(1.0 + jnp.exp(-d), approx=True)
    dec_ref[...] = dec.astype(dec_ref.dtype)


def prepare_params(params):
    """Pad every feature dim to a lane-dense multiple of 128, cast weights to bf16.

    Zero-padding the extra weight rows/cols and bias lanes is numerically
    exact: padded lanes carry leaky_relu(0) == 0 and contribute nothing.
    Biases stay f32 (tiny, added to f32 accumulators).
    """
    input_size, hidden_size = params["w1"].shape
    z_size = params["w2"].shape[1]
    in_pad = max(LANE, _round_up(input_size, LANE))
    hid_pad = max(LANE, _round_up(hidden_size, LANE))
    z_pad = max(LANE, _round_up(z_size, LANE))

    def pad2(a, rows, cols):
        return jnp.pad(a, ((0, rows - a.shape[0]), (0, cols - a.shape[1])))

    kparams = {
        "w1": pad2(params["w1"], in_pad, hid_pad).astype(jnp.bfloat16),
        "b1": pad2(params["b1"], 1, hid_pad).astype(jnp.float32),
        "w2": pad2(params["w2"], hid_pad, z_pad).astype(jnp.bfloat16),
        "b2": pad2(params["b2"], 1, z_pad).astype(jnp.float32),
        "w3": pad2(params["w3"], z_pad, hid_pad).astype(jnp.bfloat16),
        "b3": pad2(params["b3"], 1, hid_pad).astype(jnp.float32),
        "w4": pad2(params["w4"], hid_pad, in_pad).astype(jnp.bfloat16),
        "b4": pad2(params["b4"], 1, in_pad).astype(jnp.float32),
    }
    dims = {"input_size": input_size, "hidden_size": hidden_size, "z_size": z_size,
            "in_pad": in_pad, "hid_pad": hid_pad, "z_pad": z_pad}
    return kparams, dims


def autoencoder_forward(x, kparams, dims, *, batch_tile=None):
    """x: [B, input_size]. Returns (decoded, z) as bf16 (cast downstream if f32 needed)."""
    B, input_size = x.shape
    assert input_size == dims["input_size"]
    in_pad, hid_pad, z_pad = dims["in_pad"], dims["hid_pad"], dims["z_pad"]

    # Batch tile: 256 fills the 256-wide v6e/v7x MXU M dim and amortizes the
    # ~0.35 us/step grid overhead; small batches collapse to one grid step.
    # (On v5e, or when n_tiles per core would drop below 2 on v7x, pass
    # batch_tile=128 explicitly.)
    if batch_tile is None:
        TB = 256 if B >= 256 else _round_up(B, 16)
    else:
        TB = batch_tile
    n_tiles = pl.cdiv(B, TB)
    B_pad = n_tiles * TB

    xb = x.astype(jnp.bfloat16)
    pad_rows, pad_cols = B_pad - B, in_pad - input_size
    if pad_rows or pad_cols:
        xb = jnp.pad(xb, ((0, pad_rows), (0, pad_cols)))

    def act_spec(n_cols):
        return pl.BlockSpec((TB, n_cols), lambda i: (i, 0))

    out_specs = (act_spec(in_pad), act_spec(z_pad))
    out_shape = (
        jax.ShapeDtypeStruct((B_pad, in_pad), jnp.bfloat16),  # decoded (padded)
        jax.ShapeDtypeStruct((B_pad, z_pad), jnp.bfloat16),   # z (padded)
    )

    # Advisory cost estimate so XLA can overlap surrounding HLO with this
    # DMA-bound kernel.
    flops = 2 * B_pad * (in_pad * hid_pad + hid_pad * z_pad
                         + z_pad * hid_pad + hid_pad * in_pad)
    transcendentals = B_pad * in_pad  # exp in the sigmoid epilogue
    weight_bytes = sum(int(v.size) * v.dtype.itemsize for v in kparams.values())
    bytes_accessed = (int(xb.size) * xb.dtype.itemsize + weight_bytes
                      + B_pad * in_pad * 2 + B_pad * z_pad * 2)

    # VMEM budget: resident weights (ideally single-buffered), double-buffered
    # bf16 activation tiles, f32 intermediates; clamp to <=48 MiB (v7x-safe).
    act_buf_bytes = 2 * TB * (2 * in_pad + z_pad) * 2
    scratch_bytes = TB * (2 * hid_pad + z_pad + in_pad) * 4
    vmem_limit = int(min(max(2 * (weight_bytes + act_buf_bytes + scratch_bytes),
                             16 * 1024 * 1024),
                         48 * 1024 * 1024))

    def build(single_buffer_weights):
        def const_spec(arr):
            # Constant block index -> weights/biases stay resident, DMA'd once.
            if single_buffer_weights:
                return pl.BlockSpec(arr.shape, lambda i: (0, 0),
                                    pipeline_mode=pl.Buffered(1))
            return pl.BlockSpec(arr.shape, lambda i: (0, 0))

        in_specs = [
            act_spec(in_pad),
            const_spec(kparams["w1"]), const_spec(kparams["b1"]),
            const_spec(kparams["w2"]), const_spec(kparams["b2"]),
            const_spec(kparams["w3"]), const_spec(kparams["b3"]),
            const_spec(kparams["w4"]), const_spec(kparams["b4"]),
        ]
        return pl.pallas_call(
            autoencoder_kernel,
            out_shape=out_shape,
            grid=(n_tiles,),
            in_specs=in_specs,
            out_specs=out_specs,
            compiler_params=pltpu.CompilerParams(
                dimension_semantics=("parallel",),   # megacore sharding on v7x
                vmem_limit_bytes=vmem_limit,
            ),
            cost_estimate=pl.CostEstimate(
                flops=flops,
                transcendentals=transcendentals,
                bytes_accessed=bytes_accessed,
            ),
        )

    args = (xb,
            kparams["w1"], kparams["b1"],
            kparams["w2"], kparams["b2"],
            kparams["w3"], kparams["b3"],
            kparams["w4"], kparams["b4"])

    try:
        decoded, z_padded = build(single_buffer_weights=True)(*args)
    except Exception:
        # Fallback: default (double-buffered) resident weights if this jax
        # version rejects pipeline_mode=pl.Buffered(1).
        decoded, z_padded = build(single_buffer_weights=False)(*args)

    return decoded[:B, :input_size], z_padded[:B, :dims["z_size"]]


def init_params(key, input_size, hidden_size, z_size):
    """Deterministic PyTorch-like uniform init. Weights stored as [in, out], f32."""
    def linear(key, fan_in, fan_out):
        kw, kb = jax.random.split(key)
        bound = 1.0 / jnp.sqrt(fan_in)
        w = jax.random.uniform(kw, (fan_in, fan_out), jnp.float32, -bound, bound)
        b = jax.random.uniform(kb, (1, fan_out), jnp.float32, -bound, bound)
        return w, b

    k1, k2, k3, k4 = jax.random.split(key, 4)
    w1, b1 = linear(k1, input_size, hidden_size)
    w2, b2 = linear(k2, hidden_size, z_size)
    w3, b3 = linear(k3, z_size, hidden_size)
    w4, b4 = linear(k4, hidden_size, input_size)
    return {"w1": w1, "b1": b1, "w2": w2, "b2": b2,
            "w3": w3, "b3": b3, "w4": w4, "b4": b4}


def reference_forward(x, params):
    """Pure-JAX f32 reference (unpadded weights) for validation."""
    def leaky(v):
        return jnp.where(v > 0, v, LEAKY_SLOPE * v)
    h = leaky(x @ params["w1"] + params["b1"])
    z = leaky(h @ params["w2"] + params["b2"])
    d = leaky(z @ params["w3"] + params["b3"])
    decoded = jax.nn.sigmoid(d @ params["w4"] + params["b4"])
    return decoded, z


if __name__ == "__main__":
    # Module-default feature sizes (784/400/10) at a small batch; the non-128
    # widths exercise the lane-padding path (784->896, 400->512, 10->128).
    batch = 64
    input_size = 784
    hidden_size = 400
    z_size = 10

    key = jax.random.PRNGKey(0)
    kx, kp = jax.random.split(key)
    x = jax.random.normal(kx, (batch, input_size), jnp.float32)
    params = init_params(kp, input_size, hidden_size, z_size)

    kparams, dims = prepare_params(params)
    decoded, z = autoencoder_forward(x, kparams, dims)
    decoded, z = jax.block_until_ready((decoded, z))

    ref_decoded, ref_z = reference_forward(x, params)
    assert decoded.shape == (batch, input_size)
    assert z.shape == (batch, z_size)
    # bf16 matmul operands + bf16 outputs -> loosened tolerance vs f32 reference.
    assert jnp.allclose(decoded.astype(jnp.float32), ref_decoded, atol=5e-2, rtol=5e-2)
    assert jnp.allclose(z.astype(jnp.float32), ref_z, atol=5e-2, rtol=5e-2)

    print("KERNEL_OK")
</pallas_src>

<mosaic_0001>
module attributes {stable_mosaic.version = 11 : i64} {
  func.func @autoencoder_kernel(%arg0: i32, %arg1: memref<64x896xbf16, #tpu.memory_space<vmem>>, %arg2: memref<896x512xbf16, #tpu.memory_space<vmem>>, %arg3: memref<1x512xf32, #tpu.memory_space<vmem>>, %arg4: memref<512x128xbf16, #tpu.memory_space<vmem>>, %arg5: memref<1x128xf32, #tpu.memory_space<vmem>>, %arg6: memref<128x512xbf16, #tpu.memory_space<vmem>>, %arg7: memref<1x512xf32, #tpu.memory_space<vmem>>, %arg8: memref<512x896xbf16, #tpu.memory_space<vmem>>, %arg9: memref<1x896xf32, #tpu.memory_space<vmem>>, %arg10: memref<64x896xbf16, #tpu.memory_space<vmem>>, %arg11: memref<64x128xbf16, #tpu.memory_space<vmem>>) attributes {dimension_semantics = [#tpu.dimension_semantics<parallel>], iteration_bounds = array<i64: 1>, scalar_prefetch = 0 : i64, scratch_operands = 0 : i64, tpu.core_type = #tpu.core_type<tc>, window_params = [{transform_indices = @transform_0, window_bounds = array<i64: 64, 896>}, {pipeline_mode = #tpu.pipeline_mode<synchronous>, transform_indices = @transform_1, window_bounds = array<i64: 896, 512>}, {pipeline_mode = #tpu.pipeline_mode<synchronous>, transform_indices = @transform_2, window_bounds = array<i64: 1, 512>}, {pipeline_mode = #tpu.pipeline_mode<synchronous>, transform_indices = @transform_3, window_bounds = array<i64: 512, 128>}, {pipeline_mode = #tpu.pipeline_mode<synchronous>, transform_indices = @transform_4, window_bounds = array<i64: 1, 128>}, {pipeline_mode = #tpu.pipeline_mode<synchronous>, transform_indices = @transform_5, window_bounds = array<i64: 128, 512>}, {pipeline_mode = #tpu.pipeline_mode<synchronous>, transform_indices = @transform_6, window_bounds = array<i64: 1, 512>}, {pipeline_mode = #tpu.pipeline_mode<synchronous>, transform_indices = @transform_7, window_bounds = array<i64: 512, 896>}, {pipeline_mode = #tpu.pipeline_mode<synchronous>, transform_indices = @transform_8, window_bounds = array<i64: 1, 896>}, {transform_indices = @transform_9, window_bounds = array<i64: 64, 896>}, {transform_indices = @transform_10, window_bounds = array<i64: 64, 128>}]} {
    %c0 = arith.constant 0 : index
    %c0_0 = arith.constant 0 : index
    %0 = vector.load %arg1[%c0, %c0_0] : memref<64x896xbf16, #tpu.memory_space<vmem>>, vector<64x896xbf16>
    %c0_1 = arith.constant 0 : index
    %c0_2 = arith.constant 0 : index
    %1 = vector.load %arg2[%c0_1, %c0_2] : memref<896x512xbf16, #tpu.memory_space<vmem>>, vector<896x512xbf16>
    %cst = arith.constant dense<0.000000e+00> : vector<64x512xf32>
    %2 = tpu.matmul %0, %1, %cst {dimension_numbers = #tpu.dot_dimension_numbers<[1], [0], [0], [1], [0, 0, 1, 1], [], []>} : vector<64x896xbf16>, vector<896x512xbf16>, vector<64x512xf32> -> vector<64x512xf32>
    %c0_3 = arith.constant 0 : index
    %c0_4 = arith.constant 0 : index
    %3 = vector.load %arg3[%c0_3, %c0_4] : memref<1x512xf32, #tpu.memory_space<vmem>>, vector<1x512xf32>
    %4 = vector.broadcast %3 : vector<1x512xf32> to vector<64x512xf32>
    %5 = arith.addf %2, %4 : vector<64x512xf32>
    %cst_5 = arith.constant 0.00999999977 : f32
    %6 = vector.broadcast %cst_5 : f32 to vector<64x512xf32>
    %7 = arith.mulf %6, %5 : vector<64x512xf32>
    %8 = arith.maximumf %5, %7 : vector<64x512xf32>
    %9 = arith.truncf %8 : vector<64x512xf32> to vector<64x512xbf16>
    %c0_6 = arith.constant 0 : index
    %c0_7 = arith.constant 0 : index
    %10 = vector.load %arg4[%c0_6, %c0_7] : memref<512x128xbf16, #tpu.memory_space<vmem>>, vector<512x128xbf16>
    %cst_8 = arith.constant dense<0.000000e+00> : vector<64x128xf32>
    %11 = tpu.matmul %9, %10, %cst_8 {dimension_numbers = #tpu.dot_dimension_numbers<[1], [0], [0], [1], [0, 0, 1, 1], [], []>} : vector<64x512xbf16>, vector<512x128xbf16>, vector<64x128xf32> -> vector<64x128xf32>
    %c0_9 = arith.constant 0 : index
    %c0_10 = arith.constant 0 : index
    %12 = vector.load %arg5[%c0_9, %c0_10] : memref<1x128xf32, #tpu.memory_space<vmem>>, vector<1x128xf32>
    %13 = vector.broadcast %12 : vector<1x128xf32> to vector<64x128xf32>
    %14 = arith.addf %11, %13 : vector<64x128xf32>
    %cst_11 = arith.constant 0.00999999977 : f32
    %15 = vector.broadcast %cst_11 : f32 to vector<64x128xf32>
    %16 = arith.mulf %15, %14 : vector<64x128xf32>
    %17 = arith.maximumf %14, %16 : vector<64x128xf32>
    %18 = arith.truncf %17 : vector<64x128xf32> to vector<64x128xbf16>
    %c0_12 = arith.constant 0 : index
    %c0_13 = arith.constant 0 : index
    %19 = vector.load %arg11[%c0_12, %c0_13] : memref<64x128xbf16, #tpu.memory_space<vmem>>, vector<64x128xbf16>
    tpu.vector_store %arg11[%c0_12, %c0_13], %18 {strides = array<i32>} : memref<64x128xbf16, #tpu.memory_space<vmem>>, vector<64x128xbf16>,
    %20 = arith.truncf %17 : vector<64x128xf32> to vector<64x128xbf16>
    %c0_14 = arith.constant 0 : index
    %c0_15 = arith.constant 0 : index
    %21 = vector.load %arg6[%c0_14, %c0_15] : memref<128x512xbf16, #tpu.memory_space<vmem>>, vector<128x512xbf16>
    %cst_16 = arith.constant dense<0.000000e+00> : vector<64x512xf32>
    %22 = tpu.matmul %20, %21, %cst_16 {dimension_numbers = #tpu.dot_dimension_numbers<[1], [0], [0], [1], [0, 0, 1, 1], [], []>} : vector<64x128xbf16>, vector<128x512xbf16>, vector<64x512xf32> -> vector<64x512xf32>
    %c0_17 = arith.constant 0 : index
    %c0_18 = arith.constant 0 : index
    %23 = vector.load %arg7[%c0_17, %c0_18] : memref<1x512xf32, #tpu.memory_space<vmem>>, vector<1x512xf32>
    %24 = vector.broadcast %23 : vector<1x512xf32> to vector<64x512xf32>
    %25 = arith.addf %22, %24 : vector<64x512xf32>
    %cst_19 = arith.constant 0.00999999977 : f32
    %26 = vector.broadcast %cst_19 : f32 to vector<64x512xf32>
    %27 = arith.mulf %26, %25 : vector<64x512xf32>
    %28 = arith.maximumf %25, %27 : vector<64x512xf32>
    %29 = arith.truncf %28 : vector<64x512xf32> to vector<64x512xbf16>
    %c0_20 = arith.constant 0 : index
    %c0_21 = arith.constant 0 : index
    %30 = vector.load %arg8[%c0_20, %c0_21] : memref<512x896xbf16, #tpu.memory_space<vmem>>, vector<512x896xbf16>
    %cst_22 = arith.constant dense<0.000000e+00> : vector<64x896xf32>
    %31 = tpu.matmul %29, %30, %cst_22 {dimension_numbers = #tpu.dot_dimension_numbers<[1], [0], [0], [1], [0, 0, 1, 1], [], []>} : vector<64x512xbf16>, vector<512x896xbf16>, vector<64x896xf32> -> vector<64x896xf32>
    %c0_23 = arith.constant 0 : index
    %c0_24 = arith.constant 0 : index
    %32 = vector.load %arg9[%c0_23, %c0_24] : memref<1x896xf32, #tpu.memory_space<vmem>>, vector<1x896xf32>
    %33 = vector.broadcast %32 : vector<1x896xf32> to vector<64x896xf32>
    %34 = arith.addf %31, %33 : vector<64x896xf32>
    %cst_25 = arith.constant 0.000000e+00 : f32
    %35 = vector.broadcast %cst_25 : f32 to vector<64x896xf32>
    %36 = arith.subf %35, %34 : vector<64x896xf32>
    %37 = math.exp %36 : vector<64x896xf32>
    %cst_26 = arith.constant 1.000000e+00 : f32
    %38 = vector.broadcast %cst_26 : f32 to vector<64x896xf32>
    %39 = arith.addf %38, %37 : vector<64x896xf32>
    %40 = tpu.reciprocal %39 {approx = true} : vector<64x896xf32> -> vector<64x896xf32>
    %41 = arith.truncf %40 : vector<64x896xf32> to vector<64x896xbf16>
    %c0_27 = arith.constant 0 : index
    %c0_28 = arith.constant 0 : index
    %42 = vector.load %arg10[%c0_27, %c0_28] : memref<64x896xbf16, #tpu.memory_space<vmem>>, vector<64x896xbf16>
    tpu.vector_store %arg10[%c0_27, %c0_28], %41 {strides = array<i32>} : memref<64x896xbf16, #tpu.memory_space<vmem>>, vector<64x896xbf16>,
    return
  }
  func.func @transform_0(%arg0: i32) -> (i32, i32) {
    %c0_i32 = arith.constant 0 : i32
    %c0_i32_0 = arith.constant 0 : i32
    return %arg0, %c0_i32 : i32, i32
  }
  func.func @transform_1(%arg0: i32) -> (i32, i32) {
    %c0_i32 = arith.constant 0 : i32
    %c0_i32_0 = arith.constant 0 : i32
    %c0_i32_1 = arith.constant 0 : i32
    return %c0_i32, %c0_i32_0 : i32, i32
  }
  func.func @transform_2(%arg0: i32) -> (i32, i32) {
    %c0_i32 = arith.constant 0 : i32
    %c0_i32_0 = arith.constant 0 : i32
    %c0_i32_1 = arith.constant 0 : i32
    return %c0_i32, %c0_i32_0 : i32, i32
  }
  func.func @transform_3(%arg0: i32) -> (i32, i32) {
    %c0_i32 = arith.constant 0 : i32
    %c0_i32_0 = arith.constant 0 : i32
    %c0_i32_1 = arith.constant 0 : i32
    return %c0_i32, %c0_i32_0 : i32, i32
  }
  func.func @transform_4(%arg0: i32) -> (i32, i32) {
    %c0_i32 = arith.constant 0 : i32
    %c0_i32_0 = arith.constant 0 : i32
    %c0_i32_1 = arith.constant 0 : i32
    return %c0_i32, %c0_i32_0 : i32, i32
  }
  func.func @transform_5(%arg0: i32) -> (i32, i32) {
    %c0_i32 = arith.constant 0 : i32
    %c0_i32_0 = arith.constant 0 : i32
    %c0_i32_1 = arith.constant 0 : i32
    return %c0_i32, %c0_i32_0 : i32, i32
  }
  func.func @transform_6(%arg0: i32) -> (i32, i32) {
    %c0_i32 = arith.constant 0 : i32
    %c0_i32_0 = arith.constant 0 : i32
    %c0_i32_1 = arith.constant 0 : i32
    return %c0_i32, %c0_i32_0 : i32, i32
  }
  func.func @transform_7(%arg0: i32) -> (i32, i32) {
    %c0_i32 = arith.constant 0 : i32
    %c0_i32_0 = arith.constant 0 : i32
    %c0_i32_1 = arith.constant 0 : i32
    return %c0_i32, %c0_i32_0 : i32, i32
  }
  func.func @transform_8(%arg0: i32) -> (i32, i32) {
    %c0_i32 = arith.constant 0 : i32
    %c0_i32_0 = arith.constant 0 : i32
    %c0_i32_1 = arith.constant 0 : i32
    return %c0_i32, %c0_i32_0 : i32, i32
  }
  func.func @transform_9(%arg0: i32) -> (i32, i32) {
    %c0_i32 = arith.constant 0 : i32
    %c0_i32_0 = arith.constant 0 : i32
    return %arg0, %c0_i32 : i32, i32
  }
  func.func @transform_10(%arg0: i32) -> (i32, i32) {
    %c0_i32 = arith.constant 0 : i32
    %c0_i32_0 = arith.constant 0 : i32
    return %arg0, %c0_i32 : i32, i32
  }
}

module attributes {stable_mosaic.version = 11 : i64} {
  func.func @autoencoder_kernel(%arg0: i32, %arg1: memref<64x896xbf16, #tpu.memory_space<vmem>>, %arg2: memref<896x512xbf16, #tpu.memory_space<vmem>>, %arg3: memref<1x512xf32, #tpu.memory_space<vmem>>, %arg4: memref<512x128xbf16, #tpu.memory_space<vmem>>, %arg5: memref<1x128xf32, #tpu.memory_space<vmem>>, %arg6: memref<128x512xbf16, #tpu.memory_space<vmem>>, %arg7: memref<1x512xf32, #tpu.memory_space<vmem>>, %arg8: memref<512x896xbf16, #tpu.memory_space<vmem>>, %arg9: memref<1x896xf32, #tpu.memory_space<vmem>>, %arg10: memref<64x896xbf16, #tpu.memory_space<vmem>>, %arg11: memref<64x128xbf16, #tpu.memory_space<vmem>>) attributes {dimension_semantics = [#tpu.dimension_semantics<parallel>], iteration_bounds = array<i64: 1>, scalar_prefetch = 0 : i64, scratch_operands = 0 : i64, tpu.core_type = #tpu.core_type<tc>, window_params = [{transform_indices = @transform_0, window_bounds = array<i64: 64, 896>}, {pipeline_mode = #tpu.pipeline_mode<synchronous>, transform_indices = @transform_1, window_bounds = array<i64: 896, 512>}, {pipeline_mode = #tpu.pipeline_mode<synchronous>, transform_indices = @transform_2, window_bounds = array<i64: 1, 512>}, {pipeline_mode = #tpu.pipeline_mode<synchronous>, transform_indices = @transform_3, window_bounds = array<i64: 512, 128>}, {pipeline_mode = #tpu.pipeline_mode<synchronous>, transform_indices = @transform_4, window_bounds = array<i64: 1, 128>}, {pipeline_mode = #tpu.pipeline_mode<synchronous>, transform_indices = @transform_5, window_bounds = array<i64: 128, 512>}, {pipeline_mode = #tpu.pipeline_mode<synchronous>, transform_indices = @transform_6, window_bounds = array<i64: 1, 512>}, {pipeline_mode = #tpu.pipeline_mode<synchronous>, transform_indices = @transform_7, window_bounds = array<i64: 512, 896>}, {pipeline_mode = #tpu.pipeline_mode<synchronous>, transform_indices = @transform_8, window_bounds = array<i64: 1, 896>}, {transform_indices = @transform_9, window_bounds = array<i64: 64, 896>}, {transform_indices = @transform_10, window_bounds = array<i64: 64, 128>}]} {
    %c0 = arith.constant 0 : index
    %c0_0 = arith.constant 0 : index
    %0 = vector.load %arg1[%c0, %c0_0] : memref<64x896xbf16, #tpu.memory_space<vmem>>, vector<64x896xbf16>
    %c0_1 = arith.constant 0 : index
    %c0_2 = arith.constant 0 : index
    %1 = vector.load %arg2[%c0_1, %c0_2] : memref<896x512xbf16, #tpu.memory_space<vmem>>, vector<896x512xbf16>
    %cst = arith.constant dense<0.000000e+00> : vector<64x512xf32>
    %2 = tpu.matmul %0, %1, %cst {dimension_numbers = #tpu.dot_dimension_numbers<[1], [0], [0], [1], [0, 0, 1, 1], [], []>} : vector<64x896xbf16>, vector<896x512xbf16>, vector<64x512xf32> -> vector<64x512xf32>
    %c0_3 = arith.constant 0 : index
    %c0_4 = arith.constant 0 : index
    %3 = vector.load %arg3[%c0_3, %c0_4] : memref<1x512xf32, #tpu.memory_space<vmem>>, vector<1x512xf32>
    %4 = vector.broadcast %3 : vector<1x512xf32> to vector<64x512xf32>
    %5 = arith.addf %2, %4 : vector<64x512xf32>
    %cst_5 = arith.constant 0.00999999977 : f32
    %6 = vector.broadcast %cst_5 : f32 to vector<64x512xf32>
    %7 = arith.mulf %6, %5 : vector<64x512xf32>
    %8 = arith.maximumf %5, %7 : vector<64x512xf32>
    %9 = arith.truncf %8 : vector<64x512xf32> to vector<64x512xbf16>
    %c0_6 = arith.constant 0 : index
    %c0_7 = arith.constant 0 : index
    %10 = vector.load %arg4[%c0_6, %c0_7] : memref<512x128xbf16, #tpu.memory_space<vmem>>, vector<512x128xbf16>
    %cst_8 = arith.constant dense<0.000000e+00> : vector<64x128xf32>
    %11 = tpu.matmul %9, %10, %cst_8 {dimension_numbers = #tpu.dot_dimension_numbers<[1], [0], [0], [1], [0, 0, 1, 1], [], []>} : vector<64x512xbf16>, vector<512x128xbf16>, vector<64x128xf32> -> vector<64x128xf32>
    %c0_9 = arith.constant 0 : index
    %c0_10 = arith.constant 0 : index
    %12 = vector.load %arg5[%c0_9, %c0_10] : memref<1x128xf32, #tpu.memory_space<vmem>>, vector<1x128xf32>
    %13 = vector.broadcast %12 : vector<1x128xf32> to vector<64x128xf32>
    %14 = arith.addf %11, %13 : vector<64x128xf32>
    %cst_11 = arith.constant 0.00999999977 : f32
    %15 = vector.broadcast %cst_11 : f32 to vector<64x128xf32>
    %16 = arith.mulf %15, %14 : vector<64x128xf32>
    %17 = arith.maximumf %14, %16 : vector<64x128xf32>
    %18 = arith.truncf %17 : vector<64x128xf32> to vector<64x128xbf16>
    %c0_12 = arith.constant 0 : index
    %c0_13 = arith.constant 0 : index
    %19 = vector.load %arg11[%c0_12, %c0_13] : memref<64x128xbf16, #tpu.memory_space<vmem>>, vector<64x128xbf16>
    tpu.vector_store %arg11[%c0_12, %c0_13], %18 {strides = array<i32>} : memref<64x128xbf16, #tpu.memory_space<vmem>>, vector<64x128xbf16>,
    %20 = arith.truncf %17 : vector<64x128xf32> to vector<64x128xbf16>
    %c0_14 = arith.constant 0 : index
    %c0_15 = arith.constant 0 : index
    %21 = vector.load %arg6[%c0_14, %c0_15] : memref<128x512xbf16, #tpu.memory_space<vmem>>, vector<128x512xbf16>
    %cst_16 = arith.constant dense<0.000000e+00> : vector<64x512xf32>
    %22 = tpu.matmul %20, %21, %cst_16 {dimension_numbers = #tpu.dot_dimension_numbers<[1], [0], [0], [1], [0, 0, 1, 1], [], []>} : vector<64x128xbf16>, vector<128x512xbf16>, vector<64x512xf32> -> vector<64x512xf32>
    %c0_17 = arith.constant 0 : index
    %c0_18 = arith.constant 0 : index
    %23 = vector.load %arg7[%c0_17, %c0_18] : memref<1x512xf32, #tpu.memory_space<vmem>>, vector<1x512xf32>
    %24 = vector.broadcast %23 : vector<1x512xf32> to vector<64x512xf32>
    %25 = arith.addf %22, %24 : vector<64x512xf32>
    %cst_19 = arith.constant 0.00999999977 : f32
    %26 = vector.broadcast %cst_19 : f32 to vector<64x512xf32>
    %27 = arith.mulf %26, %25 : vector<64x512xf32>
    %28 = arith.maximumf %25, %27 : vector<64x512xf32>
    %29 = arith.truncf %28 : vector<64x512xf32> to vector<64x512xbf16>
    %c0_20 = arith.constant 0 : index
    %c0_21 = arith.constant 0 : index
    %30 = vector.load %arg8[%c0_20, %c0_21] : memref<512x896xbf16, #tpu.memory_space<vmem>>, vector<512x896xbf16>
    %cst_22 = arith.constant dense<0.000000e+00> : vector<64x896xf32>
    %31 = tpu.matmul %29, %30, %cst_22 {dimension_numbers = #tpu.dot_dimension_numbers<[1], [0], [0], [1], [0, 0, 1, 1], [], []>} : vector<64x512xbf16>, vector<512x896xbf16>, vector<64x896xf32> -> vector<64x896xf32>
    %c0_23 = arith.constant 0 : index
    %c0_24 = arith.constant 0 : index
    %32 = vector.load %arg9[%c0_23, %c0_24] : memref<1x896xf32, #tpu.memory_space<vmem>>, vector<1x896xf32>
    %33 = vector.broadcast %32 : vector<1x896xf32> to vector<64x896xf32>
    %34 = arith.addf %31, %33 : vector<64x896xf32>
    %cst_25 = arith.constant 0.000000e+00 : f32
    %35 = vector.broadcast %cst_25 : f32 to vector<64x896xf32>
    %36 = arith.subf %35, %34 : vector<64x896xf32>
    %37 = math.exp %36 : vector<64x896xf32>
    %cst_26 = arith.constant 1.000000e+00 : f32
    %38 = vector.broadcast %cst_26 : f32 to vector<64x896xf32>
    %39 = arith.addf %38, %37 : vector<64x896xf32>
    %40 = tpu.reciprocal %39 {approx = true} : vector<64x896xf32> -> vector<64x896xf32>
    %41 = arith.truncf %40 : vector<64x896xf32> to vector<64x896xbf16>
    %c0_27 = arith.constant 0 : index
    %c0_28 = arith.constant 0 : index
    %42 = vector.load %arg10[%c0_27, %c0_28] : memref<64x896xbf16, #tpu.memory_space<vmem>>, vector<64x896xbf16>
    tpu.vector_store %arg10[%c0_27, %c0_28], %41 {strides = array<i32>} : memref<64x896xbf16, #tpu.memory_space<vmem>>, vector<64x896xbf16>,
    return
  }
  func.func @transform_0(%arg0: i32) -> (i32, i32) {
    %c0_i32 = arith.constant 0 : i32
    %c0_i32_0 = arith.constant 0 : i32
    return %arg0, %c0_i32 : i32, i32
  }
  func.func @transform_1(%arg0: i32) -> (i32, i32) {
    %c0_i32 = arith.constant 0 : i32
    %c0_i32_0 = arith.constant 0 : i32
    %c0_i32_1 = arith.constant 0 : i32
    return %c0_i32, %c0_i32_0 : i32, i32
  }
  func.func @transform_2(%arg0: i32) -> (i32, i32) {
    %c0_i32 = arith.constant 0 : i32
    %c0_i32_0 = arith.constant 0 : i32
    %c0_i32_1 = arith.constant 0 : i32
    return %c0_i32, %c0_i32_0 : i32, i32
  }
  func.func @transform_3(%arg0: i32) -> (i32, i32) {
    %c0_i32 = arith.constant 0 : i32
    %c0_i32_0 = arith.constant 0 : i32
    %c0_i32_1 = arith.constant 0 : i32
    return %c0_i32, %c0_i32_0 : i32, i32
  }
  func.func @transform_4(%arg0: i32) -> (i32, i32) {
    %c0_i32 = arith.constant 0 : i32
    %c0_i32_0 = arith.constant 0 : i32
    %c0_i32_1 = arith.constant 0 : i32
    return %c0_i32, %c0_i32_0 : i32, i32
  }
  func.func @transform_5(%arg0: i32) -> (i32, i32) {
    %c0_i32 = arith.constant 0 : i32
    %c0_i32_0 = arith.constant 0 : i32
    %c0_i32_1 = arith.constant 0 : i32
    return %c0_i32, %c0_i32_0 : i32, i32
  }
  func.func @transform_6(%arg0: i32) -> (i32, i32) {
    %c0_i32 = arith.constant 0 : i32
    %c0_i32_0 = arith.constant 0 : i32
    %c0_i32_1 = arith.constant 0 : i32
    return %c0_i32, %c0_i32_0 : i32, i32
  }
  func.func @transform_7(%arg0: i32) -> (i32, i32) {
    %c0_i32 = arith.constant 0 : i32
    %c0_i32_0 = arith.constant 0 : i32
    %c0_i32_1 = arith.constant 0 : i32
    return %c0_i32, %c0_i32_0 : i32, i32
  }
  func.func @transform_8(%arg0: i32) -> (i32, i32) {
    %c0_i32 = arith.constant 0 : i32
    %c0_i32_0 = arith.constant 0 : i32
    %c0_i32_1 = arith.constant 0 : i32
    return %c0_i32, %c0_i32_0 : i32, i32
  }
  func.func @transform_9(%arg0: i32) -> (i32, i32) {
    %c0_i32 = arith.constant 0 : i32
    %c0_i32_0 = arith.constant 0 : i32
    return %arg0, %c0_i32 : i32, i32
  }
  func.func @transform_10(%arg0: i32) -> (i32, i32) {
    %c0_i32 = arith.constant 0 : i32
    %c0_i32_0 = arith.constant 0 : i32
    return %arg0, %c0_i32 : i32, i32
  }
}

</mosaic_0001>

<llo_original>
// kernel: tpu_custom_call.1
$region0: #{tpu_custom_call.1}
  #allocation0 [shape = 'u32[]', space=smem, size = 0x4, offset = 0x4, fixed_abs, tag = 'smem constant byte address 0x4 - core index']
  #allocation1 [shape = 'u32[144,128]{1,0:T(1,128)}', space=vmem, size = 0x12000, scoped, tag = 'internal scratch']
  %s0 = inlined_call_operand.hbm [shape: bf16[64,896], index: 0, kind: input, shape index: {}]
  %s1 = inlined_call_operand.hbm [shape: bf16[896,512], index: 1, kind: input, shape index: {}]
  %s2 = inlined_call_operand.vmem [shape: f32[1,512], index: 2, kind: input, shape index: {}]
  %s3 = inlined_call_operand.hbm [shape: bf16[512,128], index: 3, kind: input, shape index: {}]
  %s4 = inlined_call_operand.hbm [shape: f32[1,128], index: 4, kind: input, shape index: {}]
  %s5 = inlined_call_operand.hbm [shape: bf16[128,512], index: 5, kind: input, shape index: {}]
  %s6 = inlined_call_operand.vmem [shape: f32[1,512], index: 6, kind: input, shape index: {}]
  %s7 = inlined_call_operand.hbm [shape: bf16[512,896], index: 7, kind: input, shape index: {}]
  %s8 = inlined_call_operand.vmem [shape: f32[1,896], index: 8, kind: input, shape index: {}]
  %s9 = inlined_call_operand.hbm [shape: bf16[64,896], index: 9, kind: output, shape index: {0}]
  %s10 = inlined_call_operand.hbm [shape: bf16[64,128], index: 10, kind: output, shape index: {1}]
  %11 = xla_tuple %s9, %s10
  %s12 = sld [smem:[#allocation0]]
  $region78: #{tpu_custom_call.1} parent=0
    _
  %s14 = ssub.s32 1, %s12
  %s15 = scalar_select 0, %s14, %s12
  $region1: #{tpu_custom_call.1} parent=0
    #allocation2 [shape = 'u8[114688]{0}', space=vmem, size = 0x1c000, scoped, tag = 'input window, operand 0, single buffered']
    #allocation3 [shape = 's32[1]{0}', space=sflag, size = 0x4, scoped, tag = 'scoped memory for tpu_custom_call.1']
    #allocation4 [shape = 's32[1]{0}', space=sflag, size = 0x4, scoped, tag = 'scoped memory for tpu_custom_call.1']
    #allocation5 [shape = 'u8[917504]{0}', space=vmem, size = 0xe0000, scoped, tag = 'input window, operand 1, single buffered']
    #allocation6 [shape = 's32[1]{0}', space=sflag, size = 0x4, scoped, tag = 'scoped memory for tpu_custom_call.1']
    #allocation7 [shape = 'u8[131072]{0}', space=vmem, size = 0x20000, scoped, tag = 'input window, operand 3, single buffered']
    #allocation8 [shape = 'u8[512]{0}', space=vmem, size = 0x400, scoped, tag = 'input window, operand 4, single buffered']
    #allocation9 [shape = 's32[1]{0}', space=sflag, size = 0x4, scoped, tag = 'scoped memory for tpu_custom_call.1']
    #allocation10 [shape = 'u8[131072]{0}', space=vmem, size = 0x20000, scoped, tag = 'input window, operand 5, single buffered']
    #allocation11 [shape = 'u8[917504]{0}', space=vmem, size = 0xe0000, scoped, tag = 'input window, operand 7, single buffered']
    #allocation12 [shape = 's32[1]{0}', space=sflag, size = 0x4, scoped, tag = 'scoped memory for tpu_custom_call.1']
    #allocation13 [shape = 'u8[114688]{0}', space=vmem, size = 0x1c000, scoped, tag = 'output window, operand 0, single buffered']
    #allocation14 [shape = 'u8[16384]{0}', space=vmem, size = 0x4000, scoped, tag = 'output window, operand 1, single buffered']
    #allocation15 [shape = 's32[1]{0}', space=sflag, size = 0x4, scoped, tag = 'scoped memory for tpu_custom_call.1']
    %16 = vsyncpa [#allocation3], 0
    %17 = vsyncpa [#allocation6], 0
    %18 = vsyncpa [#allocation9], 0
    %19 = vsyncpa [#allocation12], 0
    %20 = vsyncpa [#allocation4], 0
    %21 = vsyncpa [#allocation15], 0
    // Predicated region
    $region2: #{tpu_custom_call.1} parent=1 // pred_check
      _
    $region3: #{tpu_custom_call.1} parent=1 // pred_check_branch
      %23 = sbr.rel (0) target = $region5
    $region4: #{tpu_custom_call.1} parent=1 // pred_region
      %s25 = ssub.s32 3584, 3584
      %26 = vsyncadd [#allocation3], %s25
      %s27 = sshll.u32 [#allocation2], 4
      %s28 = int_to_ptr.vmem [resolvable:$true] %s27
      %33 = dma.hbm_to_vmem [thread:$0]  %s0, 3584, %s28, [#allocation3], 448, 448, 28
    $region5: #{tpu_custom_call.1} parent=1 // pred_fallthru
      _
    // Predicated region
    $region6: #{tpu_custom_call.1} parent=1 // pred_check
      _
    $region7: #{tpu_custom_call.1} parent=1 // pred_check_branch
      %35 = sbr.rel (0) target = $region9
    $region8: #{tpu_custom_call.1} parent=1 // pred_region
      %s37 = ssub.s32 28672, 28672
      %38 = vsyncadd [#allocation6], %s37
      %s39 = sshll.u32 [#allocation5], 4
      %s40 = int_to_ptr.vmem [resolvable:$true] %s39
      %45 = dma.hbm_to_vmem [thread:$0]  %s1, 28672, %s40, [#allocation6], 256, 256, 16
    $region9: #{tpu_custom_call.1} parent=1 // pred_fallthru
      _
    // Predicated region
    $region10: #{tpu_custom_call.1} parent=1 // pred_check
      _
    $region11: #{tpu_custom_call.1} parent=1 // pred_check_branch
      %47 = sbr.rel (0) target = $region13
    $region12: #{tpu_custom_call.1} parent=1 // pred_region
      _
    $region13: #{tpu_custom_call.1} parent=1 // pred_fallthru
      _
    // Predicated region
    $region14: #{tpu_custom_call.1} parent=1 // pred_check
      _
    $region15: #{tpu_custom_call.1} parent=1 // pred_check_branch
      %49 = sbr.rel (0) target = $region17
    $region16: #{tpu_custom_call.1} parent=1 // pred_region
      %s51 = ssub.s32 4096, 4096
      %52 = vsyncadd [#allocation6], %s51
      %s53 = sshll.u32 [#allocation7], 4
      %s54 = int_to_ptr.vmem [resolvable:$true] %s53
      %59 = dma.hbm_to_vmem [thread:$0]  %s3, 4096, %s54, [#allocation6], 64, 64, 4
    $region17: #{tpu_custom_call.1} parent=1 // pred_fallthru
      _
    // Predicated region
    $region18: #{tpu_custom_call.1} parent=1 // pred_check
      _
    $region19: #{tpu_custom_call.1} parent=1 // pred_check_branch
      %61 = sbr.rel (0) target = $region21
    $region20: #{tpu_custom_call.1} parent=1 // pred_region
      %s63 = ssub.s32 16, 16
      %64 = vsyncadd [#allocation9], %s63
      %s66 = sshll.u32 [#allocation8], 4
      %s67 = int_to_ptr.vmem [resolvable:$true] %s66
      %69 = dma.hbm_to_vmem [thread:$0]  %s4, 16, %s67, [#allocation9]
    $region21: #{tpu_custom_call.1} parent=1 // pred_fallthru
      _
    // Predicated region
    $region22: #{tpu_custom_call.1} parent=1 // pred_check
      _
    $region23: #{tpu_custom_call.1} parent=1 // pred_check_branch
      %71 = sbr.rel (0) target = $region25
    $region24: #{tpu_custom_call.1} parent=1 // pred_region
      %s73 = ssub.s32 4096, 4096
      %74 = vsyncadd [#allocation9], %s73
      %s75 = sshll.u32 [#allocation10], 4
      %s76 = int_to_ptr.vmem [resolvable:$true] %s75
      %81 = dma.hbm_to_vmem [thread:$0]  %s5, 4096, %s76, [#allocation9], 256, 256, 16
    $region25: #{tpu_custom_call.1} parent=1 // pred_fallthru
      _
    // Predicated region
    $region26: #{tpu_custom_call.1} parent=1 // pred_check
      _
    $region27: #{tpu_custom_call.1} parent=1 // pred_check_branch
      %83 = sbr.rel (0) target = $region29
    $region28: #{tpu_custom_call.1} parent=1 // pred_region
      _
    $region29: #{tpu_custom_call.1} parent=1 // pred_fallthru
      _
    // Predicated region
    $region30: #{tpu_custom_call.1} parent=1 // pred_check
      _
    $region31: #{tpu_custom_call.1} parent=1 // pred_check_branch
      %85 = sbr.rel (0) target = $region33
    $region32: #{tpu_custom_call.1} parent=1 // pred_region
      %s87 = ssub.s32 28672, 28672
      %88 = vsyncadd [#allocation12], %s87
      %s89 = sshll.u32 [#allocation11], 4
      %s90 = int_to_ptr.vmem [resolvable:$true] %s89
      %95 = dma.hbm_to_vmem [thread:$0]  %s7, 28672, %s90, [#allocation12], 448, 448, 28
    $region33: #{tpu_custom_call.1} parent=1 // pred_fallthru
      _
    // Predicated region
    $region34: #{tpu_custom_call.1} parent=1 // pred_check
      _
    $region35: #{tpu_custom_call.1} parent=1 // pred_check_branch
      %97 = sbr.rel (0) target = $region37
    $region36: #{tpu_custom_call.1} parent=1 // pred_region
      _
    $region37: #{tpu_custom_call.1} parent=1 // pred_fallthru
      _
    // Predicated region
    $region38: #{tpu_custom_call.1} parent=1 // pred_check
      _
    $region39: #{tpu_custom_call.1} parent=1 // pred_check_branch
      %99 = sbr.rel (0) target = $region41
    $region40: #{tpu_custom_call.1} parent=1 // pred_region
      %100 = dma.done [#allocation3], 3584
    $region41: #{tpu_custom_call.1} parent=1 // pred_fallthru
      _
    // Predicated region
    $region42: #{tpu_custom_call.1} parent=1 // pred_check
      _
    $region43: #{tpu_custom_call.1} parent=1 // pred_check_branch
      %102 = sbr.rel (0) target = $region45
    $region44: #{tpu_custom_call.1} parent=1 // pred_region
      %103 = dma.done [#allocation6], 28672
    $region45: #{tpu_custom_call.1} parent=1 // pred_fallthru
      _
    // Predicated region
    $region46: #{tpu_custom_call.1} parent=1 // pred_check
      _
    $region47: #{tpu_custom_call.1} parent=1 // pred_check_branch
      %105 = sbr.rel (0) target = $region49
    $region48: #{tpu_custom_call.1} parent=1 // pred_region
      %106 = dma.done [#allocation6], 4096
    $region49: #{tpu_custom_call.1} parent=1 // pred_fallthru
      _
    // Predicated region
    $region50: #{tpu_custom_call.1} parent=1 // pred_check
      _
    $region51: #{tpu_custom_call.1} parent=1 // pred_check_branch
      %108 = sbr.rel (0) target = $region53
    $region52: #{tpu_custom_call.1} parent=1 // pred_region
      %109 = dma.done [#allocation9], 16
    $region53: #{tpu_custom_call.1} parent=1 // pred_fallthru
      _
    // Predicated region
    $region54: #{tpu_custom_call.1} parent=1 // pred_check
      _
    $region55: #{tpu_custom_call.1} parent=1 // pred_check_branch
      %111 = sbr.rel (0) target = $region57
    $region56: #{tpu_custom_call.1} parent=1 // pred_region
      %112 = dma.done [#allocation9], 4096
    $region57: #{tpu_custom_call.1} parent=1 // pred_fallthru
      _
    // Predicated region
    $region58: #{tpu_custom_call.1} parent=1 // pred_check
      _
    $region59: #{tpu_custom_call.1} parent=1 // pred_check_branch
      %114 = sbr.rel (0) target = $region61
    $region60: #{tpu_custom_call.1} parent=1 // pred_region
      %115 = dma.done [#allocation12], 28672
    $region61: #{tpu_custom_call.1} parent=1 // pred_fallthru
      _
    %v117 = vld [vmem:[#allocation2] sm:$0xff]
    %v118 = vld [vmem:[#allocation2 + $0x8] sm:$0xff]
    %v119 = vld [vmem:[#allocation2 + $0x10] sm:$0xff]
    %v120 = vld [vmem:[#allocation2 + $0x18] sm:$0xf]
    %v121 = vld [vmem:[#allocation2 + $0x1c] sm:$0xff]
    %v122 = vld [vmem:[#allocation2 + $0x24] sm:$0xff]
    %v123 = vld [vmem:[#allocation2 + $0x2c] sm:$0xff]
    %v124 = vld [vmem:[#allocation2 + $0x34] sm:$0xf]
    %v125 = vld [vmem:[#allocation2 + $0x38] sm:$0xff]
    %v126 = vld [vmem:[#allocation2 + $0x40] sm:$0xff]
    %v127 = vld [vmem:[#allocation2 + $0x48] sm:$0xff]
    %v128 = vld [vmem:[#allocation2 + $0x50] sm:$0xf]
    %v129 = vld [vmem:[#allocation2 + $0x54] sm:$0xff]
    %v130 = vld [vmem:[#allocation2 + $0x5c] sm:$0xff]
    %v131 = vld [vmem:[#allocation2 + $0x64] sm:$0xff]
    %v132 = vld [vmem:[#allocation2 + $0x6c] sm:$0xf]
    %v133 = vld [vmem:[#allocation2 + $0x70] sm:$0xff]
    %v134 = vld [vmem:[#allocation2 + $0x78] sm:$0xff]
    %v135 = vld [vmem:[#allocation2 + $0x80] sm:$0xff]
    %v136 = vld [vmem:[#allocation2 + $0x88] sm:$0xf]
    %v137 = vld [vmem:[#allocation2 + $0x8c] sm:$0xff]
    %v138 = vld [vmem:[#allocation2 + $0x94] sm:$0xff]
    %v139 = vld [vmem:[#allocation2 + $0x9c] sm:$0xff]
    %v140 = vld [vmem:[#allocation2 + $0xa4] sm:$0xf]
    %v141 = vld [vmem:[#allocation2 + $0xa8] sm:$0xff]
    %v142 = vld [vmem:[#allocation2 + $0xb0] sm:$0xff]
    %v143 = vld [vmem:[#allocation2 + $0xb8] sm:$0xff]
    %v144 = vld [vmem:[#allocation2 + $0xc0] sm:$0xf]
    %v145 = vld [vmem:[#allocation2 + $0xc4] sm:$0xff]
    %v146 = vld [vmem:[#allocation2 + $0xcc] sm:$0xff]
    %v147 = vld [vmem:[#allocation2 + $0xd4] sm:$0xff]
    %v148 = vld [vmem:[#allocation2 + $0xdc] sm:$0xf]
    %v149 = vld [vmem:[#allocation5] sm:$0xff]
    %v150 = vld [vmem:[#allocation5 + $0x8] sm:$0xff]
    %v151 = vld [vmem:[#allocation5 + $0x10] sm:$0xff]
    %v152 = vld [vmem:[#allocation5 + $0x18] sm:$0xff]
    %v153 = vld [vmem:[#allocation5 + $0x20] sm:$0xff]
    %v154 = vld [vmem:[#allocation5 + $0x28] sm:$0xff]
    %v155 = vld [vmem:[#allocation5 + $0x30] sm:$0xff]
    %v156 = vld [vmem:[#allocation5 + $0x38] sm:$0xff]
    %v157 = vld [vmem:[#allocation5 + $0x40] sm:$0xff]
    %v158 = vld [vmem:[#allocation5 + $0x48] sm:$0xff]
    %v159 = vld [vmem:[#allocation5 + $0x50] sm:$0xff]
    %v160 = vld [vmem:[#allocation5 + $0x58] sm:$0xff]
    %v161 = vld [vmem:[#allocation5 + $0x60] sm:$0xff]
    %v162 = vld [vmem:[#allocation5 + $0x68] sm:$0xff]
    %v163 = vld [vmem:[#allocation5 + $0x70] sm:$0xff]
    %v164 = vld [vmem:[#allocation5 + $0x78] sm:$0xff]
    %v165 = vld [vmem:[#allocation5 + $0x80] sm:$0xff]
    %v166 = vld [vmem:[#allocation5 + $0x88] sm:$0xff]
    %v167 = vld [vmem:[#allocation5 + $0x90] sm:$0xff]
    %v168 = vld [vmem:[#allocation5 + $0x98] sm:$0xff]
    %v169 = vld [vmem:[#allocation5 + $0xa0] sm:$0xff]
    %v170 = vld [vmem:[#allocation5 + $0xa8] sm:$0xff]
    %v171 = vld [vmem:[#allocation5 + $0xb0] sm:$0xff]
    %v172 = vld [vmem:[#allocation5 + $0xb8] sm:$0xff]
    %v173 = vld [vmem:[#allocation5 + $0xc0] sm:$0xff]
    %v174 = vld [vmem:[#allocation5 + $0xc8] sm:$0xff]
    %v175 = vld [vmem:[#allocation5 + $0xd0] sm:$0xff]
    %v176 = vld [vmem:[#allocation5 + $0xd8] sm:$0xff]
    %v177 = vld [vmem:[#allocation5 + $0xe0] sm:$0xff]
    %v178 = vld [vmem:[#allocation5 + $0xe8] sm:$0xff]
    %v179 = vld [vmem:[#allocation5 + $0xf0] sm:$0xff]
    %v180 = vld [vmem:[#allocation5 + $0xf8] sm:$0xff]
    %v181 = vld [vmem:[#allocation5 + $0x100] sm:$0xff]
    %v182 = vld [vmem:[#allocation5 + $0x108] sm:$0xff]
    %v183 = vld [vmem:[#allocation5 + $0x110] sm:$0xff]
    %v184 = vld [vmem:[#allocation5 + $0x118] sm:$0xff]
    %v185 = vld [vmem:[#allocation5 + $0x120] sm:$0xff]
    %v186 = vld [vmem:[#allocation5 + $0x128] sm:$0xff]
    %v187 = vld [vmem:[#allocation5 + $0x130] sm:$0xff]
    %v188 = vld [vmem:[#allocation5 + $0x138] sm:$0xff]
    %v189 = vld [vmem:[#allocation5 + $0x140] sm:$0xff]
    %v190 = vld [vmem:[#allocation5 + $0x148] sm:$0xff]
    %v191 = vld [vmem:[#allocation5 + $0x150] sm:$0xff]
    %v192 = vld [vmem:[#allocation5 + $0x158] sm:$0xff]
    %v193 = vld [vmem:[#allocation5 + $0x160] sm:$0xff]
    %v194 = vld [vmem:[#allocation5 + $0x168] sm:$0xff]
    %v195 = vld [vmem:[#allocation5 + $0x170] sm:$0xff]
    %v196 = vld [vmem:[#allocation5 + $0x178] sm:$0xff]
    %v197 = vld [vmem:[#allocation5 + $0x180] sm:$0xff]
    %v198 = vld [vmem:[#allocation5 + $0x188] sm:$0xff]
    %v199 = vld [vmem:[#allocation5 + $0x190] sm:$0xff]
    %v200 = vld [vmem:[#allocation5 + $0x198] sm:$0xff]
    %v201 = vld [vmem:[#allocation5 + $0x1a0] sm:$0xff]
    %v202 = vld [vmem:[#allocation5 + $0x1a8] sm:$0xff]
    %v203 = vld [vmem:[#allocation5 + $0x1b0] sm:$0xff]
    %v204 = vld [vmem:[#allocation5 + $0x1b8] sm:$0xff]
    %v205 = vld [vmem:[#allocation5 + $0x1c0] sm:$0xff]
    %v206 = vld [vmem:[#allocation5 + $0x1c8] sm:$0xff]
    %v207 = vld [vmem:[#allocation5 + $0x1d0] sm:$0xff]
    %v208 = vld [vmem:[#allocation5 + $0x1d8] sm:$0xff]
    %v209 = vld [vmem:[#allocation5 + $0x1e0] sm:$0xff]
    %v210 = vld [vmem:[#allocation5 + $0x1e8] sm:$0xff]
    %v211 = vld [vmem:[#allocation5 + $0x1f0] sm:$0xff]
    %v212 = vld [vmem:[#allocation5 + $0x1f8] sm:$0xff]
    %v213 = vld [vmem:[#allocation5 + $0x200] sm:$0xff]
    %v214 = vld [vmem:[#allocation5 + $0x208] sm:$0xff]
    %v215 = vld [vmem:[#allocation5 + $0x210] sm:$0xff]
    %v216 = vld [vmem:[#allocation5 + $0x218] sm:$0xff]
    %v217 = vld [vmem:[#allocation5 + $0x220] sm:$0xff]
    %v218 = vld [vmem:[#allocation5 + $0x228] sm:$0xff]
    %v219 = vld [vmem:[#allocation5 + $0x230] sm:$0xff]
    %v220 = vld [vmem:[#allocation5 + $0x238] sm:$0xff]
    %v221 = vld [vmem:[#allocation5 + $0x240] sm:$0xff]
    %v222 = vld [vmem:[#allocation5 + $0x248] sm:$0xff]
    %v223 = vld [vmem:[#allocation5 + $0x250] sm:$0xff]
    %v224 = vld [vmem:[#allocation5 + $0x258] sm:$0xff]
    %v225 = vld [vmem:[#allocation5 + $0x260] sm:$0xff]
    %v226 = vld [vmem:[#allocation5 + $0x268] sm:$0xff]
    %v227 = vld [vmem:[#allocation5 + $0x270] sm:$0xff]
    %v228 = vld [vmem:[#allocation5 + $0x278] sm:$0xff]
    %v229 = vld [vmem:[#allocation5 + $0x280] sm:$0xff]
    %v230 = vld [vmem:[#allocation5 + $0x288] sm:$0xff]
    %v231 = vld [vmem:[#allocation5 + $0x290] sm:$0xff]
    %v232 = vld [vmem:[#allocation5 + $0x298] sm:$0xff]
    %v233 = vld [vmem:[#allocation5 + $0x2a0] sm:$0xff]
    %v234 = vld [vmem:[#allocation5 + $0x2a8] sm:$0xff]
    %v235 = vld [vmem:[#allocation5 + $0x2b0] sm:$0xff]
    %v236 = vld [vmem:[#allocation5 + $0x2b8] sm:$0xff]
    %v237 = vld [vmem:[#allocation5 + $0x2c0] sm:$0xff]
    %v238 = vld [vmem:[#allocation5 + $0x2c8] sm:$0xff]
    %v239 = vld [vmem:[#allocation5 + $0x2d0] sm:$0xff]
    %v240 = vld [vmem:[#allocation5 + $0x2d8] sm:$0xff]
    %v241 = vld [vmem:[#allocation5 + $0x2e0] sm:$0xff]
    %v242 = vld [vmem:[#allocation5 + $0x2e8] sm:$0xff]
    %v243 = vld [vmem:[#allocation5 + $0x2f0] sm:$0xff]
    %v244 = vld [vmem:[#allocation5 + $0x2f8] sm:$0xff]
    %v245 = vld [vmem:[#allocation5 + $0x300] sm:$0xff]
    %v246 = vld [vmem:[#allocation5 + $0x308] sm:$0xff]
    %v247 = vld [vmem:[#allocation5 + $0x310] sm:$0xff]
    %v248 = vld [vmem:[#allocation5 + $0x318] sm:$0xff]
    %v249 = vld [vmem:[#allocation5 + $0x320] sm:$0xff]
    %v250 = vld [vmem:[#allocation5 + $0x328] sm:$0xff]
    %v251 = vld [vmem:[#allocation5 + $0x330] sm:$0xff]
    %v252 = vld [vmem:[#allocation5 + $0x338] sm:$0xff]
    %v253 = vld [vmem:[#allocation5 + $0x340] sm:$0xff]
    %v254 = vld [vmem:[#allocation5 + $0x348] sm:$0xff]
    %v255 = vld [vmem:[#allocation5 + $0x350] sm:$0xff]
    %v256 = vld [vmem:[#allocation5 + $0x358] sm:$0xff]
    %v257 = vld [vmem:[#allocation5 + $0x360] sm:$0xff]
    %v258 = vld [vmem:[#allocation5 + $0x368] sm:$0xff]
    %v259 = vld [vmem:[#allocation5 + $0x370] sm:$0xff]
    %v260 = vld [vmem:[#allocation5 + $0x378] sm:$0xff]
    %v261 = vld [vmem:[#allocation5 + $0x380] sm:$0xff]
    %v262 = vld [vmem:[#allocation5 + $0x388] sm:$0xff]
    %v263 = vld [vmem:[#allocation5 + $0x390] sm:$0xff]
    %v264 = vld [vmem:[#allocation5 + $0x398] sm:$0xff]
    %v265 = vld [vmem:[#allocation5 + $0x3a0] sm:$0xff]
    %v266 = vld [vmem:[#allocation5 + $0x3a8] sm:$0xff]
    %v267 = vld [vmem:[#allocation5 + $0x3b0] sm:$0xff]
    %v268 = vld [vmem:[#allocation5 + $0x3b8] sm:$0xff]
    %v269 = vld [vmem:[#allocation5 + $0x3c0] sm:$0xff]
    %v270 = vld [vmem:[#allocation5 + $0x3c8] sm:$0xff]
    %v271 = vld [vmem:[#allocation5 + $0x3d0] sm:$0xff]
    %v272 = vld [vmem:[#allocation5 + $0x3d8] sm:$0xff]
    %v273 = vld [vmem:[#allocation5 + $0x3e0] sm:$0xff]
    %v274 = vld [vmem:[#allocation5 + $0x3e8] sm:$0xff]
    %v275 = vld [vmem:[#allocation5 + $0x3f0] sm:$0xff]
    %v276 = vld [vmem:[#allocation5 + $0x3f8] sm:$0xff]
    %v277 = vld [vmem:[#allocation5 + $0x400] sm:$0xff]
    %v278 = vld [vmem:[#allocation5 + $0x408] sm:$0xff]
    %v279 = vld [vmem:[#allocation5 + $0x410] sm:$0xff]
    %v280 = vld [vmem:[#allocation5 + $0x418] sm:$0xff]
    %v281 = vld [vmem:[#allocation5 + $0x420] sm:$0xff]
    %v282 = vld [vmem:[#allocation5 + $0x428] sm:$0xff]
    %v283 = vld [vmem:[#allocation5 + $0x430] sm:$0xff]
    %v284 = vld [vmem:[#allocation5 + $0x438] sm:$0xff]
    %v285 = vld [vmem:[#allocation5 + $0x440] sm:$0xff]
    %v286 = vld [vmem:[#allocation5 + $0x448] sm:$0xff]
    %v287 = vld [vmem:[#allocation5 + $0x450] sm:$0xff]
    %v288 = vld [vmem:[#allocation5 + $0x458] sm:$0xff]
    %v289 = vld [vmem:[#allocation5 + $0x460] sm:$0xff]
    %v290 = vld [vmem:[#allocation5 + $0x468] sm:$0xff]
    %v291 = vld [vmem:[#allocation5 + $0x470] sm:$0xff]
    %v292 = vld [vmem:[#allocation5 + $0x478] sm:$0xff]
    %v293 = vld [vmem:[#allocation5 + $0x480] sm:$0xff]
    %v294 = vld [vmem:[#allocation5 + $0x488] sm:$0xff]
    %v295 = vld [vmem:[#allocation5 + $0x490] sm:$0xff]
    %v296 = vld [vmem:[#allocation5 + $0x498] sm:$0xff]
    %v297 = vld [vmem:[#allocation5 + $0x4a0] sm:$0xff]
    %v298 = vld [vmem:[#allocation5 + $0x4a8] sm:$0xff]
    %v299 = vld [vmem:[#allocation5 + $0x4b0] sm:$0xff]
    %v300 = vld [vmem:[#allocation5 + $0x4b8] sm:$0xff]
    %v301 = vld [vmem:[#allocation5 + $0x4c0] sm:$0xff]
    %v302 = vld [vmem:[#allocation5 + $0x4c8] sm:$0xff]
    %v303 = vld [vmem:[#allocation5 + $0x4d0] sm:$0xff]
    %v304 = vld [vmem:[#allocation5 + $0x4d8] sm:$0xff]
    %v305 = vld [vmem:[#allocation5 + $0x4e0] sm:$0xff]
    %v306 = vld [vmem:[#allocation5 + $0x4e8] sm:$0xff]
    %v307 = vld [vmem:[#allocation5 + $0x4f0] sm:$0xff]
    %v308 = vld [vmem:[#allocation5 + $0x4f8] sm:$0xff]
    %v309 = vld [vmem:[#allocation5 + $0x500] sm:$0xff]
    %v310 = vld [vmem:[#allocation5 + $0x508] sm:$0xff]
    %v311 = vld [vmem:[#allocation5 + $0x510] sm:$0xff]
    %v312 = vld [vmem:[#allocation5 + $0x518] sm:$0xff]
    %v313 = vld [vmem:[#allocation5 + $0x520] sm:$0xff]
    %v314 = vld [vmem:[#allocation5 + $0x528] sm:$0xff]
    %v315 = vld [vmem:[#allocation5 + $0x530] sm:$0xff]
    %v316 = vld [vmem:[#allocation5 + $0x538] sm:$0xff]
    %v317 = vld [vmem:[#allocation5 + $0x540] sm:$0xff]
    %v318 = vld [vmem:[#allocation5 + $0x548] sm:$0xff]
    %v319 = vld [vmem:[#allocation5 + $0x550] sm:$0xff]
    %v320 = vld [vmem:[#allocation5 + $0x558] sm:$0xff]
    %v321 = vld [vmem:[#allocation5 + $0x560] sm:$0xff]
    %v322 = vld [vmem:[#allocation5 + $0x568] sm:$0xff]
    %v323 = vld [vmem:[#allocation5 + $0x570] sm:$0xff]
    %v324 = vld [vmem:[#allocation5 + $0x578] sm:$0xff]
    %v325 = vld [vmem:[#allocation5 + $0x580] sm:$0xff]
    %v326 = vld [vmem:[#allocation5 + $0x588] sm:$0xff]
    %v327 = vld [vmem:[#allocation5 + $0x590] sm:$0xff]
    %v328 = vld [vmem:[#allocation5 + $0x598] sm:$0xff]
    %v329 = vld [vmem:[#allocation5 + $0x5a0] sm:$0xff]
    %v330 = vld [vmem:[#allocation5 + $0x5a8] sm:$0xff]
    %v331 = vld [vmem:[#allocation5 + $0x5b0] sm:$0xff]
    %v332 = vld [vmem:[#allocation5 + $0x5b8] sm:$0xff]
    %v333 = vld [vmem:[#allocation5 + $0x5c0] sm:$0xff]
    %v334 = vld [vmem:[#allocation5 + $0x5c8] sm:$0xff]
    %v335 = vld [vmem:[#allocation5 + $0x5d0] sm:$0xff]
    %v336 = vld [vmem:[#allocation5 + $0x5d8] sm:$0xff]
    %v337 = vld [vmem:[#allocation5 + $0x5e0] sm:$0xff]
    %v338 = vld [vmem:[#allocation5 + $0x5e8] sm:$0xff]
    %v339 = vld [vmem:[#allocation5 + $0x5f0] sm:$0xff]
    %v340 = vld [vmem:[#allocation5 + $0x5f8] sm:$0xff]
    %v341 = vld [vmem:[#allocation5 + $0x600] sm:$0xff]
    %v342 = vld [vmem:[#allocation5 + $0x608] sm:$0xff]
    %v343 = vld [vmem:[#allocation5 + $0x610] sm:$0xff]
    %v344 = vld [vmem:[#allocation5 + $0x618] sm:$0xff]
    %v345 = vld [vmem:[#allocation5 + $0x620] sm:$0xff]
    %v346 = vld [vmem:[#allocation5 + $0x628] sm:$0xff]
    %v347 = vld [vmem:[#allocation5 + $0x630] sm:$0xff]
    %v348 = vld [vmem:[#allocation5 + $0x638] sm:$0xff]
    %v349 = vld [vmem:[#allocation5 + $0x640] sm:$0xff]
    %v350 = vld [vmem:[#allocation5 + $0x648] sm:$0xff]
    %v351 = vld [vmem:[#allocation5 + $0x650] sm:$0xff]
    %v352 = vld [vmem:[#allocation5 + $0x658] sm:$0xff]
    %v353 = vld [vmem:[#allocation5 + $0x660] sm:$0xff]
    %v354 = vld [vmem:[#allocation5 + $0x668] sm:$0xff]
    %v355 = vld [vmem:[#allocation5 + $0x670] sm:$0xff]
    %v356 = vld [vmem:[#allocation5 + $0x678] sm:$0xff]
    %v357 = vld [vmem:[#allocation5 + $0x680] sm:$0xff]
    %v358 = vld [vmem:[#allocation5 + $0x688] sm:$0xff]
    %v359 = vld [vmem:[#allocation5 + $0x690] sm:$0xff]
    %v360 = vld [vmem:[#allocation5 + $0x698] sm:$0xff]
    %v361 = vld [vmem:[#allocation5 + $0x6a0] sm:$0xff]
    %v362 = vld [vmem:[#allocation5 + $0x6a8] sm:$0xff]
    %v363 = vld [vmem:[#allocation5 + $0x6b0] sm:$0xff]
    %v364 = vld [vmem:[#allocation5 + $0x6b8] sm:$0xff]
    %v365 = vld [vmem:[#allocation5 + $0x6c0] sm:$0xff]
    %v366 = vld [vmem:[#allocation5 + $0x6c8] sm:$0xff]
    %v367 = vld [vmem:[#allocation5 + $0x6d0] sm:$0xff]
    %v368 = vld [vmem:[#allocation5 + $0x6d8] sm:$0xff]
    %v369 = vld [vmem:[#allocation5 + $0x6e0] sm:$0xff]
    %v370 = vld [vmem:[#allocation5 + $0x6e8] sm:$0xff]
    %v371 = vld [vmem:[#allocation5 + $0x6f0] sm:$0xff]
    %v372 = vld [vmem:[#allocation5 + $0x6f8] sm:$0xff]
    %v373 = vld [vmem:[%s2] sm:$0xf]
    %v375 = vlaneseq
    %v376 = vshrl.u32 %v375, 7
    %v377 = vsub.s32 0, %v376
    %v378 = vrot.slane %v373, %v377
    %v379 = vlaneseq
    %v380 = vshrl.u32 %v379, 7
    %v381 = vsub.s32 1, %v380
    %v382 = vrot.slane %v373, %v381
    %v383 = vlaneseq
    %v384 = vshrl.u32 %v383, 7
    %v385 = vsub.s32 2, %v384
    %v386 = vrot.slane %v373, %v385
    %v387 = vlaneseq
    %v388 = vshrl.u32 %v387, 7
    %v389 = vsub.s32 3, %v388
    %v390 = vrot.slane %v373, %v389
    %v427 = vunpack.c.l.b16 %v117
    %v428 = vunpack.c.h.b16 %v117
    %v429 = vunpack.c.l.b16 %v118
    %v430 = vunpack.c.h.b16 %v118
    %v431 = vunpack.c.l.b16 %v119
    %v432 = vunpack.c.h.b16 %v119
    %v433 = vunpack.c.l.b16 %v120
    %v434 = vunpack.c.l.b16 %v121
    %v435 = vunpack.c.h.b16 %v121
    %v436 = vunpack.c.l.b16 %v122
    %v437 = vunpack.c.h.b16 %v122
    %v438 = vunpack.c.l.b16 %v123
    %v439 = vunpack.c.h.b16 %v123
    %v440 = vunpack.c.l.b16 %v124
    %v441 = vunpack.c.l.b16 %v125
    %v442 = vunpack.c.h.b16 %v125
    %v443 = vunpack.c.l.b16 %v126
    %v444 = vunpack.c.h.b16 %v126
    %v445 = vunpack.c.l.b16 %v127
    %v446 = vunpack.c.h.b16 %v127
    %v447 = vunpack.c.l.b16 %v128
    %v448 = vunpack.c.l.b16 %v129
    %v449 = vunpack.c.h.b16 %v129
    %v450 = vunpack.c.l.b16 %v130
    %v451 = vunpack.c.h.b16 %v130
    %v452 = vunpack.c.l.b16 %v131
    %v453 = vunpack.c.h.b16 %v131
    %v454 = vunpack.c.l.b16 %v132
    %v455 = vunpack.c.l.b16 %v133
    %v456 = vunpack.c.h.b16 %v133
    %v457 = vunpack.c.l.b16 %v134
    %v458 = vunpack.c.h.b16 %v134
    %v459 = vunpack.c.l.b16 %v135
    %v460 = vunpack.c.h.b16 %v135
    %v461 = vunpack.c.l.b16 %v136
    %v462 = vunpack.c.l.b16 %v137
    %v463 = vunpack.c.h.b16 %v137
    %v464 = vunpack.c.l.b16 %v138
    %v465 = vunpack.c.h.b16 %v138
    %v466 = vunpack.c.l.b16 %v139
    %v467 = vunpack.c.h.b16 %v139
    %v468 = vunpack.c.l.b16 %v140
    %v469 = vunpack.c.l.b16 %v141
    %v470 = vunpack.c.h.b16 %v141
    %v471 = vunpack.c.l.b16 %v142
    %v472 = vunpack.c.h.b16 %v142
    %v473 = vunpack.c.l.b16 %v143
    %v474 = vunpack.c.h.b16 %v143
    %v475 = vunpack.c.l.b16 %v144
    %v476 = vunpack.c.l.b16 %v145
    %v477 = vunpack.c.h.b16 %v145
    %v478 = vunpack.c.l.b16 %v146
    %v479 = vunpack.c.h.b16 %v146
    %v480 = vunpack.c.l.b16 %v147
    %v481 = vunpack.c.h.b16 %v147
    %v482 = vunpack.c.l.b16 %v148
    %v483 = vpack.c.b16 %v434, %v427
    %v484 = vpack.c.b16 %v435, %v428
    %v485 = vpack.c.b16 %v436, %v429
    %v486 = vpack.c.b16 %v437, %v430
    %v487 = vpack.c.b16 %v438, %v431
    %v488 = vpack.c.b16 %v439, %v432
    %v489 = vpack.c.b16 %v440, %v433
    %v490 = vpack.c.b16 %v448, %v441
    %v491 = vpack.c.b16 %v449, %v442
    %v492 = vpack.c.b16 %v450, %v443
    %v493 = vpack.c.b16 %v451, %v444
    %v494 = vpack.c.b16 %v452, %v445
    %v495 = vpack.c.b16 %v453, %v446
    %v496 = vpack.c.b16 %v454, %v447
    %v497 = vpack.c.b16 %v462, %v455
    %v498 = vpack.c.b16 %v463, %v456
    %v499 = vpack.c.b16 %v464, %v457
    %v500 = vpack.c.b16 %v465, %v458
    %v501 = vpack.c.b16 %v466, %v459
    %v502 = vpack.c.b16 %v467, %v460
    %v503 = vpack.c.b16 %v468, %v461
    %v504 = vpack.c.b16 %v476, %v469
    %v505 = vpack.c.b16 %v477, %v470
    %v506 = vpack.c.b16 %v478, %v471
    %v507 = vpack.c.b16 %v479, %v472
    %v508 = vpack.c.b16 %v480, %v473
    %v509 = vpack.c.b16 %v481, %v474
    %v510 = vpack.c.b16 %v482, %v475
    %v763 = vunpack.c.l.b16 %v149
    %v764 = vunpack.c.h.b16 %v149
    %v765 = vunpack.c.l.b16 %v150
    %v766 = vunpack.c.h.b16 %v150
    %v767 = vunpack.c.l.b16 %v151
    %v768 = vunpack.c.h.b16 %v151
    %v769 = vunpack.c.l.b16 %v152
    %v770 = vunpack.c.h.b16 %v152
    %v771 = vunpack.c.l.b16 %v153
    %v772 = vunpack.c.h.b16 %v153
    %v773 = vunpack.c.l.b16 %v154
    %v774 = vunpack.c.h.b16 %v154
    %v775 = vunpack.c.l.b16 %v155
    %v776 = vunpack.c.h.b16 %v155
    %v777 = vunpack.c.l.b16 %v156
    %v778 = vunpack.c.h.b16 %v156
    %v779 = vunpack.c.l.b16 %v157
    %v780 = vunpack.c.h.b16 %v157
    %v781 = vunpack.c.l.b16 %v158
    %v782 = vunpack.c.h.b16 %v158
    %v783 = vunpack.c.l.b16 %v159
    %v784 = vunpack.c.h.b16 %v159
    %v785 = vunpack.c.l.b16 %v160
    %v786 = vunpack.c.h.b16 %v160
    %v787 = vunpack.c.l.b16 %v161
    %v788 = vunpack.c.h.b16 %v161
    %v789 = vunpack.c.l.b16 %v162
    %v790 = vunpack.c.h.b16 %v162
    %v791 = vunpack.c.l.b16 %v163
    %v792 = vunpack.c.h.b16 %v163
    %v793 = vunpack.c.l.b16 %v164
    %v794 = vunpack.c.h.b16 %v164
    %v795 = vunpack.c.l.b16 %v165
    %v796 = vunpack.c.h.b16 %v165
    %v797 = vunpack.c.l.b16 %v166
    %v798 = vunpack.c.h.b16 %v166
    %v799 = vunpack.c.l.b16 %v167
    %v800 = vunpack.c.h.b16 %v167
    %v801 = vunpack.c.l.b16 %v168
    %v802 = vunpack.c.h.b16 %v168
    %v803 = vunpack.c.l.b16 %v169
    %v804 = vunpack.c.h.b16 %v169
    %v805 = vunpack.c.l.b16 %v170
    %v806 = vunpack.c.h.b16 %v170
    %v807 = vunpack.c.l.b16 %v171
    %v808 = vunpack.c.h.b16 %v171
    %v809 = vunpack.c.l.b16 %v172
    %v810 = vunpack.c.h.b16 %v172
    %v811 = vunpack.c.l.b16 %v173
    %v812 = vunpack.c.h.b16 %v173
    %v813 = vunpack.c.l.b16 %v174
    %v814 = vunpack.c.h.b16 %v174
    %v815 = vunpack.c.l.b16 %v175
    %v816 = vunpack.c.h.b16 %v175
    %v817 = vunpack.c.l.b16 %v176
    %v818 = vunpack.c.h.b16 %v176
    %v819 = vunpack.c.l.b16 %v177
    %v820 = vunpack.c.h.b16 %v177
    %v821 = vunpack.c.l.b16 %v178
    %v822 = vunpack.c.h.b16 %v178
    %v823 = vunpack.c.l.b16 %v179
    %v824 = vunpack.c.h.b16 %v179
    %v825 = vunpack.c.l.b16 %v180
    %v826 = vunpack.c.h.b16 %v180
    %v827 = vunpack.c.l.b16 %v181
    %v828 = vunpack.c.h.b16 %v181
    %v829 = vunpack.c.l.b16 %v182
    %v830 = vunpack.c.h.b16 %v182
    %v831 = vunpack.c.l.b16 %v183
    %v832 = vunpack.c.h.b16 %v183
    %v833 = vunpack.c.l.b16 %v184
    %v834 = vunpack.c.h.b16 %v184
    %v835 = vunpack.c.l.b16 %v185
    %v836 = vunpack.c.h.b16 %v185
    %v837 = vunpack.c.l.b16 %v186
    %v838 = vunpack.c.h.b16 %v186
    %v839 = vunpack.c.l.b16 %v187
    %v840 = vunpack.c.h.b16 %v187
    %v841 = vunpack.c.l.b16 %v188
    %v842 = vunpack.c.h.b16 %v188
    %v843 = vunpack.c.l.b16 %v189
    %v844 = vunpack.c.h.b16 %v189
    %v845 = vunpack.c.l.b16 %v190
    %v846 = vunpack.c.h.b16 %v190
    %v847 = vunpack.c.l.b16 %v191
    %v848 = vunpack.c.h.b16 %v191
    %v849 = vunpack.c.l.b16 %v192
    %v850 = vunpack.c.h.b16 %v192
    %v851 = vunpack.c.l.b16 %v193
    %v852 = vunpack.c.h.b16 %v193
    %v853 = vunpack.c.l.b16 %v194
    %v854 = vunpack.c.h.b16 %v194
    %v855 = vunpack.c.l.b16 %v195
    %v856 = vunpack.c.h.b16 %v195
    %v857 = vunpack.c.l.b16 %v196
    %v858 = vunpack.c.h.b16 %v196
    %v859 = vunpack.c.l.b16 %v197
    %v860 = vunpack.c.h.b16 %v197
    %v861 = vunpack.c.l.b16 %v198
    %v862 = vunpack.c.h.b16 %v198
    %v863 = vunpack.c.l.b16 %v199
    %v864 = vunpack.c.h.b16 %v199
    %v865 = vunpack.c.l.b16 %v200
    %v866 = vunpack.c.h.b16 %v200
    %v867 = vunpack.c.l.b16 %v201
    %v868 = vunpack.c.h.b16 %v201
    %v869 = vunpack.c.l.b16 %v202
    %v870 = vunpack.c.h.b16 %v202
    %v871 = vunpack.c.l.b16 %v203
    %v872 = vunpack.c.h.b16 %v203
    %v873 = vunpack.c.l.b16 %v204
    %v874 = vunpack.c.h.b16 %v204
    %v875 = vunpack.c.l.b16 %v205
    %v876 = vunpack.c.h.b16 %v205
    %v877 = vunpack.c.l.b16 %v206
    %v878 = vunpack.c.h.b16 %v206
    %v879 = vunpack.c.l.b16 %v207
    %v880 = vunpack.c.h.b16 %v207
    %v881 = vunpack.c.l.b16 %v208
    %v882 = vunpack.c.h.b16 %v208
    %v883 = vunpack.c.l.b16 %v209
    %v884 = vunpack.c.h.b16 %v209
    %v885 = vunpack.c.l.b16 %v210
    %v886 = vunpack.c.h.b16 %v210
    %v887 = vunpack.c.l.b16 %v211
    %v888 = vunpack.c.h.b16 %v211
    %v889 = vunpack.c.l.b16 %v212
    %v890 = vunpack.c.h.b16 %v212
    %v891 = vunpack.c.l.b16 %v213
    %v892 = vunpack.c.h.b16 %v213
    %v893 = vunpack.c.l.b16 %v214
    %v894 = vunpack.c.h.b16 %v214
    %v895 = vunpack.c.l.b16 %v215
    %v896 = vunpack.c.h.b16 %v215
    %v897 = vunpack.c.l.b16 %v216
    %v898 = vunpack.c.h.b16 %v216
    %v899 = vunpack.c.l.b16 %v217
    %v900 = vunpack.c.h.b16 %v217
    %v901 = vunpack.c.l.b16 %v218
    %v902 = vunpack.c.h.b16 %v218
    %v903 = vunpack.c.l.b16 %v219
    %v904 = vunpack.c.h.b16 %v219
    %v905 = vunpack.c.l.b16 %v220
    %v906 = vunpack.c.h.b16 %v220
    %v907 = vunpack.c.l.b16 %v221
    %v908 = vunpack.c.h.b16 %v221
    %v909 = vunpack.c.l.b16 %v222
    %v910 = vunpack.c.h.b16 %v222
    %v911 = vunpack.c.l.b16 %v223
    %v912 = vunpack.c.h.b16 %v223
    %v913 = vunpack.c.l.b16 %v224
    %v914 = vunpack.c.h.b16 %v224
    %v915 = vunpack.c.l.b16 %v225
    %v916 = vunpack.c.h.b16 %v225
    %v917 = vunpack.c.l.b16 %v226
    %v918 = vunpack.c.h.b16 %v226
    %v919 = vunpack.c.l.b16 %v227
    %v920 = vunpack.c.h.b16 %v227
    %v921 = vunpack.c.l.b16 %v228
    %v922 = vunpack.c.h.b16 %v228
    %v923 = vunpack.c.l.b16 %v229
    %v924 = vunpack.c.h.b16 %v229
    %v925 = vunpack.c.l.b16 %v230
    %v926 = vunpack.c.h.b16 %v230
    %v927 = vunpack.c.l.b16 %v231
    %v928 = vunpack.c.h.b16 %v231
    %v929 = vunpack.c.l.b16 %v232
    %v930 = vunpack.c.h.b16 %v232
    %v931 = vunpack.c.l.b16 %v233
    %v932 = vunpack.c.h.b16 %v233
    %v933 = vunpack.c.l.b16 %v234
    %v934 = vunpack.c.h.b16 %v234
    %v935 = vunpack.c.l.b16 %v235
    %v936 = vunpack.c.h.b16 %v235
    %v937 = vunpack.c.l.b16 %v236
    %v938 = vunpack.c.h.b16 %v236
    %v939 = vunpack.c.l.b16 %v237
    %v940 = vunpack.c.h.b16 %v237
    %v941 = vunpack.c.l.b16 %v238
    %v942 = vunpack.c.h.b16 %v238
    %v943 = vunpack.c.l.b16 %v239
    %v944 = vunpack.c.h.b16 %v239
    %v945 = vunpack.c.l.b16 %v240
    %v946 = vunpack.c.h.b16 %v240
    %v947 = vunpack.c.l.b16 %v241
    %v948 = vunpack.c.h.b16 %v241
    %v949 = vunpack.c.l.b16 %v242
    %v950 = vunpack.c.h.b16 %v242
    %v951 = vunpack.c.l.b16 %v243
    %v952 = vunpack.c.h.b16 %v243
    %v953 = vunpack.c.l.b16 %v244
    %v954 = vunpack.c.h.b16 %v244
    %v955 = vunpack.c.l.b16 %v245
    %v956 = vunpack.c.h.b16 %v245
    %v957 = vunpack.c.l.b16 %v246
    %v958 = vunpack.c.h.b16 %v246
    %v959 = vunpack.c.l.b16 %v247
    %v960 = vunpack.c.h.b16 %v247
    %v961 = vunpack.c.l.b16 %v248
    %v962 = vunpack.c.h.b16 %v248
    %v963 = vunpack.c.l.b16 %v249
    %v964 = vunpack.c.h.b16 %v249
    %v965 = vunpack.c.l.b16 %v250
    %v966 = vunpack.c.h.b16 %v250
    %v967 = vunpack.c.l.b16 %v251
    %v968 = vunpack.c.h.b16 %v251
    %v969 = vunpack.c.l.b16 %v252
    %v970 = vunpack.c.h.b16 %v252
    %v971 = vunpack.c.l.b16 %v253
    %v972 = vunpack.c.h.b16 %v253
    %v973 = vunpack.c.l.b16 %v254
    %v974 = vunpack.c.h.b16 %v254
    %v975 = vunpack.c.l.b16 %v255
    %v976 = vunpack.c.h.b16 %v255
    %v977 = vunpack.c.l.b16 %v256
    %v978 = vunpack.c.h.b16 %v256
    %v979 = vunpack.c.l.b16 %v257
    %v980 = vunpack.c.h.b16 %v257
    %v981 = vunpack.c.l.b16 %v258
    %v982 = vunpack.c.h.b16 %v258
    %v983 = vunpack.c.l.b16 %v259
    %v984 = vunpack.c.h.b16 %v259
    %v985 = vunpack.c.l.b16 %v260
    %v986 = vunpack.c.h.b16 %v260
    %v987 = vunpack.c.l.b16 %v261
    %v988 = vunpack.c.h.b16 %v261
    %v989 = vunpack.c.l.b16 %v262
    %v990 = vunpack.c.h.b16 %v262
    %v991 = vunpack.c.l.b16 %v263
    %v992 = vunpack.c.h.b16 %v263
    %v993 = vunpack.c.l.b16 %v264
    %v994 = vunpack.c.h.b16 %v264
    %v995 = vunpack.c.l.b16 %v265
    %v996 = vunpack.c.h.b16 %v265
    %v997 = vunpack.c.l.b16 %v266
    %v998 = vunpack.c.h.b16 %v266
    %v999 = vunpack.c.l.b16 %v267
    %v1000 = vunpack.c.h.b16 %v267
    %v1001 = vunpack.c.l.b16 %v268
    %v1002 = vunpack.c.h.b16 %v268
    %v1003 = vunpack.c.l.b16 %v269
    %v1004 = vunpack.c.h.b16 %v269
    %v1005 = vunpack.c.l.b16 %v270
    %v1006 = vunpack.c.h.b16 %v270
    %v1007 = vunpack.c.l.b16 %v271
    %v1008 = vunpack.c.h.b16 %v271
    %v1009 = vunpack.c.l.b16 %v272
    %v1010 = vunpack.c.h.b16 %v272
    %v1011 = vunpack.c.l.b16 %v273
    %v1012 = vunpack.c.h.b16 %v273
    %v1013 = vunpack.c.l.b16 %v274
    %v1014 = vunpack.c.h.b16 %v274
    %v1015 = vunpack.c.l.b16 %v275
    %v1016 = vunpack.c.h.b16 %v275
    %v1017 = vunpack.c.l.b16 %v276
    %v1018 = vunpack.c.h.b16 %v276
    %v1019 = vunpack.c.l.b16 %v277
    %v1020 = vunpack.c.h.b16 %v277
    %v1021 = vunpack.c.l.b16 %v278
    %v1022 = vunpack.c.h.b16 %v278
    %v1023 = vunpack.c.l.b16 %v279
    %v1024 = vunpack.c.h.b16 %v279
    %v1025 = vunpack.c.l.b16 %v280
    %v1026 = vunpack.c.h.b16 %v280
    %v1027 = vunpack.c.l.b16 %v281
    %v1028 = vunpack.c.h.b16 %v281
    %v1029 = vunpack.c.l.b16 %v282
    %v1030 = vunpack.c.h.b16 %v282
    %v1031 = vunpack.c.l.b16 %v283
    %v1032 = vunpack.c.h.b16 %v283
    %v1033 = vunpack.c.l.b16 %v284
    %v1034 = vunpack.c.h.b16 %v284
    %v1035 = vunpack.c.l.b16 %v285
    %v1036 = vunpack.c.h.b16 %v285
    %v1037 = vunpack.c.l.b16 %v286
    %v1038 = vunpack.c.h.b16 %v286
    %v1039 = vunpack.c.l.b16 %v287
    %v1040 = vunpack.c.h.b16 %v287
    %v1041 = vunpack.c.l.b16 %v288
    %v1042 = vunpack.c.h.b16 %v288
    %v1043 = vunpack.c.l.b16 %v289
    %v1044 = vunpack.c.h.b16 %v289
    %v1045 = vunpack.c.l.b16 %v290
    %v1046 = vunpack.c.h.b16 %v290
    %v1047 = vunpack.c.l.b16 %v291
    %v1048 = vunpack.c.h.b16 %v291
    %v1049 = vunpack.c.l.b16 %v292
    %v1050 = vunpack.c.h.b16 %v292
    %v1051 = vunpack.c.l.b16 %v293
    %v1052 = vunpack.c.h.b16 %v293
    %v1053 = vunpack.c.l.b16 %v294
    %v1054 = vunpack.c.h.b16 %v294
    %v1055 = vunpack.c.l.b16 %v295
    %v1056 = vunpack.c.h.b16 %v295
    %v1057 = vunpack.c.l.b16 %v296
    %v1058 = vunpack.c.h.b16 %v296
    %v1059 = vunpack.c.l.b16 %v297
    %v1060 = vunpack.c.h.b16 %v297
    %v1061 = vunpack.c.l.b16 %v298
    %v1062 = vunpack.c.h.b16 %v298
    %v1063 = vunpack.c.l.b16 %v299
    %v1064 = vunpack.c.h.b16 %v299
    %v1065 = vunpack.c.l.b16 %v300
    %v1066 = vunpack.c.h.b16 %v300
    %v1067 = vunpack.c.l.b16 %v301
    %v1068 = vunpack.c.h.b16 %v301
    %v1069 = vunpack.c.l.b16 %v302
    %v1070 = vunpack.c.h.b16 %v302
    %v1071 = vunpack.c.l.b16 %v303
    %v1072 = vunpack.c.h.b16 %v303
    %v1073 = vunpack.c.l.b16 %v304
    %v1074 = vunpack.c.h.b16 %v304
    %v1075 = vunpack.c.l.b16 %v305
    %v1076 = vunpack.c.h.b16 %v305
    %v1077 = vunpack.c.l.b16 %v306
    %v1078 = vunpack.c.h.b16 %v306
    %v1079 = vunpack.c.l.b16 %v307
    %v1080 = vunpack.c.h.b16 %v307
    %v1081 = vunpack.c.l.b16 %v308
    %v1082 = vunpack.c.h.b16 %v308
    %v1083 = vunpack.c.l.b16 %v309
    %v1084 = vunpack.c.h.b16 %v309
    %v1085 = vunpack.c.l.b16 %v310
    %v1086 = vunpack.c.h.b16 %v310
    %v1087 = vunpack.c.l.b16 %v311
    %v1088 = vunpack.c.h.b16 %v311
    %v1089 = vunpack.c.l.b16 %v312
    %v1090 = vunpack.c.h.b16 %v312
    %v1091 = vunpack.c.l.b16 %v313
    %v1092 = vunpack.c.h.b16 %v313
    %v1093 = vunpack.c.l.b16 %v314
    %v1094 = vunpack.c.h.b16 %v314
    %v1095 = vunpack.c.l.b16 %v315
    %v1096 = vunpack.c.h.b16 %v315
    %v1097 = vunpack.c.l.b16 %v316
    %v1098 = vunpack.c.h.b16 %v316
    %v1099 = vunpack.c.l.b16 %v317
    %v1100 = vunpack.c.h.b16 %v317
    %v1101 = vunpack.c.l.b16 %v318
    %v1102 = vunpack.c.h.b16 %v318
    %v1103 = vunpack.c.l.b16 %v319
    %v1104 = vunpack.c.h.b16 %v319
    %v1105 = vunpack.c.l.b16 %v320
    %v1106 = vunpack.c.h.b16 %v320
    %v1107 = vunpack.c.l.b16 %v321
    %v1108 = vunpack.c.h.b16 %v321
    %v1109 = vunpack.c.l.b16 %v322
    %v1110 = vunpack.c.h.b16 %v322
    %v1111 = vunpack.c.l.b16 %v323
    %v1112 = vunpack.c.h.b16 %v323
    %v1113 = vunpack.c.l.b16 %v324
    %v1114 = vunpack.c.h.b16 %v324
    %v1115 = vunpack.c.l.b16 %v325
    %v1116 = vunpack.c.h.b16 %v325
    %v1117 = vunpack.c.l.b16 %v326
    %v1118 = vunpack.c.h.b16 %v326
    %v1119 = vunpack.c.l.b16 %v327
    %v1120 = vunpack.c.h.b16 %v327
    %v1121 = vunpack.c.l.b16 %v328
    %v1122 = vunpack.c.h.b16 %v328
    %v1123 = vunpack.c.l.b16 %v329
    %v1124 = vunpack.c.h.b16 %v329
    %v1125 = vunpack.c.l.b16 %v330
    %v1126 = vunpack.c.h.b16 %v330
    %v1127 = vunpack.c.l.b16 %v331
    %v1128 = vunpack.c.h.b16 %v331
    %v1129 = vunpack.c.l.b16 %v332
    %v1130 = vunpack.c.h.b16 %v332
    %v1131 = vunpack.c.l.b16 %v333
    %v1132 = vunpack.c.h.b16 %v333
    %v1133 = vunpack.c.l.b16 %v334
    %v1134 = vunpack.c.h.b16 %v334
    %v1135 = vunpack.c.l.b16 %v335
    %v1136 = vunpack.c.h.b16 %v335
    %v1137 = vunpack.c.l.b16 %v336
    %v1138 = vunpack.c.h.b16 %v336
    %v1139 = vunpack.c.l.b16 %v337
    %v1140 = vunpack.c.h.b16 %v337
    %v1141 = vunpack.c.l.b16 %v338
    %v1142 = vunpack.c.h.b16 %v338
    %v1143 = vunpack.c.l.b16 %v339
    %v1144 = vunpack.c.h.b16 %v339
    %v1145 = vunpack.c.l.b16 %v340
    %v1146 = vunpack.c.h.b16 %v340
    %v1147 = vunpack.c.l.b16 %v341
    %v1148 = vunpack.c.h.b16 %v341
    %v1149 = vunpack.c.l.b16 %v342
    %v1150 = vunpack.c.h.b16 %v342
    %v1151 = vunpack.c.l.b16 %v343
    %v1152 = vunpack.c.h.b16 %v343
    %v1153 = vunpack.c.l.b16 %v344
    %v1154 = vunpack.c.h.b16 %v344
    %v1155 = vunpack.c.l.b16 %v345
    %v1156 = vunpack.c.h.b16 %v345
    %v1157 = vunpack.c.l.b16 %v346
    %v1158 = vunpack.c.h.b16 %v346
    %v1159 = vunpack.c.l.b16 %v347
    %v1160 = vunpack.c.h.b16 %v347
    %v1161 = vunpack.c.l.b16 %v348
    %v1162 = vunpack.c.h.b16 %v348
    %v1163 = vunpack.c.l.b16 %v349
    %v1164 = vunpack.c.h.b16 %v349
    %v1165 = vunpack.c.l.b16 %v350
    %v1166 = vunpack.c.h.b16 %v350
    %v1167 = vunpack.c.l.b16 %v351
    %v1168 = vunpack.c.h.b16 %v351
    %v1169 = vunpack.c.l.b16 %v352
    %v1170 = vunpack.c.h.b16 %v352
    %v1171 = vunpack.c.l.b16 %v353
    %v1172 = vunpack.c.h.b16 %v353
    %v1173 = vunpack.c.l.b16 %v354
    %v1174 = vunpack.c.h.b16 %v354
    %v1175 = vunpack.c.l.b16 %v355
    %v1176 = vunpack.c.h.b16 %v355
    %v1177 = vunpack.c.l.b16 %v356
    %v1178 = vunpack.c.h.b16 %v356
    %v1179 = vunpack.c.l.b16 %v357
    %v1180 = vunpack.c.h.b16 %v357
    %v1181 = vunpack.c.l.b16 %v358
    %v1182 = vunpack.c.h.b16 %v358
    %v1183 = vunpack.c.l.b16 %v359
    %v1184 = vunpack.c.h.b16 %v359
    %v1185 = vunpack.c.l.b16 %v360
    %v1186 = vunpack.c.h.b16 %v360
    %v1187 = vunpack.c.l.b16 %v361
    %v1188 = vunpack.c.h.b16 %v361
    %v1189 = vunpack.c.l.b16 %v362
    %v1190 = vunpack.c.h.b16 %v362
    %v1191 = vunpack.c.l.b16 %v363
    %v1192 = vunpack.c.h.b16 %v363
    %v1193 = vunpack.c.l.b16 %v364
    %v1194 = vunpack.c.h.b16 %v364
    %v1195 = vunpack.c.l.b16 %v365
    %v1196 = vunpack.c.h.b16 %v365
    %v1197 = vunpack.c.l.b16 %v366
    %v1198 = vunpack.c.h.b16 %v366
    %v1199 = vunpack.c.l.b16 %v367
    %v1200 = vunpack.c.h.b16 %v367
    %v1201 = vunpack.c.l.b16 %v368
    %v1202 = vunpack.c.h.b16 %v368
    %v1203 = vunpack.c.l.b16 %v369
    %v1204 = vunpack.c.h.b16 %v369
    %v1205 = vunpack.c.l.b16 %v370
    %v1206 = vunpack.c.h.b16 %v370
    %v1207 = vunpack.c.l.b16 %v371
    %v1208 = vunpack.c.h.b16 %v371
    %v1209 = vunpack.c.l.b16 %v372
    %v1210 = vunpack.c.h.b16 %v372
    %v1211 = vpack.c.b16 %v767, %v763
    %v1212 = vpack.c.b16 %v768, %v764
    %v1213 = vpack.c.b16 %v769, %v765
    %v1214 = vpack.c.b16 %v770, %v766
    %v1215 = vpack.c.b16 %v775, %v771
    %v1216 = vpack.c.b16 %v776, %v772
    %v1217 = vpack.c.b16 %v777, %v773
    %v1218 = vpack.c.b16 %v778, %v774
    %v1219 = vpack.c.b16 %v783, %v779
    %v1220 = vpack.c.b16 %v784, %v780
    %v1221 = vpack.c.b16 %v785, %v781
    %v1222 = vpack.c.b16 %v786, %v782
    %v1223 = vpack.c.b16 %v791, %v787
    %v1224 = vpack.c.b16 %v792, %v788
    %v1225 = vpack.c.b16 %v793, %v789
    %v1226 = vpack.c.b16 %v794, %v790
    %v1227 = vpack.c.b16 %v799, %v795
    %v1228 = vpack.c.b16 %v800, %v796
    %v1229 = vpack.c.b16 %v801, %v797
    %v1230 = vpack.c.b16 %v802, %v798
    %v1231 = vpack.c.b16 %v807, %v803
    %v1232 = vpack.c.b16 %v808, %v804
    %v1233 = vpack.c.b16 %v809, %v805
    %v1234 = vpack.c.b16 %v810, %v806
    %v1235 = vpack.c.b16 %v815, %v811
    %v1236 = vpack.c.b16 %v816, %v812
    %v1237 = vpack.c.b16 %v817, %v813
    %v1238 = vpack.c.b16 %v818, %v814
    %v1239 = vpack.c.b16 %v823, %v819
    %v1240 = vpack.c.b16 %v824, %v820
    %v1241 = vpack.c.b16 %v825, %v821
    %v1242 = vpack.c.b16 %v826, %v822
    %v1243 = vpack.c.b16 %v831, %v827
    %v1244 = vpack.c.b16 %v832, %v828
    %v1245 = vpack.c.b16 %v833, %v829
    %v1246 = vpack.c.b16 %v834, %v830
    %v1247 = vpack.c.b16 %v839, %v835
    %v1248 = vpack.c.b16 %v840, %v836
    %v1249 = vpack.c.b16 %v841, %v837
    %v1250 = vpack.c.b16 %v842, %v838
    %v1251 = vpack.c.b16 %v847, %v843
    %v1252 = vpack.c.b16 %v848, %v844
    %v1253 = vpack.c.b16 %v849, %v845
    %v1254 = vpack.c.b16 %v850, %v846
    %v1255 = vpack.c.b16 %v855, %v851
    %v1256 = vpack.c.b16 %v856, %v852
    %v1257 = vpack.c.b16 %v857, %v853
    %v1258 = vpack.c.b16 %v858, %v854
    %v1259 = vpack.c.b16 %v863, %v859
    %v1260 = vpack.c.b16 %v864, %v860
    %v1261 = vpack.c.b16 %v865, %v861
    %v1262 = vpack.c.b16 %v866, %v862
    %v1263 = vpack.c.b16 %v871, %v867
    %v1264 = vpack.c.b16 %v872, %v868
    %v1265 = vpack.c.b16 %v873, %v869
    %v1266 = vpack.c.b16 %v874, %v870
    %v1267 = vpack.c.b16 %v879, %v875
    %v1268 = vpack.c.b16 %v880, %v876
    %v1269 = vpack.c.b16 %v881, %v877
    %v1270 = vpack.c.b16 %v882, %v878
    %v1271 = vpack.c.b16 %v887, %v883
    %v1272 = vpack.c.b16 %v888, %v884
    %v1273 = vpack.c.b16 %v889, %v885
    %v1274 = vpack.c.b16 %v890, %v886
    %v1275 = vpack.c.b16 %v895, %v891
    %v1276 = vpack.c.b16 %v896, %v892
    %v1277 = vpack.c.b16 %v897, %v893
    %v1278 = vpack.c.b16 %v898, %v894
    %v1279 = vpack.c.b16 %v903, %v899
    %v1280 = vpack.c.b16 %v904, %v900
    %v1281 = vpack.c.b16 %v905, %v901
    %v1282 = vpack.c.b16 %v906, %v902
    %v1283 = vpack.c.b16 %v911, %v907
    %v1284 = vpack.c.b16 %v912, %v908
    %v1285 = vpack.c.b16 %v913, %v909
    %v1286 = vpack.c.b16 %v914, %v910
    %v1287 = vpack.c.b16 %v919, %v915
    %v1288 = vpack.c.b16 %v920, %v916
    %v1289 = vpack.c.b16 %v921, %v917
    %v1290 = vpack.c.b16 %v922, %v918
    %v1291 = vpack.c.b16 %v927, %v923
    %v1292 = vpack.c.b16 %v928, %v924
    %v1293 = vpack.c.b16 %v929, %v925
    %v1294 = vpack.c.b16 %v930, %v926
    %v1295 = vpack.c.b16 %v935, %v931
    %v1296 = vpack.c.b16 %v936, %v932
    %v1297 = vpack.c.b16 %v937, %v933
    %v1298 = vpack.c.b16 %v938, %v934
    %v1299 = vpack.c.b16 %v943, %v939
    %v1300 = vpack.c.b16 %v944, %v940
    %v1301 = vpack.c.b16 %v945, %v941
    %v1302 = vpack.c.b16 %v946, %v942
    %v1303 = vpack.c.b16 %v951, %v947
    %v1304 = vpack.c.b16 %v952, %v948
    %v1305 = vpack.c.b16 %v953, %v949
    %v1306 = vpack.c.b16 %v954, %v950
    %v1307 = vpack.c.b16 %v959, %v955
    %v1308 = vpack.c.b16 %v960, %v956
    %v1309 = vpack.c.b16 %v961, %v957
    %v1310 = vpack.c.b16 %v962, %v958
    %v1311 = vpack.c.b16 %v967, %v963
    %v1312 = vpack.c.b16 %v968, %v964
    %v1313 = vpack.c.b16 %v969, %v965
    %v1314 = vpack.c.b16 %v970, %v966
    %v1315 = vpack.c.b16 %v975, %v971
    %v1316 = vpack.c.b16 %v976, %v972
    %v1317 = vpack.c.b16 %v977, %v973
    %v1318 = vpack.c.b16 %v978, %v974
    %v1319 = vpack.c.b16 %v983, %v979
    %v1320 = vpack.c.b16 %v984, %v980
    %v1321 = vpack.c.b16 %v985, %v981
    %v1322 = vpack.c.b16 %v986, %v982
    %v1323 = vpack.c.b16 %v991, %v987
    %v1324 = vpack.c.b16 %v992, %v988
    %v1325 = vpack.c.b16 %v993, %v989
    %v1326 = vpack.c.b16 %v994, %v990
    %v1327 = vpack.c.b16 %v999, %v995
    %v1328 = vpack.c.b16 %v1000, %v996
    %v1329 = vpack.c.b16 %v1001, %v997
    %v1330 = vpack.c.b16 %v1002, %v998
    %v1331 = vpack.c.b16 %v1007, %v1003
    %v1332 = vpack.c.b16 %v1008, %v1004
    %v1333 = vpack.c.b16 %v1009, %v1005
    %v1334 = vpack.c.b16 %v1010, %v1006
    %v1335 = vpack.c.b16 %v1015, %v1011
    %v1336 = vpack.c.b16 %v1016, %v1012
    %v1337 = vpack.c.b16 %v1017, %v1013
    %v1338 = vpack.c.b16 %v1018, %v1014
    %v1339 = vpack.c.b16 %v1023, %v1019
    %v1340 = vpack.c.b16 %v1024, %v1020
    %v1341 = vpack.c.b16 %v1025, %v1021
    %v1342 = vpack.c.b16 %v1026, %v1022
    %v1343 = vpack.c.b16 %v1031, %v1027
    %v1344 = vpack.c.b16 %v1032, %v1028
    %v1345 = vpack.c.b16 %v1033, %v1029
    %v1346 = vpack.c.b16 %v1034, %v1030
    %v1347 = vpack.c.b16 %v1039, %v1035
    %v1348 = vpack.c.b16 %v1040, %v1036
    %v1349 = vpack.c.b16 %v1041, %v1037
    %v1350 = vpack.c.b16 %v1042, %v1038
    %v1351 = vpack.c.b16 %v1047, %v1043
    %v1352 = vpack.c.b16 %v1048, %v1044
    %v1353 = vpack.c.b16 %v1049, %v1045
    %v1354 = vpack.c.b16 %v1050, %v1046
    %v1355 = vpack.c.b16 %v1055, %v1051
    %v1356 = vpack.c.b16 %v1056, %v1052
    %v1357 = vpack.c.b16 %v1057, %v1053
    %v1358 = vpack.c.b16 %v1058, %v1054
    %v1359 = vpack.c.b16 %v1063, %v1059
    %v1360 = vpack.c.b16 %v1064, %v1060
    %v1361 = vpack.c.b16 %v1065, %v1061
    %v1362 = vpack.c.b16 %v1066, %v1062
    %v1363 = vpack.c.b16 %v1071, %v1067
    %v1364 = vpack.c.b16 %v1072, %v1068
    %v1365 = vpack.c.b16 %v1073, %v1069
    %v1366 = vpack.c.b16 %v1074, %v1070
    %v1367 = vpack.c.b16 %v1079, %v1075
    %v1368 = vpack.c.b16 %v1080, %v1076
    %v1369 = vpack.c.b16 %v1081, %v1077
    %v1370 = vpack.c.b16 %v1082, %v1078
    %v1371 = vpack.c.b16 %v1087, %v1083
    %v1372 = vpack.c.b16 %v1088, %v1084
    %v1373 = vpack.c.b16 %v1089, %v1085
    %v1374 = vpack.c.b16 %v1090, %v1086
    %v1375 = vpack.c.b16 %v1095, %v1091
    %v1376 = vpack.c.b16 %v1096, %v1092
    %v1377 = vpack.c.b16 %v1097, %v1093
    %v1378 = vpack.c.b16 %v1098, %v1094
    %v1379 = vpack.c.b16 %v1103, %v1099
    %v1380 = vpack.c.b16 %v1104, %v1100
    %v1381 = vpack.c.b16 %v1105, %v1101
    %v1382 = vpack.c.b16 %v1106, %v1102
    %v1383 = vpack.c.b16 %v1111, %v1107
    %v1384 = vpack.c.b16 %v1112, %v1108
    %v1385 = vpack.c.b16 %v1113, %v1109
    %v1386 = vpack.c.b16 %v1114, %v1110
    %v1387 = vpack.c.b16 %v1119, %v1115
    %v1388 = vpack.c.b16 %v1120, %v1116
    %v1389 = vpack.c.b16 %v1121, %v1117
    %v1390 = vpack.c.b16 %v1122, %v1118
    %v1391 = vpack.c.b16 %v1127, %v1123
    %v1392 = vpack.c.b16 %v1128, %v1124
    %v1393 = vpack.c.b16 %v1129, %v1125
    %v1394 = vpack.c.b16 %v1130, %v1126
    %v1395 = vpack.c.b16 %v1135, %v1131
    %v1396 = vpack.c.b16 %v1136, %v1132
    %v1397 = vpack.c.b16 %v1137, %v1133
    %v1398 = vpack.c.b16 %v1138, %v1134
    %v1399 = vpack.c.b16 %v1143, %v1139
    %v1400 = vpack.c.b16 %v1144, %v1140
    %v1401 = vpack.c.b16 %v1145, %v1141
    %v1402 = vpack.c.b16 %v1146, %v1142
    %v1403 = vpack.c.b16 %v1151, %v1147
    %v1404 = vpack.c.b16 %v1152, %v1148
    %v1405 = vpack.c.b16 %v1153, %v1149
    %v1406 = vpack.c.b16 %v1154, %v1150
    %v1407 = vpack.c.b16 %v1159, %v1155
    %v1408 = vpack.c.b16 %v1160, %v1156
    %v1409 = vpack.c.b16 %v1161, %v1157
    %v1410 = vpack.c.b16 %v1162, %v1158
    %v1411 = vpack.c.b16 %v1167, %v1163
    %v1412 = vpack.c.b16 %v1168, %v1164
    %v1413 = vpack.c.b16 %v1169, %v1165
    %v1414 = vpack.c.b16 %v1170, %v1166
    %v1415 = vpack.c.b16 %v1175, %v1171
    %v1416 = vpack.c.b16 %v1176, %v1172
    %v1417 = vpack.c.b16 %v1177, %v1173
    %v1418 = vpack.c.b16 %v1178, %v1174
    %v1419 = vpack.c.b16 %v1183, %v1179
    %v1420 = vpack.c.b16 %v1184, %v1180
    %v1421 = vpack.c.b16 %v1185, %v1181
    %v1422 = vpack.c.b16 %v1186, %v1182
    %v1423 = vpack.c.b16 %v1191, %v1187
    %v1424 = vpack.c.b16 %v1192, %v1188
    %v1425 = vpack.c.b16 %v1193, %v1189
    %v1426 = vpack.c.b16 %v1194, %v1190
    %v1427 = vpack.c.b16 %v1199, %v1195
    %v1428 = vpack.c.b16 %v1200, %v1196
    %v1429 = vpack.c.b16 %v1201, %v1197
    %v1430 = vpack.c.b16 %v1202, %v1198
    %v1431 = vpack.c.b16 %v1207, %v1203
    %v1432 = vpack.c.b16 %v1208, %v1204
    %v1433 = vpack.c.b16 %v1209, %v1205
    %v1434 = vpack.c.b16 %v1210, %v1206
    %1659 = vmatprep.subr.bf16.mxu0 %v1212
    %1660 = vmatpush1.bf16.msra.mxu0 %v1211
    %1661 = vmatprep.subr.bf16.mxu0 %v1216
    %1662 = vmatpush1.bf16.msra.mxu0 %v1215
    %1663 = vmatprep.subr.bf16.mxu0 %v1220
    %1664 = vmatpush1.bf16.msra.mxu0 %v1219
    %1665 = vmatprep.subr.bf16.mxu0 %v1224
    %1666 = vmatpush1.bf16.msra.mxu0 %v1223
    %1667 = vmatprep.subr.bf16.mxu0 %v1228
    %1668 = vmatpush1.bf16.msra.mxu0 %v1227
    %1669 = vmatprep.subr.bf16.mxu0 %v1232
    %1670 = vmatpush1.bf16.msra.mxu0 %v1231
    %1671 = vmatprep.subr.bf16.mxu0 %v1236
    %1672 = vmatpush1.bf16.msra.mxu0 %v1235
    %1673 = vmatprep.subr.bf16.mxu0 %v1240
    %1674 = vmatpush1.bf16.msra.mxu0 %v1239
    %1675 = vmatprep.subr.bf16.mxu0 %v1244
    %1676 = vmatpush1.bf16.msra.mxu0 %v1243
    %1677 = vmatprep.subr.bf16.mxu0 %v1248
    %1678 = vmatpush1.bf16.msra.mxu0 %v1247
    %1679 = vmatprep.subr.bf16.mxu0 %v1252
    %1680 = vmatpush1.bf16.msra.mxu0 %v1251
    %1681 = vmatprep.subr.bf16.mxu0 %v1256
    %1682 = vmatpush1.bf16.msra.mxu0 %v1255
    %1683 = vmatprep.subr.bf16.mxu0 %v1260
    %1684 = vmatpush1.bf16.msra.mxu0 %v1259
    %1685 = vmatprep.subr.bf16.mxu0 %v1264
    %1686 = vmatpush1.bf16.msra.mxu0 %v1263
    %1687 = vmatprep.subr.bf16.mxu0 %v1268
    %1688 = vmatpush1.bf16.msra.mxu0 %v1267
    %1689 = vmatprep.subr.bf16.mxu0 %v1272
    %1690 = vmatpush1.bf16.msra.mxu0 %v1271
    %1691 = vmatprep.mubr.bf16.mxu0 %v484
    %1692 = vmatmul.mubr.bf16.gmra.mrb[0].mxu0 %v483
    %v1693 = vpop.f32.mrb[0].mxu0
    %v1694 = vadd.f32 %v378, %v1693
    %v1695 = vpop.f32.mrb[0].mxu0
    %v1696 = vadd.f32 %v382, %v1695
    %v1697 = vpop.f32.mrb[0].mxu0
    %v1698 = vadd.f32 %v378, %v1697
    %v1699 = vpop.f32.mrb[0].mxu0
    %v1700 = vadd.f32 %v382, %v1699
    %1701 = vmatprep.mubr.bf16.mxu0 %v491
    %1702 = vmatmul.mubr.bf16.gmra.mrb[0].mxu0 %v490
    %v1703 = vpop.f32.mrb[0].mxu0
    %v1704 = vadd.f32 %v378, %v1703
    %v1705 = vpop.f32.mrb[0].mxu0
    %v1706 = vadd.f32 %v382, %v1705
    %v1707 = vpop.f32.mrb[0].mxu0
    %v1708 = vadd.f32 %v378, %v1707
    %v1709 = vpop.f32.mrb[0].mxu0
    %v1710 = vadd.f32 %v382, %v1709
    %1711 = vmatprep.mubr.bf16.mxu0 %v498
    %1712 = vmatmul.mubr.bf16.gmra.mrb[0].mxu0 %v497
    %v1713 = vpop.f32.mrb[0].mxu0
    %v1714 = vadd.f32 %v378, %v1713
    %v1715 = vpop.f32.mrb[0].mxu0
    %v1716 = vadd.f32 %v382, %v1715
    %v1717 = vpop.f32.mrb[0].mxu0
    %v1718 = vadd.f32 %v378, %v1717
    %v1719 = vpop.f32.mrb[0].mxu0
    %v1720 = vadd.f32 %v382, %v1719
    %1721 = vmatprep.mubr.bf16.mxu0 %v505
    %1722 = vmatmul.mubr.bf16.gmra.mrb[0].mxu0 %v504
    %v1723 = vpop.f32.mrb[0].mxu0
    %v1724 = vadd.f32 %v378, %v1723
    %v1725 = vpop.f32.mrb[0].mxu0
    %v1726 = vadd.f32 %v382, %v1725
    %v1727 = vpop.f32.mrb[0].mxu0
    %v1728 = vadd.f32 %v378, %v1727
    %v1729 = vpop.f32.mrb[0].mxu0
    %v1730 = vadd.f32 %v382, %v1729
    %1731 = vdwg.mxu0
    %1732 = vmatprep.subr.bf16.mxu0 %v1276
    %1733 = vmatpush1.bf16.msra.mxu0 %v1275
    %1734 = vmatprep.subr.bf16.mxu0 %v1280
    %1735 = vmatpush1.bf16.msra.mxu0 %v1279
    %1736 = vmatprep.subr.bf16.mxu0 %v1284
    %1737 = vmatpush1.bf16.msra.mxu0 %v1283
    %1738 = vmatprep.subr.bf16.mxu0 %v1288
    %1739 = vmatpush1.bf16.msra.mxu0 %v1287
    %1740 = vmatprep.subr.bf16.mxu0 %v1292
    %1741 = vmatpush1.bf16.msra.mxu0 %v1291
    %1742 = vmatprep.subr.bf16.mxu0 %v1296
    %1743 = vmatpush1.bf16.msra.mxu0 %v1295
    %1744 = vmatprep.subr.bf16.mxu0 %v1300
    %1745 = vmatpush1.bf16.msra.mxu0 %v1299
    %1746 = vmatprep.subr.bf16.mxu0 %v1304
    %1747 = vmatpush1.bf16.msra.mxu0 %v1303
    %1748 = vmatprep.subr.bf16.mxu0 %v1308
    %1749 = vmatpush1.bf16.msra.mxu0 %v1307
    %1750 = vmatprep.subr.bf16.mxu0 %v1312
    %1751 = vmatpush1.bf16.msra.mxu0 %v1311
    %1752 = vmatprep.subr.bf16.mxu0 %v1316
    %1753 = vmatpush1.bf16.msra.mxu0 %v1315
    %1754 = vmatprep.subr.bf16.mxu0 %v1320
    %1755 = vmatpush1.bf16.msra.mxu0 %v1319
    %1756 = vmatprep.subr.bf16.mxu0 %v1324
    %1757 = vmatpush1.bf16.msra.mxu0 %v1323
    %1758 = vmatprep.subr.bf16.mxu0 %v1328
    %1759 = vmatpush1.bf16.msra.mxu0 %v1327
    %1760 = vmatprep.subr.bf16.mxu0 %v1332
    %1761 = vmatpush1.bf16.msra.mxu0 %v1331
    %1762 = vmatprep.subr.bf16.mxu0 %v1336
    %1763 = vmatpush1.bf16.msra.mxu0 %v1335
    %1764 = vmatprep.mubr.bf16.mxu0 %v486
    %1765 = vmatmul.mubr.bf16.gmra.mrb[0].mxu0 %v485
    %v1766 = vpop.f32.mrb[0].mxu0
    %v1767 = vadd.f32 %v1694, %v1766
    %v1768 = vpop.f32.mrb[0].mxu0
    %v1769 = vadd.f32 %v1696, %v1768
    %v1770 = vpop.f32.mrb[0].mxu0
    %v1771 = vadd.f32 %v1698, %v1770
    %v1772 = vpop.f32.mrb[0].mxu0
    %v1773 = vadd.f32 %v1700, %v1772
    %1774 = vmatprep.mubr.bf16.mxu0 %v493
    %1775 = vmatmul.mubr.bf16.gmra.mrb[0].mxu0 %v492
    %v1776 = vpop.f32.mrb[0].mxu0
    %v1777 = vadd.f32 %v1704, %v1776
    %v1778 = vpop.f32.mrb[0].mxu0
    %v1779 = vadd.f32 %v1706, %v1778
    %v1780 = vpop.f32.mrb[0].mxu0
    %v1781 = vadd.f32 %v1708, %v1780
    %v1782 = vpop.f32.mrb[0].mxu0
    %v1783 = vadd.f32 %v1710, %v1782
    %1784 = vmatprep.mubr.bf16.mxu0 %v500
    %1785 = vmatmul.mubr.bf16.gmra.mrb[0].mxu0 %v499
    %v1786 = vpop.f32.mrb[0].mxu0
    %v1787 = vadd.f32 %v1714, %v1786
    %v1788 = vpop.f32.mrb[0].mxu0
    %v1789 = vadd.f32 %v1716, %v1788
    %v1790 = vpop.f32.mrb[0].mxu0
    %v1791 = vadd.f32 %v1718, %v1790
    %v1792 = vpop.f32.mrb[0].mxu0
    %v1793 = vadd.f32 %v1720, %v1792
    %1794 = vmatprep.mubr.bf16.mxu0 %v507
    %1795 = vmatmul.mubr.bf16.gmra.mrb[0].mxu0 %v506
    %v1796 = vpop.f32.mrb[0].mxu0
    %v1797 = vadd.f32 %v1724, %v1796
    %v1798 = vpop.f32.mrb[0].mxu0
    %v1799 = vadd.f32 %v1726, %v1798
    %v1800 = vpop.f32.mrb[0].mxu0
    %v1801 = vadd.f32 %v1728, %v1800
    %v1802 = vpop.f32.mrb[0].mxu0
    %v1803 = vadd.f32 %v1730, %v1802
    %1804 = vdwg.mxu0
    %1805 = vmatprep.subr.bf16.mxu0 %v1340
    %1806 = vmatpush1.bf16.msra.mxu0 %v1339
    %1807 = vmatprep.subr.bf16.mxu0 %v1344
    %1808 = vmatpush1.bf16.msra.mxu0 %v1343
    %1809 = vmatprep.subr.bf16.mxu0 %v1348
    %1810 = vmatpush1.bf16.msra.mxu0 %v1347
    %1811 = vmatprep.subr.bf16.mxu0 %v1352
    %1812 = vmatpush1.bf16.msra.mxu0 %v1351
    %1813 = vmatprep.subr.bf16.mxu0 %v1356
    %1814 = vmatpush1.bf16.msra.mxu0 %v1355
    %1815 = vmatprep.subr.bf16.mxu0 %v1360
    %1816 = vmatpush1.bf16.msra.mxu0 %v1359
    %1817 = vmatprep.subr.bf16.mxu0 %v1364
    %1818 = vmatpush1.bf16.msra.mxu0 %v1363
    %1819 = vmatprep.subr.bf16.mxu0 %v1368
    %1820 = vmatpush1.bf16.msra.mxu0 %v1367
    %1821 = vmatprep.subr.bf16.mxu0 %v1372
    %1822 = vmatpush1.bf16.msra.mxu0 %v1371
    %1823 = vmatprep.subr.bf16.mxu0 %v1376
    %1824 = vmatpush1.bf16.msra.mxu0 %v1375
    %1825 = vmatprep.subr.bf16.mxu0 %v1380
    %1826 = vmatpush1.bf16.msra.mxu0 %v1379
    %1827 = vmatprep.subr.bf16.mxu0 %v1384
    %1828 = vmatpush1.bf16.msra.mxu0 %v1383
    %1829 = vmatprep.subr.bf16.mxu0 %v1388
    %1830 = vmatpush1.bf16.msra.mxu0 %v1387
    %1831 = vmatprep.subr.bf16.mxu0 %v1392
    %1832 = vmatpush1.bf16.msra.mxu0 %v1391
    %1833 = vmatprep.subr.bf16.mxu0 %v1396
    %1834 = vmatpush1.bf16.msra.mxu0 %v1395
    %1835 = vmatprep.subr.bf16.mxu0 %v1400
    %1836 = vmatpush1.bf16.msra.mxu0 %v1399
    %1837 = vmatprep.mubr.bf16.mxu0 %v488
    %1838 = vmatmul.mubr.bf16.gmra.mrb[0].mxu0 %v487
    %v1839 = vpop.f32.mrb[0].mxu0
    %v1840 = vadd.f32 %v1767, %v1839
    %v1841 = vpop.f32.mrb[0].mxu0
    %v1842 = vadd.f32 %v1769, %v1841
    %v1843 = vpop.f32.mrb[0].mxu0
    %v1844 = vadd.f32 %v1771, %v1843
    %v1845 = vpop.f32.mrb[0].mxu0
    %v1846 = vadd.f32 %v1773, %v1845
    %1847 = vmatprep.mubr.bf16.mxu0 %v495
    %1848 = vmatmul.mubr.bf16.gmra.mrb[0].mxu0 %v494
    %v1849 = vpop.f32.mrb[0].mxu0
    %v1850 = vadd.f32 %v1777, %v1849
    %v1851 = vpop.f32.mrb[0].mxu0
    %v1852 = vadd.f32 %v1779, %v1851
    %v1853 = vpop.f32.mrb[0].mxu0
    %v1854 = vadd.f32 %v1781, %v1853
    %v1855 = vpop.f32.mrb[0].mxu0
    %v1856 = vadd.f32 %v1783, %v1855
    %1857 = vmatprep.mubr.bf16.mxu0 %v502
    %1858 = vmatmul.mubr.bf16.gmra.mrb[0].mxu0 %v501
    %v1859 = vpop.f32.mrb[0].mxu0
    %v1860 = vadd.f32 %v1787, %v1859
    %v1861 = vpop.f32.mrb[0].mxu0
    %v1862 = vadd.f32 %v1789, %v1861
    %v1863 = vpop.f32.mrb[0].mxu0
    %v1864 = vadd.f32 %v1791, %v1863
    %v1865 = vpop.f32.mrb[0].mxu0
    %v1866 = vadd.f32 %v1793, %v1865
    %1867 = vmatprep.mubr.bf16.mxu0 %v509
    %1868 = vmatmul.mubr.bf16.gmra.mrb[0].mxu0 %v508
    %v1869 = vpop.f32.mrb[0].mxu0
    %v1870 = vadd.f32 %v1797, %v1869
    %v1871 = vpop.f32.mrb[0].mxu0
    %v1872 = vadd.f32 %v1799, %v1871
    %v1873 = vpop.f32.mrb[0].mxu0
    %v1874 = vadd.f32 %v1801, %v1873
    %v1875 = vpop.f32.mrb[0].mxu0
    %v1876 = vadd.f32 %v1803, %v1875
    %1877 = vdwg.mxu0
    %1878 = vmatprep.subr.bf16.mxu0 %v1404
    %1879 = vmatpush1.bf16.msra.mxu0 %v1403
    %1880 = vmatprep.subr.bf16.mxu0 %v1408
    %1881 = vmatpush1.bf16.msra.mxu0 %v1407
    %1882 = vmatprep.subr.bf16.mxu0 %v1412
    %1883 = vmatpush1.bf16.msra.mxu0 %v1411
    %1884 = vmatprep.subr.bf16.mxu0 %v1416
    %1885 = vmatpush1.bf16.msra.mxu0 %v1415
    %1886 = vmatprep.subr.bf16.mxu0 %v1420
    %1887 = vmatpush1.bf16.msra.mxu0 %v1419
    %1888 = vmatprep.subr.bf16.mxu0 %v1424
    %1889 = vmatpush1.bf16.msra.mxu0 %v1423
    %1890 = vmatprep.subr.bf16.mxu0 %v1428
    %1891 = vmatpush1.bf16.msra.mxu0 %v1427
    %1892 = vmatprep.subr.bf16.mxu0 %v1432
    %1893 = vmatpush1.bf16.msra.mxu0 %v1431
    %1894 = vmatprep.subr.bf16.mxu0 0
    %1895 = vmatpush1.bf16.msra.mxu0 0
    %1896 = vmatprep.subr.bf16.mxu0 0
    %1897 = vmatpush1.bf16.msra.mxu0 0
    %1898 = vmatprep.subr.bf16.mxu0 0
    %1899 = vmatpush1.bf16.msra.mxu0 0
    %1900 = vmatprep.subr.bf16.mxu0 0
    %1901 = vmatpush1.bf16.msra.mxu0 0
    %1902 = vmatprep.subr.bf16.mxu0 0
    %1903 = vmatpush1.bf16.msra.mxu0 0
    %1904 = vmatprep.subr.bf16.mxu0 0
    %1905 = vmatpush1.bf16.msra.mxu0 0
    %1906 = vmatprep.subr.bf16.mxu0 0
    %1907 = vmatpush1.bf16.msra.mxu0 0
    %1908 = vmatprep.subr.bf16.mxu0 0
    %1909 = vmatpush1.bf16.msra.mxu0 0
    %1910 = vmatprep.mubr.bf16.mxu0 0
    %1911 = vmatmul.mubr.bf16.gmra.mrb[0].mxu0 %v489
    %v1912 = vpop.f32.mrb[0].mxu0
    %v1913 = vadd.f32 %v1840, %v1912
    %v1914 = vpop.f32.mrb[0].mxu0
    %v1915 = vadd.f32 %v1842, %v1914
    %v1916 = vpop.f32.mrb[0].mxu0
    %v1917 = vadd.f32 %v1844, %v1916
    %v1918 = vpop.f32.mrb[0].mxu0
    %v1919 = vadd.f32 %v1846, %v1918
    %1920 = vmatprep.mubr.bf16.mxu0 0
    %1921 = vmatmul.mubr.bf16.gmra.mrb[0].mxu0 %v496
    %v1922 = vpop.f32.mrb[0].mxu0
    %v1923 = vadd.f32 %v1850, %v1922
    %v1924 = vpop.f32.mrb[0].mxu0
    %v1925 = vadd.f32 %v1852, %v1924
    %v1926 = vpop.f32.mrb[0].mxu0
    %v1927 = vadd.f32 %v1854, %v1926
    %v1928 = vpop.f32.mrb[0].mxu0
    %v1929 = vadd.f32 %v1856, %v1928
    %1930 = vmatprep.mubr.bf16.mxu0 0
    %1931 = vmatmul.mubr.bf16.gmra.mrb[0].mxu0 %v503
    %v1932 = vpop.f32.mrb[0].mxu0
    %v1933 = vadd.f32 %v1860, %v1932
    %v1934 = vpop.f32.mrb[0].mxu0
    %v1935 = vadd.f32 %v1862, %v1934
    %v1936 = vpop.f32.mrb[0].mxu0
    %v1937 = vadd.f32 %v1864, %v1936
    %v1938 = vpop.f32.mrb[0].mxu0
    %v1939 = vadd.f32 %v1866, %v1938
    %1940 = vmatprep.mubr.bf16.mxu0 0
    %1941 = vmatmul.mubr.bf16.gmra.mrb[0].mxu0 %v510
    %v1942 = vpop.f32.mrb[0].mxu0
    %v1943 = vadd.f32 %v1870, %v1942
    %v1944 = vpop.f32.mrb[0].mxu0
    %v1945 = vadd.f32 %v1872, %v1944
    %v1946 = vpop.f32.mrb[0].mxu0
    %v1947 = vadd.f32 %v1874, %v1946
    %v1948 = vpop.f32.mrb[0].mxu0
    %v1949 = vadd.f32 %v1876, %v1948
    %1950 = vdwg.mxu0
    %1951 = vmatprep.subr.bf16.mxu0 %v1214
    %1952 = vmatpush1.bf16.msra.mxu0 %v1213
    %1953 = vmatprep.subr.bf16.mxu0 %v1218
    %1954 = vmatpush1.bf16.msra.mxu0 %v1217
    %1955 = vmatprep.subr.bf16.mxu0 %v1222
    %1956 = vmatpush1.bf16.msra.mxu0 %v1221
    %1957 = vmatprep.subr.bf16.mxu0 %v1226
    %1958 = vmatpush1.bf16.msra.mxu0 %v1225
    %1959 = vmatprep.subr.bf16.mxu0 %v1230
    %1960 = vmatpush1.bf16.msra.mxu0 %v1229
    %1961 = vmatprep.subr.bf16.mxu0 %v1234
    %1962 = vmatpush1.bf16.msra.mxu0 %v1233
    %1963 = vmatprep.subr.bf16.mxu0 %v1238
    %1964 = vmatpush1.bf16.msra.mxu0 %v1237
    %1965 = vmatprep.subr.bf16.mxu0 %v1242
    %1966 = vmatpush1.bf16.msra.mxu0 %v1241
    %1967 = vmatprep.subr.bf16.mxu0 %v1246
    %1968 = vmatpush1.bf16.msra.mxu0 %v1245
    %1969 = vmatprep.subr.bf16.mxu0 %v1250
    %1970 = vmatpush1.bf16.msra.mxu0 %v1249
    %1971 = vmatprep.subr.bf16.mxu0 %v1254
    %1972 = vmatpush1.bf16.msra.mxu0 %v1253
    %1973 = vmatprep.subr.bf16.mxu0 %v1258
    %1974 = vmatpush1.bf16.msra.mxu0 %v1257
    %1975 = vmatprep.subr.bf16.mxu0 %v1262
    %1976 = vmatpush1.bf16.msra.mxu0 %v1261
    %1977 = vmatprep.subr.bf16.mxu0 %v1266
    %1978 = vmatpush1.bf16.msra.mxu0 %v1265
    %1979 = vmatprep.subr.bf16.mxu0 %v1270
    %1980 = vmatpush1.bf16.msra.mxu0 %v1269
    %1981 = vmatprep.subr.bf16.mxu0 %v1274
    %1982 = vmatpush1.bf16.msra.mxu0 %v1273
    %1983 = vmatprep.mubr.bf16.mxu0 %v484
    %1984 = vmatmul.mubr.bf16.gmra.mrb[0].mxu0 %v483
    %v1985 = vpop.f32.mrb[0].mxu0
    %v1986 = vadd.f32 %v386, %v1985
    %v1987 = vpop.f32.mrb[0].mxu0
    %v1988 = vadd.f32 %v390, %v1987
    %v1989 = vpop.f32.mrb[0].mxu0
    %v1990 = vadd.f32 %v386, %v1989
    %v1991 = vpop.f32.mrb[0].mxu0
    %v1992 = vadd.f32 %v390, %v1991
    %1993 = vmatprep.mubr.bf16.mxu0 %v491
    %1994 = vmatmul.mubr.bf16.gmra.mrb[0].mxu0 %v490
    %v1995 = vpop.f32.mrb[0].mxu0
    %v1996 = vadd.f32 %v386, %v1995
    %v1997 = vpop.f32.mrb[0].mxu0
    %v1998 = vadd.f32 %v390, %v1997
    %v1999 = vpop.f32.mrb[0].mxu0
    %v2000 = vadd.f32 %v386, %v1999
    %v2001 = vpop.f32.mrb[0].mxu0
    %v2002 = vadd.f32 %v390, %v2001
    %2003 = vmatprep.mubr.bf16.mxu0 %v498
    %2004 = vmatmul.mubr.bf16.gmra.mrb[0].mxu0 %v497
    %v2005 = vpop.f32.mrb[0].mxu0
    %v2006 = vadd.f32 %v386, %v2005
    %v2007 = vpop.f32.mrb[0].mxu0
    %v2008 = vadd.f32 %v390, %v2007
    %v2009 = vpop.f32.mrb[0].mxu0
    %v2010 = vadd.f32 %v386, %v2009
    %v2011 = vpop.f32.mrb[0].mxu0
    %v2012 = vadd.f32 %v390, %v2011
    %2013 = vmatprep.mubr.bf16.mxu0 %v505
    %2014 = vmatmul.mubr.bf16.gmra.mrb[0].mxu0 %v504
    %v2015 = vpop.f32.mrb[0].mxu0
    %v2016 = vadd.f32 %v386, %v2015
    %v2017 = vpop.f32.mrb[0].mxu0
    %v2018 = vadd.f32 %v390, %v2017
    %v2019 = vpop.f32.mrb[0].mxu0
    %v2020 = vadd.f32 %v386, %v2019
    %v2021 = vpop.f32.mrb[0].mxu0
    %v2022 = vadd.f32 %v390, %v2021
    %2023 = vdwg.mxu0
    %2024 = vmatprep.subr.bf16.mxu0 %v1278
    %2025 = vmatpush1.bf16.msra.mxu0 %v1277
    %2026 = vmatprep.subr.bf16.mxu0 %v1282
    %2027 = vmatpush1.bf16.msra.mxu0 %v1281
    %2028 = vmatprep.subr.bf16.mxu0 %v1286
    %2029 = vmatpush1.bf16.msra.mxu0 %v1285
    %2030 = vmatprep.subr.bf16.mxu0 %v1290
    %2031 = vmatpush1.bf16.msra.mxu0 %v1289
    %2032 = vmatprep.subr.bf16.mxu0 %v1294
    %2033 = vmatpush1.bf16.msra.mxu0 %v1293
    %2034 = vmatprep.subr.bf16.mxu0 %v1298
    %2035 = vmatpush1.bf16.msra.mxu0 %v1297
    %2036 = vmatprep.subr.bf16.mxu0 %v1302
    %2037 = vmatpush1.bf16.msra.mxu0 %v1301
    %2038 = vmatprep.subr.bf16.mxu0 %v1306
    %2039 = vmatpush1.bf16.msra.mxu0 %v1305
    %2040 = vmatprep.subr.bf16.mxu0 %v1310
    %2041 = vmatpush1.bf16.msra.mxu0 %v1309
    %2042 = vmatprep.subr.bf16.mxu0 %v1314
    %2043 = vmatpush1.bf16.msra.mxu0 %v1313
    %2044 = vmatprep.subr.bf16.mxu0 %v1318
    %2045 = vmatpush1.bf16.msra.mxu0 %v1317
    %2046 = vmatprep.subr.bf16.mxu0 %v1322
    %2047 = vmatpush1.bf16.msra.mxu0 %v1321
    %2048 = vmatprep.subr.bf16.mxu0 %v1326
    %2049 = vmatpush1.bf16.msra.mxu0 %v1325
    %2050 = vmatprep.subr.bf16.mxu0 %v1330
    %2051 = vmatpush1.bf16.msra.mxu0 %v1329
    %2052 = vmatprep.subr.bf16.mxu0 %v1334
    %2053 = vmatpush1.bf16.msra.mxu0 %v1333
    %2054 = vmatprep.subr.bf16.mxu0 %v1338
    %2055 = vmatpush1.bf16.msra.mxu0 %v1337
    %2056 = vmatprep.mubr.bf16.mxu0 %v486
    %2057 = vmatmul.mubr.bf16.gmra.mrb[0].mxu0 %v485
    %v2058 = vpop.f32.mrb[0].mxu0
    %v2059 = vadd.f32 %v1986, %v2058
    %v2060 = vpop.f32.mrb[0].mxu0
    %v2061 = vadd.f32 %v1988, %v2060
    %v2062 = vpop.f32.mrb[0].mxu0
    %v2063 = vadd.f32 %v1990, %v2062
    %v2064 = vpop.f32.mrb[0].mxu0
    %v2065 = vadd.f32 %v1992, %v2064
    %2066 = vmatprep.mubr.bf16.mxu0 %v493
    %2067 = vmatmul.mubr.bf16.gmra.mrb[0].mxu0 %v492
    %v2068 = vpop.f32.mrb[0].mxu0
    %v2069 = vadd.f32 %v1996, %v2068
    %v2070 = vpop.f32.mrb[0].mxu0
    %v2071 = vadd.f32 %v1998, %v2070
    %v2072 = vpop.f32.mrb[0].mxu0
    %v2073 = vadd.f32 %v2000, %v2072
    %v2074 = vpop.f32.mrb[0].mxu0
    %v2075 = vadd.f32 %v2002, %v2074
    %2076 = vmatprep.mubr.bf16.mxu0 %v500
    %2077 = vmatmul.mubr.bf16.gmra.mrb[0].mxu0 %v499
    %v2078 = vpop.f32.mrb[0].mxu0
    %v2079 = vadd.f32 %v2006, %v2078
    %v2080 = vpop.f32.mrb[0].mxu0
    %v2081 = vadd.f32 %v2008, %v2080
    %v2082 = vpop.f32.mrb[0].mxu0
    %v2083 = vadd.f32 %v2010, %v2082
    %v2084 = vpop.f32.mrb[0].mxu0
    %v2085 = vadd.f32 %v2012, %v2084
    %2086 = vmatprep.mubr.bf16.mxu0 %v507
    %2087 = vmatmul.mubr.bf16.gmra.mrb[0].mxu0 %v506
    %v2088 = vpop.f32.mrb[0].mxu0
    %v2089 = vadd.f32 %v2016, %v2088
    %v2090 = vpop.f32.mrb[0].mxu0
    %v2091 = vadd.f32 %v2018, %v2090
    %v2092 = vpop.f32.mrb[0].mxu0
    %v2093 = vadd.f32 %v2020, %v2092
    %v2094 = vpop.f32.mrb[0].mxu0
    %v2095 = vadd.f32 %v2022, %v2094
    %2096 = vdwg.mxu0
    %2097 = vmatprep.subr.bf16.mxu0 %v1342
    %2098 = vmatpush1.bf16.msra.mxu0 %v1341
    %2099 = vmatprep.subr.bf16.mxu0 %v1346
    %2100 = vmatpush1.bf16.msra.mxu0 %v1345
    %2101 = vmatprep.subr.bf16.mxu0 %v1350
    %2102 = vmatpush1.bf16.msra.mxu0 %v1349
    %2103 = vmatprep.subr.bf16.mxu0 %v1354
    %2104 = vmatpush1.bf16.msra.mxu0 %v1353
    %2105 = vmatprep.subr.bf16.mxu0 %v1358
    %2106 = vmatpush1.bf16.msra.mxu0 %v1357
    %2107 = vmatprep.subr.bf16.mxu0 %v1362
    %2108 = vmatpush1.bf16.msra.mxu0 %v1361
    %2109 = vmatprep.subr.bf16.mxu0 %v1366
    %2110 = vmatpush1.bf16.msra.mxu0 %v1365
    %2111 = vmatprep.subr.bf16.mxu0 %v1370
    %2112 = vmatpush1.bf16.msra.mxu0 %v1369
    %2113 = vmatprep.subr.bf16.mxu0 %v1374
    %2114 = vmatpush1.bf16.msra.mxu0 %v1373
    %2115 = vmatprep.subr.bf16.mxu0 %v1378
    %2116 = vmatpush1.bf16.msra.mxu0 %v1377
    %2117 = vmatprep.subr.bf16.mxu0 %v1382
    %2118 = vmatpush1.bf16.msra.mxu0 %v1381
    %2119 = vmatprep.subr.bf16.mxu0 %v1386
    %2120 = vmatpush1.bf16.msra.mxu0 %v1385
    %2121 = vmatprep.subr.bf16.mxu0 %v1390
    %2122 = vmatpush1.bf16.msra.mxu0 %v1389
    %2123 = vmatprep.subr.bf16.mxu0 %v1394
    %2124 = vmatpush1.bf16.msra.mxu0 %v1393
    %2125 = vmatprep.subr.bf16.mxu0 %v1398
    %2126 = vmatpush1.bf16.msra.mxu0 %v1397
    %2127 = vmatprep.subr.bf16.mxu0 %v1402
    %2128 = vmatpush1.bf16.msra.mxu0 %v1401
    %2129 = vmatprep.mubr.bf16.mxu0 %v488
    %2130 = vmatmul.mubr.bf16.gmra.mrb[0].mxu0 %v487
    %v2131 = vpop.f32.mrb[0].mxu0
    %v2132 = vadd.f32 %v2059, %v2131
    %v2133 = vpop.f32.mrb[0].mxu0
    %v2134 = vadd.f32 %v2061, %v2133
    %v2135 = vpop.f32.mrb[0].mxu0
    %v2136 = vadd.f32 %v2063, %v2135
    %v2137 = vpop.f32.mrb[0].mxu0
    %v2138 = vadd.f32 %v2065, %v2137
    %2139 = vmatprep.mubr.bf16.mxu0 %v495
    %2140 = vmatmul.mubr.bf16.gmra.mrb[0].mxu0 %v494
    %v2141 = vpop.f32.mrb[0].mxu0
    %v2142 = vadd.f32 %v2069, %v2141
    %v2143 = vpop.f32.mrb[0].mxu0
    %v2144 = vadd.f32 %v2071, %v2143
    %v2145 = vpop.f32.mrb[0].mxu0
    %v2146 = vadd.f32 %v2073, %v2145
    %v2147 = vpop.f32.mrb[0].mxu0
    %v2148 = vadd.f32 %v2075, %v2147
    %2149 = vmatprep.mubr.bf16.mxu0 %v502
    %2150 = vmatmul.mubr.bf16.gmra.mrb[0].mxu0 %v501
    %v2151 = vpop.f32.mrb[0].mxu0
    %v2152 = vadd.f32 %v2079, %v2151
    %v2153 = vpop.f32.mrb[0].mxu0
    %v2154 = vadd.f32 %v2081, %v2153
    %v2155 = vpop.f32.mrb[0].mxu0
    %v2156 = vadd.f32 %v2083, %v2155
    %v2157 = vpop.f32.mrb[0].mxu0
    %v2158 = vadd.f32 %v2085, %v2157
    %2159 = vmatprep.mubr.bf16.mxu0 %v509
    %2160 = vmatmul.mubr.bf16.gmra.mrb[0].mxu0 %v508
    %v2161 = vpop.f32.mrb[0].mxu0
    %v2162 = vadd.f32 %v2089, %v2161
    %v2163 = vpop.f32.mrb[0].mxu0
    %v2164 = vadd.f32 %v2091, %v2163
    %v2165 = vpop.f32.mrb[0].mxu0
    %v2166 = vadd.f32 %v2093, %v2165
    %v2167 = vpop.f32.mrb[0].mxu0
    %v2168 = vadd.f32 %v2095, %v2167
    %2169 = vdwg.mxu0
    %2170 = vmatprep.subr.bf16.mxu0 %v1406
    %2171 = vmatpush1.bf16.msra.mxu0 %v1405
    %2172 = vmatprep.subr.bf16.mxu0 %v1410
    %2173 = vmatpush1.bf16.msra.mxu0 %v1409
    %2174 = vmatprep.subr.bf16.mxu0 %v1414
    %2175 = vmatpush1.bf16.msra.mxu0 %v1413
    %2176 = vmatprep.subr.bf16.mxu0 %v1418
    %2177 = vmatpush1.bf16.msra.mxu0 %v1417
    %2178 = vmatprep.subr.bf16.mxu0 %v1422
    %2179 = vmatpush1.bf16.msra.mxu0 %v1421
    %2180 = vmatprep.subr.bf16.mxu0 %v1426
    %2181 = vmatpush1.bf16.msra.mxu0 %v1425
    %2182 = vmatprep.subr.bf16.mxu0 %v1430
    %2183 = vmatpush1.bf16.msra.mxu0 %v1429
    %2184 = vmatprep.subr.bf16.mxu0 %v1434
    %2185 = vmatpush1.bf16.msra.mxu0 %v1433
    %2186 = vmatprep.subr.bf16.mxu0 0
    %2187 = vmatpush1.bf16.msra.mxu0 0
    %2188 = vmatprep.subr.bf16.mxu0 0
    %2189 = vmatpush1.bf16.msra.mxu0 0
    %2190 = vmatprep.subr.bf16.mxu0 0
    %2191 = vmatpush1.bf16.msra.mxu0 0
    %2192 = vmatprep.subr.bf16.mxu0 0
    %2193 = vmatpush1.bf16.msra.mxu0 0
    %2194 = vmatprep.subr.bf16.mxu0 0
    %2195 = vmatpush1.bf16.msra.mxu0 0
    %2196 = vmatprep.subr.bf16.mxu0 0
    %2197 = vmatpush1.bf16.msra.mxu0 0
    %2198 = vmatprep.subr.bf16.mxu0 0
    %2199 = vmatpush1.bf16.msra.mxu0 0
    %2200 = vmatprep.subr.bf16.mxu0 0
    %2201 = vmatpush1.bf16.msra.mxu0 0
    %2202 = vmatprep.mubr.bf16.mxu0 0
    %2203 = vmatmul.mubr.bf16.gmra.mrb[0].mxu0 %v489
    %v2204 = vpop.f32.mrb[0].mxu0
    %v2205 = vadd.f32 %v2132, %v2204
    %v2206 = vpop.f32.mrb[0].mxu0
    %v2207 = vadd.f32 %v2134, %v2206
    %v2208 = vpop.f32.mrb[0].mxu0
    %v2209 = vadd.f32 %v2136, %v2208
    %v2210 = vpop.f32.mrb[0].mxu0
    %v2211 = vadd.f32 %v2138, %v2210
    %2212 = vmatprep.mubr.bf16.mxu0 0
    %2213 = vmatmul.mubr.bf16.gmra.mrb[0].mxu0 %v496
    %v2214 = vpop.f32.mrb[0].mxu0
    %v2215 = vadd.f32 %v2142, %v2214
    %v2216 = vpop.f32.mrb[0].mxu0
    %v2217 = vadd.f32 %v2144, %v2216
    %v2218 = vpop.f32.mrb[0].mxu0
    %v2219 = vadd.f32 %v2146, %v2218
    %v2220 = vpop.f32.mrb[0].mxu0
    %v2221 = vadd.f32 %v2148, %v2220
    %2222 = vmatprep.mubr.bf16.mxu0 0
    %2223 = vmatmul.mubr.bf16.gmra.mrb[0].mxu0 %v503
    %v2224 = vpop.f32.mrb[0].mxu0
    %v2225 = vadd.f32 %v2152, %v2224
    %v2226 = vpop.f32.mrb[0].mxu0
    %v2227 = vadd.f32 %v2154, %v2226
    %v2228 = vpop.f32.mrb[0].mxu0
    %v2229 = vadd.f32 %v2156, %v2228
    %v2230 = vpop.f32.mrb[0].mxu0
    %v2231 = vadd.f32 %v2158, %v2230
    %2232 = vmatprep.mubr.bf16.mxu0 0
    %2233 = vmatmul.mubr.bf16.gmra.mrb[0].mxu0 %v510
    %v2234 = vpop.f32.mrb[0].mxu0
    %v2235 = vadd.f32 %v2162, %v2234
    %v2236 = vpop.f32.mrb[0].mxu0
    %v2237 = vadd.f32 %v2164, %v2236
    %v2238 = vpop.f32.mrb[0].mxu0
    %v2239 = vadd.f32 %v2166, %v2238
    %v2240 = vpop.f32.mrb[0].mxu0
    %v2241 = vadd.f32 %v2168, %v2240
    %2242 = vdwg.mxu0
    %v2243 = vmul.f32 %v1913, 0.01
    %v2244 = vmul.f32 %v1915, 0.01
    %v2245 = vmul.f32 %v2205, 0.01
    %v2246 = vmul.f32 %v2207, 0.01
    %v2247 = vmul.f32 %v1917, 0.01
    %v2248 = vmul.f32 %v1919, 0.01
    %v2249 = vmul.f32 %v2209, 0.01
    %v2250 = vmul.f32 %v2211, 0.01
    %v2251 = vmul.f32 %v1923, 0.01
    %v2252 = vmul.f32 %v1925, 0.01
    %v2253 = vmul.f32 %v2215, 0.01
    %v2254 = vmul.f32 %v2217, 0.01
    %v2255 = vmul.f32 %v1927, 0.01
    %v2256 = vmul.f32 %v1929, 0.01
    %v2257 = vmul.f32 %v2219, 0.01
    %v2258 = vmul.f32 %v2221, 0.01
    %v2259 = vmul.f32 %v1933, 0.01
    %v2260 = vmul.f32 %v1935, 0.01
    %v2261 = vmul.f32 %v2225, 0.01
    %v2262 = vmul.f32 %v2227, 0.01
    %v2263 = vmul.f32 %v1937, 0.01
    %v2264 = vmul.f32 %v1939, 0.01
    %v2265 = vmul.f32 %v2229, 0.01
    %v2266 = vmul.f32 %v2231, 0.01
    %v2267 = vmul.f32 %v1943, 0.01
    %v2268 = vmul.f32 %v1945, 0.01
    %v2269 = vmul.f32 %v2235, 0.01
    %v2270 = vmul.f32 %v2237, 0.01
    %v2271 = vmul.f32 %v1947, 0.01
    %v2272 = vmul.f32 %v1949, 0.01
    %v2273 = vmul.f32 %v2239, 0.01
    %v2274 = vmul.f32 %v2241, 0.01
    %v2275 = vmax.f32 %v1913, %v2243
    %v2276 = vmax.f32 %v1915, %v2244
    %v2277 = vmax.f32 %v2205, %v2245
    %v2278 = vmax.f32 %v2207, %v2246
    %v2279 = vmax.f32 %v1917, %v2247
    %v2280 = vmax.f32 %v1919, %v2248
    %v2281 = vmax.f32 %v2209, %v2249
    %v2282 = vmax.f32 %v2211, %v2250
    %v2283 = vmax.f32 %v1923, %v2251
    %v2284 = vmax.f32 %v1925, %v2252
    %v2285 = vmax.f32 %v2215, %v2253
    %v2286 = vmax.f32 %v2217, %v2254
    %v2287 = vmax.f32 %v1927, %v2255
    %v2288 = vmax.f32 %v1929, %v2256
    %v2289 = vmax.f32 %v2219, %v2257
    %v2290 = vmax.f32 %v2221, %v2258
    %v2291 = vmax.f32 %v1933, %v2259
    %v2292 = vmax.f32 %v1935, %v2260
    %v2293 = vmax.f32 %v2225, %v2261
    %v2294 = vmax.f32 %v2227, %v2262
    %v2295 = vmax.f32 %v1937, %v2263
    %v2296 = vmax.f32 %v1939, %v2264
    %v2297 = vmax.f32 %v2229, %v2265
    %v2298 = vmax.f32 %v2231, %v2266
    %v2299 = vmax.f32 %v1943, %v2267
    %v2300 = vmax.f32 %v1945, %v2268
    %v2301 = vmax.f32 %v2235, %v2269
    %v2302 = vmax.f32 %v2237, %v2270
    %v2303 = vmax.f32 %v1947, %v2271
    %v2304 = vmax.f32 %v1949, %v2272
    %v2305 = vmax.f32 %v2239, %v2273
    %v2306 = vmax.f32 %v2241, %v2274
    %v2307 = vpack.c.bf16 %v2279, %v2275
    %v2308 = vpack.c.bf16 %v2280, %v2276
    %v2309 = vpack.c.bf16 %v2281, %v2277
    %v2310 = vpack.c.bf16 %v2282, %v2278
    %v2311 = vpack.c.bf16 %v2287, %v2283
    %v2312 = vpack.c.bf16 %v2288, %v2284
    %v2313 = vpack.c.bf16 %v2289, %v2285
    %v2314 = vpack.c.bf16 %v2290, %v2286
    %v2315 = vpack.c.bf16 %v2295, %v2291
    %v2316 = vpack.c.bf16 %v2296, %v2292
    %v2317 = vpack.c.bf16 %v2297, %v2293
    %v2318 = vpack.c.bf16 %v2298, %v2294
    %v2319 = vpack.c.bf16 %v2303, %v2299
    %v2320 = vpack.c.bf16 %v2304, %v2300
    %v2321 = vpack.c.bf16 %v2305, %v2301
    %v2322 = vpack.c.bf16 %v2306, %v2302
    %v2323 = vld [vmem:[#allocation7] sm:$0xf]
    %v2324 = vld [vmem:[#allocation7 + $0x4] sm:$0xf]
    %v2325 = vld [vmem:[#allocation7 + $0x8] sm:$0xf]
    %v2326 = vld [vmem:[#allocation7 + $0xc] sm:$0xf]
    %v2327 = vld [vmem:[#allocation7 + $0x10] sm:$0xf]
    %v2328 = vld [vmem:[#allocation7 + $0x14] sm:$0xf]
    %v2329 = vld [vmem:[#allocation7 + $0x18] sm:$0xf]
    %v2330 = vld [vmem:[#allocation7 + $0x1c] sm:$0xf]
    %v2331 = vld [vmem:[#allocation7 + $0x20] sm:$0xf]
    %v2332 = vld [vmem:[#allocation7 + $0x24] sm:$0xf]
    %v2333 = vld [vmem:[#allocation7 + $0x28] sm:$0xf]
    %v2334 = vld [vmem:[#allocation7 + $0x2c] sm:$0xf]
    %v2335 = vld [vmem:[#allocation7 + $0x30] sm:$0xf]
    %v2336 = vld [vmem:[#allocation7 + $0x34] sm:$0xf]
    %v2337 = vld [vmem:[#allocation7 + $0x38] sm:$0xf]
    %v2338 = vld [vmem:[#allocation7 + $0x3c] sm:$0xf]
    %v2339 = vld [vmem:[#allocation7 + $0x40] sm:$0xf]
    %v2340 = vld [vmem:[#allocation7 + $0x44] sm:$0xf]
    %v2341 = vld [vmem:[#allocation7 + $0x48] sm:$0xf]
    %v2342 = vld [vmem:[#allocation7 + $0x4c] sm:$0xf]
    %v2343 = vld [vmem:[#allocation7 + $0x50] sm:$0xf]
    %v2344 = vld [vmem:[#allocation7 + $0x54] sm:$0xf]
    %v2345 = vld [vmem:[#allocation7 + $0x58] sm:$0xf]
    %v2346 = vld [vmem:[#allocation7 + $0x5c] sm:$0xf]
    %v2347 = vld [vmem:[#allocation7 + $0x60] sm:$0xf]
    %v2348 = vld [vmem:[#allocation7 + $0x64] sm:$0xf]
    %v2349 = vld [vmem:[#allocation7 + $0x68] sm:$0xf]
    %v2350 = vld [vmem:[#allocation7 + $0x6c] sm:$0xf]
    %v2351 = vld [vmem:[#allocation7 + $0x70] sm:$0xf]
    %v2352 = vld [vmem:[#allocation7 + $0x74] sm:$0xf]
    %v2353 = vld [vmem:[#allocation7 + $0x78] sm:$0xf]
    %v2354 = vld [vmem:[#allocation7 + $0x7c] sm:$0xf]
    %v2355 = vld [vmem:[#allocation7 + $0x80] sm:$0xf]
    %v2356 = vld [vmem:[#allocation7 + $0x84] sm:$0xf]
    %v2357 = vld [vmem:[#allocation7 + $0x88] sm:$0xf]
    %v2358 = vld [vmem:[#allocation7 + $0x8c] sm:$0xf]
    %v2359 = vld [vmem:[#allocation7 + $0x90] sm:$0xf]
    %v2360 = vld [vmem:[#allocation7 + $0x94] sm:$0xf]
    %v2361 = vld [vmem:[#allocation7 + $0x98] sm:$0xf]
    %v2362 = vld [vmem:[#allocation7 + $0x9c] sm:$0xf]
    %v2363 = vld [vmem:[#allocation7 + $0xa0] sm:$0xf]
    %v2364 = vld [vmem:[#allocation7 + $0xa4] sm:$0xf]
    %v2365 = vld [vmem:[#allocation7 + $0xa8] sm:$0xf]
    %v2366 = vld [vmem:[#allocation7 + $0xac] sm:$0xf]
    %v2367 = vld [vmem:[#allocation7 + $0xb0] sm:$0xf]
    %v2368 = vld [vmem:[#allocation7 + $0xb4] sm:$0xf]
    %v2369 = vld [vmem:[#allocation7 + $0xb8] sm:$0xf]
    %v2370 = vld [vmem:[#allocation7 + $0xbc] sm:$0xf]
    %v2371 = vld [vmem:[#allocation7 + $0xc0] sm:$0xf]
    %v2372 = vld [vmem:[#allocation7 + $0xc4] sm:$0xf]
    %v2373 = vld [vmem:[#allocation7 + $0xc8] sm:$0xf]
    %v2374 = vld [vmem:[#allocation7 + $0xcc] sm:$0xf]
    %v2375 = vld [vmem:[#allocation7 + $0xd0] sm:$0xf]
    %v2376 = vld [vmem:[#allocation7 + $0xd4] sm:$0xf]
    %v2377 = vld [vmem:[#allocation7 + $0xd8] sm:$0xf]
    %v2378 = vld [vmem:[#allocation7 + $0xdc] sm:$0xf]
    %v2379 = vld [vmem:[#allocation7 + $0xe0] sm:$0xf]
    %v2380 = vld [vmem:[#allocation7 + $0xe4] sm:$0xf]
    %v2381 = vld [vmem:[#allocation7 + $0xe8] sm:$0xf]
    %v2382 = vld [vmem:[#allocation7 + $0xec] sm:$0xf]
    %v2383 = vld [vmem:[#allocation7 + $0xf0] sm:$0xf]
    %v2384 = vld [vmem:[#allocation7 + $0xf4] sm:$0xf]
    %v2385 = vld [vmem:[#allocation7 + $0xf8] sm:$0xf]
    %v2386 = vld [vmem:[#allocation7 + $0xfc] sm:$0xf]
    %v2387 = vld [vmem:[#allocation8] sm:$0x1]
    %v2389 = vlaneseq
    %v2390 = vshrl.u32 %v2389, 7
    %v2391 = vsub.s32 0, %v2390
    %v2392 = vrot.slane %v2387, %v2391
    %v2458 = vunpack.c.l.b16 %v2323
    %v2459 = vunpack.c.l.b16 %v2324
    %v2460 = vunpack.c.l.b16 %v2325
    %v2461 = vunpack.c.l.b16 %v2326
    %v2462 = vunpack.c.l.b16 %v2327
    %v2463 = vunpack.c.l.b16 %v2328
    %v2464 = vunpack.c.l.b16 %v2329
    %v2465 = vunpack.c.l.b16 %v2330
    %v2466 = vunpack.c.l.b16 %v2331
    %v2467 = vunpack.c.l.b16 %v2332
    %v2468 = vunpack.c.l.b16 %v2333
    %v2469 = vunpack.c.l.b16 %v2334
    %v2470 = vunpack.c.l.b16 %v2335
    %v2471 = vunpack.c.l.b16 %v2336
    %v2472 = vunpack.c.l.b16 %v2337
    %v2473 = vunpack.c.l.b16 %v2338
    %v2474 = vunpack.c.l.b16 %v2339
    %v2475 = vunpack.c.l.b16 %v2340
    %v2476 = vunpack.c.l.b16 %v2341
    %v2477 = vunpack.c.l.b16 %v2342
    %v2478 = vunpack.c.l.b16 %v2343
    %v2479 = vunpack.c.l.b16 %v2344
    %v2480 = vunpack.c.l.b16 %v2345
    %v2481 = vunpack.c.l.b16 %v2346
    %v2482 = vunpack.c.l.b16 %v2347
    %v2483 = vunpack.c.l.b16 %v2348
    %v2484 = vunpack.c.l.b16 %v2349
    %v2485 = vunpack.c.l.b16 %v2350
    %v2486 = vunpack.c.l.b16 %v2351
    %v2487 = vunpack.c.l.b16 %v2352
    %v2488 = vunpack.c.l.b16 %v2353
    %v2489 = vunpack.c.l.b16 %v2354
    %v2490 = vunpack.c.l.b16 %v2355
    %v2491 = vunpack.c.l.b16 %v2356
    %v2492 = vunpack.c.l.b16 %v2357
    %v2493 = vunpack.c.l.b16 %v2358
    %v2494 = vunpack.c.l.b16 %v2359
    %v2495 = vunpack.c.l.b16 %v2360
    %v2496 = vunpack.c.l.b16 %v2361
    %v2497 = vunpack.c.l.b16 %v2362
    %v2498 = vunpack.c.l.b16 %v2363
    %v2499 = vunpack.c.l.b16 %v2364
    %v2500 = vunpack.c.l.b16 %v2365
    %v2501 = vunpack.c.l.b16 %v2366
    %v2502 = vunpack.c.l.b16 %v2367
    %v2503 = vunpack.c.l.b16 %v2368
    %v2504 = vunpack.c.l.b16 %v2369
    %v2505 = vunpack.c.l.b16 %v2370
    %v2506 = vunpack.c.l.b16 %v2371
    %v2507 = vunpack.c.l.b16 %v2372
    %v2508 = vunpack.c.l.b16 %v2373
    %v2509 = vunpack.c.l.b16 %v2374
    %v2510 = vunpack.c.l.b16 %v2375
    %v2511 = vunpack.c.l.b16 %v2376
    %v2512 = vunpack.c.l.b16 %v2377
    %v2513 = vunpack.c.l.b16 %v2378
    %v2514 = vunpack.c.l.b16 %v2379
    %v2515 = vunpack.c.l.b16 %v2380
    %v2516 = vunpack.c.l.b16 %v2381
    %v2517 = vunpack.c.l.b16 %v2382
    %v2518 = vunpack.c.l.b16 %v2383
    %v2519 = vunpack.c.l.b16 %v2384
    %v2520 = vunpack.c.l.b16 %v2385
    %v2521 = vunpack.c.l.b16 %v2386
    %v2522 = vpack.c.b16 %v2459, %v2458
    %v2523 = vpack.c.b16 %v2461, %v2460
    %v2524 = vpack.c.b16 %v2463, %v2462
    %v2525 = vpack.c.b16 %v2465, %v2464
    %v2526 = vpack.c.b16 %v2467, %v2466
    %v2527 = vpack.c.b16 %v2469, %v2468
    %v2528 = vpack.c.b16 %v2471, %v2470
    %v2529 = vpack.c.b16 %v2473, %v2472
    %v2530 = vpack.c.b16 %v2475, %v2474
    %v2531 = vpack.c.b16 %v2477, %v2476
    %v2532 = vpack.c.b16 %v2479, %v2478
    %v2533 = vpack.c.b16 %v2481, %v2480
    %v2534 = vpack.c.b16 %v2483, %v2482
    %v2535 = vpack.c.b16 %v2485, %v2484
    %v2536 = vpack.c.b16 %v2487, %v2486
    %v2537 = vpack.c.b16 %v2489, %v2488
    %v2538 = vpack.c.b16 %v2491, %v2490
    %v2539 = vpack.c.b16 %v2493, %v2492
    %v2540 = vpack.c.b16 %v2495, %v2494
    %v2541 = vpack.c.b16 %v2497, %v2496
    %v2542 = vpack.c.b16 %v2499, %v2498
    %v2543 = vpack.c.b16 %v2501, %v2500
    %v2544 = vpack.c.b16 %v2503, %v2502
    %v2545 = vpack.c.b16 %v2505, %v2504
    %v2546 = vpack.c.b16 %v2507, %v2506
    %v2547 = vpack.c.b16 %v2509, %v2508
    %v2548 = vpack.c.b16 %v2511, %v2510
    %v2549 = vpack.c.b16 %v2513, %v2512
    %v2550 = vpack.c.b16 %v2515, %v2514
    %v2551 = vpack.c.b16 %v2517, %v2516
    %v2552 = vpack.c.b16 %v2519, %v2518
    %v2553 = vpack.c.b16 %v2521, %v2520
    %2586 = vmatprep.subr.bf16.mxu0 0
    %2587 = vmatpush1.bf16.msra.mxu0 %v2522
    %2588 = vmatprep.subr.bf16.mxu0 0
    %2589 = vmatpush1.bf16.msra.mxu0 %v2523
    %2590 = vmatprep.subr.bf16.mxu0 0
    %2591 = vmatpush1.bf16.msra.mxu0 %v2524
    %2592 = vmatprep.subr.bf16.mxu0 0
    %2593 = vmatpush1.bf16.msra.mxu0 %v2525
    %2594 = vmatprep.subr.bf16.mxu0 0
    %2595 = vmatpush1.bf16.msra.mxu0 %v2526
    %2596 = vmatprep.subr.bf16.mxu0 0
    %2597 = vmatpush1.bf16.msra.mxu0 %v2527
    %2598 = vmatprep.subr.bf16.mxu0 0
    %2599 = vmatpush1.bf16.msra.mxu0 %v2528
    %2600 = vmatprep.subr.bf16.mxu0 0
    %2601 = vmatpush1.bf16.msra.mxu0 %v2529
    %2602 = vmatprep.subr.bf16.mxu0 0
    %2603 = vmatpush1.bf16.msra.mxu0 %v2530
    %2604 = vmatprep.subr.bf16.mxu0 0
    %2605 = vmatpush1.bf16.msra.mxu0 %v2531
    %2606 = vmatprep.subr.bf16.mxu0 0
    %2607 = vmatpush1.bf16.msra.mxu0 %v2532
    %2608 = vmatprep.subr.bf16.mxu0 0
    %2609 = vmatpush1.bf16.msra.mxu0 %v2533
    %2610 = vmatprep.subr.bf16.mxu0 0
    %2611 = vmatpush1.bf16.msra.mxu0 %v2534
    %2612 = vmatprep.subr.bf16.mxu0 0
    %2613 = vmatpush1.bf16.msra.mxu0 %v2535
    %2614 = vmatprep.subr.bf16.mxu0 0
    %2615 = vmatpush1.bf16.msra.mxu0 %v2536
    %2616 = vmatprep.subr.bf16.mxu0 0
    %2617 = vmatpush1.bf16.msra.mxu0 %v2537
    %2618 = vmatprep.mubr.bf16.mxu0 %v2308
    %2619 = vmatmul.mubr.bf16.gmra.mrb[0].mxu0 %v2307
    %v2620 = vpop.f32.mrb[0].mxu0
    %v2621 = vadd.f32 %v2392, %v2620
    %v2622 = vpop.f32.mrb[0].mxu0
    %v2623 = vpop.f32.mrb[0].mxu0
    %v2624 = vadd.f32 %v2392, %v2623
    %v2625 = vpop.f32.mrb[0].mxu0
    %2626 = vmatprep.mubr.bf16.mxu0 %v2312
    %2627 = vmatmul.mubr.bf16.gmra.mrb[0].mxu0 %v2311
    %v2628 = vpop.f32.mrb[0].mxu0
    %v2629 = vadd.f32 %v2392, %v2628
    %v2630 = vpop.f32.mrb[0].mxu0
    %v2631 = vpop.f32.mrb[0].mxu0
    %v2632 = vadd.f32 %v2392, %v2631
    %v2633 = vpop.f32.mrb[0].mxu0
    %2634 = vmatprep.mubr.bf16.mxu0 %v2316
    %2635 = vmatmul.mubr.bf16.gmra.mrb[0].mxu0 %v2315
    %v2636 = vpop.f32.mrb[0].mxu0
    %v2637 = vadd.f32 %v2392, %v2636
    %v2638 = vpop.f32.mrb[0].mxu0
    %v2639 = vpop.f32.mrb[0].mxu0
    %v2640 = vadd.f32 %v2392, %v2639
    %v2641 = vpop.f32.mrb[0].mxu0
    %2642 = vmatprep.mubr.bf16.mxu0 %v2320
    %2643 = vmatmul.mubr.bf16.gmra.mrb[0].mxu0 %v2319
    %v2644 = vpop.f32.mrb[0].mxu0
    %v2645 = vadd.f32 %v2392, %v2644
    %v2646 = vpop.f32.mrb[0].mxu0
    %v2647 = vpop.f32.mrb[0].mxu0
    %v2648 = vadd.f32 %v2392, %v2647
    %v2649 = vpop.f32.mrb[0].mxu0
    %2650 = vdwg.mxu0
    %2651 = vmatprep.subr.bf16.mxu0 0
    %2652 = vmatpush1.bf16.msra.mxu0 %v2538
    %2653 = vmatprep.subr.bf16.mxu0 0
    %2654 = vmatpush1.bf16.msra.mxu0 %v2539
    %2655 = vmatprep.subr.bf16.mxu0 0
    %2656 = vmatpush1.bf16.msra.mxu0 %v2540
    %2657 = vmatprep.subr.bf16.mxu0 0
    %2658 = vmatpush1.bf16.msra.mxu0 %v2541
    %2659 = vmatprep.subr.bf16.mxu0 0
    %2660 = vmatpush1.bf16.msra.mxu0 %v2542
    %2661 = vmatprep.subr.bf16.mxu0 0
    %2662 = vmatpush1.bf16.msra.mxu0 %v2543
    %2663 = vmatprep.subr.bf16.mxu0 0
    %2664 = vmatpush1.bf16.msra.mxu0 %v2544
    %2665 = vmatprep.subr.bf16.mxu0 0
    %2666 = vmatpush1.bf16.msra.mxu0 %v2545
    %2667 = vmatprep.subr.bf16.mxu0 0
    %2668 = vmatpush1.bf16.msra.mxu0 %v2546
    %2669 = vmatprep.subr.bf16.mxu0 0
    %2670 = vmatpush1.bf16.msra.mxu0 %v2547
    %2671 = vmatprep.subr.bf16.mxu0 0
    %2672 = vmatpush1.bf16.msra.mxu0 %v2548
    %2673 = vmatprep.subr.bf16.mxu0 0
    %2674 = vmatpush1.bf16.msra.mxu0 %v2549
    %2675 = vmatprep.subr.bf16.mxu0 0
    %2676 = vmatpush1.bf16.msra.mxu0 %v2550
    %2677 = vmatprep.subr.bf16.mxu0 0
    %2678 = vmatpush1.bf16.msra.mxu0 %v2551
    %2679 = vmatprep.subr.bf16.mxu0 0
    %2680 = vmatpush1.bf16.msra.mxu0 %v2552
    %2681 = vmatprep.subr.bf16.mxu0 0
    %2682 = vmatpush1.bf16.msra.mxu0 %v2553
    %2683 = vmatprep.mubr.bf16.mxu0 %v2310
    %2684 = vmatmul.mubr.bf16.gmra.mrb[0].mxu0 %v2309
    %v2685 = vpop.f32.mrb[0].mxu0
    %v2686 = vadd.f32 %v2621, %v2685
    %v2687 = vpop.f32.mrb[0].mxu0
    %v2688 = vpop.f32.mrb[0].mxu0
    %v2689 = vadd.f32 %v2624, %v2688
    %v2690 = vpop.f32.mrb[0].mxu0
    %2691 = vmatprep.mubr.bf16.mxu0 %v2314
    %2692 = vmatmul.mubr.bf16.gmra.mrb[0].mxu0 %v2313
    %v2693 = vpop.f32.mrb[0].mxu0
    %v2694 = vadd.f32 %v2629, %v2693
    %v2695 = vpop.f32.mrb[0].mxu0
    %v2696 = vpop.f32.mrb[0].mxu0
    %v2697 = vadd.f32 %v2632, %v2696
    %v2698 = vpop.f32.mrb[0].mxu0
    %2699 = vmatprep.mubr.bf16.mxu0 %v2318
    %2700 = vmatmul.mubr.bf16.gmra.mrb[0].mxu0 %v2317
    %v2701 = vpop.f32.mrb[0].mxu0
    %v2702 = vadd.f32 %v2637, %v2701
    %v2703 = vpop.f32.mrb[0].mxu0
    %v2704 = vpop.f32.mrb[0].mxu0
    %v2705 = vadd.f32 %v2640, %v2704
    %v2706 = vpop.f32.mrb[0].mxu0
    %2707 = vmatprep.mubr.bf16.mxu0 %v2322
    %2708 = vmatmul.mubr.bf16.gmra.mrb[0].mxu0 %v2321
    %v2709 = vpop.f32.mrb[0].mxu0
    %v2710 = vadd.f32 %v2645, %v2709
    %v2711 = vpop.f32.mrb[0].mxu0
    %v2712 = vpop.f32.mrb[0].mxu0
    %v2713 = vadd.f32 %v2648, %v2712
    %v2714 = vpop.f32.mrb[0].mxu0
    %2715 = vdwg.mxu0
    %v2716 = vmul.f32 %v2686, 0.01
    %v2717 = vmul.f32 %v2689, 0.01
    %v2718 = vmul.f32 %v2694, 0.01
    %v2719 = vmul.f32 %v2697, 0.01
    %v2720 = vmul.f32 %v2702, 0.01
    %v2721 = vmul.f32 %v2705, 0.01
    %v2722 = vmul.f32 %v2710, 0.01
    %v2723 = vmul.f32 %v2713, 0.01
    %v2724 = vmax.f32 %v2686, %v2716
    %v2725 = vmax.f32 %v2689, %v2717
    %v2726 = vmax.f32 %v2694, %v2718
    %v2727 = vmax.f32 %v2697, %v2719
    %v2728 = vmax.f32 %v2702, %v2720
    %v2729 = vmax.f32 %v2705, %v2721
    %v2730 = vmax.f32 %v2710, %v2722
    %v2731 = vmax.f32 %v2713, %v2723
    %v2732 = vpack.c.bf16 %v2725, %v2724
    %v2733 = vpack.c.bf16 %v2727, %v2726
    %v2734 = vpack.c.bf16 %v2729, %v2728
    %v2735 = vpack.c.bf16 %v2731, %v2730
    %v2740 = vunpack.c.l.b16 %v2732
    %v2741 = vunpack.c.h.b16 %v2732
    %v2742 = vunpack.c.l.b16 %v2733
    %v2743 = vunpack.c.h.b16 %v2733
    %v2744 = vunpack.c.l.b16 %v2734
    %v2745 = vunpack.c.h.b16 %v2734
    %v2746 = vunpack.c.l.b16 %v2735
    %v2747 = vunpack.c.h.b16 %v2735
    %v2748 = vpack.c.b16 %v2740, %v2740
    %v2749 = vpack.c.b16 %v2741, %v2741
    %v2750 = vpack.c.b16 %v2742, %v2742
    %v2751 = vpack.c.b16 %v2743, %v2743
    %v2752 = vpack.c.b16 %v2744, %v2744
    %v2753 = vpack.c.b16 %v2745, %v2745
    %v2754 = vpack.c.b16 %v2746, %v2746
    %v2755 = vpack.c.b16 %v2747, %v2747
    %2764 = vst [vmem:[#allocation14] sm:$0xf] %v2748
    %2765 = vst [vmem:[#allocation14 + $0x4] sm:$0xf] %v2749
    %2766 = vst [vmem:[#allocation14 + $0x8] sm:$0xf] %v2750
    %2767 = vst [vmem:[#allocation14 + $0xc] sm:$0xf] %v2751
    %2768 = vst [vmem:[#allocation14 + $0x10] sm:$0xf] %v2752
    %2769 = vst [vmem:[#allocation14 + $0x14] sm:$0xf] %v2753
    %2770 = vst [vmem:[#allocation14 + $0x18] sm:$0xf] %v2754
    %2771 = vst [vmem:[#allocation14 + $0x1c] sm:$0xf] %v2755
    %v2772 = vld [vmem:[#allocation10] sm:$0xff]
    %v2773 = vld [vmem:[#allocation10 + $0x8] sm:$0xff]
    %v2774 = vld [vmem:[#allocation10 + $0x10] sm:$0xff]
    %v2775 = vld [vmem:[#allocation10 + $0x18] sm:$0xff]
    %v2776 = vld [vmem:[#allocation10 + $0x20] sm:$0xff]
    %v2777 = vld [vmem:[#allocation10 + $0x28] sm:$0xff]
    %v2778 = vld [vmem:[#allocation10 + $0x30] sm:$0xff]
    %v2779 = vld [vmem:[#allocation10 + $0x38] sm:$0xff]
    %v2780 = vld [vmem:[#allocation10 + $0x40] sm:$0xff]
    %v2781 = vld [vmem:[#allocation10 + $0x48] sm:$0xff]
    %v2782 = vld [vmem:[#allocation10 + $0x50] sm:$0xff]
    %v2783 = vld [vmem:[#allocation10 + $0x58] sm:$0xff]
    %v2784 = vld [vmem:[#allocation10 + $0x60] sm:$0xff]
    %v2785 = vld [vmem:[#allocation10 + $0x68] sm:$0xff]
    %v2786 = vld [vmem:[#allocation10 + $0x70] sm:$0xff]
    %v2787 = vld [vmem:[#allocation10 + $0x78] sm:$0xff]
    %v2788 = vld [vmem:[#allocation10 + $0x80] sm:$0xff]
    %v2789 = vld [vmem:[#allocation10 + $0x88] sm:$0xff]
    %v2790 = vld [vmem:[#allocation10 + $0x90] sm:$0xff]
    %v2791 = vld [vmem:[#allocation10 + $0x98] sm:$0xff]
    %v2792 = vld [vmem:[#allocation10 + $0xa0] sm:$0xff]
    %v2793 = vld [vmem:[#allocation10 + $0xa8] sm:$0xff]
    %v2794 = vld [vmem:[#allocation10 + $0xb0] sm:$0xff]
    %v2795 = vld [vmem:[#allocation10 + $0xb8] sm:$0xff]
    %v2796 = vld [vmem:[#allocation10 + $0xc0] sm:$0xff]
    %v2797 = vld [vmem:[#allocation10 + $0xc8] sm:$0xff]
    %v2798 = vld [vmem:[#allocation10 + $0xd0] sm:$0xff]
    %v2799 = vld [vmem:[#allocation10 + $0xd8] sm:$0xff]
    %v2800 = vld [vmem:[#allocation10 + $0xe0] sm:$0xff]
    %v2801 = vld [vmem:[#allocation10 + $0xe8] sm:$0xff]
    %v2802 = vld [vmem:[#allocation10 + $0xf0] sm:$0xff]
    %v2803 = vld [vmem:[#allocation10 + $0xf8] sm:$0xff]
    %v2804 = vld [vmem:[%s6] sm:$0xf]
    %v2806 = vlaneseq
    %v2807 = vshrl.u32 %v2806, 7
    %v2808 = vsub.s32 0, %v2807
    %v2809 = vrot.slane %v2804, %v2808
    %v2810 = vlaneseq
    %v2811 = vshrl.u32 %v2810, 7
    %v2812 = vsub.s32 1, %v2811
    %v2813 = vrot.slane %v2804, %v2812
    %v2814 = vlaneseq
    %v2815 = vshrl.u32 %v2814, 7
    %v2816 = vsub.s32 2, %v2815
    %v2817 = vrot.slane %v2804, %v2816
    %v2818 = vlaneseq
    %v2819 = vshrl.u32 %v2818, 7
    %v2820 = vsub.s32 3, %v2819
    %v2821 = vrot.slane %v2804, %v2820
    %v2858 = vunpack.c.l.b16 %v2772
    %v2859 = vunpack.c.h.b16 %v2772
    %v2860 = vunpack.c.l.b16 %v2773
    %v2861 = vunpack.c.h.b16 %v2773
    %v2862 = vunpack.c.l.b16 %v2774
    %v2863 = vunpack.c.h.b16 %v2774
    %v2864 = vunpack.c.l.b16 %v2775
    %v2865 = vunpack.c.h.b16 %v2775
    %v2866 = vunpack.c.l.b16 %v2776
    %v2867 = vunpack.c.h.b16 %v2776
    %v2868 = vunpack.c.l.b16 %v2777
    %v2869 = vunpack.c.h.b16 %v2777
    %v2870 = vunpack.c.l.b16 %v2778
    %v2871 = vunpack.c.h.b16 %v2778
    %v2872 = vunpack.c.l.b16 %v2779
    %v2873 = vunpack.c.h.b16 %v2779
    %v2874 = vunpack.c.l.b16 %v2780
    %v2875 = vunpack.c.h.b16 %v2780
    %v2876 = vunpack.c.l.b16 %v2781
    %v2877 = vunpack.c.h.b16 %v2781
    %v2878 = vunpack.c.l.b16 %v2782
    %v2879 = vunpack.c.h.b16 %v2782
    %v2880 = vunpack.c.l.b16 %v2783
    %v2881 = vunpack.c.h.b16 %v2783
    %v2882 = vunpack.c.l.b16 %v2784
    %v2883 = vunpack.c.h.b16 %v2784
    %v2884 = vunpack.c.l.b16 %v2785
    %v2885 = vunpack.c.h.b16 %v2785
    %v2886 = vunpack.c.l.b16 %v2786
    %v2887 = vunpack.c.h.b16 %v2786
    %v2888 = vunpack.c.l.b16 %v2787
    %v2889 = vunpack.c.h.b16 %v2787
    %v2890 = vunpack.c.l.b16 %v2788
    %v2891 = vunpack.c.h.b16 %v2788
    %v2892 = vunpack.c.l.b16 %v2789
    %v2893 = vunpack.c.h.b16 %v2789
    %v2894 = vunpack.c.l.b16 %v2790
    %v2895 = vunpack.c.h.b16 %v2790
    %v2896 = vunpack.c.l.b16 %v2791
    %v2897 = vunpack.c.h.b16 %v2791
    %v2898 = vunpack.c.l.b16 %v2792
    %v2899 = vunpack.c.h.b16 %v2792
    %v2900 = vunpack.c.l.b16 %v2793
    %v2901 = vunpack.c.h.b16 %v2793
    %v2902 = vunpack.c.l.b16 %v2794
    %v2903 = vunpack.c.h.b16 %v2794
    %v2904 = vunpack.c.l.b16 %v2795
    %v2905 = vunpack.c.h.b16 %v2795
    %v2906 = vunpack.c.l.b16 %v2796
    %v2907 = vunpack.c.h.b16 %v2796
    %v2908 = vunpack.c.l.b16 %v2797
    %v2909 = vunpack.c.h.b16 %v2797
    %v2910 = vunpack.c.l.b16 %v2798
    %v2911 = vunpack.c.h.b16 %v2798
    %v2912 = vunpack.c.l.b16 %v2799
    %v2913 = vunpack.c.h.b16 %v2799
    %v2914 = vunpack.c.l.b16 %v2800
    %v2915 = vunpack.c.h.b16 %v2800
    %v2916 = vunpack.c.l.b16 %v2801
    %v2917 = vunpack.c.h.b16 %v2801
    %v2918 = vunpack.c.l.b16 %v2802
    %v2919 = vunpack.c.h.b16 %v2802
    %v2920 = vunpack.c.l.b16 %v2803
    %v2921 = vunpack.c.h.b16 %v2803
    %v2922 = vpack.c.b16 %v2862, %v2858
    %v2923 = vpack.c.b16 %v2863, %v2859
    %v2924 = vpack.c.b16 %v2864, %v2860
    %v2925 = vpack.c.b16 %v2865, %v2861
    %v2926 = vpack.c.b16 %v2870, %v2866
    %v2927 = vpack.c.b16 %v2871, %v2867
    %v2928 = vpack.c.b16 %v2872, %v2868
    %v2929 = vpack.c.b16 %v2873, %v2869
    %v2930 = vpack.c.b16 %v2878, %v2874
    %v2931 = vpack.c.b16 %v2879, %v2875
    %v2932 = vpack.c.b16 %v2880, %v2876
    %v2933 = vpack.c.b16 %v2881, %v2877
    %v2934 = vpack.c.b16 %v2886, %v2882
    %v2935 = vpack.c.b16 %v2887, %v2883
    %v2936 = vpack.c.b16 %v2888, %v2884
    %v2937 = vpack.c.b16 %v2889, %v2885
    %v2938 = vpack.c.b16 %v2894, %v2890
    %v2939 = vpack.c.b16 %v2895, %v2891
    %v2940 = vpack.c.b16 %v2896, %v2892
    %v2941 = vpack.c.b16 %v2897, %v2893
    %v2942 = vpack.c.b16 %v2902, %v2898
    %v2943 = vpack.c.b16 %v2903, %v2899
    %v2944 = vpack.c.b16 %v2904, %v2900
    %v2945 = vpack.c.b16 %v2905, %v2901
    %v2946 = vpack.c.b16 %v2910, %v2906
    %v2947 = vpack.c.b16 %v2911, %v2907
    %v2948 = vpack.c.b16 %v2912, %v2908
    %v2949 = vpack.c.b16 %v2913, %v2909
    %v2950 = vpack.c.b16 %v2918, %v2914
    %v2951 = vpack.c.b16 %v2919, %v2915
    %v2952 = vpack.c.b16 %v2920, %v2916
    %v2953 = vpack.c.b16 %v2921, %v2917
    %2986 = vmatprep.subr.bf16.mxu0 %v2923
    %2987 = vmatpush1.bf16.msra.mxu0 %v2922
    %2988 = vmatprep.subr.bf16.mxu0 %v2927
    %2989 = vmatpush1.bf16.msra.mxu0 %v2926
    %2990 = vmatprep.subr.bf16.mxu0 %v2931
    %2991 = vmatpush1.bf16.msra.mxu0 %v2930
    %2992 = vmatprep.subr.bf16.mxu0 %v2935
    %2993 = vmatpush1.bf16.msra.mxu0 %v2934
    %2994 = vmatprep.subr.bf16.mxu0 %v2939
    %2995 = vmatpush1.bf16.msra.mxu0 %v2938
    %2996 = vmatprep.subr.bf16.mxu0 %v2943
    %2997 = vmatpush1.bf16.msra.mxu0 %v2942
    %2998 = vmatprep.subr.bf16.mxu0 %v2947
    %2999 = vmatpush1.bf16.msra.mxu0 %v2946
    %3000 = vmatprep.subr.bf16.mxu0 %v2951
    %3001 = vmatpush1.bf16.msra.mxu0 %v2950
    %3002 = vmatprep.subr.bf16.mxu0 0
    %3003 = vmatpush1.bf16.msra.mxu0 0
    %3004 = vmatprep.subr.bf16.mxu0 0
    %3005 = vmatpush1.bf16.msra.mxu0 0
    %3006 = vmatprep.subr.bf16.mxu0 0
    %3007 = vmatpush1.bf16.msra.mxu0 0
    %3008 = vmatprep.subr.bf16.mxu0 0
    %3009 = vmatpush1.bf16.msra.mxu0 0
    %3010 = vmatprep.subr.bf16.mxu0 0
    %3011 = vmatpush1.bf16.msra.mxu0 0
    %3012 = vmatprep.subr.bf16.mxu0 0
    %3013 = vmatpush1.bf16.msra.mxu0 0
    %3014 = vmatprep.subr.bf16.mxu0 0
    %3015 = vmatpush1.bf16.msra.mxu0 0
    %3016 = vmatprep.subr.bf16.mxu0 0
    %3017 = vmatpush1.bf16.msra.mxu0 0
    %3018 = vmatprep.mubr.bf16.mxu0 0
    %3019 = vmatmul.mubr.bf16.gmra.mrb[0].mxu0 %v2732
    %v3020 = vpop.f32.mrb[0].mxu0
    %v3021 = vadd.f32 %v2809, %v3020
    %v3022 = vpop.f32.mrb[0].mxu0
    %v3023 = vadd.f32 %v2813, %v3022
    %v3024 = vpop.f32.mrb[0].mxu0
    %v3025 = vadd.f32 %v2809, %v3024
    %v3026 = vpop.f32.mrb[0].mxu0
    %v3027 = vadd.f32 %v2813, %v3026
    %3028 = vmatprep.mubr.bf16.mxu0 0
    %3029 = vmatmul.mubr.bf16.gmra.mrb[0].mxu0 %v2733
    %v3030 = vpop.f32.mrb[0].mxu0
    %v3031 = vadd.f32 %v2809, %v3030
    %v3032 = vpop.f32.mrb[0].mxu0
    %v3033 = vadd.f32 %v2813, %v3032
    %v3034 = vpop.f32.mrb[0].mxu0
    %v3035 = vadd.f32 %v2809, %v3034
    %v3036 = vpop.f32.mrb[0].mxu0
    %v3037 = vadd.f32 %v2813, %v3036
    %3038 = vmatprep.mubr.bf16.mxu0 0
    %3039 = vmatmul.mubr.bf16.gmra.mrb[0].mxu0 %v2734
    %v3040 = vpop.f32.mrb[0].mxu0
    %v3041 = vadd.f32 %v2809, %v3040
    %v3042 = vpop.f32.mrb[0].mxu0
    %v3043 = vadd.f32 %v2813, %v3042
    %v3044 = vpop.f32.mrb[0].mxu0
    %v3045 = vadd.f32 %v2809, %v3044
    %v3046 = vpop.f32.mrb[0].mxu0
    %v3047 = vadd.f32 %v2813, %v3046
    %3048 = vmatprep.mubr.bf16.mxu0 0
    %3049 = vmatmul.mubr.bf16.gmra.mrb[0].mxu0 %v2735
    %v3050 = vpop.f32.mrb[0].mxu0
    %v3051 = vadd.f32 %v2809, %v3050
    %v3052 = vpop.f32.mrb[0].mxu0
    %v3053 = vadd.f32 %v2813, %v3052
    %v3054 = vpop.f32.mrb[0].mxu0
    %v3055 = vadd.f32 %v2809, %v3054
    %v3056 = vpop.f32.mrb[0].mxu0
    %v3057 = vadd.f32 %v2813, %v3056
    %3058 = vdwg.mxu0
    %3059 = vmatprep.subr.bf16.mxu0 %v2925
    %3060 = vmatpush1.bf16.msra.mxu0 %v2924
    %3061 = vmatprep.subr.bf16.mxu0 %v2929
    %3062 = vmatpush1.bf16.msra.mxu0 %v2928
    %3063 = vmatprep.subr.bf16.mxu0 %v2933
    %3064 = vmatpush1.bf16.msra.mxu0 %v2932
    %3065 = vmatprep.subr.bf16.mxu0 %v2937
    %3066 = vmatpush1.bf16.msra.mxu0 %v2936
    %3067 = vmatprep.subr.bf16.mxu0 %v2941
    %3068 = vmatpush1.bf16.msra.mxu0 %v2940
    %3069 = vmatprep.subr.bf16.mxu0 %v2945
    %3070 = vmatpush1.bf16.msra.mxu0 %v2944
    %3071 = vmatprep.subr.bf16.mxu0 %v2949
    %3072 = vmatpush1.bf16.msra.mxu0 %v2948
    %3073 = vmatprep.subr.bf16.mxu0 %v2953
    %3074 = vmatpush1.bf16.msra.mxu0 %v2952
    %3075 = vmatprep.subr.bf16.mxu0 0
    %3076 = vmatpush1.bf16.msra.mxu0 0
    %3077 = vmatprep.subr.bf16.mxu0 0
    %3078 = vmatpush1.bf16.msra.mxu0 0
    %3079 = vmatprep.subr.bf16.mxu0 0
    %3080 = vmatpush1.bf16.msra.mxu0 0
    %3081 = vmatprep.subr.bf16.mxu0 0
    %3082 = vmatpush1.bf16.msra.mxu0 0
    %3083 = vmatprep.subr.bf16.mxu0 0
    %3084 = vmatpush1.bf16.msra.mxu0 0
    %3085 = vmatprep.subr.bf16.mxu0 0
    %3086 = vmatpush1.bf16.msra.mxu0 0
    %3087 = vmatprep.subr.bf16.mxu0 0
    %3088 = vmatpush1.bf16.msra.mxu0 0
    %3089 = vmatprep.subr.bf16.mxu0 0
    %3090 = vmatpush1.bf16.msra.mxu0 0
    %3091 = vmatprep.mubr.bf16.mxu0 0
    %3092 = vmatmul.mubr.bf16.gmra.mrb[0].mxu0 %v2732
    %v3093 = vpop.f32.mrb[0].mxu0
    %v3094 = vadd.f32 %v2817, %v3093
    %v3095 = vpop.f32.mrb[0].mxu0
    %v3096 = vadd.f32 %v2821, %v3095
    %v3097 = vpop.f32.mrb[0].mxu0
    %v3098 = vadd.f32 %v2817, %v3097
    %v3099 = vpop.f32.mrb[0].mxu0
    %v3100 = vadd.f32 %v2821, %v3099
    %3101 = vmatprep.mubr.bf16.mxu0 0
    %3102 = vmatmul.mubr.bf16.gmra.mrb[0].mxu0 %v2733
    %v3103 = vpop.f32.mrb[0].mxu0
    %v3104 = vadd.f32 %v2817, %v3103
    %v3105 = vpop.f32.mrb[0].mxu0
    %v3106 = vadd.f32 %v2821, %v3105
    %v3107 = vpop.f32.mrb[0].mxu0
    %v3108 = vadd.f32 %v2817, %v3107
    %v3109 = vpop.f32.mrb[0].mxu0
    %v3110 = vadd.f32 %v2821, %v3109
    %3111 = vmatprep.mubr.bf16.mxu0 0
    %3112 = vmatmul.mubr.bf16.gmra.mrb[0].mxu0 %v2734
    %v3113 = vpop.f32.mrb[0].mxu0
    %v3114 = vadd.f32 %v2817, %v3113
    %v3115 = vpop.f32.mrb[0].mxu0
    %v3116 = vadd.f32 %v2821, %v3115
    %v3117 = vpop.f32.mrb[0].mxu0
    %v3118 = vadd.f32 %v2817, %v3117
    %v3119 = vpop.f32.mrb[0].mxu0
    %v3120 = vadd.f32 %v2821, %v3119
    %3121 = vmatprep.mubr.bf16.mxu0 0
    %3122 = vmatmul.mubr.bf16.gmra.mrb[0].mxu0 %v2735
    %v3123 = vpop.f32.mrb[0].mxu0
    %v3124 = vadd.f32 %v2817, %v3123
    %v3125 = vpop.f32.mrb[0].mxu0
    %v3126 = vadd.f32 %v2821, %v3125
    %v3127 = vpop.f32.mrb[0].mxu0
    %v3128 = vadd.f32 %v2817, %v3127
    %v3129 = vpop.f32.mrb[0].mxu0
    %v3130 = vadd.f32 %v2821, %v3129
    %3131 = vdwg.mxu0
    %v3132 = vmul.f32 %v3021, 0.01
    %v3133 = vmul.f32 %v3023, 0.01
    %v3134 = vmul.f32 %v3094, 0.01
    %v3135 = vmul.f32 %v3096, 0.01
    %v3136 = vmul.f32 %v3025, 0.01
    %v3137 = vmul.f32 %v3027, 0.01
    %v3138 = vmul.f32 %v3098, 0.01
    %v3139 = vmul.f32 %v3100, 0.01
    %v3140 = vmul.f32 %v3031, 0.01
    %v3141 = vmul.f32 %v3033, 0.01
    %v3142 = vmul.f32 %v3104, 0.01
    %v3143 = vmul.f32 %v3106, 0.01
    %v3144 = vmul.f32 %v3035, 0.01
    %v3145 = vmul.f32 %v3037, 0.01
    %v3146 = vmul.f32 %v3108, 0.01
    %v3147 = vmul.f32 %v3110, 0.01
    %v3148 = vmul.f32 %v3041, 0.01
    %v3149 = vmul.f32 %v3043, 0.01
    %v3150 = vmul.f32 %v3114, 0.01
    %v3151 = vmul.f32 %v3116, 0.01
    %v3152 = vmul.f32 %v3045, 0.01
    %v3153 = vmul.f32 %v3047, 0.01
    %v3154 = vmul.f32 %v3118, 0.01
    %v3155 = vmul.f32 %v3120, 0.01
    %v3156 = vmul.f32 %v3051, 0.01
    %v3157 = vmul.f32 %v3053, 0.01
    %v3158 = vmul.f32 %v3124, 0.01
    %v3159 = vmul.f32 %v3126, 0.01
    %v3160 = vmul.f32 %v3055, 0.01
    %v3161 = vmul.f32 %v3057, 0.01
    %v3162 = vmul.f32 %v3128, 0.01
    %v3163 = vmul.f32 %v3130, 0.01
    %v3164 = vmax.f32 %v3021, %v3132
    %v3165 = vmax.f32 %v3023, %v3133
    %v3166 = vmax.f32 %v3094, %v3134
    %v3167 = vmax.f32 %v3096, %v3135
    %v3168 = vmax.f32 %v3025, %v3136
    %v3169 = vmax.f32 %v3027, %v3137
    %v3170 = vmax.f32 %v3098, %v3138
    %v3171 = vmax.f32 %v3100, %v3139
    %v3172 = vmax.f32 %v3031, %v3140
    %v3173 = vmax.f32 %v3033, %v3141
    %v3174 = vmax.f32 %v3104, %v3142
    %v3175 = vmax.f32 %v3106, %v3143
    %v3176 = vmax.f32 %v3035, %v3144
    %v3177 = vmax.f32 %v3037, %v3145
    %v3178 = vmax.f32 %v3108, %v3146
    %v3179 = vmax.f32 %v3110, %v3147
    %v3180 = vmax.f32 %v3041, %v3148
    %v3181 = vmax.f32 %v3043, %v3149
    %v3182 = vmax.f32 %v3114, %v3150
    %v3183 = vmax.f32 %v3116, %v3151
    %v3184 = vmax.f32 %v3045, %v3152
    %v3185 = vmax.f32 %v3047, %v3153
    %v3186 = vmax.f32 %v3118, %v3154
    %v3187 = vmax.f32 %v3120, %v3155
    %v3188 = vmax.f32 %v3051, %v3156
    %v3189 = vmax.f32 %v3053, %v3157
    %v3190 = vmax.f32 %v3124, %v3158
    %v3191 = vmax.f32 %v3126, %v3159
    %v3192 = vmax.f32 %v3055, %v3160
    %v3193 = vmax.f32 %v3057, %v3161
    %v3194 = vmax.f32 %v3128, %v3162
    %v3195 = vmax.f32 %v3130, %v3163
    %v3196 = vpack.c.bf16 %v3168, %v3164
    %v3197 = vpack.c.bf16 %v3169, %v3165
    %v3198 = vpack.c.bf16 %v3170, %v3166
    %v3199 = vpack.c.bf16 %v3171, %v3167
    %v3200 = vpack.c.bf16 %v3176, %v3172
    %v3201 = vpack.c.bf16 %v3177, %v3173
    %v3202 = vpack.c.bf16 %v3178, %v3174
    %v3203 = vpack.c.bf16 %v3179, %v3175
    %v3204 = vpack.c.bf16 %v3184, %v3180
    %v3205 = vpack.c.bf16 %v3185, %v3181
    %v3206 = vpack.c.bf16 %v3186, %v3182
    %v3207 = vpack.c.bf16 %v3187, %v3183
    %v3208 = vpack.c.bf16 %v3192, %v3188
    %v3209 = vpack.c.bf16 %v3193, %v3189
    %v3210 = vpack.c.bf16 %v3194, %v3190
    %v3211 = vpack.c.bf16 %v3195, %v3191
    %v3212 = vld [vmem:[#allocation11] sm:$0xff]
    %v3213 = vld [vmem:[#allocation11 + $0x8] sm:$0xff]
    %v3214 = vld [vmem:[#allocation11 + $0x10] sm:$0xff]
    %v3215 = vld [vmem:[#allocation11 + $0x18] sm:$0xf]
    %v3216 = vld [vmem:[#allocation11 + $0x1c] sm:$0xff]
    %v3217 = vld [vmem:[#allocation11 + $0x24] sm:$0xff]
    %v3218 = vld [vmem:[#allocation11 + $0x2c] sm:$0xff]
    %v3219 = vld [vmem:[#allocation11 + $0x34] sm:$0xf]
    %v3220 = vld [vmem:[#allocation11 + $0x38] sm:$0xff]
    %v3221 = vld [vmem:[#allocation11 + $0x40] sm:$0xff]
    %v3222 = vld [vmem:[#allocation11 + $0x48] sm:$0xff]
    %v3223 = vld [vmem:[#allocation11 + $0x50] sm:$0xf]
    %v3224 = vld [vmem:[#allocation11 + $0x54] sm:$0xff]
    %v3225 = vld [vmem:[#allocation11 + $0x5c] sm:$0xff]
    %v3226 = vld [vmem:[#allocation11 + $0x64] sm:$0xff]
    %v3227 = vld [vmem:[#allocation11 + $0x6c] sm:$0xf]
    %v3228 = vld [vmem:[#allocation11 + $0x70] sm:$0xff]
    %v3229 = vld [vmem:[#allocation11 + $0x78] sm:$0xff]
    %v3230 = vld [vmem:[#allocation11 + $0x80] sm:$0xff]
    %v3231 = vld [vmem:[#allocation11 + $0x88] sm:$0xf]
    %v3232 = vld [vmem:[#allocation11 + $0x8c] sm:$0xff]
    %v3233 = vld [vmem:[#allocation11 + $0x94] sm:$0xff]
    %v3234 = vld [vmem:[#allocation11 + $0x9c] sm:$0xff]
    %v3235 = vld [vmem:[#allocation11 + $0xa4] sm:$0xf]
    %v3236 = vld [vmem:[#allocation11 + $0xa8] sm:$0xff]
    %v3237 = vld [vmem:[#allocation11 + $0xb0] sm:$0xff]
    %v3238 = vld [vmem:[#allocation11 + $0xb8] sm:$0xff]
    %v3239 = vld [vmem:[#allocation11 + $0xc0] sm:$0xf]
    %v3240 = vld [vmem:[#allocation11 + $0xc4] sm:$0xff]
    %v3241 = vld [vmem:[#allocation11 + $0xcc] sm:$0xff]
    %v3242 = vld [vmem:[#allocation11 + $0xd4] sm:$0xff]
    %v3243 = vld [vmem:[#allocation11 + $0xdc] sm:$0xf]
    %v3244 = vld [vmem:[#allocation11 + $0xe0] sm:$0xff]
    %v3245 = vld [vmem:[#allocation11 + $0xe8] sm:$0xff]
    %v3246 = vld [vmem:[#allocation11 + $0xf0] sm:$0xff]
    %v3247 = vld [vmem:[#allocation11 + $0xf8] sm:$0xf]
    %v3248 = vld [vmem:[#allocation11 + $0xfc] sm:$0xff]
    %v3249 = vld [vmem:[#allocation11 + $0x104] sm:$0xff]
    %v3250 = vld [vmem:[#allocation11 + $0x10c] sm:$0xff]
    %v3251 = vld [vmem:[#allocation11 + $0x114] sm:$0xf]
    %v3252 = vld [vmem:[#allocation11 + $0x118] sm:$0xff]
    %v3253 = vld [vmem:[#allocation11 + $0x120] sm:$0xff]
    %v3254 = vld [vmem:[#allocation11 + $0x128] sm:$0xff]
    %v3255 = vld [vmem:[#allocation11 + $0x130] sm:$0xf]
    %v3256 = vld [vmem:[#allocation11 + $0x134] sm:$0xff]
    %v3257 = vld [vmem:[#allocation11 + $0x13c] sm:$0xff]
    %v3258 = vld [vmem:[#allocation11 + $0x144] sm:$0xff]
    %v3259 = vld [vmem:[#allocation11 + $0x14c] sm:$0xf]
    %v3260 = vld [vmem:[#allocation11 + $0x150] sm:$0xff]
    %v3261 = vld [vmem:[#allocation11 + $0x158] sm:$0xff]
    %v3262 = vld [vmem:[#allocation11 + $0x160] sm:$0xff]
    %v3263 = vld [vmem:[#allocation11 + $0x168] sm:$0xf]
    %v3264 = vld [vmem:[#allocation11 + $0x16c] sm:$0xff]
    %v3265 = vld [vmem:[#allocation11 + $0x174] sm:$0xff]
    %v3266 = vld [vmem:[#allocation11 + $0x17c] sm:$0xff]
    %v3267 = vld [vmem:[#allocation11 + $0x184] sm:$0xf]
    %v3268 = vld [vmem:[#allocation11 + $0x188] sm:$0xff]
    %v3269 = vld [vmem:[#allocation11 + $0x190] sm:$0xff]
    %v3270 = vld [vmem:[#allocation11 + $0x198] sm:$0xff]
    %v3271 = vld [vmem:[#allocation11 + $0x1a0] sm:$0xf]
    %v3272 = vld [vmem:[#allocation11 + $0x1a4] sm:$0xff]
    %v3273 = vld [vmem:[#allocation11 + $0x1ac] sm:$0xff]
    %v3274 = vld [vmem:[#allocation11 + $0x1b4] sm:$0xff]
    %v3275 = vld [vmem:[#allocation11 + $0x1bc] sm:$0xf]
    %v3276 = vld [vmem:[#allocation11 + $0x1c0] sm:$0xff]
    %v3277 = vld [vmem:[#allocation11 + $0x1c8] sm:$0xff]
    %v3278 = vld [vmem:[#allocation11 + $0x1d0] sm:$0xff]
    %v3279 = vld [vmem:[#allocation11 + $0x1d8] sm:$0xf]
    %v3280 = vld [vmem:[#allocation11 + $0x1dc] sm:$0xff]
    %v3281 = vld [vmem:[#allocation11 + $0x1e4] sm:$0xff]
    %v3282 = vld [vmem:[#allocation11 + $0x1ec] sm:$0xff]
    %v3283 = vld [vmem:[#allocation11 + $0x1f4] sm:$0xf]
    %v3284 = vld [vmem:[#allocation11 + $0x1f8] sm:$0xff]
    %v3285 = vld [vmem:[#allocation11 + $0x200] sm:$0xff]
    %v3286 = vld [vmem:[#allocation11 + $0x208] sm:$0xff]
    %v3287 = vld [vmem:[#allocation11 + $0x210] sm:$0xf]
    %v3288 = vld [vmem:[#allocation11 + $0x214] sm:$0xff]
    %v3289 = vld [vmem:[#allocation11 + $0x21c] sm:$0xff]
    %v3290 = vld [vmem:[#allocation11 + $0x224] sm:$0xff]
    %v3291 = vld [vmem:[#allocation11 + $0x22c] sm:$0xf]
    %v3292 = vld [vmem:[#allocation11 + $0x230] sm:$0xff]
    %v3293 = vld [vmem:[#allocation11 + $0x238] sm:$0xff]
    %v3294 = vld [vmem:[#allocation11 + $0x240] sm:$0xff]
    %v3295 = vld [vmem:[#allocation11 + $0x248] sm:$0xf]
    %v3296 = vld [vmem:[#allocation11 + $0x24c] sm:$0xff]
    %v3297 = vld [vmem:[#allocation11 + $0x254] sm:$0xff]
    %v3298 = vld [vmem:[#allocation11 + $0x25c] sm:$0xff]
    %v3299 = vld [vmem:[#allocation11 + $0x264] sm:$0xf]
    %v3300 = vld [vmem:[#allocation11 + $0x268] sm:$0xff]
    %v3301 = vld [vmem:[#allocation11 + $0x270] sm:$0xff]
    %v3302 = vld [vmem:[#allocation11 + $0x278] sm:$0xff]
    %v3303 = vld [vmem:[#allocation11 + $0x280] sm:$0xf]
    %v3304 = vld [vmem:[#allocation11 + $0x284] sm:$0xff]
    %v3305 = vld [vmem:[#allocation11 + $0x28c] sm:$0xff]
    %v3306 = vld [vmem:[#allocation11 + $0x294] sm:$0xff]
    %v3307 = vld [vmem:[#allocation11 + $0x29c] sm:$0xf]
    %v3308 = vld [vmem:[#allocation11 + $0x2a0] sm:$0xff]
    %v3309 = vld [vmem:[#allocation11 + $0x2a8] sm:$0xff]
    %v3310 = vld [vmem:[#allocation11 + $0x2b0] sm:$0xff]
    %v3311 = vld [vmem:[#allocation11 + $0x2b8] sm:$0xf]
    %v3312 = vld [vmem:[#allocation11 + $0x2bc] sm:$0xff]
    %v3313 = vld [vmem:[#allocation11 + $0x2c4] sm:$0xff]
    %v3314 = vld [vmem:[#allocation11 + $0x2cc] sm:$0xff]
    %v3315 = vld [vmem:[#allocation11 + $0x2d4] sm:$0xf]
    %v3316 = vld [vmem:[#allocation11 + $0x2d8] sm:$0xff]
    %v3317 = vld [vmem:[#allocation11 + $0x2e0] sm:$0xff]
    %v3318 = vld [vmem:[#allocation11 + $0x2e8] sm:$0xff]
    %v3319 = vld [vmem:[#allocation11 + $0x2f0] sm:$0xf]
    %v3320 = vld [vmem:[#allocation11 + $0x2f4] sm:$0xff]
    %v3321 = vld [vmem:[#allocation11 + $0x2fc] sm:$0xff]
    %v3322 = vld [vmem:[#allocation11 + $0x304] sm:$0xff]
    %v3323 = vld [vmem:[#allocation11 + $0x30c] sm:$0xf]
    %v3324 = vld [vmem:[#allocation11 + $0x310] sm:$0xff]
    %v3325 = vld [vmem:[#allocation11 + $0x318] sm:$0xff]
    %v3326 = vld [vmem:[#allocation11 + $0x320] sm:$0xff]
    %v3327 = vld [vmem:[#allocation11 + $0x328] sm:$0xf]
    %v3328 = vld [vmem:[#allocation11 + $0x32c] sm:$0xff]
    %v3329 = vld [vmem:[#allocation11 + $0x334] sm:$0xff]
    %v3330 = vld [vmem:[#allocation11 + $0x33c] sm:$0xff]
    %v3331 = vld [vmem:[#allocation11 + $0x344] sm:$0xf]
    %v3332 = vld [vmem:[#allocation11 + $0x348] sm:$0xff]
    %v3333 = vld [vmem:[#allocation11 + $0x350] sm:$0xff]
    %v3334 = vld [vmem:[#allocation11 + $0x358] sm:$0xff]
    %v3335 = vld [vmem:[#allocation11 + $0x360] sm:$0xf]
    %v3336 = vld [vmem:[#allocation11 + $0x364] sm:$0xff]
    %v3337 = vld [vmem:[#allocation11 + $0x36c] sm:$0xff]
    %v3338 = vld [vmem:[#allocation11 + $0x374] sm:$0xff]
    %v3339 = vld [vmem:[#allocation11 + $0x37c] sm:$0xf]
    %v3340 = vld [vmem:[#allocation11 + $0x380] sm:$0xff]
    %v3341 = vld [vmem:[#allocation11 + $0x388] sm:$0xff]
    %v3342 = vld [vmem:[#allocation11 + $0x390] sm:$0xff]
    %v3343 = vld [vmem:[#allocation11 + $0x398] sm:$0xf]
    %v3344 = vld [vmem:[#allocation11 + $0x39c] sm:$0xff]
    %v3345 = vld [vmem:[#allocation11 + $0x3a4] sm:$0xff]
    %v3346 = vld [vmem:[#allocation11 + $0x3ac] sm:$0xff]
    %v3347 = vld [vmem:[#allocation11 + $0x3b4] sm:$0xf]
    %v3348 = vld [vmem:[#allocation11 + $0x3b8] sm:$0xff]
    %v3349 = vld [vmem:[#allocation11 + $0x3c0] sm:$0xff]
    %v3350 = vld [vmem:[#allocation11 + $0x3c8] sm:$0xff]
    %v3351 = vld [vmem:[#allocation11 + $0x3d0] sm:$0xf]
    %v3352 = vld [vmem:[#allocation11 + $0x3d4] sm:$0xff]
    %v3353 = vld [vmem:[#allocation11 + $0x3dc] sm:$0xff]
    %v3354 = vld [vmem:[#allocation11 + $0x3e4] sm:$0xff]
    %v3355 = vld [vmem:[#allocation11 + $0x3ec] sm:$0xf]
    %v3356 = vld [vmem:[#allocation11 + $0x3f0] sm:$0xff]
    %v3357 = vld [vmem:[#allocation11 + $0x3f8] sm:$0xff]
    %v3358 = vld [vmem:[#allocation11 + $0x400] sm:$0xff]
    %v3359 = vld [vmem:[#allocation11 + $0x408] sm:$0xf]
    %v3360 = vld [vmem:[#allocation11 + $0x40c] sm:$0xff]
    %v3361 = vld [vmem:[#allocation11 + $0x414] sm:$0xff]
    %v3362 = vld [vmem:[#allocation11 + $0x41c] sm:$0xff]
    %v3363 = vld [vmem:[#allocation11 + $0x424] sm:$0xf]
    %v3364 = vld [vmem:[#allocation11 + $0x428] sm:$0xff]
    %v3365 = vld [vmem:[#allocation11 + $0x430] sm:$0xff]
    %v3366 = vld [vmem:[#allocation11 + $0x438] sm:$0xff]
    %v3367 = vld [vmem:[#allocation11 + $0x440] sm:$0xf]
    %v3368 = vld [vmem:[#allocation11 + $0x444] sm:$0xff]
    %v3369 = vld [vmem:[#allocation11 + $0x44c] sm:$0xff]
    %v3370 = vld [vmem:[#allocation11 + $0x454] sm:$0xff]
    %v3371 = vld [vmem:[#allocation11 + $0x45c] sm:$0xf]
    %v3372 = vld [vmem:[#allocation11 + $0x460] sm:$0xff]
    %v3373 = vld [vmem:[#allocation11 + $0x468] sm:$0xff]
    %v3374 = vld [vmem:[#allocation11 + $0x470] sm:$0xff]
    %v3375 = vld [vmem:[#allocation11 + $0x478] sm:$0xf]
    %v3376 = vld [vmem:[#allocation11 + $0x47c] sm:$0xff]
    %v3377 = vld [vmem:[#allocation11 + $0x484] sm:$0xff]
    %v3378 = vld [vmem:[#allocation11 + $0x48c] sm:$0xff]
    %v3379 = vld [vmem:[#allocation11 + $0x494] sm:$0xf]
    %v3380 = vld [vmem:[#allocation11 + $0x498] sm:$0xff]
    %v3381 = vld [vmem:[#allocation11 + $0x4a0] sm:$0xff]
    %v3382 = vld [vmem:[#allocation11 + $0x4a8] sm:$0xff]
    %v3383 = vld [vmem:[#allocation11 + $0x4b0] sm:$0xf]
    %v3384 = vld [vmem:[#allocation11 + $0x4b4] sm:$0xff]
    %v3385 = vld [vmem:[#allocation11 + $0x4bc] sm:$0xff]
    %v3386 = vld [vmem:[#allocation11 + $0x4c4] sm:$0xff]
    %v3387 = vld [vmem:[#allocation11 + $0x4cc] sm:$0xf]
    %v3388 = vld [vmem:[#allocation11 + $0x4d0] sm:$0xff]
    %v3389 = vld [vmem:[#allocation11 + $0x4d8] sm:$0xff]
    %v3390 = vld [vmem:[#allocation11 + $0x4e0] sm:$0xff]
    %v3391 = vld [vmem:[#allocation11 + $0x4e8] sm:$0xf]
    %v3392 = vld [vmem:[#allocation11 + $0x4ec] sm:$0xff]
    %v3393 = vld [vmem:[#allocation11 + $0x4f4] sm:$0xff]
    %v3394 = vld [vmem:[#allocation11 + $0x4fc] sm:$0xff]
    %v3395 = vld [vmem:[#allocation11 + $0x504] sm:$0xf]
    %v3396 = vld [vmem:[#allocation11 + $0x508] sm:$0xff]
    %v3397 = vld [vmem:[#allocation11 + $0x510] sm:$0xff]
    %v3398 = vld [vmem:[#allocation11 + $0x518] sm:$0xff]
    %v3399 = vld [vmem:[#allocation11 + $0x520] sm:$0xf]
    %v3400 = vld [vmem:[#allocation11 + $0x524] sm:$0xff]
    %v3401 = vld [vmem:[#allocation11 + $0x52c] sm:$0xff]
    %v3402 = vld [vmem:[#allocation11 + $0x534] sm:$0xff]
    %v3403 = vld [vmem:[#allocation11 + $0x53c] sm:$0xf]
    %v3404 = vld [vmem:[#allocation11 + $0x540] sm:$0xff]
    %v3405 = vld [vmem:[#allocation11 + $0x548] sm:$0xff]
    %v3406 = vld [vmem:[#allocation11 + $0x550] sm:$0xff]
    %v3407 = vld [vmem:[#allocation11 + $0x558] sm:$0xf]
    %v3408 = vld [vmem:[#allocation11 + $0x55c] sm:$0xff]
    %v3409 = vld [vmem:[#allocation11 + $0x564] sm:$0xff]
    %v3410 = vld [vmem:[#allocation11 + $0x56c] sm:$0xff]
    %v3411 = vld [vmem:[#allocation11 + $0x574] sm:$0xf]
    %v3412 = vld [vmem:[#allocation11 + $0x578] sm:$0xff]
    %v3413 = vld [vmem:[#allocation11 + $0x580] sm:$0xff]
    %v3414 = vld [vmem:[#allocation11 + $0x588] sm:$0xff]
    %v3415 = vld [vmem:[#allocation11 + $0x590] sm:$0xf]
    %v3416 = vld [vmem:[#allocation11 + $0x594] sm:$0xff]
    %v3417 = vld [vmem:[#allocation11 + $0x59c] sm:$0xff]
    %v3418 = vld [vmem:[#allocation11 + $0x5a4] sm:$0xff]
    %v3419 = vld [vmem:[#allocation11 + $0x5ac] sm:$0xf]
    %v3420 = vld [vmem:[#allocation11 + $0x5b0] sm:$0xff]
    %v3421 = vld [vmem:[#allocation11 + $0x5b8] sm:$0xff]
    %v3422 = vld [vmem:[#allocation11 + $0x5c0] sm:$0xff]
    %v3423 = vld [vmem:[#allocation11 + $0x5c8] sm:$0xf]
    %v3424 = vld [vmem:[#allocation11 + $0x5cc] sm:$0xff]
    %v3425 = vld [vmem:[#allocation11 + $0x5d4] sm:$0xff]
    %v3426 = vld [vmem:[#allocation11 + $0x5dc] sm:$0xff]
    %v3427 = vld [vmem:[#allocation11 + $0x5e4] sm:$0xf]
    %v3428 = vld [vmem:[#allocation11 + $0x5e8] sm:$0xff]
    %v3429 = vld [vmem:[#allocation11 + $0x5f0] sm:$0xff]
    %v3430 = vld [vmem:[#allocation11 + $0x5f8] sm:$0xff]
    %v3431 = vld [vmem:[#allocation11 + $0x600] sm:$0xf]
    %v3432 = vld [vmem:[#allocation11 + $0x604] sm:$0xff]
    %v3433 = vld [vmem:[#allocation11 + $0x60c] sm:$0xff]
    %v3434 = vld [vmem:[#allocation11 + $0x614] sm:$0xff]
    %v3435 = vld [vmem:[#allocation11 + $0x61c] sm:$0xf]
    %v3436 = vld [vmem:[#allocation11 + $0x620] sm:$0xff]
    %v3437 = vld [vmem:[#allocation11 + $0x628] sm:$0xff]
    %v3438 = vld [vmem:[#allocation11 + $0x630] sm:$0xff]
    %v3439 = vld [vmem:[#allocation11 + $0x638] sm:$0xf]
    %v3440 = vld [vmem:[#allocation11 + $0x63c] sm:$0xff]
    %v3441 = vld [vmem:[#allocation11 + $0x644] sm:$0xff]
    %v3442 = vld [vmem:[#allocation11 + $0x64c] sm:$0xff]
    %v3443 = vld [vmem:[#allocation11 + $0x654] sm:$0xf]
    %v3444 = vld [vmem:[#allocation11 + $0x658] sm:$0xff]
    %v3445 = vld [vmem:[#allocation11 + $0x660] sm:$0xff]
    %v3446 = vld [vmem:[#allocation11 + $0x668] sm:$0xff]
    %v3447 = vld [vmem:[#allocation11 + $0x670] sm:$0xf]
    %v3448 = vld [vmem:[#allocation11 + $0x674] sm:$0xff]
    %v3449 = vld [vmem:[#allocation11 + $0x67c] sm:$0xff]
    %v3450 = vld [vmem:[#allocation11 + $0x684] sm:$0xff]
    %v3451 = vld [vmem:[#allocation11 + $0x68c] sm:$0xf]
    %v3452 = vld [vmem:[#allocation11 + $0x690] sm:$0xff]
    %v3453 = vld [vmem:[#allocation11 + $0x698] sm:$0xff]
    %v3454 = vld [vmem:[#allocation11 + $0x6a0] sm:$0xff]
    %v3455 = vld [vmem:[#allocation11 + $0x6a8] sm:$0xf]
    %v3456 = vld [vmem:[#allocation11 + $0x6ac] sm:$0xff]
    %v3457 = vld [vmem:[#allocation11 + $0x6b4] sm:$0xff]
    %v3458 = vld [vmem:[#allocation11 + $0x6bc] sm:$0xff]
    %v3459 = vld [vmem:[#allocation11 + $0x6c4] sm:$0xf]
    %v3460 = vld [vmem:[#allocation11 + $0x6c8] sm:$0xff]
    %v3461 = vld [vmem:[#allocation11 + $0x6d0] sm:$0xff]
    %v3462 = vld [vmem:[#allocation11 + $0x6d8] sm:$0xff]
    %v3463 = vld [vmem:[#allocation11 + $0x6e0] sm:$0xf]
    %v3464 = vld [vmem:[#allocation11 + $0x6e4] sm:$0xff]
    %v3465 = vld [vmem:[#allocation11 + $0x6ec] sm:$0xff]
    %v3466 = vld [vmem:[#allocation11 + $0x6f4] sm:$0xff]
    %v3467 = vld [vmem:[#allocation11 + $0x6fc] sm:$0xf]
    %v3468 = vld [vmem:[%s8] sm:$0xff]
    %v3470 = vlaneseq
    %v3471 = vshrl.u32 %v3470, 7
    %v3472 = vsub.s32 0, %v3471
    %v3473 = vrot.slane %v3468, %v3472
    %v3474 = vlaneseq
    %v3475 = vshrl.u32 %v3474, 7
    %v3476 = vsub.s32 1, %v3475
    %v3477 = vrot.slane %v3468, %v3476
    %v3478 = vlaneseq
    %v3479 = vshrl.u32 %v3478, 7
    %v3480 = vsub.s32 2, %v3479
    %v3481 = vrot.slane %v3468, %v3480
    %v3482 = vlaneseq
    %v3483 = vshrl.u32 %v3482, 7
    %v3484 = vsub.s32 3, %v3483
    %v3485 = vrot.slane %v3468, %v3484
    %v3486 = vlaneseq
    %v3487 = vshrl.u32 %v3486, 7
    %v3488 = vsub.s32 4, %v3487
    %v3489 = vrot.slane %v3468, %v3488
    %v3490 = vlaneseq
    %v3491 = vshrl.u32 %v3490, 7
    %v3492 = vsub.s32 5, %v3491
    %v3493 = vrot.slane %v3468, %v3492
    %v3494 = vlaneseq
    %v3495 = vshrl.u32 %v3494, 7
    %v3496 = vsub.s32 6, %v3495
    %v3497 = vrot.slane %v3468, %v3496
    %v3761 = vunpack.c.l.b16 %v3212
    %v3762 = vunpack.c.h.b16 %v3212
    %v3763 = vunpack.c.l.b16 %v3213
    %v3764 = vunpack.c.h.b16 %v3213
    %v3765 = vunpack.c.l.b16 %v3214
    %v3766 = vunpack.c.h.b16 %v3214
    %v3767 = vunpack.c.l.b16 %v3215
    %v3768 = vunpack.c.l.b16 %v3216
    %v3769 = vunpack.c.h.b16 %v3216
    %v3770 = vunpack.c.l.b16 %v3217
    %v3771 = vunpack.c.h.b16 %v3217
    %v3772 = vunpack.c.l.b16 %v3218
    %v3773 = vunpack.c.h.b16 %v3218
    %v3774 = vunpack.c.l.b16 %v3219
    %v3775 = vunpack.c.l.b16 %v3220
    %v3776 = vunpack.c.h.b16 %v3220
    %v3777 = vunpack.c.l.b16 %v3221
    %v3778 = vunpack.c.h.b16 %v3221
    %v3779 = vunpack.c.l.b16 %v3222
    %v3780 = vunpack.c.h.b16 %v3222
    %v3781 = vunpack.c.l.b16 %v3223
    %v3782 = vunpack.c.l.b16 %v3224
    %v3783 = vunpack.c.h.b16 %v3224
    %v3784 = vunpack.c.l.b16 %v3225
    %v3785 = vunpack.c.h.b16 %v3225
    %v3786 = vunpack.c.l.b16 %v3226
    %v3787 = vunpack.c.h.b16 %v3226
    %v3788 = vunpack.c.l.b16 %v3227
    %v3789 = vunpack.c.l.b16 %v3228
    %v3790 = vunpack.c.h.b16 %v3228
    %v3791 = vunpack.c.l.b16 %v3229
    %v3792 = vunpack.c.h.b16 %v3229
    %v3793 = vunpack.c.l.b16 %v3230
    %v3794 = vunpack.c.h.b16 %v3230
    %v3795 = vunpack.c.l.b16 %v3231
    %v3796 = vunpack.c.l.b16 %v3232
    %v3797 = vunpack.c.h.b16 %v3232
    %v3798 = vunpack.c.l.b16 %v3233
    %v3799 = vunpack.c.h.b16 %v3233
    %v3800 = vunpack.c.l.b16 %v3234
    %v3801 = vunpack.c.h.b16 %v3234
    %v3802 = vunpack.c.l.b16 %v3235
    %v3803 = vunpack.c.l.b16 %v3236
    %v3804 = vunpack.c.h.b16 %v3236
    %v3805 = vunpack.c.l.b16 %v3237
    %v3806 = vunpack.c.h.b16 %v3237
    %v3807 = vunpack.c.l.b16 %v3238
    %v3808 = vunpack.c.h.b16 %v3238
    %v3809 = vunpack.c.l.b16 %v3239
    %v3810 = vunpack.c.l.b16 %v3240
    %v3811 = vunpack.c.h.b16 %v3240
    %v3812 = vunpack.c.l.b16 %v3241
    %v3813 = vunpack.c.h.b16 %v3241
    %v3814 = vunpack.c.l.b16 %v3242
    %v3815 = vunpack.c.h.b16 %v3242
    %v3816 = vunpack.c.l.b16 %v3243
    %v3817 = vunpack.c.l.b16 %v3244
    %v3818 = vunpack.c.h.b16 %v3244
    %v3819 = vunpack.c.l.b16 %v3245
    %v3820 = vunpack.c.h.b16 %v3245
    %v3821 = vunpack.c.l.b16 %v3246
    %v3822 = vunpack.c.h.b16 %v3246
    %v3823 = vunpack.c.l.b16 %v3247
    %v3824 = vunpack.c.l.b16 %v3248
    %v3825 = vunpack.c.h.b16 %v3248
    %v3826 = vunpack.c.l.b16 %v3249
    %v3827 = vunpack.c.h.b16 %v3249
    %v3828 = vunpack.c.l.b16 %v3250
    %v3829 = vunpack.c.h.b16 %v3250
    %v3830 = vunpack.c.l.b16 %v3251
    %v3831 = vunpack.c.l.b16 %v3252
    %v3832 = vunpack.c.h.b16 %v3252
    %v3833 = vunpack.c.l.b16 %v3253
    %v3834 = vunpack.c.h.b16 %v3253
    %v3835 = vunpack.c.l.b16 %v3254
    %v3836 = vunpack.c.h.b16 %v3254
    %v3837 = vunpack.c.l.b16 %v3255
    %v3838 = vunpack.c.l.b16 %v3256
    %v3839 = vunpack.c.h.b16 %v3256
    %v3840 = vunpack.c.l.b16 %v3257
    %v3841 = vunpack.c.h.b16 %v3257
    %v3842 = vunpack.c.l.b16 %v3258
    %v3843 = vunpack.c.h.b16 %v3258
    %v3844 = vunpack.c.l.b16 %v3259
    %v3845 = vunpack.c.l.b16 %v3260
    %v3846 = vunpack.c.h.b16 %v3260
    %v3847 = vunpack.c.l.b16 %v3261
    %v3848 = vunpack.c.h.b16 %v3261
    %v3849 = vunpack.c.l.b16 %v3262
    %v3850 = vunpack.c.h.b16 %v3262
    %v3851 = vunpack.c.l.b16 %v3263
    %v3852 = vunpack.c.l.b16 %v3264
    %v3853 = vunpack.c.h.b16 %v3264
    %v3854 = vunpack.c.l.b16 %v3265
    %v3855 = vunpack.c.h.b16 %v3265
    %v3856 = vunpack.c.l.b16 %v3266
    %v3857 = vunpack.c.h.b16 %v3266
    %v3858 = vunpack.c.l.b16 %v3267
    %v3859 = vunpack.c.l.b16 %v3268
    %v3860 = vunpack.c.h.b16 %v3268
    %v3861 = vunpack.c.l.b16 %v3269
    %v3862 = vunpack.c.h.b16 %v3269
    %v3863 = vunpack.c.l.b16 %v3270
    %v3864 = vunpack.c.h.b16 %v3270
    %v3865 = vunpack.c.l.b16 %v3271
    %v3866 = vunpack.c.l.b16 %v3272
    %v3867 = vunpack.c.h.b16 %v3272
    %v3868 = vunpack.c.l.b16 %v3273
    %v3869 = vunpack.c.h.b16 %v3273
    %v3870 = vunpack.c.l.b16 %v3274
    %v3871 = vunpack.c.h.b16 %v3274
    %v3872 = vunpack.c.l.b16 %v3275
    %v3873 = vunpack.c.l.b16 %v3276
    %v3874 = vunpack.c.h.b16 %v3276
    %v3875 = vunpack.c.l.b16 %v3277
    %v3876 = vunpack.c.h.b16 %v3277
    %v3877 = vunpack.c.l.b16 %v3278
    %v3878 = vunpack.c.h.b16 %v3278
    %v3879 = vunpack.c.l.b16 %v3279
    %v3880 = vunpack.c.l.b16 %v3280
    %v3881 = vunpack.c.h.b16 %v3280
    %v3882 = vunpack.c.l.b16 %v3281
    %v3883 = vunpack.c.h.b16 %v3281
    %v3884 = vunpack.c.l.b16 %v3282
    %v3885 = vunpack.c.h.b16 %v3282
    %v3886 = vunpack.c.l.b16 %v3283
    %v3887 = vunpack.c.l.b16 %v3284
    %v3888 = vunpack.c.h.b16 %v3284
    %v3889 = vunpack.c.l.b16 %v3285
    %v3890 = vunpack.c.h.b16 %v3285
    %v3891 = vunpack.c.l.b16 %v3286
    %v3892 = vunpack.c.h.b16 %v3286
    %v3893 = vunpack.c.l.b16 %v3287
    %v3894 = vunpack.c.l.b16 %v3288
    %v3895 = vunpack.c.h.b16 %v3288
    %v3896 = vunpack.c.l.b16 %v3289
    %v3897 = vunpack.c.h.b16 %v3289
    %v3898 = vunpack.c.l.b16 %v3290
    %v3899 = vunpack.c.h.b16 %v3290
    %v3900 = vunpack.c.l.b16 %v3291
    %v3901 = vunpack.c.l.b16 %v3292
    %v3902 = vunpack.c.h.b16 %v3292
    %v3903 = vunpack.c.l.b16 %v3293
    %v3904 = vunpack.c.h.b16 %v3293
    %v3905 = vunpack.c.l.b16 %v3294
    %v3906 = vunpack.c.h.b16 %v3294
    %v3907 = vunpack.c.l.b16 %v3295
    %v3908 = vunpack.c.l.b16 %v3296
    %v3909 = vunpack.c.h.b16 %v3296
    %v3910 = vunpack.c.l.b16 %v3297
    %v3911 = vunpack.c.h.b16 %v3297
    %v3912 = vunpack.c.l.b16 %v3298
    %v3913 = vunpack.c.h.b16 %v3298
    %v3914 = vunpack.c.l.b16 %v3299
    %v3915 = vunpack.c.l.b16 %v3300
    %v3916 = vunpack.c.h.b16 %v3300
    %v3917 = vunpack.c.l.b16 %v3301
    %v3918 = vunpack.c.h.b16 %v3301
    %v3919 = vunpack.c.l.b16 %v3302
    %v3920 = vunpack.c.h.b16 %v3302
    %v3921 = vunpack.c.l.b16 %v3303
    %v3922 = vunpack.c.l.b16 %v3304
    %v3923 = vunpack.c.h.b16 %v3304
    %v3924 = vunpack.c.l.b16 %v3305
    %v3925 = vunpack.c.h.b16 %v3305
    %v3926 = vunpack.c.l.b16 %v3306
    %v3927 = vunpack.c.h.b16 %v3306
    %v3928 = vunpack.c.l.b16 %v3307
    %v3929 = vunpack.c.l.b16 %v3308
    %v3930 = vunpack.c.h.b16 %v3308
    %v3931 = vunpack.c.l.b16 %v3309
    %v3932 = vunpack.c.h.b16 %v3309
    %v3933 = vunpack.c.l.b16 %v3310
    %v3934 = vunpack.c.h.b16 %v3310
    %v3935 = vunpack.c.l.b16 %v3311
    %v3936 = vunpack.c.l.b16 %v3312
    %v3937 = vunpack.c.h.b16 %v3312
    %v3938 = vunpack.c.l.b16 %v3313
    %v3939 = vunpack.c.h.b16 %v3313
    %v3940 = vunpack.c.l.b16 %v3314
    %v3941 = vunpack.c.h.b16 %v3314
    %v3942 = vunpack.c.l.b16 %v3315
    %v3943 = vunpack.c.l.b16 %v3316
    %v3944 = vunpack.c.h.b16 %v3316
    %v3945 = vunpack.c.l.b16 %v3317
    %v3946 = vunpack.c.h.b16 %v3317
    %v3947 = vunpack.c.l.b16 %v3318
    %v3948 = vunpack.c.h.b16 %v3318
    %v3949 = vunpack.c.l.b16 %v3319
    %v3950 = vunpack.c.l.b16 %v3320
    %v3951 = vunpack.c.h.b16 %v3320
    %v3952 = vunpack.c.l.b16 %v3321
    %v3953 = vunpack.c.h.b16 %v3321
    %v3954 = vunpack.c.l.b16 %v3322
    %v3955 = vunpack.c.h.b16 %v3322
    %v3956 = vunpack.c.l.b16 %v3323
    %v3957 = vunpack.c.l.b16 %v3324
    %v3958 = vunpack.c.h.b16 %v3324
    %v3959 = vunpack.c.l.b16 %v3325
    %v3960 = vunpack.c.h.b16 %v3325
    %v3961 = vunpack.c.l.b16 %v3326
    %v3962 = vunpack.c.h.b16 %v3326
    %v3963 = vunpack.c.l.b16 %v3327
    %v3964 = vunpack.c.l.b16 %v3328
    %v3965 = vunpack.c.h.b16 %v3328
    %v3966 = vunpack.c.l.b16 %v3329
    %v3967 = vunpack.c.h.b16 %v3329
    %v3968 = vunpack.c.l.b16 %v3330
    %v3969 = vunpack.c.h.b16 %v3330
    %v3970 = vunpack.c.l.b16 %v3331
    %v3971 = vunpack.c.l.b16 %v3332
    %v3972 = vunpack.c.h.b16 %v3332
    %v3973 = vunpack.c.l.b16 %v3333
    %v3974 = vunpack.c.h.b16 %v3333
    %v3975 = vunpack.c.l.b16 %v3334
    %v3976 = vunpack.c.h.b16 %v3334
    %v3977 = vunpack.c.l.b16 %v3335
    %v3978 = vunpack.c.l.b16 %v3336
    %v3979 = vunpack.c.h.b16 %v3336
    %v3980 = vunpack.c.l.b16 %v3337
    %v3981 = vunpack.c.h.b16 %v3337
    %v3982 = vunpack.c.l.b16 %v3338
    %v3983 = vunpack.c.h.b16 %v3338
    %v3984 = vunpack.c.l.b16 %v3339
    %v3985 = vunpack.c.l.b16 %v3340
    %v3986 = vunpack.c.h.b16 %v3340
    %v3987 = vunpack.c.l.b16 %v3341
    %v3988 = vunpack.c.h.b16 %v3341
    %v3989 = vunpack.c.l.b16 %v3342
    %v3990 = vunpack.c.h.b16 %v3342
    %v3991 = vunpack.c.l.b16 %v3343
    %v3992 = vunpack.c.l.b16 %v3344
    %v3993 = vunpack.c.h.b16 %v3344
    %v3994 = vunpack.c.l.b16 %v3345
    %v3995 = vunpack.c.h.b16 %v3345
    %v3996 = vunpack.c.l.b16 %v3346
    %v3997 = vunpack.c.h.b16 %v3346
    %v3998 = vunpack.c.l.b16 %v3347
    %v3999 = vunpack.c.l.b16 %v3348
    %v4000 = vunpack.c.h.b16 %v3348
    %v4001 = vunpack.c.l.b16 %v3349
    %v4002 = vunpack.c.h.b16 %v3349
    %v4003 = vunpack.c.l.b16 %v3350
    %v4004 = vunpack.c.h.b16 %v3350
    %v4005 = vunpack.c.l.b16 %v3351
    %v4006 = vunpack.c.l.b16 %v3352
    %v4007 = vunpack.c.h.b16 %v3352
    %v4008 = vunpack.c.l.b16 %v3353
    %v4009 = vunpack.c.h.b16 %v3353
    %v4010 = vunpack.c.l.b16 %v3354
    %v4011 = vunpack.c.h.b16 %v3354
    %v4012 = vunpack.c.l.b16 %v3355
    %v4013 = vunpack.c.l.b16 %v3356
    %v4014 = vunpack.c.h.b16 %v3356
    %v4015 = vunpack.c.l.b16 %v3357
    %v4016 = vunpack.c.h.b16 %v3357
    %v4017 = vunpack.c.l.b16 %v3358
    %v4018 = vunpack.c.h.b16 %v3358
    %v4019 = vunpack.c.l.b16 %v3359
    %v4020 = vunpack.c.l.b16 %v3360
    %v4021 = vunpack.c.h.b16 %v3360
    %v4022 = vunpack.c.l.b16 %v3361
    %v4023 = vunpack.c.h.b16 %v3361
    %v4024 = vunpack.c.l.b16 %v3362
    %v4025 = vunpack.c.h.b16 %v3362
    %v4026 = vunpack.c.l.b16 %v3363
    %v4027 = vunpack.c.l.b16 %v3364
    %v4028 = vunpack.c.h.b16 %v3364
    %v4029 = vunpack.c.l.b16 %v3365
    %v4030 = vunpack.c.h.b16 %v3365
    %v4031 = vunpack.c.l.b16 %v3366
    %v4032 = vunpack.c.h.b16 %v3366
    %v4033 = vunpack.c.l.b16 %v3367
    %v4034 = vunpack.c.l.b16 %v3368
    %v4035 = vunpack.c.h.b16 %v3368
    %v4036 = vunpack.c.l.b16 %v3369
    %v4037 = vunpack.c.h.b16 %v3369
    %v4038 = vunpack.c.l.b16 %v3370
    %v4039 = vunpack.c.h.b16 %v3370
    %v4040 = vunpack.c.l.b16 %v3371
    %v4041 = vunpack.c.l.b16 %v3372
    %v4042 = vunpack.c.h.b16 %v3372
    %v4043 = vunpack.c.l.b16 %v3373
    %v4044 = vunpack.c.h.b16 %v3373
    %v4045 = vunpack.c.l.b16 %v3374
    %v4046 = vunpack.c.h.b16 %v3374
    %v4047 = vunpack.c.l.b16 %v3375
    %v4048 = vunpack.c.l.b16 %v3376
    %v4049 = vunpack.c.h.b16 %v3376
    %v4050 = vunpack.c.l.b16 %v3377
    %v4051 = vunpack.c.h.b16 %v3377
    %v4052 = vunpack.c.l.b16 %v3378
    %v4053 = vunpack.c.h.b16 %v3378
    %v4054 = vunpack.c.l.b16 %v3379
    %v4055 = vunpack.c.l.b16 %v3380
    %v4056 = vunpack.c.h.b16 %v3380
    %v4057 = vunpack.c.l.b16 %v3381
    %v4058 = vunpack.c.h.b16 %v3381
    %v4059 = vunpack.c.l.b16 %v3382
    %v4060 = vunpack.c.h.b16 %v3382
    %v4061 = vunpack.c.l.b16 %v3383
    %v4062 = vunpack.c.l.b16 %v3384
    %v4063 = vunpack.c.h.b16 %v3384
    %v4064 = vunpack.c.l.b16 %v3385
    %v4065 = vunpack.c.h.b16 %v3385
    %v4066 = vunpack.c.l.b16 %v3386
    %v4067 = vunpack.c.h.b16 %v3386
    %v4068 = vunpack.c.l.b16 %v3387
    %v4069 = vunpack.c.l.b16 %v3388
    %v4070 = vunpack.c.h.b16 %v3388
    %v4071 = vunpack.c.l.b16 %v3389
    %v4072 = vunpack.c.h.b16 %v3389
    %v4073 = vunpack.c.l.b16 %v3390
    %v4074 = vunpack.c.h.b16 %v3390
    %v4075 = vunpack.c.l.b16 %v3391
    %v4076 = vunpack.c.l.b16 %v3392
    %v4077 = vunpack.c.h.b16 %v3392
    %v4078 = vunpack.c.l.b16 %v3393
    %v4079 = vunpack.c.h.b16 %v3393
    %v4080 = vunpack.c.l.b16 %v3394
    %v4081 = vunpack.c.h.b16 %v3394
    %v4082 = vunpack.c.l.b16 %v3395
    %v4083 = vunpack.c.l.b16 %v3396
    %v4084 = vunpack.c.h.b16 %v3396
    %v4085 = vunpack.c.l.b16 %v3397
    %v4086 = vunpack.c.h.b16 %v3397
    %v4087 = vunpack.c.l.b16 %v3398
    %v4088 = vunpack.c.h.b16 %v3398
    %v4089 = vunpack.c.l.b16 %v3399
    %v4090 = vunpack.c.l.b16 %v3400
    %v4091 = vunpack.c.h.b16 %v3400
    %v4092 = vunpack.c.l.b16 %v3401
    %v4093 = vunpack.c.h.b16 %v3401
    %v4094 = vunpack.c.l.b16 %v3402
    %v4095 = vunpack.c.h.b16 %v3402
    %v4096 = vunpack.c.l.b16 %v3403
    %v4097 = vunpack.c.l.b16 %v3404
    %v4098 = vunpack.c.h.b16 %v3404
    %v4099 = vunpack.c.l.b16 %v3405
    %v4100 = vunpack.c.h.b16 %v3405
    %v4101 = vunpack.c.l.b16 %v3406
    %v4102 = vunpack.c.h.b16 %v3406
    %v4103 = vunpack.c.l.b16 %v3407
    %v4104 = vunpack.c.l.b16 %v3408
    %v4105 = vunpack.c.h.b16 %v3408
    %v4106 = vunpack.c.l.b16 %v3409
    %v4107 = vunpack.c.h.b16 %v3409
    %v4108 = vunpack.c.l.b16 %v3410
    %v4109 = vunpack.c.h.b16 %v3410
    %v4110 = vunpack.c.l.b16 %v3411
    %v4111 = vunpack.c.l.b16 %v3412
    %v4112 = vunpack.c.h.b16 %v3412
    %v4113 = vunpack.c.l.b16 %v3413
    %v4114 = vunpack.c.h.b16 %v3413
    %v4115 = vunpack.c.l.b16 %v3414
    %v4116 = vunpack.c.h.b16 %v3414
    %v4117 = vunpack.c.l.b16 %v3415
    %v4118 = vunpack.c.l.b16 %v3416
    %v4119 = vunpack.c.h.b16 %v3416
    %v4120 = vunpack.c.l.b16 %v3417
    %v4121 = vunpack.c.h.b16 %v3417
    %v4122 = vunpack.c.l.b16 %v3418
    %v4123 = vunpack.c.h.b16 %v3418
    %v4124 = vunpack.c.l.b16 %v3419
    %v4125 = vunpack.c.l.b16 %v3420
    %v4126 = vunpack.c.h.b16 %v3420
    %v4127 = vunpack.c.l.b16 %v3421
    %v4128 = vunpack.c.h.b16 %v3421
    %v4129 = vunpack.c.l.b16 %v3422
    %v4130 = vunpack.c.h.b16 %v3422
    %v4131 = vunpack.c.l.b16 %v3423
    %v4132 = vunpack.c.l.b16 %v3424
    %v4133 = vunpack.c.h.b16 %v3424
    %v4134 = vunpack.c.l.b16 %v3425
    %v4135 = vunpack.c.h.b16 %v3425
    %v4136 = vunpack.c.l.b16 %v3426
    %v4137 = vunpack.c.h.b16 %v3426
    %v4138 = vunpack.c.l.b16 %v3427
    %v4139 = vunpack.c.l.b16 %v3428
    %v4140 = vunpack.c.h.b16 %v3428
    %v4141 = vunpack.c.l.b16 %v3429
    %v4142 = vunpack.c.h.b16 %v3429
    %v4143 = vunpack.c.l.b16 %v3430
    %v4144 = vunpack.c.h.b16 %v3430
    %v4145 = vunpack.c.l.b16 %v3431
    %v4146 = vunpack.c.l.b16 %v3432
    %v4147 = vunpack.c.h.b16 %v3432
    %v4148 = vunpack.c.l.b16 %v3433
    %v4149 = vunpack.c.h.b16 %v3433
    %v4150 = vunpack.c.l.b16 %v3434
    %v4151 = vunpack.c.h.b16 %v3434
    %v4152 = vunpack.c.l.b16 %v3435
    %v4153 = vunpack.c.l.b16 %v3436
    %v4154 = vunpack.c.h.b16 %v3436
    %v4155 = vunpack.c.l.b16 %v3437
    %v4156 = vunpack.c.h.b16 %v3437
    %v4157 = vunpack.c.l.b16 %v3438
    %v4158 = vunpack.c.h.b16 %v3438
    %v4159 = vunpack.c.l.b16 %v3439
    %v4160 = vunpack.c.l.b16 %v3440
    %v4161 = vunpack.c.h.b16 %v3440
    %v4162 = vunpack.c.l.b16 %v3441
    %v4163 = vunpack.c.h.b16 %v3441
    %v4164 = vunpack.c.l.b16 %v3442
    %v4165 = vunpack.c.h.b16 %v3442
    %v4166 = vunpack.c.l.b16 %v3443
    %v4167 = vunpack.c.l.b16 %v3444
    %v4168 = vunpack.c.h.b16 %v3444
    %v4169 = vunpack.c.l.b16 %v3445
    %v4170 = vunpack.c.h.b16 %v3445
    %v4171 = vunpack.c.l.b16 %v3446
    %v4172 = vunpack.c.h.b16 %v3446
    %v4173 = vunpack.c.l.b16 %v3447
    %v4174 = vunpack.c.l.b16 %v3448
    %v4175 = vunpack.c.h.b16 %v3448
    %v4176 = vunpack.c.l.b16 %v3449
    %v4177 = vunpack.c.h.b16 %v3449
    %v4178 = vunpack.c.l.b16 %v3450
    %v4179 = vunpack.c.h.b16 %v3450
    %v4180 = vunpack.c.l.b16 %v3451
    %v4181 = vunpack.c.l.b16 %v3452
    %v4182 = vunpack.c.h.b16 %v3452
    %v4183 = vunpack.c.l.b16 %v3453
    %v4184 = vunpack.c.h.b16 %v3453
    %v4185 = vunpack.c.l.b16 %v3454
    %v4186 = vunpack.c.h.b16 %v3454
    %v4187 = vunpack.c.l.b16 %v3455
    %v4188 = vunpack.c.l.b16 %v3456
    %v4189 = vunpack.c.h.b16 %v3456
    %v4190 = vunpack.c.l.b16 %v3457
    %v4191 = vunpack.c.h.b16 %v3457
    %v4192 = vunpack.c.l.b16 %v3458
    %v4193 = vunpack.c.h.b16 %v3458
    %v4194 = vunpack.c.l.b16 %v3459
    %v4195 = vunpack.c.l.b16 %v3460
    %v4196 = vunpack.c.h.b16 %v3460
    %v4197 = vunpack.c.l.b16 %v3461
    %v4198 = vunpack.c.h.b16 %v3461
    %v4199 = vunpack.c.l.b16 %v3462
    %v4200 = vunpack.c.h.b16 %v3462
    %v4201 = vunpack.c.l.b16 %v3463
    %v4202 = vunpack.c.l.b16 %v3464
    %v4203 = vunpack.c.h.b16 %v3464
    %v4204 = vunpack.c.l.b16 %v3465
    %v4205 = vunpack.c.h.b16 %v3465
    %v4206 = vunpack.c.l.b16 %v3466
    %v4207 = vunpack.c.h.b16 %v3466
    %v4208 = vunpack.c.l.b16 %v3467
    %v4209 = vpack.c.b16 %v3768, %v3761
    %v4210 = vpack.c.b16 %v3769, %v3762
    %v4211 = vpack.c.b16 %v3770, %v3763
    %v4212 = vpack.c.b16 %v3771, %v3764
    %v4213 = vpack.c.b16 %v3772, %v3765
    %v4214 = vpack.c.b16 %v3773, %v3766
    %v4215 = vpack.c.b16 %v3774, %v3767
    %v4216 = vpack.c.b16 %v3782, %v3775
    %v4217 = vpack.c.b16 %v3783, %v3776
    %v4218 = vpack.c.b16 %v3784, %v3777
    %v4219 = vpack.c.b16 %v3785, %v3778
    %v4220 = vpack.c.b16 %v3786, %v3779
    %v4221 = vpack.c.b16 %v3787, %v3780
    %v4222 = vpack.c.b16 %v3788, %v3781
    %v4223 = vpack.c.b16 %v3796, %v3789
    %v4224 = vpack.c.b16 %v3797, %v3790
    %v4225 = vpack.c.b16 %v3798, %v3791
    %v4226 = vpack.c.b16 %v3799, %v3792
    %v4227 = vpack.c.b16 %v3800, %v3793
    %v4228 = vpack.c.b16 %v3801, %v3794
    %v4229 = vpack.c.b16 %v3802, %v3795
    %v4230 = vpack.c.b16 %v3810, %v3803
    %v4231 = vpack.c.b16 %v3811, %v3804
    %v4232 = vpack.c.b16 %v3812, %v3805
    %v4233 = vpack.c.b16 %v3813, %v3806
    %v4234 = vpack.c.b16 %v3814, %v3807
    %v4235 = vpack.c.b16 %v3815, %v3808
    %v4236 = vpack.c.b16 %v3816, %v3809
    %v4237 = vpack.c.b16 %v3824, %v3817
    %v4238 = vpack.c.b16 %v3825, %v3818
    %v4239 = vpack.c.b16 %v3826, %v3819
    %v4240 = vpack.c.b16 %v3827, %v3820
    %v4241 = vpack.c.b16 %v3828, %v3821
    %v4242 = vpack.c.b16 %v3829, %v3822
    %v4243 = vpack.c.b16 %v3830, %v3823
    %v4244 = vpack.c.b16 %v3838, %v3831
    %v4245 = vpack.c.b16 %v3839, %v3832
    %v4246 = vpack.c.b16 %v3840, %v3833
    %v4247 = vpack.c.b16 %v3841, %v3834
    %v4248 = vpack.c.b16 %v3842, %v3835
    %v4249 = vpack.c.b16 %v3843, %v3836
    %v4250 = vpack.c.b16 %v3844, %v3837
    %v4251 = vpack.c.b16 %v3852, %v3845
    %v4252 = vpack.c.b16 %v3853, %v3846
    %v4253 = vpack.c.b16 %v3854, %v3847
    %v4254 = vpack.c.b16 %v3855, %v3848
    %v4255 = vpack.c.b16 %v3856, %v3849
    %v4256 = vpack.c.b16 %v3857, %v3850
    %v4257 = vpack.c.b16 %v3858, %v3851
    %v4258 = vpack.c.b16 %v3866, %v3859
    %v4259 = vpack.c.b16 %v3867, %v3860
    %v4260 = vpack.c.b16 %v3868, %v3861
    %v4261 = vpack.c.b16 %v3869, %v3862
    %v4262 = vpack.c.b16 %v3870, %v3863
    %v4263 = vpack.c.b16 %v3871, %v3864
    %v4264 = vpack.c.b16 %v3872, %v3865
    %v4265 = vpack.c.b16 %v3880, %v3873
    %v4266 = vpack.c.b16 %v3881, %v3874
    %v4267 = vpack.c.b16 %v3882, %v3875
    %v4268 = vpack.c.b16 %v3883, %v3876
    %v4269 = vpack.c.b16 %v3884, %v3877
    %v4270 = vpack.c.b16 %v3885, %v3878
    %v4271 = vpack.c.b16 %v3886, %v3879
    %v4272 = vpack.c.b16 %v3894, %v3887
    %v4273 = vpack.c.b16 %v3895, %v3888
    %v4274 = vpack.c.b16 %v3896, %v3889
    %v4275 = vpack.c.b16 %v3897, %v3890
    %v4276 = vpack.c.b16 %v3898, %v3891
    %v4277 = vpack.c.b16 %v3899, %v3892
    %v4278 = vpack.c.b16 %v3900, %v3893
    %v4279 = vpack.c.b16 %v3908, %v3901
    %v4280 = vpack.c.b16 %v3909, %v3902
    %v4281 = vpack.c.b16 %v3910, %v3903
    %v4282 = vpack.c.b16 %v3911, %v3904
    %v4283 = vpack.c.b16 %v3912, %v3905
    %v4284 = vpack.c.b16 %v3913, %v3906
    %v4285 = vpack.c.b16 %v3914, %v3907
    %v4286 = vpack.c.b16 %v3922, %v3915
    %v4287 = vpack.c.b16 %v3923, %v3916
    %v4288 = vpack.c.b16 %v3924, %v3917
    %v4289 = vpack.c.b16 %v3925, %v3918
    %v4290 = vpack.c.b16 %v3926, %v3919
    %v4291 = vpack.c.b16 %v3927, %v3920
    %v4292 = vpack.c.b16 %v3928, %v3921
    %v4293 = vpack.c.b16 %v3936, %v3929
    %v4294 = vpack.c.b16 %v3937, %v3930
    %v4295 = vpack.c.b16 %v3938, %v3931
    %v4296 = vpack.c.b16 %v3939, %v3932
    %v4297 = vpack.c.b16 %v3940, %v3933
    %v4298 = vpack.c.b16 %v3941, %v3934
    %v4299 = vpack.c.b16 %v3942, %v3935
    %v4300 = vpack.c.b16 %v3950, %v3943
    %v4301 = vpack.c.b16 %v3951, %v3944
    %v4302 = vpack.c.b16 %v3952, %v3945
    %v4303 = vpack.c.b16 %v3953, %v3946
    %v4304 = vpack.c.b16 %v3954, %v3947
    %v4305 = vpack.c.b16 %v3955, %v3948
    %v4306 = vpack.c.b16 %v3956, %v3949
    %v4307 = vpack.c.b16 %v3964, %v3957
    %v4308 = vpack.c.b16 %v3965, %v3958
    %v4309 = vpack.c.b16 %v3966, %v3959
    %v4310 = vpack.c.b16 %v3967, %v3960
    %v4311 = vpack.c.b16 %v3968, %v3961
    %v4312 = vpack.c.b16 %v3969, %v3962
    %v4313 = vpack.c.b16 %v3970, %v3963
    %v4314 = vpack.c.b16 %v3978, %v3971
    %v4315 = vpack.c.b16 %v3979, %v3972
    %v4316 = vpack.c.b16 %v3980, %v3973
    %v4317 = vpack.c.b16 %v3981, %v3974
    %v4318 = vpack.c.b16 %v3982, %v3975
    %v4319 = vpack.c.b16 %v3983, %v3976
    %v4320 = vpack.c.b16 %v3984, %v3977
    %v4321 = vpack.c.b16 %v3992, %v3985
    %v4322 = vpack.c.b16 %v3993, %v3986
    %v4323 = vpack.c.b16 %v3994, %v3987
    %v4324 = vpack.c.b16 %v3995, %v3988
    %v4325 = vpack.c.b16 %v3996, %v3989
    %v4326 = vpack.c.b16 %v3997, %v3990
    %v4327 = vpack.c.b16 %v3998, %v3991
    %v4328 = vpack.c.b16 %v4006, %v3999
    %v4329 = vpack.c.b16 %v4007, %v4000
    %v4330 = vpack.c.b16 %v4008, %v4001
    %v4331 = vpack.c.b16 %v4009, %v4002
    %v4332 = vpack.c.b16 %v4010, %v4003
    %v4333 = vpack.c.b16 %v4011, %v4004
    %v4334 = vpack.c.b16 %v4012, %v4005
    %v4335 = vpack.c.b16 %v4020, %v4013
    %v4336 = vpack.c.b16 %v4021, %v4014
    %v4337 = vpack.c.b16 %v4022, %v4015
    %v4338 = vpack.c.b16 %v4023, %v4016
    %v4339 = vpack.c.b16 %v4024, %v4017
    %v4340 = vpack.c.b16 %v4025, %v4018
    %v4341 = vpack.c.b16 %v4026, %v4019
    %v4342 = vpack.c.b16 %v4034, %v4027
    %v4343 = vpack.c.b16 %v4035, %v4028
    %v4344 = vpack.c.b16 %v4036, %v4029
    %v4345 = vpack.c.b16 %v4037, %v4030
    %v4346 = vpack.c.b16 %v4038, %v4031
    %v4347 = vpack.c.b16 %v4039, %v4032
    %v4348 = vpack.c.b16 %v4040, %v4033
    %v4349 = vpack.c.b16 %v4048, %v4041
    %v4350 = vpack.c.b16 %v4049, %v4042
    %v4351 = vpack.c.b16 %v4050, %v4043
    %v4352 = vpack.c.b16 %v4051, %v4044
    %v4353 = vpack.c.b16 %v4052, %v4045
    %v4354 = vpack.c.b16 %v4053, %v4046
    %v4355 = vpack.c.b16 %v4054, %v4047
    %v4356 = vpack.c.b16 %v4062, %v4055
    %v4357 = vpack.c.b16 %v4063, %v4056
    %v4358 = vpack.c.b16 %v4064, %v4057
    %v4359 = vpack.c.b16 %v4065, %v4058
    %v4360 = vpack.c.b16 %v4066, %v4059
    %v4361 = vpack.c.b16 %v4067, %v4060
    %v4362 = vpack.c.b16 %v4068, %v4061
    %v4363 = vpack.c.b16 %v4076, %v4069
    %v4364 = vpack.c.b16 %v4077, %v4070
    %v4365 = vpack.c.b16 %v4078, %v4071
    %v4366 = vpack.c.b16 %v4079, %v4072
    %v4367 = vpack.c.b16 %v4080, %v4073
    %v4368 = vpack.c.b16 %v4081, %v4074
    %v4369 = vpack.c.b16 %v4082, %v4075
    %v4370 = vpack.c.b16 %v4090, %v4083
    %v4371 = vpack.c.b16 %v4091, %v4084
    %v4372 = vpack.c.b16 %v4092, %v4085
    %v4373 = vpack.c.b16 %v4093, %v4086
    %v4374 = vpack.c.b16 %v4094, %v4087
    %v4375 = vpack.c.b16 %v4095, %v4088
    %v4376 = vpack.c.b16 %v4096, %v4089
    %v4377 = vpack.c.b16 %v4104, %v4097
    %v4378 = vpack.c.b16 %v4105, %v4098
    %v4379 = vpack.c.b16 %v4106, %v4099
    %v4380 = vpack.c.b16 %v4107, %v4100
    %v4381 = vpack.c.b16 %v4108, %v4101
    %v4382 = vpack.c.b16 %v4109, %v4102
    %v4383 = vpack.c.b16 %v4110, %v4103
    %v4384 = vpack.c.b16 %v4118, %v4111
    %v4385 = vpack.c.b16 %v4119, %v4112
    %v4386 = vpack.c.b16 %v4120, %v4113
    %v4387 = vpack.c.b16 %v4121, %v4114
    %v4388 = vpack.c.b16 %v4122, %v4115
    %v4389 = vpack.c.b16 %v4123, %v4116
    %v4390 = vpack.c.b16 %v4124, %v4117
    %v4391 = vpack.c.b16 %v4132, %v4125
    %v4392 = vpack.c.b16 %v4133, %v4126
    %v4393 = vpack.c.b16 %v4134, %v4127
    %v4394 = vpack.c.b16 %v4135, %v4128
    %v4395 = vpack.c.b16 %v4136, %v4129
    %v4396 = vpack.c.b16 %v4137, %v4130
    %v4397 = vpack.c.b16 %v4138, %v4131
    %v4398 = vpack.c.b16 %v4146, %v4139
    %v4399 = vpack.c.b16 %v4147, %v4140
    %v4400 = vpack.c.b16 %v4148, %v4141
    %v4401 = vpack.c.b16 %v4149, %v4142
    %v4402 = vpack.c.b16 %v4150, %v4143
    %v4403 = vpack.c.b16 %v4151, %v4144
    %v4404 = vpack.c.b16 %v4152, %v4145
    %v4405 = vpack.c.b16 %v4160, %v4153
    %v4406 = vpack.c.b16 %v4161, %v4154
    %v4407 = vpack.c.b16 %v4162, %v4155
    %v4408 = vpack.c.b16 %v4163, %v4156
    %v4409 = vpack.c.b16 %v4164, %v4157
    %v4410 = vpack.c.b16 %v4165, %v4158
    %v4411 = vpack.c.b16 %v4166, %v4159
    %v4412 = vpack.c.b16 %v4174, %v4167
    %v4413 = vpack.c.b16 %v4175, %v4168
    %v4414 = vpack.c.b16 %v4176, %v4169
    %v4415 = vpack.c.b16 %v4177, %v4170
    %v4416 = vpack.c.b16 %v4178, %v4171
    %v4417 = vpack.c.b16 %v4179, %v4172
    %v4418 = vpack.c.b16 %v4180, %v4173
    %v4419 = vpack.c.b16 %v4188, %v4181
    %v4420 = vpack.c.b16 %v4189, %v4182
    %v4421 = vpack.c.b16 %v4190, %v4183
    %v4422 = vpack.c.b16 %v4191, %v4184
    %v4423 = vpack.c.b16 %v4192, %v4185
    %v4424 = vpack.c.b16 %v4193, %v4186
    %v4425 = vpack.c.b16 %v4194, %v4187
    %v4426 = vpack.c.b16 %v4202, %v4195
    %v4427 = vpack.c.b16 %v4203, %v4196
    %v4428 = vpack.c.b16 %v4204, %v4197
    %v4429 = vpack.c.b16 %v4205, %v4198
    %v4430 = vpack.c.b16 %v4206, %v4199
    %v4431 = vpack.c.b16 %v4207, %v4200
    %v4432 = vpack.c.b16 %v4208, %v4201
    %4657 = vmatprep.subr.bf16.mxu0 %v4210
    %4658 = vmatpush1.bf16.msra.mxu0 %v4209
    %4659 = vmatprep.subr.bf16.mxu0 %v4217
    %4660 = vmatpush1.bf16.msra.mxu0 %v4216
    %4661 = vmatprep.subr.bf16.mxu0 %v4224
    %4662 = vmatpush1.bf16.msra.mxu0 %v4223
    %4663 = vmatprep.subr.bf16.mxu0 %v4231
    %4664 = vmatpush1.bf16.msra.mxu0 %v4230
    %4665 = vmatprep.subr.bf16.mxu0 %v4238
    %4666 = vmatpush1.bf16.msra.mxu0 %v4237
    %4667 = vmatprep.subr.bf16.mxu0 %v4245
    %4668 = vmatpush1.bf16.msra.mxu0 %v4244
    %4669 = vmatprep.subr.bf16.mxu0 %v4252
    %4670 = vmatpush1.bf16.msra.mxu0 %v4251
    %4671 = vmatprep.subr.bf16.mxu0 %v4259
    %4672 = vmatpush1.bf16.msra.mxu0 %v4258
    %4673 = vmatprep.subr.bf16.mxu0 %v4266
    %4674 = vmatpush1.bf16.msra.mxu0 %v4265
    %4675 = vmatprep.subr.bf16.mxu0 %v4273
    %4676 = vmatpush1.bf16.msra.mxu0 %v4272
    %4677 = vmatprep.subr.bf16.mxu0 %v4280
    %4678 = vmatpush1.bf16.msra.mxu0 %v4279
    %4679 = vmatprep.subr.bf16.mxu0 %v4287
    %4680 = vmatpush1.bf16.msra.mxu0 %v4286
    %4681 = vmatprep.subr.bf16.mxu0 %v4294
    %4682 = vmatpush1.bf16.msra.mxu0 %v4293
    %4683 = vmatprep.subr.bf16.mxu0 %v4301
    %4684 = vmatpush1.bf16.msra.mxu0 %v4300
    %4685 = vmatprep.subr.bf16.mxu0 %v4308
    %4686 = vmatpush1.bf16.msra.mxu0 %v4307
    %4687 = vmatprep.subr.bf16.mxu0 %v4315
    %4688 = vmatpush1.bf16.msra.mxu0 %v4314
    %4689 = vmatprep.mubr.bf16.mxu0 %v3197
    %4690 = vmatmul.mubr.bf16.gmra.mrb[0].mxu0 %v3196
    %v4691 = vpop.f32.mrb[0].mxu0
    %v4692 = vadd.f32 %v3473, %v4691
    %v4693 = vpop.f32.mrb[0].mxu0
    %v4694 = vadd.f32 %v3477, %v4693
    %v4695 = vpop.f32.mrb[0].mxu0
    %v4696 = vadd.f32 %v3473, %v4695
    %v4697 = vpop.f32.mrb[0].mxu0
    %v4698 = vadd.f32 %v3477, %v4697
    %4699 = vmatprep.mubr.bf16.mxu0 %v3201
    %4700 = vmatmul.mubr.bf16.gmra.mrb[0].mxu0 %v3200
    %v4701 = vpop.f32.mrb[0].mxu0
    %v4702 = vadd.f32 %v3473, %v4701
    %v4703 = vpop.f32.mrb[0].mxu0
    %v4704 = vadd.f32 %v3477, %v4703
    %v4705 = vpop.f32.mrb[0].mxu0
    %v4706 = vadd.f32 %v3473, %v4705
    %v4707 = vpop.f32.mrb[0].mxu0
    %v4708 = vadd.f32 %v3477, %v4707
    %4709 = vmatprep.mubr.bf16.mxu0 %v3205
    %4710 = vmatmul.mubr.bf16.gmra.mrb[0].mxu0 %v3204
    %v4711 = vpop.f32.mrb[0].mxu0
    %v4712 = vadd.f32 %v3473, %v4711
    %v4713 = vpop.f32.mrb[0].mxu0
    %v4714 = vadd.f32 %v3477, %v4713
    %v4715 = vpop.f32.mrb[0].mxu0
    %v4716 = vadd.f32 %v3473, %v4715
    %v4717 = vpop.f32.mrb[0].mxu0
    %v4718 = vadd.f32 %v3477, %v4717
    %4719 = vmatprep.mubr.bf16.mxu0 %v3209
    %4720 = vmatmul.mubr.bf16.gmra.mrb[0].mxu0 %v3208
    %v4721 = vpop.f32.mrb[0].mxu0
    %v4722 = vadd.f32 %v3473, %v4721
    %v4723 = vpop.f32.mrb[0].mxu0
    %v4724 = vadd.f32 %v3477, %v4723
    %v4725 = vpop.f32.mrb[0].mxu0
    %v4726 = vadd.f32 %v3473, %v4725
    %v4727 = vpop.f32.mrb[0].mxu0
    %v4728 = vadd.f32 %v3477, %v4727
    %4729 = vdwg.mxu0
    %4730 = vmatprep.subr.bf16.mxu0 %v4322
    %4731 = vmatpush1.bf16.msra.mxu0 %v4321
    %4732 = vmatprep.subr.bf16.mxu0 %v4329
    %4733 = vmatpush1.bf16.msra.mxu0 %v4328
    %4734 = vmatprep.subr.bf16.mxu0 %v4336
    %4735 = vmatpush1.bf16.msra.mxu0 %v4335
    %4736 = vmatprep.subr.bf16.mxu0 %v4343
    %4737 = vmatpush1.bf16.msra.mxu0 %v4342
    %4738 = vmatprep.subr.bf16.mxu0 %v4350
    %4739 = vmatpush1.bf16.msra.mxu0 %v4349
    %4740 = vmatprep.subr.bf16.mxu0 %v4357
    %4741 = vmatpush1.bf16.msra.mxu0 %v4356
    %4742 = vmatprep.subr.bf16.mxu0 %v4364
    %4743 = vmatpush1.bf16.msra.mxu0 %v4363
    %4744 = vmatprep.subr.bf16.mxu0 %v4371
    %4745 = vmatpush1.bf16.msra.mxu0 %v4370
    %4746 = vmatprep.subr.bf16.mxu0 %v4378
    %4747 = vmatpush1.bf16.msra.mxu0 %v4377
    %4748 = vmatprep.subr.bf16.mxu0 %v4385
    %4749 = vmatpush1.bf16.msra.mxu0 %v4384
    %4750 = vmatprep.subr.bf16.mxu0 %v4392
    %4751 = vmatpush1.bf16.msra.mxu0 %v4391
    %4752 = vmatprep.subr.bf16.mxu0 %v4399
    %4753 = vmatpush1.bf16.msra.mxu0 %v4398
    %4754 = vmatprep.subr.bf16.mxu0 %v4406
    %4755 = vmatpush1.bf16.msra.mxu0 %v4405
    %4756 = vmatprep.subr.bf16.mxu0 %v4413
    %4757 = vmatpush1.bf16.msra.mxu0 %v4412
    %4758 = vmatprep.subr.bf16.mxu0 %v4420
    %4759 = vmatpush1.bf16.msra.mxu0 %v4419
    %4760 = vmatprep.subr.bf16.mxu0 %v4427
    %4761 = vmatpush1.bf16.msra.mxu0 %v4426
    %4762 = vmatprep.mubr.bf16.mxu0 %v3199
    %4763 = vmatmul.mubr.bf16.gmra.mrb[0].mxu0 %v3198
    %v4764 = vpop.f32.mrb[0].mxu0
    %v4765 = vadd.f32 %v4692, %v4764
    %v4766 = vpop.f32.mrb[0].mxu0
    %v4767 = vadd.f32 %v4694, %v4766
    %v4768 = vpop.f32.mrb[0].mxu0
    %v4769 = vadd.f32 %v4696, %v4768
    %v4770 = vpop.f32.mrb[0].mxu0
    %v4771 = vadd.f32 %v4698, %v4770
    %4772 = vmatprep.mubr.bf16.mxu0 %v3203
    %4773 = vmatmul.mubr.bf16.gmra.mrb[0].mxu0 %v3202
    %v4774 = vpop.f32.mrb[0].mxu0
    %v4775 = vadd.f32 %v4702, %v4774
    %v4776 = vpop.f32.mrb[0].mxu0
    %v4777 = vadd.f32 %v4704, %v4776
    %v4778 = vpop.f32.mrb[0].mxu0
    %v4779 = vadd.f32 %v4706, %v4778
    %v4780 = vpop.f32.mrb[0].mxu0
    %v4781 = vadd.f32 %v4708, %v4780
    %4782 = vmatprep.mubr.bf16.mxu0 %v3207
    %4783 = vmatmul.mubr.bf16.gmra.mrb[0].mxu0 %v3206
    %v4784 = vpop.f32.mrb[0].mxu0
    %v4785 = vadd.f32 %v4712, %v4784
    %v4786 = vpop.f32.mrb[0].mxu0
    %v4787 = vadd.f32 %v4714, %v4786
    %v4788 = vpop.f32.mrb[0].mxu0
    %v4789 = vadd.f32 %v4716, %v4788
    %v4790 = vpop.f32.mrb[0].mxu0
    %v4791 = vadd.f32 %v4718, %v4790
    %4792 = vmatprep.mubr.bf16.mxu0 %v3211
    %4793 = vmatmul.mubr.bf16.gmra.mrb[0].mxu0 %v3210
    %v4794 = vpop.f32.mrb[0].mxu0
    %v4795 = vadd.f32 %v4722, %v4794
    %v4796 = vpop.f32.mrb[0].mxu0
    %v4797 = vadd.f32 %v4724, %v4796
    %v4798 = vpop.f32.mrb[0].mxu0
    %v4799 = vadd.f32 %v4726, %v4798
    %v4800 = vpop.f32.mrb[0].mxu0
    %v4801 = vadd.f32 %v4728, %v4800
    %4802 = vdwg.mxu0
    %4803 = vmatprep.subr.bf16.mxu0 %v4212
    %4804 = vmatpush1.bf16.msra.mxu0 %v4211
    %4805 = vmatprep.subr.bf16.mxu0 %v4219
    %4806 = vmatpush1.bf16.msra.mxu0 %v4218
    %4807 = vmatprep.subr.bf16.mxu0 %v4226
    %4808 = vmatpush1.bf16.msra.mxu0 %v4225
    %4809 = vmatprep.subr.bf16.mxu0 %v4233
    %4810 = vmatpush1.bf16.msra.mxu0 %v4232
    %4811 = vmatprep.subr.bf16.mxu0 %v4240
    %4812 = vmatpush1.bf16.msra.mxu0 %v4239
    %4813 = vmatprep.subr.bf16.mxu0 %v4247
    %4814 = vmatpush1.bf16.msra.mxu0 %v4246
    %4815 = vmatprep.subr.bf16.mxu0 %v4254
    %4816 = vmatpush1.bf16.msra.mxu0 %v4253
    %4817 = vmatprep.subr.bf16.mxu0 %v4261
    %4818 = vmatpush1.bf16.msra.mxu0 %v4260
    %4819 = vmatprep.subr.bf16.mxu0 %v4268
    %4820 = vmatpush1.bf16.msra.mxu0 %v4267
    %4821 = vmatprep.subr.bf16.mxu0 %v4275
    %4822 = vmatpush1.bf16.msra.mxu0 %v4274
    %4823 = vmatprep.subr.bf16.mxu0 %v4282
    %4824 = vmatpush1.bf16.msra.mxu0 %v4281
    %4825 = vmatprep.subr.bf16.mxu0 %v4289
    %4826 = vmatpush1.bf16.msra.mxu0 %v4288
    %4827 = vmatprep.subr.bf16.mxu0 %v4296
    %4828 = vmatpush1.bf16.msra.mxu0 %v4295
    %4829 = vmatprep.subr.bf16.mxu0 %v4303
    %4830 = vmatpush1.bf16.msra.mxu0 %v4302
    %4831 = vmatprep.subr.bf16.mxu0 %v4310
    %4832 = vmatpush1.bf16.msra.mxu0 %v4309
    %4833 = vmatprep.subr.bf16.mxu0 %v4317
    %4834 = vmatpush1.bf16.msra.mxu0 %v4316
    %4835 = vmatprep.mubr.bf16.mxu0 %v3197
    %4836 = vmatmul.mubr.bf16.gmra.mrb[0].mxu0 %v3196
    %v4837 = vpop.f32.mrb[0].mxu0
    %v4838 = vadd.f32 %v3481, %v4837
    %v4839 = vpop.f32.mrb[0].mxu0
    %v4840 = vadd.f32 %v3485, %v4839
    %v4841 = vpop.f32.mrb[0].mxu0
    %v4842 = vadd.f32 %v3481, %v4841
    %v4843 = vpop.f32.mrb[0].mxu0
    %v4844 = vadd.f32 %v3485, %v4843
    %4845 = vmatprep.mubr.bf16.mxu0 %v3201
    %4846 = vmatmul.mubr.bf16.gmra.mrb[0].mxu0 %v3200
    %v4847 = vpop.f32.mrb[0].mxu0
    %v4848 = vadd.f32 %v3481, %v4847
    %v4849 = vpop.f32.mrb[0].mxu0
    %v4850 = vadd.f32 %v3485, %v4849
    %v4851 = vpop.f32.mrb[0].mxu0
    %v4852 = vadd.f32 %v3481, %v4851
    %v4853 = vpop.f32.mrb[0].mxu0
    %v4854 = vadd.f32 %v3485, %v4853
    %4855 = vmatprep.mubr.bf16.mxu0 %v3205
    %4856 = vmatmul.mubr.bf16.gmra.mrb[0].mxu0 %v3204
    %v4857 = vpop.f32.mrb[0].mxu0
    %v4858 = vadd.f32 %v3481, %v4857
    %v4859 = vpop.f32.mrb[0].mxu0
    %v4860 = vadd.f32 %v3485, %v4859
    %v4861 = vpop.f32.mrb[0].mxu0
    %v4862 = vadd.f32 %v3481, %v4861
    %v4863 = vpop.f32.mrb[0].mxu0
    %v4864 = vadd.f32 %v3485, %v4863
    %4865 = vmatprep.mubr.bf16.mxu0 %v3209
    %4866 = vmatmul.mubr.bf16.gmra.mrb[0].mxu0 %v3208
    %v4867 = vpop.f32.mrb[0].mxu0
    %v4868 = vadd.f32 %v3481, %v4867
    %v4869 = vpop.f32.mrb[0].mxu0
    %v4870 = vadd.f32 %v3485, %v4869
    %v4871 = vpop.f32.mrb[0].mxu0
    %v4872 = vadd.f32 %v3481, %v4871
    %v4873 = vpop.f32.mrb[0].mxu0
    %v4874 = vadd.f32 %v3485, %v4873
    %4875 = vdwg.mxu0
    %4876 = vmatprep.subr.bf16.mxu0 %v4324
    %4877 = vmatpush1.bf16.msra.mxu0 %v4323
    %4878 = vmatprep.subr.bf16.mxu0 %v4331
    %4879 = vmatpush1.bf16.msra.mxu0 %v4330
    %4880 = vmatprep.subr.bf16.mxu0 %v4338
    %4881 = vmatpush1.bf16.msra.mxu0 %v4337
    %4882 = vmatprep.subr.bf16.mxu0 %v4345
    %4883 = vmatpush1.bf16.msra.mxu0 %v4344
    %4884 = vmatprep.subr.bf16.mxu0 %v4352
    %4885 = vmatpush1.bf16.msra.mxu0 %v4351
    %4886 = vmatprep.subr.bf16.mxu0 %v4359
    %4887 = vmatpush1.bf16.msra.mxu0 %v4358
    %4888 = vmatprep.subr.bf16.mxu0 %v4366
    %4889 = vmatpush1.bf16.msra.mxu0 %v4365
    %4890 = vmatprep.subr.bf16.mxu0 %v4373
    %4891 = vmatpush1.bf16.msra.mxu0 %v4372
    %4892 = vmatprep.subr.bf16.mxu0 %v4380
    %4893 = vmatpush1.bf16.msra.mxu0 %v4379
    %4894 = vmatprep.subr.bf16.mxu0 %v4387
    %4895 = vmatpush1.bf16.msra.mxu0 %v4386
    %4896 = vmatprep.subr.bf16.mxu0 %v4394
    %4897 = vmatpush1.bf16.msra.mxu0 %v4393
    %4898 = vmatprep.subr.bf16.mxu0 %v4401
    %4899 = vmatpush1.bf16.msra.mxu0 %v4400
    %4900 = vmatprep.subr.bf16.mxu0 %v4408
    %4901 = vmatpush1.bf16.msra.mxu0 %v4407
    %4902 = vmatprep.subr.bf16.mxu0 %v4415
    %4903 = vmatpush1.bf16.msra.mxu0 %v4414
    %4904 = vmatprep.subr.bf16.mxu0 %v4422
    %4905 = vmatpush1.bf16.msra.mxu0 %v4421
    %4906 = vmatprep.subr.bf16.mxu0 %v4429
    %4907 = vmatpush1.bf16.msra.mxu0 %v4428
    %4908 = vmatprep.mubr.bf16.mxu0 %v3199
    %4909 = vmatmul.mubr.bf16.gmra.mrb[0].mxu0 %v3198
    %v4910 = vpop.f32.mrb[0].mxu0
    %v4911 = vadd.f32 %v4838, %v4910
    %v4912 = vpop.f32.mrb[0].mxu0
    %v4913 = vadd.f32 %v4840, %v4912
    %v4914 = vpop.f32.mrb[0].mxu0
    %v4915 = vadd.f32 %v4842, %v4914
    %v4916 = vpop.f32.mrb[0].mxu0
    %v4917 = vadd.f32 %v4844, %v4916
    %4918 = vmatprep.mubr.bf16.mxu0 %v3203
    %4919 = vmatmul.mubr.bf16.gmra.mrb[0].mxu0 %v3202
    %v4920 = vpop.f32.mrb[0].mxu0
    %v4921 = vadd.f32 %v4848, %v4920
    %v4922 = vpop.f32.mrb[0].mxu0
    %v4923 = vadd.f32 %v4850, %v4922
    %v4924 = vpop.f32.mrb[0].mxu0
    %v4925 = vadd.f32 %v4852, %v4924
    %v4926 = vpop.f32.mrb[0].mxu0
    %v4927 = vadd.f32 %v4854, %v4926
    %4928 = vmatprep.mubr.bf16.mxu0 %v3207
    %4929 = vmatmul.mubr.bf16.gmra.mrb[0].mxu0 %v3206
    %v4930 = vpop.f32.mrb[0].mxu0
    %v4931 = vadd.f32 %v4858, %v4930
    %v4932 = vpop.f32.mrb[0].mxu0
    %v4933 = vadd.f32 %v4860, %v4932
    %v4934 = vpop.f32.mrb[0].mxu0
    %v4935 = vadd.f32 %v4862, %v4934
    %v4936 = vpop.f32.mrb[0].mxu0
    %v4937 = vadd.f32 %v4864, %v4936
    %4938 = vmatprep.mubr.bf16.mxu0 %v3211
    %4939 = vmatmul.mubr.bf16.gmra.mrb[0].mxu0 %v3210
    %v4940 = vpop.f32.mrb[0].mxu0
    %v4941 = vadd.f32 %v4868, %v4940
    %v4942 = vpop.f32.mrb[0].mxu0
    %v4943 = vadd.f32 %v4870, %v4942
    %v4944 = vpop.f32.mrb[0].mxu0
    %v4945 = vadd.f32 %v4872, %v4944
    %v4946 = vpop.f32.mrb[0].mxu0
    %v4947 = vadd.f32 %v4874, %v4946
    %4948 = vdwg.mxu0
    %4949 = vmatprep.subr.bf16.mxu0 %v4214
    %4950 = vmatpush1.bf16.msra.mxu0 %v4213
    %4951 = vmatprep.subr.bf16.mxu0 %v4221
    %4952 = vmatpush1.bf16.msra.mxu0 %v4220
    %4953 = vmatprep.subr.bf16.mxu0 %v4228
    %4954 = vmatpush1.bf16.msra.mxu0 %v4227
    %4955 = vmatprep.subr.bf16.mxu0 %v4235
    %4956 = vmatpush1.bf16.msra.mxu0 %v4234
    %4957 = vmatprep.subr.bf16.mxu0 %v4242
    %4958 = vmatpush1.bf16.msra.mxu0 %v4241
    %4959 = vmatprep.subr.bf16.mxu0 %v4249
    %4960 = vmatpush1.bf16.msra.mxu0 %v4248
    %4961 = vmatprep.subr.bf16.mxu0 %v4256
    %4962 = vmatpush1.bf16.msra.mxu0 %v4255
    %4963 = vmatprep.subr.bf16.mxu0 %v4263
    %4964 = vmatpush1.bf16.msra.mxu0 %v4262
    %4965 = vmatprep.subr.bf16.mxu0 %v4270
    %4966 = vmatpush1.bf16.msra.mxu0 %v4269
    %4967 = vmatprep.subr.bf16.mxu0 %v4277
    %4968 = vmatpush1.bf16.msra.mxu0 %v4276
    %4969 = vmatprep.subr.bf16.mxu0 %v4284
    %4970 = vmatpush1.bf16.msra.mxu0 %v4283
    %4971 = vmatprep.subr.bf16.mxu0 %v4291
    %4972 = vmatpush1.bf16.msra.mxu0 %v4290
    %4973 = vmatprep.subr.bf16.mxu0 %v4298
    %4974 = vmatpush1.bf16.msra.mxu0 %v4297
    %4975 = vmatprep.subr.bf16.mxu0 %v4305
    %4976 = vmatpush1.bf16.msra.mxu0 %v4304
    %4977 = vmatprep.subr.bf16.mxu0 %v4312
    %4978 = vmatpush1.bf16.msra.mxu0 %v4311
    %4979 = vmatprep.subr.bf16.mxu0 %v4319
    %4980 = vmatpush1.bf16.msra.mxu0 %v4318
    %4981 = vmatprep.mubr.bf16.mxu0 %v3197
    %4982 = vmatmul.mubr.bf16.gmra.mrb[0].mxu0 %v3196
    %v4983 = vpop.f32.mrb[0].mxu0
    %v4984 = vadd.f32 %v3489, %v4983
    %v4985 = vpop.f32.mrb[0].mxu0
    %v4986 = vadd.f32 %v3493, %v4985
    %v4987 = vpop.f32.mrb[0].mxu0
    %v4988 = vadd.f32 %v3489, %v4987
    %v4989 = vpop.f32.mrb[0].mxu0
    %v4990 = vadd.f32 %v3493, %v4989
    %4991 = vmatprep.mubr.bf16.mxu0 %v3201
    %4992 = vmatmul.mubr.bf16.gmra.mrb[0].mxu0 %v3200
    %v4993 = vpop.f32.mrb[0].mxu0
    %v4994 = vadd.f32 %v3489, %v4993
    %v4995 = vpop.f32.mrb[0].mxu0
    %v4996 = vadd.f32 %v3493, %v4995
    %v4997 = vpop.f32.mrb[0].mxu0
    %v4998 = vadd.f32 %v3489, %v4997
    %v4999 = vpop.f32.mrb[0].mxu0
    %v5000 = vadd.f32 %v3493, %v4999
    %5001 = vmatprep.mubr.bf16.mxu0 %v3205
    %5002 = vmatmul.mubr.bf16.gmra.mrb[0].mxu0 %v3204
    %v5003 = vpop.f32.mrb[0].mxu0
    %v5004 = vadd.f32 %v3489, %v5003
    %v5005 = vpop.f32.mrb[0].mxu0
    %v5006 = vadd.f32 %v3493, %v5005
    %v5007 = vpop.f32.mrb[0].mxu0
    %v5008 = vadd.f32 %v3489, %v5007
    %v5009 = vpop.f32.mrb[0].mxu0
    %v5010 = vadd.f32 %v3493, %v5009
    %5011 = vmatprep.mubr.bf16.mxu0 %v3209
    %5012 = vmatmul.mubr.bf16.gmra.mrb[0].mxu0 %v3208
    %v5013 = vpop.f32.mrb[0].mxu0
    %v5014 = vadd.f32 %v3489, %v5013
    %v5015 = vpop.f32.mrb[0].mxu0
    %v5016 = vadd.f32 %v3493, %v5015
    %v5017 = vpop.f32.mrb[0].mxu0
    %v5018 = vadd.f32 %v3489, %v5017
    %v5019 = vpop.f32.mrb[0].mxu0
    %v5020 = vadd.f32 %v3493, %v5019
    %5021 = vdwg.mxu0
    %5022 = vmatprep.subr.bf16.mxu0 %v4326
    %5023 = vmatpush1.bf16.msra.mxu0 %v4325
    %5024 = vmatprep.subr.bf16.mxu0 %v4333
    %5025 = vmatpush1.bf16.msra.mxu0 %v4332
    %5026 = vmatprep.subr.bf16.mxu0 %v4340
    %5027 = vmatpush1.bf16.msra.mxu0 %v4339
    %5028 = vmatprep.subr.bf16.mxu0 %v4347
    %5029 = vmatpush1.bf16.msra.mxu0 %v4346
    %5030 = vmatprep.subr.bf16.mxu0 %v4354
    %5031 = vmatpush1.bf16.msra.mxu0 %v4353
    %5032 = vmatprep.subr.bf16.mxu0 %v4361
    %5033 = vmatpush1.bf16.msra.mxu0 %v4360
    %5034 = vmatprep.subr.bf16.mxu0 %v4368
    %5035 = vmatpush1.bf16.msra.mxu0 %v4367
    %5036 = vmatprep.subr.bf16.mxu0 %v4375
    %5037 = vmatpush1.bf16.msra.mxu0 %v4374
    %5038 = vmatprep.subr.bf16.mxu0 %v4382
    %5039 = vmatpush1.bf16.msra.mxu0 %v4381
    %5040 = vmatprep.subr.bf16.mxu0 %v4389
    %5041 = vmatpush1.bf16.msra.mxu0 %v4388
    %5042 = vmatprep.subr.bf16.mxu0 %v4396
    %5043 = vmatpush1.bf16.msra.mxu0 %v4395
    %5044 = vmatprep.subr.bf16.mxu0 %v4403
    %5045 = vmatpush1.bf16.msra.mxu0 %v4402
    %5046 = vmatprep.subr.bf16.mxu0 %v4410
    %5047 = vmatpush1.bf16.msra.mxu0 %v4409
    %5048 = vmatprep.subr.bf16.mxu0 %v4417
    %5049 = vmatpush1.bf16.msra.mxu0 %v4416
    %5050 = vmatprep.subr.bf16.mxu0 %v4424
    %5051 = vmatpush1.bf16.msra.mxu0 %v4423
    %5052 = vmatprep.subr.bf16.mxu0 %v4431
    %5053 = vmatpush1.bf16.msra.mxu0 %v4430
    %5054 = vmatprep.mubr.bf16.mxu0 %v3199
    %5055 = vmatmul.mubr.bf16.gmra.mrb[0].mxu0 %v3198
    %v5056 = vpop.f32.mrb[0].mxu0
    %v5057 = vadd.f32 %v4984, %v5056
    %v5058 = vpop.f32.mrb[0].mxu0
    %v5059 = vadd.f32 %v4986, %v5058
    %v5060 = vpop.f32.mrb[0].mxu0
    %v5061 = vadd.f32 %v4988, %v5060
    %v5062 = vpop.f32.mrb[0].mxu0
    %v5063 = vadd.f32 %v4990, %v5062
    %5064 = vmatprep.mubr.bf16.mxu0 %v3203
    %5065 = vmatmul.mubr.bf16.gmra.mrb[0].mxu0 %v3202
    %v5066 = vpop.f32.mrb[0].mxu0
    %v5067 = vadd.f32 %v4994, %v5066
    %v5068 = vpop.f32.mrb[0].mxu0
    %v5069 = vadd.f32 %v4996, %v5068
    %v5070 = vpop.f32.mrb[0].mxu0
    %v5071 = vadd.f32 %v4998, %v5070
    %v5072 = vpop.f32.mrb[0].mxu0
    %v5073 = vadd.f32 %v5000, %v5072
    %5074 = vmatprep.mubr.bf16.mxu0 %v3207
    %5075 = vmatmul.mubr.bf16.gmra.mrb[0].mxu0 %v3206
    %v5076 = vpop.f32.mrb[0].mxu0
    %v5077 = vadd.f32 %v5004, %v5076
    %v5078 = vpop.f32.mrb[0].mxu0
    %v5079 = vadd.f32 %v5006, %v5078
    %v5080 = vpop.f32.mrb[0].mxu0
    %v5081 = vadd.f32 %v5008, %v5080
    %v5082 = vpop.f32.mrb[0].mxu0
    %v5083 = vadd.f32 %v5010, %v5082
    %5084 = vmatprep.mubr.bf16.mxu0 %v3211
    %5085 = vmatmul.mubr.bf16.gmra.mrb[0].mxu0 %v3210
    %v5086 = vpop.f32.mrb[0].mxu0
    %v5087 = vadd.f32 %v5014, %v5086
    %v5088 = vpop.f32.mrb[0].mxu0
    %v5089 = vadd.f32 %v5016, %v5088
    %v5090 = vpop.f32.mrb[0].mxu0
    %v5091 = vadd.f32 %v5018, %v5090
    %v5092 = vpop.f32.mrb[0].mxu0
    %v5093 = vadd.f32 %v5020, %v5092
    %5094 = vdwg.mxu0
    %5095 = vmatprep.subr.bf16.mxu0 0
    %5096 = vmatpush1.bf16.msra.mxu0 %v4215
    %5097 = vmatprep.subr.bf16.mxu0 0
    %5098 = vmatpush1.bf16.msra.mxu0 %v4222
    %5099 = vmatprep.subr.bf16.mxu0 0
    %5100 = vmatpush1.bf16.msra.mxu0 %v4229
    %5101 = vmatprep.subr.bf16.mxu0 0
    %5102 = vmatpush1.bf16.msra.mxu0 %v4236
    %5103 = vmatprep.subr.bf16.mxu0 0
    %5104 = vmatpush1.bf16.msra.mxu0 %v4243
    %5105 = vmatprep.subr.bf16.mxu0 0
    %5106 = vmatpush1.bf16.msra.mxu0 %v4250
    %5107 = vmatprep.subr.bf16.mxu0 0
    %5108 = vmatpush1.bf16.msra.mxu0 %v4257
    %5109 = vmatprep.subr.bf16.mxu0 0
    %5110 = vmatpush1.bf16.msra.mxu0 %v4264
    %5111 = vmatprep.subr.bf16.mxu0 0
    %5112 = vmatpush1.bf16.msra.mxu0 %v4271
    %5113 = vmatprep.subr.bf16.mxu0 0
    %5114 = vmatpush1.bf16.msra.mxu0 %v4278
    %5115 = vmatprep.subr.bf16.mxu0 0
    %5116 = vmatpush1.bf16.msra.mxu0 %v4285
    %5117 = vmatprep.subr.bf16.mxu0 0
    %5118 = vmatpush1.bf16.msra.mxu0 %v4292
    %5119 = vmatprep.subr.bf16.mxu0 0
    %5120 = vmatpush1.bf16.msra.mxu0 %v4299
    %5121 = vmatprep.subr.bf16.mxu0 0
    %5122 = vmatpush1.bf16.msra.mxu0 %v4306
    %5123 = vmatprep.subr.bf16.mxu0 0
    %5124 = vmatpush1.bf16.msra.mxu0 %v4313
    %5125 = vmatprep.subr.bf16.mxu0 0
    %5126 = vmatpush1.bf16.msra.mxu0 %v4320
    %5127 = vmatprep.mubr.bf16.mxu0 %v3197
    %5128 = vmatmul.mubr.bf16.gmra.mrb[0].mxu0 %v3196
    %v5129 = vpop.f32.mrb[0].mxu0
    %v5130 = vadd.f32 %v3497, %v5129
    %v5131 = vpop.f32.mrb[0].mxu0
    %v5132 = vpop.f32.mrb[0].mxu0
    %v5133 = vadd.f32 %v3497, %v5132
    %v5134 = vpop.f32.mrb[0].mxu0
    %5135 = vmatprep.mubr.bf16.mxu0 %v3201
    %5136 = vmatmul.mubr.bf16.gmra.mrb[0].mxu0 %v3200
    %v5137 = vpop.f32.mrb[0].mxu0
    %v5138 = vadd.f32 %v3497, %v5137
    %v5139 = vpop.f32.mrb[0].mxu0
    %v5140 = vpop.f32.mrb[0].mxu0
    %v5141 = vadd.f32 %v3497, %v5140
    %v5142 = vpop.f32.mrb[0].mxu0
    %5143 = vmatprep.mubr.bf16.mxu0 %v3205
    %5144 = vmatmul.mubr.bf16.gmra.mrb[0].mxu0 %v3204
    %v5145 = vpop.f32.mrb[0].mxu0
    %v5146 = vadd.f32 %v3497, %v5145
    %v5147 = vpop.f32.mrb[0].mxu0
    %v5148 = vpop.f32.mrb[0].mxu0
    %v5149 = vadd.f32 %v3497, %v5148
    %v5150 = vpop.f32.mrb[0].mxu0
    %5151 = vmatprep.mubr.bf16.mxu0 %v3209
    %5152 = vmatmul.mubr.bf16.gmra.mrb[0].mxu0 %v3208
    %v5153 = vpop.f32.mrb[0].mxu0
    %v5154 = vadd.f32 %v3497, %v5153
    %v5155 = vpop.f32.mrb[0].mxu0
    %v5156 = vpop.f32.mrb[0].mxu0
    %v5157 = vadd.f32 %v3497, %v5156
    %v5158 = vpop.f32.mrb[0].mxu0
    %5159 = vdwg.mxu0
    %5160 = vmatprep.subr.bf16.mxu0 0
    %5161 = vmatpush1.bf16.msra.mxu0 %v4327
    %5162 = vmatprep.subr.bf16.mxu0 0
    %5163 = vmatpush1.bf16.msra.mxu0 %v4334
    %5164 = vmatprep.subr.bf16.mxu0 0
    %5165 = vmatpush1.bf16.msra.mxu0 %v4341
    %5166 = vmatprep.subr.bf16.mxu0 0
    %5167 = vmatpush1.bf16.msra.mxu0 %v4348
    %5168 = vmatprep.subr.bf16.mxu0 0
    %5169 = vmatpush1.bf16.msra.mxu0 %v4355
    %5170 = vmatprep.subr.bf16.mxu0 0
    %5171 = vmatpush1.bf16.msra.mxu0 %v4362
    %5172 = vmatprep.subr.bf16.mxu0 0
    %5173 = vmatpush1.bf16.msra.mxu0 %v4369
    %5174 = vmatprep.subr.bf16.mxu0 0
    %5175 = vmatpush1.bf16.msra.mxu0 %v4376
    %5176 = vmatprep.subr.bf16.mxu0 0
    %5177 = vmatpush1.bf16.msra.mxu0 %v4383
    %5178 = vmatprep.subr.bf16.mxu0 0
    %5179 = vmatpush1.bf16.msra.mxu0 %v4390
    %5180 = vmatprep.subr.bf16.mxu0 0
    %5181 = vmatpush1.bf16.msra.mxu0 %v4397
    %5182 = vmatprep.subr.bf16.mxu0 0
    %5183 = vmatpush1.bf16.msra.mxu0 %v4404
    %5184 = vmatprep.subr.bf16.mxu0 0
    %5185 = vmatpush1.bf16.msra.mxu0 %v4411
    %5186 = vmatprep.subr.bf16.mxu0 0
    %5187 = vmatpush1.bf16.msra.mxu0 %v4418
    %5188 = vmatprep.subr.bf16.mxu0 0
    %5189 = vmatpush1.bf16.msra.mxu0 %v4425
    %5190 = vmatprep.subr.bf16.mxu0 0
    %5191 = vmatpush1.bf16.msra.mxu0 %v4432
    %5192 = vmatprep.mubr.bf16.mxu0 %v3199
    %5193 = vmatmul.mubr.bf16.gmra.mrb[0].mxu0 %v3198
    %v5194 = vpop.f32.mrb[0].mxu0
    %v5195 = vadd.f32 %v5130, %v5194
    %v5196 = vpop.f32.mrb[0].mxu0
    %v5197 = vpop.f32.mrb[0].mxu0
    %v5198 = vadd.f32 %v5133, %v5197
    %v5199 = vpop.f32.mrb[0].mxu0
    %5200 = vmatprep.mubr.bf16.mxu0 %v3203
    %5201 = vmatmul.mubr.bf16.gmra.mrb[0].mxu0 %v3202
    %v5202 = vpop.f32.mrb[0].mxu0
    %v5203 = vadd.f32 %v5138, %v5202
    %v5204 = vpop.f32.mrb[0].mxu0
    %v5205 = vpop.f32.mrb[0].mxu0
    %v5206 = vadd.f32 %v5141, %v5205
    %v5207 = vpop.f32.mrb[0].mxu0
    %5208 = vmatprep.mubr.bf16.mxu0 %v3207
    %5209 = vmatmul.mubr.bf16.gmra.mrb[0].mxu0 %v3206
    %v5210 = vpop.f32.mrb[0].mxu0
    %v5211 = vadd.f32 %v5146, %v5210
    %v5212 = vpop.f32.mrb[0].mxu0
    %v5213 = vpop.f32.mrb[0].mxu0
    %v5214 = vadd.f32 %v5149, %v5213
    %v5215 = vpop.f32.mrb[0].mxu0
    %5216 = vmatprep.mubr.bf16.mxu0 %v3211
    %5217 = vmatmul.mubr.bf16.gmra.mrb[0].mxu0 %v3210
    %v5218 = vpop.f32.mrb[0].mxu0
    %v5219 = vadd.f32 %v5154, %v5218
    %v5220 = vpop.f32.mrb[0].mxu0
    %v5221 = vpop.f32.mrb[0].mxu0
    %v5222 = vadd.f32 %v5157, %v5221
    %v5223 = vpop.f32.mrb[0].mxu0
    %5224 = vdwg.mxu0
    %v5225 = vsub.f32 0.0, %v4765
    %v5226 = vsub.f32 0.0, %v4767
    %v5227 = vsub.f32 0.0, %v4911
    %v5228 = vsub.f32 0.0, %v4913
    %v5229 = vsub.f32 0.0, %v5057
    %v5230 = vsub.f32 0.0, %v5059
    %v5231 = vsub.f32 0.0, %v5195
    %v5232 = vsub.f32 0.0, %v4769
    %v5233 = vsub.f32 0.0, %v4771
    %v5234 = vsub.f32 0.0, %v4915
    %v5235 = vsub.f32 0.0, %v4917
    %v5236 = vsub.f32 0.0, %v5061
    %v5237 = vsub.f32 0.0, %v5063
    %v5238 = vsub.f32 0.0, %v5198
    %v5239 = vsub.f32 0.0, %v4775
    %v5240 = vsub.f32 0.0, %v4777
    %v5241 = vsub.f32 0.0, %v4921
    %v5242 = vsub.f32 0.0, %v4923
    %v5243 = vsub.f32 0.0, %v5067
    %v5244 = vsub.f32 0.0, %v5069
    %v5245 = vsub.f32 0.0, %v5203
    %v5246 = vsub.f32 0.0, %v4779
    %v5247 = vsub.f32 0.0, %v4781
    %v5248 = vsub.f32 0.0, %v4925
    %v5249 = vsub.f32 0.0, %v4927
    %v5250 = vsub.f32 0.0, %v5071
    %v5251 = vsub.f32 0.0, %v5073
    %v5252 = vsub.f32 0.0, %v5206
    %v5253 = vsub.f32 0.0, %v4785
    %v5254 = vsub.f32 0.0, %v4787
    %v5255 = vsub.f32 0.0, %v4931
    %v5256 = vsub.f32 0.0, %v4933
    %v5257 = vsub.f32 0.0, %v5077
    %v5258 = vsub.f32 0.0, %v5079
    %v5259 = vsub.f32 0.0, %v5211
    %v5260 = vsub.f32 0.0, %v4789
    %v5261 = vsub.f32 0.0, %v4791
    %v5262 = vsub.f32 0.0, %v4935
    %v5263 = vsub.f32 0.0, %v4937
    %v5264 = vsub.f32 0.0, %v5081
    %v5265 = vsub.f32 0.0, %v5083
    %v5266 = vsub.f32 0.0, %v5214
    %v5267 = vsub.f32 0.0, %v4795
    %v5268 = vsub.f32 0.0, %v4797
    %v5269 = vsub.f32 0.0, %v4941
    %v5270 = vsub.f32 0.0, %v4943
    %v5271 = vsub.f32 0.0, %v5087
    %v5272 = vsub.f32 0.0, %v5089
    %v5273 = vsub.f32 0.0, %v5219
    %v5274 = vsub.f32 0.0, %v4799
    %v5275 = vsub.f32 0.0, %v4801
    %v5276 = vsub.f32 0.0, %v4945
    %v5277 = vsub.f32 0.0, %v4947
    %v5278 = vsub.f32 0.0, %v5091
    %v5279 = vsub.f32 0.0, %v5093
    %v5280 = vsub.f32 0.0, %v5222
    %v5281 = vmul.f32 %v5225, 1.442695
    %v5282 = vpow.pop %v5281
    %v5283 = vmul.f32 %v5226, 1.442695
    %v5284 = vpow.pop %v5283
    %v5285 = vmul.f32 %v5227, 1.442695
    %v5286 = vpow.pop %v5285
    %v5287 = vmul.f32 %v5228, 1.442695
    %v5288 = vpow.pop %v5287
    %v5289 = vmul.f32 %v5229, 1.442695
    %v5290 = vpow.pop %v5289
    %v5291 = vmul.f32 %v5230, 1.442695
    %v5292 = vpow.pop %v5291
    %v5293 = vmul.f32 %v5231, 1.442695
    %v5294 = vpow.pop %v5293
    %v5295 = vmul.f32 %v5232, 1.442695
    %v5296 = vpow.pop %v5295
    %v5297 = vmul.f32 %v5233, 1.442695
    %v5298 = vpow.pop %v5297
    %v5299 = vmul.f32 %v5234, 1.442695
    %v5300 = vpow.pop %v5299
    %v5301 = vmul.f32 %v5235, 1.442695
    %v5302 = vpow.pop %v5301
    %v5303 = vmul.f32 %v5236, 1.442695
    %v5304 = vpow.pop %v5303
    %v5305 = vmul.f32 %v5237, 1.442695
    %v5306 = vpow.pop %v5305
    %v5307 = vmul.f32 %v5238, 1.442695
    %v5308 = vpow.pop %v5307
    %v5309 = vmul.f32 %v5239, 1.442695
    %v5310 = vpow.pop %v5309
    %v5311 = vmul.f32 %v5240, 1.442695
    %v5312 = vpow.pop %v5311
    %v5313 = vmul.f32 %v5241, 1.442695
    %v5314 = vpow.pop %v5313
    %v5315 = vmul.f32 %v5242, 1.442695
    %v5316 = vpow.pop %v5315
    %v5317 = vmul.f32 %v5243, 1.442695
    %v5318 = vpow.pop %v5317
    %v5319 = vmul.f32 %v5244, 1.442695
    %v5320 = vpow.pop %v5319
    %v5321 = vmul.f32 %v5245, 1.442695
    %v5322 = vpow.pop %v5321
    %v5323 = vmul.f32 %v5246, 1.442695
    %v5324 = vpow.pop %v5323
    %v5325 = vmul.f32 %v5247, 1.442695
    %v5326 = vpow.pop %v5325
    %v5327 = vmul.f32 %v5248, 1.442695
    %v5328 = vpow.pop %v5327
    %v5329 = vmul.f32 %v5249, 1.442695
    %v5330 = vpow.pop %v5329
    %v5331 = vmul.f32 %v5250, 1.442695
    %v5332 = vpow.pop %v5331
    %v5333 = vmul.f32 %v5251, 1.442695
    %v5334 = vpow.pop %v5333
    %v5335 = vmul.f32 %v5252, 1.442695
    %v5336 = vpow.pop %v5335
    %v5337 = vmul.f32 %v5253, 1.442695
    %v5338 = vpow.pop %v5337
    %v5339 = vmul.f32 %v5254, 1.442695
    %v5340 = vpow.pop %v5339
    %v5341 = vmul.f32 %v5255, 1.442695
    %v5342 = vpow.pop %v5341
    %v5343 = vmul.f32 %v5256, 1.442695
    %v5344 = vpow.pop %v5343
    %v5345 = vmul.f32 %v5257, 1.442695
    %v5346 = vpow.pop %v5345
    %v5347 = vmul.f32 %v5258, 1.442695
    %v5348 = vpow.pop %v5347
    %v5349 = vmul.f32 %v5259, 1.442695
    %v5350 = vpow.pop %v5349
    %v5351 = vmul.f32 %v5260, 1.442695
    %v5352 = vpow.pop %v5351
    %v5353 = vmul.f32 %v5261, 1.442695
    %v5354 = vpow.pop %v5353
    %v5355 = vmul.f32 %v5262, 1.442695
    %v5356 = vpow.pop %v5355
    %v5357 = vmul.f32 %v5263, 1.442695
    %v5358 = vpow.pop %v5357
    %v5359 = vmul.f32 %v5264, 1.442695
    %v5360 = vpow.pop %v5359
    %v5361 = vmul.f32 %v5265, 1.442695
    %v5362 = vpow.pop %v5361
    %v5363 = vmul.f32 %v5266, 1.442695
    %v5364 = vpow.pop %v5363
    %v5365 = vmul.f32 %v5267, 1.442695
    %v5366 = vpow.pop %v5365
    %v5367 = vmul.f32 %v5268, 1.442695
    %v5368 = vpow.pop %v5367
    %v5369 = vmul.f32 %v5269, 1.442695
    %v5370 = vpow.pop %v5369
    %v5371 = vmul.f32 %v5270, 1.442695
    %v5372 = vpow.pop %v5371
    %v5373 = vmul.f32 %v5271, 1.442695
    %v5374 = vpow.pop %v5373
    %v5375 = vmul.f32 %v5272, 1.442695
    %v5376 = vpow.pop %v5375
    %v5377 = vmul.f32 %v5273, 1.442695
    %v5378 = vpow.pop %v5377
    %v5379 = vmul.f32 %v5274, 1.442695
    %v5380 = vpow.pop %v5379
    %v5381 = vmul.f32 %v5275, 1.442695
    %v5382 = vpow.pop %v5381
    %v5383 = vmul.f32 %v5276, 1.442695
    %v5384 = vpow.pop %v5383
    %v5385 = vmul.f32 %v5277, 1.442695
    %v5386 = vpow.pop %v5385
    %v5387 = vmul.f32 %v5278, 1.442695
    %v5388 = vpow.pop %v5387
    %v5389 = vmul.f32 %v5279, 1.442695
    %v5390 = vpow.pop %v5389
    %v5391 = vmul.f32 %v5280, 1.442695
    %v5392 = vpow.pop %v5391
    %v5393 = vadd.f32 %v5282, 1.0
    %v5394 = vadd.f32 %v5284, 1.0
    %v5395 = vadd.f32 %v5286, 1.0
    %v5396 = vadd.f32 %v5288, 1.0
    %v5397 = vadd.f32 %v5290, 1.0
    %v5398 = vadd.f32 %v5292, 1.0
    %v5399 = vadd.f32 %v5294, 1.0
    %v5400 = vadd.f32 %v5296, 1.0
    %v5401 = vadd.f32 %v5298, 1.0
    %v5402 = vadd.f32 %v5300, 1.0
    %v5403 = vadd.f32 %v5302, 1.0
    %v5404 = vadd.f32 %v5304, 1.0
    %v5405 = vadd.f32 %v5306, 1.0
    %v5406 = vadd.f32 %v5308, 1.0
    %v5407 = vadd.f32 %v5310, 1.0
    %v5408 = vadd.f32 %v5312, 1.0
    %v5409 = vadd.f32 %v5314, 1.0
    %v5410 = vadd.f32 %v5316, 1.0
    %v5411 = vadd.f32 %v5318, 1.0
    %v5412 = vadd.f32 %v5320, 1.0
    %v5413 = vadd.f32 %v5322, 1.0
    %v5414 = vadd.f32 %v5324, 1.0
    %v5415 = vadd.f32 %v5326, 1.0
    %v5416 = vadd.f32 %v5328, 1.0
    %v5417 = vadd.f32 %v5330, 1.0
    %v5418 = vadd.f32 %v5332, 1.0
    %v5419 = vadd.f32 %v5334, 1.0
    %v5420 = vadd.f32 %v5336, 1.0
    %v5421 = vadd.f32 %v5338, 1.0
    %v5422 = vadd.f32 %v5340, 1.0
    %v5423 = vadd.f32 %v5342, 1.0
    %v5424 = vadd.f32 %v5344, 1.0
    %v5425 = vadd.f32 %v5346, 1.0
    %v5426 = vadd.f32 %v5348, 1.0
    %v5427 = vadd.f32 %v5350, 1.0
    %v5428 = vadd.f32 %v5352, 1.0
    %v5429 = vadd.f32 %v5354, 1.0
    %v5430 = vadd.f32 %v5356, 1.0
    %v5431 = vadd.f32 %v5358, 1.0
    %v5432 = vadd.f32 %v5360, 1.0
    %v5433 = vadd.f32 %v5362, 1.0
    %v5434 = vadd.f32 %v5364, 1.0
    %v5435 = vadd.f32 %v5366, 1.0
    %v5436 = vadd.f32 %v5368, 1.0
    %v5437 = vadd.f32 %v5370, 1.0
    %v5438 = vadd.f32 %v5372, 1.0
    %v5439 = vadd.f32 %v5374, 1.0
    %v5440 = vadd.f32 %v5376, 1.0
    %v5441 = vadd.f32 %v5378, 1.0
    %v5442 = vadd.f32 %v5380, 1.0
    %v5443 = vadd.f32 %v5382, 1.0
    %v5444 = vadd.f32 %v5384, 1.0
    %v5445 = vadd.f32 %v5386, 1.0
    %v5446 = vadd.f32 %v5388, 1.0
    %v5447 = vadd.f32 %v5390, 1.0
    %v5448 = vadd.f32 %v5392, 1.0
    %v5449 = vrcp.pop %v5393
    %v5450 = vrcp.pop %v5394
    %v5451 = vrcp.pop %v5395
    %v5452 = vrcp.pop %v5396
    %v5453 = vrcp.pop %v5397
    %v5454 = vrcp.pop %v5398
    %v5455 = vrcp.pop %v5399
    %v5456 = vrcp.pop %v5400
    %v5457 = vrcp.pop %v5401
    %v5458 = vrcp.pop %v5402
    %v5459 = vrcp.pop %v5403
    %v5460 = vrcp.pop %v5404
    %v5461 = vrcp.pop %v5405
    %v5462 = vrcp.pop %v5406
    %v5463 = vrcp.pop %v5407
    %v5464 = vrcp.pop %v5408
    %v5465 = vrcp.pop %v5409
    %v5466 = vrcp.pop %v5410
    %v5467 = vrcp.pop %v5411
    %v5468 = vrcp.pop %v5412
    %v5469 = vrcp.pop %v5413
    %v5470 = vrcp.pop %v5414
    %v5471 = vrcp.pop %v5415
    %v5472 = vrcp.pop %v5416
    %v5473 = vrcp.pop %v5417
    %v5474 = vrcp.pop %v5418
    %v5475 = vrcp.pop %v5419
    %v5476 = vrcp.pop %v5420
    %v5477 = vrcp.pop %v5421
    %v5478 = vrcp.pop %v5422
    %v5479 = vrcp.pop %v5423
    %v5480 = vrcp.pop %v5424
    %v5481 = vrcp.pop %v5425
    %v5482 = vrcp.pop %v5426
    %v5483 = vrcp.pop %v5427
    %v5484 = vrcp.pop %v5428
    %v5485 = vrcp.pop %v5429
    %v5486 = vrcp.pop %v5430
    %v5487 = vrcp.pop %v5431
    %v5488 = vrcp.pop %v5432
    %v5489 = vrcp.pop %v5433
    %v5490 = vrcp.pop %v5434
    %v5491 = vrcp.pop %v5435
    %v5492 = vrcp.pop %v5436
    %v5493 = vrcp.pop %v5437
    %v5494 = vrcp.pop %v5438
    %v5495 = vrcp.pop %v5439
    %v5496 = vrcp.pop %v5440
    %v5497 = vrcp.pop %v5441
    %v5498 = vrcp.pop %v5442
    %v5499 = vrcp.pop %v5443
    %v5500 = vrcp.pop %v5444
    %v5501 = vrcp.pop %v5445
    %v5502 = vrcp.pop %v5446
    %v5503 = vrcp.pop %v5447
    %v5504 = vrcp.pop %v5448
    %v5505 = vpack.c.bf16 %v5456, %v5449
    %v5506 = vpack.c.bf16 %v5457, %v5450
    %v5507 = vpack.c.bf16 %v5458, %v5451
    %v5508 = vpack.c.bf16 %v5459, %v5452
    %v5509 = vpack.c.bf16 %v5460, %v5453
    %v5510 = vpack.c.bf16 %v5461, %v5454
    %v5511 = vpack.c.bf16 %v5462, %v5455
    %v5512 = vpack.c.bf16 %v5470, %v5463
    %v5513 = vpack.c.bf16 %v5471, %v5464
    %v5514 = vpack.c.bf16 %v5472, %v5465
    %v5515 = vpack.c.bf16 %v5473, %v5466
    %v5516 = vpack.c.bf16 %v5474, %v5467
    %v5517 = vpack.c.bf16 %v5475, %v5468
    %v5518 = vpack.c.bf16 %v5476, %v5469
    %v5519 = vpack.c.bf16 %v5484, %v5477
    %v5520 = vpack.c.bf16 %v5485, %v5478
    %v5521 = vpack.c.bf16 %v5486, %v5479
    %v5522 = vpack.c.bf16 %v5487, %v5480
    %v5523 = vpack.c.bf16 %v5488, %v5481
    %v5524 = vpack.c.bf16 %v5489, %v5482
    %v5525 = vpack.c.bf16 %v5490, %v5483
    %v5526 = vpack.c.bf16 %v5498, %v5491
    %v5527 = vpack.c.bf16 %v5499, %v5492
    %v5528 = vpack.c.bf16 %v5500, %v5493
    %v5529 = vpack.c.bf16 %v5501, %v5494
    %v5530 = vpack.c.bf16 %v5502, %v5495
    %v5531 = vpack.c.bf16 %v5503, %v5496
    %v5532 = vpack.c.bf16 %v5504, %v5497
    %v5561 = vunpack.c.l.b16 %v5505
    %v5562 = vunpack.c.l.b16 %v5506
    %v5563 = vunpack.c.l.b16 %v5507
    %v5564 = vunpack.c.l.b16 %v5508
    %v5565 = vunpack.c.l.b16 %v5509
    %v5566 = vunpack.c.l.b16 %v5510
    %v5567 = vunpack.c.l.b16 %v5511
    %v5568 = vunpack.c.h.b16 %v5505
    %v5569 = vunpack.c.h.b16 %v5506
    %v5570 = vunpack.c.h.b16 %v5507
    %v5571 = vunpack.c.h.b16 %v5508
    %v5572 = vunpack.c.h.b16 %v5509
    %v5573 = vunpack.c.h.b16 %v5510
    %v5574 = vunpack.c.h.b16 %v5511
    %v5575 = vunpack.c.l.b16 %v5512
    %v5576 = vunpack.c.l.b16 %v5513
    %v5577 = vunpack.c.l.b16 %v5514
    %v5578 = vunpack.c.l.b16 %v5515
    %v5579 = vunpack.c.l.b16 %v5516
    %v5580 = vunpack.c.l.b16 %v5517
    %v5581 = vunpack.c.l.b16 %v5518
    %v5582 = vunpack.c.h.b16 %v5512
    %v5583 = vunpack.c.h.b16 %v5513
    %v5584 = vunpack.c.h.b16 %v5514
    %v5585 = vunpack.c.h.b16 %v5515
    %v5586 = vunpack.c.h.b16 %v5516
    %v5587 = vunpack.c.h.b16 %v5517
    %v5588 = vunpack.c.h.b16 %v5518
    %v5589 = vunpack.c.l.b16 %v5519
    %v5590 = vunpack.c.l.b16 %v5520
    %v5591 = vunpack.c.l.b16 %v5521
    %v5592 = vunpack.c.l.b16 %v5522
    %v5593 = vunpack.c.l.b16 %v5523
    %v5594 = vunpack.c.l.b16 %v5524
    %v5595 = vunpack.c.l.b16 %v5525
    %v5596 = vunpack.c.h.b16 %v5519
    %v5597 = vunpack.c.h.b16 %v5520
    %v5598 = vunpack.c.h.b16 %v5521
    %v5599 = vunpack.c.h.b16 %v5522
    %v5600 = vunpack.c.h.b16 %v5523
    %v5601 = vunpack.c.h.b16 %v5524
    %v5602 = vunpack.c.h.b16 %v5525
    %v5603 = vunpack.c.l.b16 %v5526
    %v5604 = vunpack.c.l.b16 %v5527
    %v5605 = vunpack.c.l.b16 %v5528
    %v5606 = vunpack.c.l.b16 %v5529
    %v5607 = vunpack.c.l.b16 %v5530
    %v5608 = vunpack.c.l.b16 %v5531
    %v5609 = vunpack.c.l.b16 %v5532
    %v5610 = vunpack.c.h.b16 %v5526
    %v5611 = vunpack.c.h.b16 %v5527
    %v5612 = vunpack.c.h.b16 %v5528
    %v5613 = vunpack.c.h.b16 %v5529
    %v5614 = vunpack.c.h.b16 %v5530
    %v5615 = vunpack.c.h.b16 %v5531
    %v5616 = vunpack.c.h.b16 %v5532
    %v5617 = vpack.c.b16 %v5562, %v5561
    %v5618 = vpack.c.b16 %v5564, %v5563
    %v5619 = vpack.c.b16 %v5566, %v5565
    %v5620 = vpack.c.b16 %v5567, %v5567
    %v5621 = vpack.c.b16 %v5569, %v5568
    %v5622 = vpack.c.b16 %v5571, %v5570
    %v5623 = vpack.c.b16 %v5573, %v5572
    %v5624 = vpack.c.b16 %v5574, %v5574
    %v5625 = vpack.c.b16 %v5576, %v5575
    %v5626 = vpack.c.b16 %v5578, %v5577
    %v5627 = vpack.c.b16 %v5580, %v5579
    %v5628 = vpack.c.b16 %v5581, %v5581
    %v5629 = vpack.c.b16 %v5583, %v5582
    %v5630 = vpack.c.b16 %v5585, %v5584
    %v5631 = vpack.c.b16 %v5587, %v5586
    %v5632 = vpack.c.b16 %v5588, %v5588
    %v5633 = vpack.c.b16 %v5590, %v5589
    %v5634 = vpack.c.b16 %v5592, %v5591
    %v5635 = vpack.c.b16 %v5594, %v5593
    %v5636 = vpack.c.b16 %v5595, %v5595
    %v5637 = vpack.c.b16 %v5597, %v5596
    %v5638 = vpack.c.b16 %v5599, %v5598
    %v5639 = vpack.c.b16 %v5601, %v5600
    %v5640 = vpack.c.b16 %v5602, %v5602
    %v5641 = vpack.c.b16 %v5604, %v5603
    %v5642 = vpack.c.b16 %v5606, %v5605
    %v5643 = vpack.c.b16 %v5608, %v5607
    %v5644 = vpack.c.b16 %v5609, %v5609
    %v5645 = vpack.c.b16 %v5611, %v5610
    %v5646 = vpack.c.b16 %v5613, %v5612
    %v5647 = vpack.c.b16 %v5615, %v5614
    %v5648 = vpack.c.b16 %v5616, %v5616
    %5681 = vst [vmem:[#allocation13] sm:$0xff] %v5617
    %5682 = vst [vmem:[#allocation13 + $0x8] sm:$0xff] %v5618
    %5683 = vst [vmem:[#allocation13 + $0x10] sm:$0xff] %v5619
    %5684 = vst [vmem:[#allocation13 + $0x18] sm:$0xf] %v5620
    %5685 = vst [vmem:[#allocation13 + $0x1c] sm:$0xff] %v5621
    %5686 = vst [vmem:[#allocation13 + $0x24] sm:$0xff] %v5622
    %5687 = vst [vmem:[#allocation13 + $0x2c] sm:$0xff] %v5623
    %5688 = vst [vmem:[#allocation13 + $0x34] sm:$0xf] %v5624
    %5689 = vst [vmem:[#allocation13 + $0x38] sm:$0xff] %v5625
    %5690 = vst [vmem:[#allocation13 + $0x40] sm:$0xff] %v5626
    %5691 = vst [vmem:[#allocation13 + $0x48] sm:$0xff] %v5627
    %5692 = vst [vmem:[#allocation13 + $0x50] sm:$0xf] %v5628
    %5693 = vst [vmem:[#allocation13 + $0x54] sm:$0xff] %v5629
    %5694 = vst [vmem:[#allocation13 + $0x5c] sm:$0xff] %v5630
    %5695 = vst [vmem:[#allocation13 + $0x64] sm:$0xff] %v5631
    %5696 = vst [vmem:[#allocation13 + $0x6c] sm:$0xf] %v5632
    %5697 = vst [vmem:[#allocation13 + $0x70] sm:$0xff] %v5633
    %5698 = vst [vmem:[#allocation13 + $0x78] sm:$0xff] %v5634
    %5699 = vst [vmem:[#allocation13 + $0x80] sm:$0xff] %v5635
    %5700 = vst [vmem:[#allocation13 + $0x88] sm:$0xf] %v5636
    %5701 = vst [vmem:[#allocation13 + $0x8c] sm:$0xff] %v5637
    %5702 = vst [vmem:[#allocation13 + $0x94] sm:$0xff] %v5638
    %5703 = vst [vmem:[#allocation13 + $0x9c] sm:$0xff] %v5639
    %5704 = vst [vmem:[#allocation13 + $0xa4] sm:$0xf] %v5640
    %5705 = vst [vmem:[#allocation13 + $0xa8] sm:$0xff] %v5641
    %5706 = vst [vmem:[#allocation13 + $0xb0] sm:$0xff] %v5642
    %5707 = vst [vmem:[#allocation13 + $0xb8] sm:$0xff] %v5643
    %5708 = vst [vmem:[#allocation13 + $0xc0] sm:$0xf] %v5644
    %5709 = vst [vmem:[#allocation13 + $0xc4] sm:$0xff] %v5645
    %5710 = vst [vmem:[#allocation13 + $0xcc] sm:$0xff] %v5646
    %5711 = vst [vmem:[#allocation13 + $0xd4] sm:$0xff] %v5647
    %5712 = vst [vmem:[#allocation13 + $0xdc] sm:$0xf] %v5648
    // Predicated region
    $region62: #{tpu_custom_call.1} parent=1 // pred_check
      _
    $region63: #{tpu_custom_call.1} parent=1 // pred_check_branch
      %5714 = sbr.rel (0) target = $region65
    $region64: #{tpu_custom_call.1} parent=1 // pred_region
      %s5716 = ssub.s32 3584, 3584
      %5717 = vsyncadd [#allocation4], %s5716
      %s5718 = sshll.u32 [#allocation13], 4
      %s5719 = int_to_ptr.vmem [resolvable:$true] %s5718
      %5724 = dma.vmem_to_hbm [thread:$0]  %s5719, 3584, %s9, [#allocation4], 448, 448, 28
    $region65: #{tpu_custom_call.1} parent=1 // pred_fallthru
      _
    // Predicated region
    $region66: #{tpu_custom_call.1} parent=1 // pred_check
      _
    $region67: #{tpu_custom_call.1} parent=1 // pred_check_branch
      %5726 = sbr.rel (0) target = $region69
    $region68: #{tpu_custom_call.1} parent=1 // pred_region
      %s5728 = ssub.s32 512, 512
      %5729 = vsyncadd [#allocation15], %s5728
      %s5730 = sshll.u32 [#allocation14], 4
      %s5731 = int_to_ptr.vmem [resolvable:$true] %s5730
      %5736 = dma.vmem_to_hbm [thread:$0]  %s5731, 512, %s10, [#allocation15], 64, 64, 4
    $region69: #{tpu_custom_call.1} parent=1 // pred_fallthru
      _
    // Predicated region
    $region70: #{tpu_custom_call.1} parent=1 // pred_check
      _
    $region71: #{tpu_custom_call.1} parent=1 // pred_check_branch
      %5738 = sbr.rel (0) target = $region73
    $region72: #{tpu_custom_call.1} parent=1 // pred_region
      %5739 = dma.done [#allocation4], 3584
    $region73: #{tpu_custom_call.1} parent=1 // pred_fallthru
      _
    // Predicated region
    $region74: #{tpu_custom_call.1} parent=1 // pred_check
      _
    $region75: #{tpu_custom_call.1} parent=1 // pred_check_branch
      %5741 = sbr.rel (0) target = $region77
    $region76: #{tpu_custom_call.1} parent=1 // pred_region
      %5742 = dma.done [#allocation15], 512
    $region77: #{tpu_custom_call.1} parent=1 // pred_fallthru
      _
    %5743 = vsyncpa [#allocation3], 1
    %5744 = vsyncpa [#allocation6], 1
    %5745 = vsyncpa [#allocation9], 1
    %5746 = vsyncpa [#allocation12], 1
    %5747 = vsyncpa [#allocation4], 1
    %5748 = vsyncpa [#allocation15], 1

// kernel: tpu_custom_call.1
$region0: #{tpu_custom_call.1}
  #allocation0 [shape = 'u32[]', space=smem, size = 0x4, offset = 0x4, fixed_abs, tag = 'smem constant byte address 0x4 - core index']
  #allocation1 [shape = 'u32[144,128]{1,0:T(1,128)}', space=vmem, size = 0x12000, scoped, tag = 'internal scratch']
  %s0 = inlined_call_operand.hbm [shape: bf16[64,896], index: 0, kind: input, shape index: {}]
  %s1 = inlined_call_operand.hbm [shape: bf16[896,512], index: 1, kind: input, shape index: {}]
  %s2 = inlined_call_operand.vmem [shape: f32[1,512], index: 2, kind: input, shape index: {}]
  %s3 = inlined_call_operand.hbm [shape: bf16[512,128], index: 3, kind: input, shape index: {}]
  %s4 = inlined_call_operand.hbm [shape: f32[1,128], index: 4, kind: input, shape index: {}]
  %s5 = inlined_call_operand.hbm [shape: bf16[128,512], index: 5, kind: input, shape index: {}]
  %s6 = inlined_call_operand.vmem [shape: f32[1,512], index: 6, kind: input, shape index: {}]
  %s7 = inlined_call_operand.hbm [shape: bf16[512,896], index: 7, kind: input, shape index: {}]
  %s8 = inlined_call_operand.vmem [shape: f32[1,896], index: 8, kind: input, shape index: {}]
  %s9 = inlined_call_operand.hbm [shape: bf16[64,896], index: 9, kind: output, shape index: {0}]
  %s10 = inlined_call_operand.hbm [shape: bf16[64,128], index: 10, kind: output, shape index: {1}]
  %11 = xla_tuple %s9, %s10
  %s12 = sld [smem:[#allocation0]]
  $region78: #{tpu_custom_call.1} parent=0
    _
  %s14 = ssub.s32 1, %s12
  %s15 = scalar_select 0, %s14, %s12
  $region1: #{tpu_custom_call.1} parent=0
    #allocation2 [shape = 'u8[114688]{0}', space=vmem, size = 0x1c000, scoped, tag = 'input window, operand 0, single buffered']
    #allocation3 [shape = 's32[1]{0}', space=sflag, size = 0x4, scoped, tag = 'scoped memory for tpu_custom_call.1']
    #allocation4 [shape = 's32[1]{0}', space=sflag, size = 0x4, scoped, tag = 'scoped memory for tpu_custom_call.1']
    #allocation5 [shape = 'u8[917504]{0}', space=vmem, size = 0xe0000, scoped, tag = 'input window, operand 1, single buffered']
    #allocation6 [shape = 's32[1]{0}', space=sflag, size = 0x4, scoped, tag = 'scoped memory for tpu_custom_call.1']
    #allocation7 [shape = 'u8[131072]{0}', space=vmem, size = 0x20000, scoped, tag = 'input window, operand 3, single buffered']
    #allocation8 [shape = 'u8[512]{0}', space=vmem, size = 0x400, scoped, tag = 'input window, operand 4, single buffered']
    #allocation9 [shape = 's32[1]{0}', space=sflag, size = 0x4, scoped, tag = 'scoped memory for tpu_custom_call.1']
    #allocation10 [shape = 'u8[131072]{0}', space=vmem, size = 0x20000, scoped, tag = 'input window, operand 5, single buffered']
    #allocation11 [shape = 'u8[917504]{0}', space=vmem, size = 0xe0000, scoped, tag = 'input window, operand 7, single buffered']
    #allocation12 [shape = 's32[1]{0}', space=sflag, size = 0x4, scoped, tag = 'scoped memory for tpu_custom_call.1']
    #allocation13 [shape = 'u8[114688]{0}', space=vmem, size = 0x1c000, scoped, tag = 'output window, operand 0, single buffered']
    #allocation14 [shape = 'u8[16384]{0}', space=vmem, size = 0x4000, scoped, tag = 'output window, operand 1, single buffered']
    #allocation15 [shape = 's32[1]{0}', space=sflag, size = 0x4, scoped, tag = 'scoped memory for tpu_custom_call.1']
    %16 = vsyncpa [#allocation3], 0
    %17 = vsyncpa [#allocation6], 0
    %18 = vsyncpa [#allocation9], 0
    %19 = vsyncpa [#allocation12], 0
    %20 = vsyncpa [#allocation4], 0
    %21 = vsyncpa [#allocation15], 0
    // Predicated region
    $region2: #{tpu_custom_call.1} parent=1 // pred_check
      _
    $region3: #{tpu_custom_call.1} parent=1 // pred_check_branch
      %23 = sbr.rel (0) target = $region5
    $region4: #{tpu_custom_call.1} parent=1 // pred_region
      %s25 = ssub.s32 3584, 3584
      %26 = vsyncadd [#allocation3], %s25
      %s27 = sshll.u32 [#allocation2], 4
      %s28 = int_to_ptr.vmem [resolvable:$true] %s27
      %33 = dma.hbm_to_vmem [thread:$0]  %s0, 3584, %s28, [#allocation3], 448, 448, 28
    $region5: #{tpu_custom_call.1} parent=1 // pred_fallthru
      _
    // Predicated region
    $region6: #{tpu_custom_call.1} parent=1 // pred_check
      _
    $region7: #{tpu_custom_call.1} parent=1 // pred_check_branch
      %35 = sbr.rel (0) target = $region9
    $region8: #{tpu_custom_call.1} parent=1 // pred_region
      %s37 = ssub.s32 28672, 28672
      %38 = vsyncadd [#allocation6], %s37
      %s39 = sshll.u32 [#allocation5], 4
      %s40 = int_to_ptr.vmem [resolvable:$true] %s39
      %45 = dma.hbm_to_vmem [thread:$0]  %s1, 28672, %s40, [#allocation6], 256, 256, 16
    $region9: #{tpu_custom_call.1} parent=1 // pred_fallthru
      _
    // Predicated region
    $region10: #{tpu_custom_call.1} parent=1 // pred_check
      _
    $region11: #{tpu_custom_call.1} parent=1 // pred_check_branch
      %47 = sbr.rel (0) target = $region13
    $region12: #{tpu_custom_call.1} parent=1 // pred_region
      _
    $region13: #{tpu_custom_call.1} parent=1 // pred_fallthru
      _
    // Predicated region
    $region14: #{tpu_custom_call.1} parent=1 // pred_check
      _
    $region15: #{tpu_custom_call.1} parent=1 // pred_check_branch
      %49 = sbr.rel (0) target = $region17
    $region16: #{tpu_custom_call.1} parent=1 // pred_region
      %s51 = ssub.s32 4096, 4096
      %52 = vsyncadd [#allocation6], %s51
      %s53 = sshll.u32 [#allocation7], 4
      %s54 = int_to_ptr.vmem [resolvable:$true] %s53
      %59 = dma.hbm_to_vmem [thread:$0]  %s3, 4096, %s54, [#allocation6], 64, 64, 4
    $region17: #{tpu_custom_call.1} parent=1 // pred_fallthru
      _
    // Predicated region
    $region18: #{tpu_custom_call.1} parent=1 // pred_check
      _
    $region19: #{tpu_custom_call.1} parent=1 // pred_check_branch
      %61 = sbr.rel (0) target = $region21
    $region20: #{tpu_custom_call.1} parent=1 // pred_region
      %s63 = ssub.s32 16, 16
      %64 = vsyncadd [#allocation9], %s63
      %s66 = sshll.u32 [#allocation8], 4
      %s67 = int_to_ptr.vmem [resolvable:$true] %s66
      %69 = dma.hbm_to_vmem [thread:$0]  %s4, 16, %s67, [#allocation9]
    $region21: #{tpu_custom_call.1} parent=1 // pred_fallthru
      _
    // Predicated region
    $region22: #{tpu_custom_call.1} parent=1 // pred_check
      _
    $region23: #{tpu_custom_call.1} parent=1 // pred_check_branch
      %71 = sbr.rel (0) target = $region25
    $region24: #{tpu_custom_call.1} parent=1 // pred_region
      %s73 = ssub.s32 4096, 4096
      %74 = vsyncadd [#allocation9], %s73
      %s75 = sshll.u32 [#allocation10], 4
      %s76 = int_to_ptr.vmem [resolvable:$true] %s75
      %81 = dma.hbm_to_vmem [thread:$0]  %s5, 4096, %s76, [#allocation9], 256, 256, 16
    $region25: #{tpu_custom_call.1} parent=1 // pred_fallthru
      _
    // Predicated region
    $region26: #{tpu_custom_call.1} parent=1 // pred_check
      _
    $region27: #{tpu_custom_call.1} parent=1 // pred_check_branch
      %83 = sbr.rel (0) target = $region29
    $region28: #{tpu_custom_call.1} parent=1 // pred_region
      _
    $region29: #{tpu_custom_call.1} parent=1 // pred_fallthru
      _
    // Predicated region
    $region30: #{tpu_custom_call.1} parent=1 // pred_check
      _
    $region31: #{tpu_custom_call.1} parent=1 // pred_check_branch
      %85 = sbr.rel (0) target = $region33
    $region32: #{tpu_custom_call.1} parent=1 // pred_region
      %s87 = ssub.s32 28672, 28672
      %88 = vsyncadd [#allocation12], %s87
      %s89 = sshll.u32 [#allocation11], 4
      %s90 = int_to_ptr.vmem [resolvable:$true] %s89
      %95 = dma.hbm_to_vmem [thread:$0]  %s7, 28672, %s90, [#allocation12], 448, 448, 28
    $region33: #{tpu_custom_call.1} parent=1 // pred_fallthru
      _
    // Predicated region
    $region34: #{tpu_custom_call.1} parent=1 // pred_check
      _
    $region35: #{tpu_custom_call.1} parent=1 // pred_check_branch
      %97 = sbr.rel (0) target = $region37
    $region36: #{tpu_custom_call.1} parent=1 // pred_region
      _
    $region37: #{tpu_custom_call.1} parent=1 // pred_fallthru
      _
    // Predicated region
    $region38: #{tpu_custom_call.1} parent=1 // pred_check
      _
    $region39: #{tpu_custom_call.1} parent=1 // pred_check_branch
      %99 = sbr.rel (0) target = $region41
    $region40: #{tpu_custom_call.1} parent=1 // pred_region
      %100 = dma.done [#allocation3], 3584
    $region41: #{tpu_custom_call.1} parent=1 // pred_fallthru
      _
    // Predicated region
    $region42: #{tpu_custom_call.1} parent=1 // pred_check
      _
    $region43: #{tpu_custom_call.1} parent=1 // pred_check_branch
      %102 = sbr.rel (0) target = $region45
    $region44: #{tpu_custom_call.1} parent=1 // pred_region
      %103 = dma.done [#allocation6], 28672
    $region45: #{tpu_custom_call.1} parent=1 // pred_fallthru
      _
    // Predicated region
    $region46: #{tpu_custom_call.1} parent=1 // pred_check
      _
    $region47: #{tpu_custom_call.1} parent=1 // pred_check_branch
      %105 = sbr.rel (0) target = $region49
    $region48: #{tpu_custom_call.1} parent=1 // pred_region
      %106 = dma.done [#allocation6], 4096
    $region49: #{tpu_custom_call.1} parent=1 // pred_fallthru
      _
    // Predicated region
    $region50: #{tpu_custom_call.1} parent=1 // pred_check
      _
    $region51: #{tpu_custom_call.1} parent=1 // pred_check_branch
      %108 = sbr.rel (0) target = $region53
    $region52: #{tpu_custom_call.1} parent=1 // pred_region
      %109 = dma.done [#allocation9], 16
    $region53: #{tpu_custom_call.1} parent=1 // pred_fallthru
      _
    // Predicated region
    $region54: #{tpu_custom_call.1} parent=1 // pred_check
      _
    $region55: #{tpu_custom_call.1} parent=1 // pred_check_branch
      %111 = sbr.rel (0) target = $region57
    $region56: #{tpu_custom_call.1} parent=1 // pred_region
      %112 = dma.done [#allocation9], 4096
    $region57: #{tpu_custom_call.1} parent=1 // pred_fallthru
      _
    // Predicated region
    $region58: #{tpu_custom_call.1} parent=1 // pred_check
      _
    $region59: #{tpu_custom_call.1} parent=1 // pred_check_branch
      %114 = sbr.rel (0) target = $region61
    $region60: #{tpu_custom_call.1} parent=1 // pred_region
      %115 = dma.done [#allocation12], 28672
    $region61: #{tpu_custom_call.1} parent=1 // pred_fallthru
      _
    %v117 = vld [vmem:[#allocation2] sm:$0xff]
    %v118 = vld [vmem:[#allocation2 + $0x8] sm:$0xff]
    %v119 = vld [vmem:[#allocation2 + $0x10] sm:$0xff]
    %v120 = vld [vmem:[#allocation2 + $0x18] sm:$0xf]
    %v121 = vld [vmem:[#allocation2 + $0x1c] sm:$0xff]
    %v122 = vld [vmem:[#allocation2 + $0x24] sm:$0xff]
    %v123 = vld [vmem:[#allocation2 + $0x2c] sm:$0xff]
    %v124 = vld [vmem:[#allocation2 + $0x34] sm:$0xf]
    %v125 = vld [vmem:[#allocation2 + $0x38] sm:$0xff]
    %v126 = vld [vmem:[#allocation2 + $0x40] sm:$0xff]
    %v127 = vld [vmem:[#allocation2 + $0x48] sm:$0xff]
    %v128 = vld [vmem:[#allocation2 + $0x50] sm:$0xf]
    %v129 = vld [vmem:[#allocation2 + $0x54] sm:$0xff]
    %v130 = vld [vmem:[#allocation2 + $0x5c] sm:$0xff]
    %v131 = vld [vmem:[#allocation2 + $0x64] sm:$0xff]
    %v132 = vld [vmem:[#allocation2 + $0x6c] sm:$0xf]
    %v133 = vld [vmem:[#allocation2 + $0x70] sm:$0xff]
    %v134 = vld [vmem:[#allocation2 + $0x78] sm:$0xff]
    %v135 = vld [vmem:[#allocation2 + $0x80] sm:$0xff]
    %v136 = vld [vmem:[#allocation2 + $0x88] sm:$0xf]
    %v137 = vld [vmem:[#allocation2 + $0x8c] sm:$0xff]
    %v138 = vld [vmem:[#allocation2 + $0x94] sm:$0xff]
    %v139 = vld [vmem:[#allocation2 + $0x9c] sm:$0xff]
    %v140 = vld [vmem:[#allocation2 + $0xa4] sm:$0xf]
    %v141 = vld [vmem:[#allocation2 + $0xa8] sm:$0xff]
    %v142 = vld [vmem:[#allocation2 + $0xb0] sm:$0xff]
    %v143 = vld [vmem:[#allocation2 + $0xb8] sm:$0xff]
    %v144 = vld [vmem:[#allocation2 + $0xc0] sm:$0xf]
    %v145 = vld [vmem:[#allocation2 + $0xc4] sm:$0xff]
    %v146 = vld [vmem:[#allocation2 + $0xcc] sm:$0xff]
    %v147 = vld [vmem:[#allocation2 + $0xd4] sm:$0xff]
    %v148 = vld [vmem:[#allocation2 + $0xdc] sm:$0xf]
    %v149 = vld [vmem:[#allocation5] sm:$0xff]
    %v150 = vld [vmem:[#allocation5 + $0x8] sm:$0xff]
    %v151 = vld [vmem:[#allocation5 + $0x10] sm:$0xff]
    %v152 = vld [vmem:[#allocation5 + $0x18] sm:$0xff]
    %v153 = vld [vmem:[#allocation5 + $0x20] sm:$0xff]
    %v154 = vld [vmem:[#allocation5 + $0x28] sm:$0xff]
    %v155 = vld [vmem:[#allocation5 + $0x30] sm:$0xff]
    %v156 = vld [vmem:[#allocation5 + $0x38] sm:$0xff]
    %v157 = vld [vmem:[#allocation5 + $0x40] sm:$0xff]
    %v158 = vld [vmem:[#allocation5 + $0x48] sm:$0xff]
    %v159 = vld [vmem:[#allocation5 + $0x50] sm:$0xff]
    %v160 = vld [vmem:[#allocation5 + $0x58] sm:$0xff]
    %v161 = vld [vmem:[#allocation5 + $0x60] sm:$0xff]
    %v162 = vld [vmem:[#allocation5 + $0x68] sm:$0xff]
    %v163 = vld [vmem:[#allocation5 + $0x70] sm:$0xff]
    %v164 = vld [vmem:[#allocation5 + $0x78] sm:$0xff]
    %v165 = vld [vmem:[#allocation5 + $0x80] sm:$0xff]
    %v166 = vld [vmem:[#allocation5 + $0x88] sm:$0xff]
    %v167 = vld [vmem:[#allocation5 + $0x90] sm:$0xff]
    %v168 = vld [vmem:[#allocation5 + $0x98] sm:$0xff]
    %v169 = vld [vmem:[#allocation5 + $0xa0] sm:$0xff]
    %v170 = vld [vmem:[#allocation5 + $0xa8] sm:$0xff]
    %v171 = vld [vmem:[#allocation5 + $0xb0] sm:$0xff]
    %v172 = vld [vmem:[#allocation5 + $0xb8] sm:$0xff]
    %v173 = vld [vmem:[#allocation5 + $0xc0] sm:$0xff]
    %v174 = vld [vmem:[#allocation5 + $0xc8] sm:$0xff]
    %v175 = vld [vmem:[#allocation5 + $0xd0] sm:$0xff]
    %v176 = vld [vmem:[#allocation5 + $0xd8] sm:$0xff]
    %v177 = vld [vmem:[#allocation5 + $0xe0] sm:$0xff]
    %v178 = vld [vmem:[#allocation5 + $0xe8] sm:$0xff]
    %v179 = vld [vmem:[#allocation5 + $0xf0] sm:$0xff]
    %v180 = vld [vmem:[#allocation5 + $0xf8] sm:$0xff]
    %v181 = vld [vmem:[#allocation5 + $0x100] sm:$0xff]
    %v182 = vld [vmem:[#allocation5 + $0x108] sm:$0xff]
    %v183 = vld [vmem:[#allocation5 + $0x110] sm:$0xff]
    %v184 = vld [vmem:[#allocation5 + $0x118] sm:$0xff]
    %v185 = vld [vmem:[#allocation5 + $0x120] sm:$0xff]
    %v186 = vld [vmem:[#allocation5 + $0x128] sm:$0xff]
    %v187 = vld [vmem:[#allocation5 + $0x130] sm:$0xff]
    %v188 = vld [vmem:[#allocation5 + $0x138] sm:$0xff]
    %v189 = vld [vmem:[#allocation5 + $0x140] sm:$0xff]
    %v190 = vld [vmem:[#allocation5 + $0x148] sm:$0xff]
    %v191 = vld [vmem:[#allocation5 + $0x150] sm:$0xff]
    %v192 = vld [vmem:[#allocation5 + $0x158] sm:$0xff]
    %v193 = vld [vmem:[#allocation5 + $0x160] sm:$0xff]
    %v194 = vld [vmem:[#allocation5 + $0x168] sm:$0xff]
    %v195 = vld [vmem:[#allocation5 + $0x170] sm:$0xff]
    %v196 = vld [vmem:[#allocation5 + $0x178] sm:$0xff]
    %v197 = vld [vmem:[#allocation5 + $0x180] sm:$0xff]
    %v198 = vld [vmem:[#allocation5 + $0x188] sm:$0xff]
    %v199 = vld [vmem:[#allocation5 + $0x190] sm:$0xff]
    %v200 = vld [vmem:[#allocation5 + $0x198] sm:$0xff]
    %v201 = vld [vmem:[#allocation5 + $0x1a0] sm:$0xff]
    %v202 = vld [vmem:[#allocation5 + $0x1a8] sm:$0xff]
    %v203 = vld [vmem:[#allocation5 + $0x1b0] sm:$0xff]
    %v204 = vld [vmem:[#allocation5 + $0x1b8] sm:$0xff]
    %v205 = vld [vmem:[#allocation5 + $0x1c0] sm:$0xff]
    %v206 = vld [vmem:[#allocation5 + $0x1c8] sm:$0xff]
    %v207 = vld [vmem:[#allocation5 + $0x1d0] sm:$0xff]
    %v208 = vld [vmem:[#allocation5 + $0x1d8] sm:$0xff]
    %v209 = vld [vmem:[#allocation5 + $0x1e0] sm:$0xff]
    %v210 = vld [vmem:[#allocation5 + $0x1e8] sm:$0xff]
    %v211 = vld [vmem:[#allocation5 + $0x1f0] sm:$0xff]
    %v212 = vld [vmem:[#allocation5 + $0x1f8] sm:$0xff]
    %v213 = vld [vmem:[#allocation5 + $0x200] sm:$0xff]
    %v214 = vld [vmem:[#allocation5 + $0x208] sm:$0xff]
    %v215 = vld [vmem:[#allocation5 + $0x210] sm:$0xff]
    %v216 = vld [vmem:[#allocation5 + $0x218] sm:$0xff]
    %v217 = vld [vmem:[#allocation5 + $0x220] sm:$0xff]
    %v218 = vld [vmem:[#allocation5 + $0x228] sm:$0xff]
    %v219 = vld [vmem:[#allocation5 + $0x230] sm:$0xff]
    %v220 = vld [vmem:[#allocation5 + $0x238] sm:$0xff]
    %v221 = vld [vmem:[#allocation5 + $0x240] sm:$0xff]
    %v222 = vld [vmem:[#allocation5 + $0x248] sm:$0xff]
    %v223 = vld [vmem:[#allocation5 + $0x250] sm:$0xff]
    %v224 = vld [vmem:[#allocation5 + $0x258] sm:$0xff]
    %v225 = vld [vmem:[#allocation5 + $0x260] sm:$0xff]
    %v226 = vld [vmem:[#allocation5 + $0x268] sm:$0xff]
    %v227 = vld [vmem:[#allocation5 + $0x270] sm:$0xff]
    %v228 = vld [vmem:[#allocation5 + $0x278] sm:$0xff]
    %v229 = vld [vmem:[#allocation5 + $0x280] sm:$0xff]
    %v230 = vld [vmem:[#allocation5 + $0x288] sm:$0xff]
    %v231 = vld [vmem:[#allocation5 + $0x290] sm:$0xff]
    %v232 = vld [vmem:[#allocation5 + $0x298] sm:$0xff]
    %v233 = vld [vmem:[#allocation5 + $0x2a0] sm:$0xff]
    %v234 = vld [vmem:[#allocation5 + $0x2a8] sm:$0xff]
    %v235 = vld [vmem:[#allocation5 + $0x2b0] sm:$0xff]
    %v236 = vld [vmem:[#allocation5 + $0x2b8] sm:$0xff]
    %v237 = vld [vmem:[#allocation5 + $0x2c0] sm:$0xff]
    %v238 = vld [vmem:[#allocation5 + $0x2c8] sm:$0xff]
    %v239 = vld [vmem:[#allocation5 + $0x2d0] sm:$0xff]
    %v240 = vld [vmem:[#allocation5 + $0x2d8] sm:$0xff]
    %v241 = vld [vmem:[#allocation5 + $0x2e0] sm:$0xff]
    %v242 = vld [vmem:[#allocation5 + $0x2e8] sm:$0xff]
    %v243 = vld [vmem:[#allocation5 + $0x2f0] sm:$0xff]
    %v244 = vld [vmem:[#allocation5 + $0x2f8] sm:$0xff]
    %v245 = vld [vmem:[#allocation5 + $0x300] sm:$0xff]
    %v246 = vld [vmem:[#allocation5 + $0x308] sm:$0xff]
    %v247 = vld [vmem:[#allocation5 + $0x310] sm:$0xff]
    %v248 = vld [vmem:[#allocation5 + $0x318] sm:$0xff]
    %v249 = vld [vmem:[#allocation5 + $0x320] sm:$0xff]
    %v250 = vld [vmem:[#allocation5 + $0x328] sm:$0xff]
    %v251 = vld [vmem:[#allocation5 + $0x330] sm:$0xff]
    %v252 = vld [vmem:[#allocation5 + $0x338] sm:$0xff]
    %v253 = vld [vmem:[#allocation5 + $0x340] sm:$0xff]
    %v254 = vld [vmem:[#allocation5 + $0x348] sm:$0xff]
    %v255 = vld [vmem:[#allocation5 + $0x350] sm:$0xff]
    %v256 = vld [vmem:[#allocation5 + $0x358] sm:$0xff]
    %v257 = vld [vmem:[#allocation5 + $0x360] sm:$0xff]
    %v258 = vld [vmem:[#allocation5 + $0x368] sm:$0xff]
    %v259 = vld [vmem:[#allocation5 + $0x370] sm:$0xff]
    %v260 = vld [vmem:[#allocation5 + $0x378] sm:$0xff]
    %v261 = vld [vmem:[#allocation5 + $0x380] sm:$0xff]
    %v262 = vld [vmem:[#allocation5 + $0x388] sm:$0xff]
    %v263 = vld [vmem:[#allocation5 + $0x390] sm:$0xff]
    %v264 = vld [vmem:[#allocation5 + $0x398] sm:$0xff]
    %v265 = vld [vmem:[#allocation5 + $0x3a0] sm:$0xff]
    %v266 = vld [vmem:[#allocation5 + $0x3a8] sm:$0xff]
    %v267 = vld [vmem:[#allocation5 + $0x3b0] sm:$0xff]
    %v268 = vld [vmem:[#allocation5 + $0x3b8] sm:$0xff]
    %v269 = vld [vmem:[#allocation5 + $0x3c0] sm:$0xff]
    %v270 = vld [vmem:[#allocation5 + $0x3c8] sm:$0xff]
    %v271 = vld [vmem:[#allocation5 + $0x3d0] sm:$0xff]
    %v272 = vld [vmem:[#allocation5 + $0x3d8] sm:$0xff]
    %v273 = vld [vmem:[#allocation5 + $0x3e0] sm:$0xff]
    %v274 = vld [vmem:[#allocation5 + $0x3e8] sm:$0xff]
    %v275 = vld [vmem:[#allocation5 + $0x3f0] sm:$0xff]
    %v276 = vld [vmem:[#allocation5 + $0x3f8] sm:$0xff]
    %v277 = vld [vmem:[#allocation5 + $0x400] sm:$0xff]
    %v278 = vld [vmem:[#allocation5 + $0x408] sm:$0xff]
    %v279 = vld [vmem:[#allocation5 + $0x410] sm:$0xff]
    %v280 = vld [vmem:[#allocation5 + $0x418] sm:$0xff]
    %v281 = vld [vmem:[#allocation5 + $0x420] sm:$0xff]
    %v282 = vld [vmem:[#allocation5 + $0x428] sm:$0xff]
    %v283 = vld [vmem:[#allocation5 + $0x430] sm:$0xff]
    %v284 = vld [vmem:[#allocation5 + $0x438] sm:$0xff]
    %v285 = vld [vmem:[#allocation5 + $0x440] sm:$0xff]
    %v286 = vld [vmem:[#allocation5 + $0x448] sm:$0xff]
    %v287 = vld [vmem:[#allocation5 + $0x450] sm:$0xff]
    %v288 = vld [vmem:[#allocation5 + $0x458] sm:$0xff]
    %v289 = vld [vmem:[#allocation5 + $0x460] sm:$0xff]
    %v290 = vld [vmem:[#allocation5 + $0x468] sm:$0xff]
    %v291 = vld [vmem:[#allocation5 + $0x470] sm:$0xff]
    %v292 = vld [vmem:[#allocation5 + $0x478] sm:$0xff]
    %v293 = vld [vmem:[#allocation5 + $0x480] sm:$0xff]
    %v294 = vld [vmem:[#allocation5 + $0x488] sm:$0xff]
    %v295 = vld [vmem:[#allocation5 + $0x490] sm:$0xff]
    %v296 = vld [vmem:[#allocation5 + $0x498] sm:$0xff]
    %v297 = vld [vmem:[#allocation5 + $0x4a0] sm:$0xff]
    %v298 = vld [vmem:[#allocation5 + $0x4a8] sm:$0xff]
    %v299 = vld [vmem:[#allocation5 + $0x4b0] sm:$0xff]
    %v300 = vld [vmem:[#allocation5 + $0x4b8] sm:$0xff]
    %v301 = vld [vmem:[#allocation5 + $0x4c0] sm:$0xff]
    %v302 = vld [vmem:[#allocation5 + $0x4c8] sm:$0xff]
    %v303 = vld [vmem:[#allocation5 + $0x4d0] sm:$0xff]
    %v304 = vld [vmem:[#allocation5 + $0x4d8] sm:$0xff]
    %v305 = vld [vmem:[#allocation5 + $0x4e0] sm:$0xff]
    %v306 = vld [vmem:[#allocation5 + $0x4e8] sm:$0xff]
    %v307 = vld [vmem:[#allocation5 + $0x4f0] sm:$0xff]
    %v308 = vld [vmem:[#allocation5 + $0x4f8] sm:$0xff]
    %v309 = vld [vmem:[#allocation5 + $0x500] sm:$0xff]
    %v310 = vld [vmem:[#allocation5 + $0x508] sm:$0xff]
    %v311 = vld [vmem:[#allocation5 + $0x510] sm:$0xff]
    %v312 = vld [vmem:[#allocation5 + $0x518] sm:$0xff]
    %v313 = vld [vmem:[#allocation5 + $0x520] sm:$0xff]
    %v314 = vld [vmem:[#allocation5 + $0x528] sm:$0xff]
    %v315 = vld [vmem:[#allocation5 + $0x530] sm:$0xff]
    %v316 = vld [vmem:[#allocation5 + $0x538] sm:$0xff]
    %v317 = vld [vmem:[#allocation5 + $0x540] sm:$0xff]
    %v318 = vld [vmem:[#allocation5 + $0x548] sm:$0xff]
    %v319 = vld [vmem:[#allocation5 + $0x550] sm:$0xff]
    %v320 = vld [vmem:[#allocation5 + $0x558] sm:$0xff]
    %v321 = vld [vmem:[#allocation5 + $0x560] sm:$0xff]
    %v322 = vld [vmem:[#allocation5 + $0x568] sm:$0xff]
    %v323 = vld [vmem:[#allocation5 + $0x570] sm:$0xff]
    %v324 = vld [vmem:[#allocation5 + $0x578] sm:$0xff]
    %v325 = vld [vmem:[#allocation5 + $0x580] sm:$0xff]
    %v326 = vld [vmem:[#allocation5 + $0x588] sm:$0xff]
    %v327 = vld [vmem:[#allocation5 + $0x590] sm:$0xff]
    %v328 = vld [vmem:[#allocation5 + $0x598] sm:$0xff]
    %v329 = vld [vmem:[#allocation5 + $0x5a0] sm:$0xff]
    %v330 = vld [vmem:[#allocation5 + $0x5a8] sm:$0xff]
    %v331 = vld [vmem:[#allocation5 + $0x5b0] sm:$0xff]
    %v332 = vld [vmem:[#allocation5 + $0x5b8] sm:$0xff]
    %v333 = vld [vmem:[#allocation5 + $0x5c0] sm:$0xff]
    %v334 = vld [vmem:[#allocation5 + $0x5c8] sm:$0xff]
    %v335 = vld [vmem:[#allocation5 + $0x5d0] sm:$0xff]
    %v336 = vld [vmem:[#allocation5 + $0x5d8] sm:$0xff]
    %v337 = vld [vmem:[#allocation5 + $0x5e0] sm:$0xff]
    %v338 = vld [vmem:[#allocation5 + $0x5e8] sm:$0xff]
    %v339 = vld [vmem:[#allocation5 + $0x5f0] sm:$0xff]
    %v340 = vld [vmem:[#allocation5 + $0x5f8] sm:$0xff]
    %v341 = vld [vmem:[#allocation5 + $0x600] sm:$0xff]
    %v342 = vld [vmem:[#allocation5 + $0x608] sm:$0xff]
    %v343 = vld [vmem:[#allocation5 + $0x610] sm:$0xff]
    %v344 = vld [vmem:[#allocation5 + $0x618] sm:$0xff]
    %v345 = vld [vmem:[#allocation5 + $0x620] sm:$0xff]
    %v346 = vld [vmem:[#allocation5 + $0x628] sm:$0xff]
    %v347 = vld [vmem:[#allocation5 + $0x630] sm:$0xff]
    %v348 = vld [vmem:[#allocation5 + $0x638] sm:$0xff]
    %v349 = vld [vmem:[#allocation5 + $0x640] sm:$0xff]
    %v350 = vld [vmem:[#allocation5 + $0x648] sm:$0xff]
    %v351 = vld [vmem:[#allocation5 + $0x650] sm:$0xff]
    %v352 = vld [vmem:[#allocation5 + $0x658] sm:$0xff]
    %v353 = vld [vmem:[#allocation5 + $0x660] sm:$0xff]
    %v354 = vld [vmem:[#allocation5 + $0x668] sm:$0xff]
    %v355 = vld [vmem:[#allocation5 + $0x670] sm:$0xff]
    %v356 = vld [vmem:[#allocation5 + $0x678] sm:$0xff]
    %v357 = vld [vmem:[#allocation5 + $0x680] sm:$0xff]
    %v358 = vld [vmem:[#allocation5 + $0x688] sm:$0xff]
    %v359 = vld [vmem:[#allocation5 + $0x690] sm:$0xff]
    %v360 = vld [vmem:[#allocation5 + $0x698] sm:$0xff]
    %v361 = vld [vmem:[#allocation5 + $0x6a0] sm:$0xff]
    %v362 = vld [vmem:[#allocation5 + $0x6a8] sm:$0xff]
    %v363 = vld [vmem:[#allocation5 + $0x6b0] sm:$0xff]
    %v364 = vld [vmem:[#allocation5 + $0x6b8] sm:$0xff]
    %v365 = vld [vmem:[#allocation5 + $0x6c0] sm:$0xff]
    %v366 = vld [vmem:[#allocation5 + $0x6c8] sm:$0xff]
    %v367 = vld [vmem:[#allocation5 + $0x6d0] sm:$0xff]
    %v368 = vld [vmem:[#allocation5 + $0x6d8] sm:$0xff]
    %v369 = vld [vmem:[#allocation5 + $0x6e0] sm:$0xff]
    %v370 = vld [vmem:[#allocation5 + $0x6e8] sm:$0xff]
    %v371 = vld [vmem:[#allocation5 + $0x6f0] sm:$0xff]
    %v372 = vld [vmem:[#allocation5 + $0x6f8] sm:$0xff]
    %v373 = vld [vmem:[%s2] sm:$0xf]
    %v375 = vlaneseq
    %v376 = vshrl.u32 %v375, 7
    %v377 = vsub.s32 0, %v376
    %v378 = vrot.slane %v373, %v377
    %v379 = vlaneseq
    %v380 = vshrl.u32 %v379, 7
    %v381 = vsub.s32 1, %v380
    %v382 = vrot.slane %v373, %v381
    %v383 = vlaneseq
    %v384 = vshrl.u32 %v383, 7
    %v385 = vsub.s32 2, %v384
    %v386 = vrot.slane %v373, %v385
    %v387 = vlaneseq
    %v388 = vshrl.u32 %v387, 7
    %v389 = vsub.s32 3, %v388
    %v390 = vrot.slane %v373, %v389
    %v427 = vunpack.c.l.b16 %v117
    %v428 = vunpack.c.h.b16 %v117
    %v429 = vunpack.c.l.b16 %v118
    %v430 = vunpack.c.h.b16 %v118
    %v431 = vunpack.c.l.b16 %v119
    %v432 = vunpack.c.h.b16 %v119
    %v433 = vunpack.c.l.b16 %v120
    %v434 = vunpack.c.l.b16 %v121
    %v435 = vunpack.c.h.b16 %v121
    %v436 = vunpack.c.l.b16 %v122
    %v437 = vunpack.c.h.b16 %v122
    %v438 = vunpack.c.l.b16 %v123
    %v439 = vunpack.c.h.b16 %v123
    %v440 = vunpack.c.l.b16 %v124
    %v441 = vunpack.c.l.b16 %v125
    %v442 = vunpack.c.h.b16 %v125
    %v443 = vunpack.c.l.b16 %v126
    %v444 = vunpack.c.h.b16 %v126
    %v445 = vunpack.c.l.b16 %v127
    %v446 = vunpack.c.h.b16 %v127
    %v447 = vunpack.c.l.b16 %v128
    %v448 = vunpack.c.l.b16 %v129
    %v449 = vunpack.c.h.b16 %v129
    %v450 = vunpack.c.l.b16 %v130
    %v451 = vunpack.c.h.b16 %v130
    %v452 = vunpack.c.l.b16 %v131
    %v453 = vunpack.c.h.b16 %v131
    %v454 = vunpack.c.l.b16 %v132
    %v455 = vunpack.c.l.b16 %v133
    %v456 = vunpack.c.h.b16 %v133
    %v457 = vunpack.c.l.b16 %v134
    %v458 = vunpack.c.h.b16 %v134
    %v459 = vunpack.c.l.b16 %v135
    %v460 = vunpack.c.h.b16 %v135
    %v461 = vunpack.c.l.b16 %v136
    %v462 = vunpack.c.l.b16 %v137
    %v463 = vunpack.c.h.b16 %v137
    %v464 = vunpack.c.l.b16 %v138
    %v465 = vunpack.c.h.b16 %v138
    %v466 = vunpack.c.l.b16 %v139
    %v467 = vunpack.c.h.b16 %v139
    %v468 = vunpack.c.l.b16 %v140
    %v469 = vunpack.c.l.b16 %v141
    %v470 = vunpack.c.h.b16 %v141
    %v471 = vunpack.c.l.b16 %v142
    %v472 = vunpack.c.h.b16 %v142
    %v473 = vunpack.c.l.b16 %v143
    %v474 = vunpack.c.h.b16 %v143
    %v475 = vunpack.c.l.b16 %v144
    %v476 = vunpack.c.l.b16 %v145
    %v477 = vunpack.c.h.b16 %v145
    %v478 = vunpack.c.l.b16 %v146
    %v479 = vunpack.c.h.b16 %v146
    %v480 = vunpack.c.l.b16 %v147
    %v481 = vunpack.c.h.b16 %v147
    %v482 = vunpack.c.l.b16 %v148
    %v483 = vpack.c.b16 %v434, %v427
    %v484 = vpack.c.b16 %v435, %v428
    %v485 = vpack.c.b16 %v436, %v429
    %v486 = vpack.c.b16 %v437, %v430
    %v487 = vpack.c.b16 %v438, %v431
    %v488 = vpack.c.b16 %v439, %v432
    %v489 = vpack.c.b16 %v440, %v433
    %v490 = vpack.c.b16 %v448, %v441
    %v491 = vpack.c.b16 %v449, %v442
    %v492 = vpack.c.b16 %v450, %v443
    %v493 = vpack.c.b16 %v451, %v444
    %v494 = vpack.c.b16 %v452, %v445
    %v495 = vpack.c.b16 %v453, %v446
    %v496 = vpack.c.b16 %v454, %v447
    %v497 = vpack.c.b16 %v462, %v455
    %v498 = vpack.c.b16 %v463, %v456
    %v499 = vpack.c.b16 %v464, %v457
    %v500 = vpack.c.b16 %v465, %v458
    %v501 = vpack.c.b16 %v466, %v459
    %v502 = vpack.c.b16 %v467, %v460
    %v503 = vpack.c.b16 %v468, %v461
    %v504 = vpack.c.b16 %v476, %v469
    %v505 = vpack.c.b16 %v477, %v470
    %v506 = vpack.c.b16 %v478, %v471
    %v507 = vpack.c.b16 %v479, %v472
    %v508 = vpack.c.b16 %v480, %v473
    %v509 = vpack.c.b16 %v481, %v474
    %v510 = vpack.c.b16 %v482, %v475
    %v763 = vunpack.c.l.b16 %v149
    %v764 = vunpack.c.h.b16 %v149
    %v765 = vunpack.c.l.b16 %v150
    %v766 = vunpack.c.h.b16 %v150
    %v767 = vunpack.c.l.b16 %v151
    %v768 = vunpack.c.h.b16 %v151
    %v769 = vunpack.c.l.b16 %v152
    %v770 = vunpack.c.h.b16 %v152
    %v771 = vunpack.c.l.b16 %v153
    %v772 = vunpack.c.h.b16 %v153
    %v773 = vunpack.c.l.b16 %v154
    %v774 = vunpack.c.h.b16 %v154
    %v775 = vunpack.c.l.b16 %v155
    %v776 = vunpack.c.h.b16 %v155
    %v777 = vunpack.c.l.b16 %v156
    %v778 = vunpack.c.h.b16 %v156
    %v779 = vunpack.c.l.b16 %v157
    %v780 = vunpack.c.h.b16 %v157
    %v781 = vunpack.c.l.b16 %v158
    %v782 = vunpack.c.h.b16 %v158
    %v783 = vunpack.c.l.b16 %v159
    %v784 = vunpack.c.h.b16 %v159
    %v785 = vunpack.c.l.b16 %v160
    %v786 = vunpack.c.h.b16 %v160
    %v787 = vunpack.c.l.b16 %v161
    %v788 = vunpack.c.h.b16 %v161
    %v789 = vunpack.c.l.b16 %v162
    %v790 = vunpack.c.h.b16 %v162
    %v791 = vunpack.c.l.b16 %v163
    %v792 = vunpack.c.h.b16 %v163
    %v793 = vunpack.c.l.b16 %v164
    %v794 = vunpack.c.h.b16 %v164
    %v795 = vunpack.c.l.b16 %v165
    %v796 = vunpack.c.h.b16 %v165
    %v797 = vunpack.c.l.b16 %v166
    %v798 = vunpack.c.h.b16 %v166
    %v799 = vunpack.c.l.b16 %v167
    %v800 = vunpack.c.h.b16 %v167
    %v801 = vunpack.c.l.b16 %v168
    %v802 = vunpack.c.h.b16 %v168
    %v803 = vunpack.c.l.b16 %v169
    %v804 = vunpack.c.h.b16 %v169
    %v805 = vunpack.c.l.b16 %v170
    %v806 = vunpack.c.h.b16 %v170
    %v807 = vunpack.c.l.b16 %v171
    %v808 = vunpack.c.h.b16 %v171
    %v809 = vunpack.c.l.b16 %v172
    %v810 = vunpack.c.h.b16 %v172
    %v811 = vunpack.c.l.b16 %v173
    %v812 = vunpack.c.h.b16 %v173
    %v813 = vunpack.c.l.b16 %v174
    %v814 = vunpack.c.h.b16 %v174
    %v815 = vunpack.c.l.b16 %v175
    %v816 = vunpack.c.h.b16 %v175
    %v817 = vunpack.c.l.b16 %v176
    %v818 = vunpack.c.h.b16 %v176
    %v819 = vunpack.c.l.b16 %v177
    %v820 = vunpack.c.h.b16 %v177
    %v821 = vunpack.c.l.b16 %v178
    %v822 = vunpack.c.h.b16 %v178
    %v823 = vunpack.c.l.b16 %v179
    %v824 = vunpack.c.h.b16 %v179
    %v825 = vunpack.c.l.b16 %v180
    %v826 = vunpack.c.h.b16 %v180
    %v827 = vunpack.c.l.b16 %v181
    %v828 = vunpack.c.h.b16 %v181
    %v829 = vunpack.c.l.b16 %v182
    %v830 = vunpack.c.h.b16 %v182
    %v831 = vunpack.c.l.b16 %v183
    %v832 = vunpack.c.h.b16 %v183
    %v833 = vunpack.c.l.b16 %v184
    %v834 = vunpack.c.h.b16 %v184
    %v835 = vunpack.c.l.b16 %v185
    %v836 = vunpack.c.h.b16 %v185
    %v837 = vunpack.c.l.b16 %v186
    %v838 = vunpack.c.h.b16 %v186
    %v839 = vunpack.c.l.b16 %v187
    %v840 = vunpack.c.h.b16 %v187
    %v841 = vunpack.c.l.b16 %v188
    %v842 = vunpack.c.h.b16 %v188
    %v843 = vunpack.c.l.b16 %v189
    %v844 = vunpack.c.h.b16 %v189
    %v845 = vunpack.c.l.b16 %v190
    %v846 = vunpack.c.h.b16 %v190
    %v847 = vunpack.c.l.b16 %v191
    %v848 = vunpack.c.h.b16 %v191
    %v849 = vunpack.c.l.b16 %v192
    %v850 = vunpack.c.h.b16 %v192
    %v851 = vunpack.c.l.b16 %v193
    %v852 = vunpack.c.h.b16 %v193
    %v853 = vunpack.c.l.b16 %v194
    %v854 = vunpack.c.h.b16 %v194
    %v855 = vunpack.c.l.b16 %v195
    %v856 = vunpack.c.h.b16 %v195
    %v857 = vunpack.c.l.b16 %v196
    %v858 = vunpack.c.h.b16 %v196
    %v859 = vunpack.c.l.b16 %v197
    %v860 = vunpack.c.h.b16 %v197
    %v861 = vunpack.c.l.b16 %v198
    %v862 = vunpack.c.h.b16 %v198
    %v863 = vunpack.c.l.b16 %v199
    %v864 = vunpack.c.h.b16 %v199
    %v865 = vunpack.c.l.b16 %v200
    %v866 = vunpack.c.h.b16 %v200
    %v867 = vunpack.c.l.b16 %v201
    %v868 = vunpack.c.h.b16 %v201
    %v869 = vunpack.c.l.b16 %v202
    %v870 = vunpack.c.h.b16 %v202
    %v871 = vunpack.c.l.b16 %v203
    %v872 = vunpack.c.h.b16 %v203
    %v873 = vunpack.c.l.b16 %v204
    %v874 = vunpack.c.h.b16 %v204
    %v875 = vunpack.c.l.b16 %v205
    %v876 = vunpack.c.h.b16 %v205
    %v877 = vunpack.c.l.b16 %v206
    %v878 = vunpack.c.h.b16 %v206
    %v879 = vunpack.c.l.b16 %v207
    %v880 = vunpack.c.h.b16 %v207
    %v881 = vunpack.c.l.b16 %v208
    %v882 = vunpack.c.h.b16 %v208
    %v883 = vunpack.c.l.b16 %v209
    %v884 = vunpack.c.h.b16 %v209
    %v885 = vunpack.c.l.b16 %v210
    %v886 = vunpack.c.h.b16 %v210
    %v887 = vunpack.c.l.b16 %v211
    %v888 = vunpack.c.h.b16 %v211
    %v889 = vunpack.c.l.b16 %v212
    %v890 = vunpack.c.h.b16 %v212
    %v891 = vunpack.c.l.b16 %v213
    %v892 = vunpack.c.h.b16 %v213
    %v893 = vunpack.c.l.b16 %v214
    %v894 = vunpack.c.h.b16 %v214
    %v895 = vunpack.c.l.b16 %v215
    %v896 = vunpack.c.h.b16 %v215
    %v897 = vunpack.c.l.b16 %v216
    %v898 = vunpack.c.h.b16 %v216
    %v899 = vunpack.c.l.b16 %v217
    %v900 = vunpack.c.h.b16 %v217
    %v901 = vunpack.c.l.b16 %v218
    %v902 = vunpack.c.h.b16 %v218
    %v903 = vunpack.c.l.b16 %v219
    %v904 = vunpack.c.h.b16 %v219
    %v905 = vunpack.c.l.b16 %v220
    %v906 = vunpack.c.h.b16 %v220
    %v907 = vunpack.c.l.b16 %v221
    %v908 = vunpack.c.h.b16 %v221
    %v909 = vunpack.c.l.b16 %v222
    %v910 = vunpack.c.h.b16 %v222
    %v911 = vunpack.c.l.b16 %v223
    %v912 = vunpack.c.h.b16 %v223
    %v913 = vunpack.c.l.b16 %v224
    %v914 = vunpack.c.h.b16 %v224
    %v915 = vunpack.c.l.b16 %v225
    %v916 = vunpack.c.h.b16 %v225
    %v917 = vunpack.c.l.b16 %v226
    %v918 = vunpack.c.h.b16 %v226
    %v919 = vunpack.c.l.b16 %v227
    %v920 = vunpack.c.h.b16 %v227
    %v921 = vunpack.c.l.b16 %v228
    %v922 = vunpack.c.h.b16 %v228
    %v923 = vunpack.c.l.b16 %v229
    %v924 = vunpack.c.h.b16 %v229
    %v925 = vunpack.c.l.b16 %v230
    %v926 = vunpack.c.h.b16 %v230
    %v927 = vunpack.c.l.b16 %v231
    %v928 = vunpack.c.h.b16 %v231
    %v929 = vunpack.c.l.b16 %v232
    %v930 = vunpack.c.h.b16 %v232
    %v931 = vunpack.c.l.b16 %v233
    %v932 = vunpack.c.h.b16 %v233
    %v933 = vunpack.c.l.b16 %v234
    %v934 = vunpack.c.h.b16 %v234
    %v935 = vunpack.c.l.b16 %v235
    %v936 = vunpack.c.h.b16 %v235
    %v937 = vunpack.c.l.b16 %v236
    %v938 = vunpack.c.h.b16 %v236
    %v939 = vunpack.c.l.b16 %v237
    %v940 = vunpack.c.h.b16 %v237
    %v941 = vunpack.c.l.b16 %v238
    %v942 = vunpack.c.h.b16 %v238
    %v943 = vunpack.c.l.b16 %v239
    %v944 = vunpack.c.h.b16 %v239
    %v945 = vunpack.c.l.b16 %v240
    %v946 = vunpack.c.h.b16 %v240
    %v947 = vunpack.c.l.b16 %v241
    %v948 = vunpack.c.h.b16 %v241
    %v949 = vunpack.c.l.b16 %v242
    %v950 = vunpack.c.h.b16 %v242
    %v951 = vunpack.c.l.b16 %v243
    %v952 = vunpack.c.h.b16 %v243
    %v953 = vunpack.c.l.b16 %v244
    %v954 = vunpack.c.h.b16 %v244
    %v955 = vunpack.c.l.b16 %v245
    %v956 = vunpack.c.h.b16 %v245
    %v957 = vunpack.c.l.b16 %v246
    %v958 = vunpack.c.h.b16 %v246
    %v959 = vunpack.c.l.b16 %v247
    %v960 = vunpack.c.h.b16 %v247
    %v961 = vunpack.c.l.b16 %v248
    %v962 = vunpack.c.h.b16 %v248
    %v963 = vunpack.c.l.b16 %v249
    %v964 = vunpack.c.h.b16 %v249
    %v965 = vunpack.c.l.b16 %v250
    %v966 = vunpack.c.h.b16 %v250
    %v967 = vunpack.c.l.b16 %v251
    %v968 = vunpack.c.h.b16 %v251
    %v969 = vunpack.c.l.b16 %v252
    %v970 = vunpack.c.h.b16 %v252
    %v971 = vunpack.c.l.b16 %v253
    %v972 = vunpack.c.h.b16 %v253
    %v973 = vunpack.c.l.b16 %v254
    %v974 = vunpack.c.h.b16 %v254
    %v975 = vunpack.c.l.b16 %v255
    %v976 = vunpack.c.h.b16 %v255
    %v977 = vunpack.c.l.b16 %v256
    %v978 = vunpack.c.h.b16 %v256
    %v979 = vunpack.c.l.b16 %v257
    %v980 = vunpack.c.h.b16 %v257
    %v981 = vunpack.c.l.b16 %v258
    %v982 = vunpack.c.h.b16 %v258
    %v983 = vunpack.c.l.b16 %v259
    %v984 = vunpack.c.h.b16 %v259
    %v985 = vunpack.c.l.b16 %v260
    %v986 = vunpack.c.h.b16 %v260
    %v987 = vunpack.c.l.b16 %v261
    %v988 = vunpack.c.h.b16 %v261
    %v989 = vunpack.c.l.b16 %v262
    %v990 = vunpack.c.h.b16 %v262
    %v991 = vunpack.c.l.b16 %v263
    %v992 = vunpack.c.h.b16 %v263
    %v993 = vunpack.c.l.b16 %v264
    %v994 = vunpack.c.h.b16 %v264
    %v995 = vunpack.c.l.b16 %v265
    %v996 = vunpack.c.h.b16 %v265
    %v997 = vunpack.c.l.b16 %v266
    %v998 = vunpack.c.h.b16 %v266
    %v999 = vunpack.c.l.b16 %v267
    %v1000 = vunpack.c.h.b16 %v267
    %v1001 = vunpack.c.l.b16 %v268
    %v1002 = vunpack.c.h.b16 %v268
    %v1003 = vunpack.c.l.b16 %v269
    %v1004 = vunpack.c.h.b16 %v269
    %v1005 = vunpack.c.l.b16 %v270
    %v1006 = vunpack.c.h.b16 %v270
    %v1007 = vunpack.c.l.b16 %v271
    %v1008 = vunpack.c.h.b16 %v271
    %v1009 = vunpack.c.l.b16 %v272
    %v1010 = vunpack.c.h.b16 %v272
    %v1011 = vunpack.c.l.b16 %v273
    %v1012 = vunpack.c.h.b16 %v273
    %v1013 = vunpack.c.l.b16 %v274
    %v1014 = vunpack.c.h.b16 %v274
    %v1015 = vunpack.c.l.b16 %v275
    %v1016 = vunpack.c.h.b16 %v275
    %v1017 = vunpack.c.l.b16 %v276
    %v1018 = vunpack.c.h.b16 %v276
    %v1019 = vunpack.c.l.b16 %v277
    %v1020 = vunpack.c.h.b16 %v277
    %v1021 = vunpack.c.l.b16 %v278
    %v1022 = vunpack.c.h.b16 %v278
    %v1023 = vunpack.c.l.b16 %v279
    %v1024 = vunpack.c.h.b16 %v279
    %v1025 = vunpack.c.l.b16 %v280
    %v1026 = vunpack.c.h.b16 %v280
    %v1027 = vunpack.c.l.b16 %v281
    %v1028 = vunpack.c.h.b16 %v281
    %v1029 = vunpack.c.l.b16 %v282
    %v1030 = vunpack.c.h.b16 %v282
    %v1031 = vunpack.c.l.b16 %v283
    %v1032 = vunpack.c.h.b16 %v283
    %v1033 = vunpack.c.l.b16 %v284
    %v1034 = vunpack.c.h.b16 %v284
    %v1035 = vunpack.c.l.b16 %v285
    %v1036 = vunpack.c.h.b16 %v285
    %v1037 = vunpack.c.l.b16 %v286
    %v1038 = vunpack.c.h.b16 %v286
    %v1039 = vunpack.c.l.b16 %v287
    %v1040 = vunpack.c.h.b16 %v287
    %v1041 = vunpack.c.l.b16 %v288
    %v1042 = vunpack.c.h.b16 %v288
    %v1043 = vunpack.c.l.b16 %v289
    %v1044 = vunpack.c.h.b16 %v289
    %v1045 = vunpack.c.l.b16 %v290
    %v1046 = vunpack.c.h.b16 %v290
    %v1047 = vunpack.c.l.b16 %v291
    %v1048 = vunpack.c.h.b16 %v291
    %v1049 = vunpack.c.l.b16 %v292
    %v1050 = vunpack.c.h.b16 %v292
    %v1051 = vunpack.c.l.b16 %v293
    %v1052 = vunpack.c.h.b16 %v293
    %v1053 = vunpack.c.l.b16 %v294
    %v1054 = vunpack.c.h.b16 %v294
    %v1055 = vunpack.c.l.b16 %v295
    %v1056 = vunpack.c.h.b16 %v295
    %v1057 = vunpack.c.l.b16 %v296
    %v1058 = vunpack.c.h.b16 %v296
    %v1059 = vunpack.c.l.b16 %v297
    %v1060 = vunpack.c.h.b16 %v297
    %v1061 = vunpack.c.l.b16 %v298
    %v1062 = vunpack.c.h.b16 %v298
    %v1063 = vunpack.c.l.b16 %v299
    %v1064 = vunpack.c.h.b16 %v299
    %v1065 = vunpack.c.l.b16 %v300
    %v1066 = vunpack.c.h.b16 %v300
    %v1067 = vunpack.c.l.b16 %v301
    %v1068 = vunpack.c.h.b16 %v301
    %v1069 = vunpack.c.l.b16 %v302
    %v1070 = vunpack.c.h.b16 %v302
    %v1071 = vunpack.c.l.b16 %v303
    %v1072 = vunpack.c.h.b16 %v303
    %v1073 = vunpack.c.l.b16 %v304
    %v1074 = vunpack.c.h.b16 %v304
    %v1075 = vunpack.c.l.b16 %v305
    %v1076 = vunpack.c.h.b16 %v305
    %v1077 = vunpack.c.l.b16 %v306
    %v1078 = vunpack.c.h.b16 %v306
    %v1079 = vunpack.c.l.b16 %v307
    %v1080 = vunpack.c.h.b16 %v307
    %v1081 = vunpack.c.l.b16 %v308
    %v1082 = vunpack.c.h.b16 %v308
    %v1083 = vunpack.c.l.b16 %v309
    %v1084 = vunpack.c.h.b16 %v309
    %v1085 = vunpack.c.l.b16 %v310
    %v1086 = vunpack.c.h.b16 %v310
    %v1087 = vunpack.c.l.b16 %v311
    %v1088 = vunpack.c.h.b16 %v311
    %v1089 = vunpack.c.l.b16 %v312
    %v1090 = vunpack.c.h.b16 %v312
    %v1091 = vunpack.c.l.b16 %v313
    %v1092 = vunpack.c.h.b16 %v313
    %v1093 = vunpack.c.l.b16 %v314
    %v1094 = vunpack.c.h.b16 %v314
    %v1095 = vunpack.c.l.b16 %v315
    %v1096 = vunpack.c.h.b16 %v315
    %v1097 = vunpack.c.l.b16 %v316
    %v1098 = vunpack.c.h.b16 %v316
    %v1099 = vunpack.c.l.b16 %v317
    %v1100 = vunpack.c.h.b16 %v317
    %v1101 = vunpack.c.l.b16 %v318
    %v1102 = vunpack.c.h.b16 %v318
    %v1103 = vunpack.c.l.b16 %v319
    %v1104 = vunpack.c.h.b16 %v319
    %v1105 = vunpack.c.l.b16 %v320
    %v1106 = vunpack.c.h.b16 %v320
    %v1107 = vunpack.c.l.b16 %v321
    %v1108 = vunpack.c.h.b16 %v321
    %v1109 = vunpack.c.l.b16 %v322
    %v1110 = vunpack.c.h.b16 %v322
    %v1111 = vunpack.c.l.b16 %v323
    %v1112 = vunpack.c.h.b16 %v323
    %v1113 = vunpack.c.l.b16 %v324
    %v1114 = vunpack.c.h.b16 %v324
    %v1115 = vunpack.c.l.b16 %v325
    %v1116 = vunpack.c.h.b16 %v325
    %v1117 = vunpack.c.l.b16 %v326
    %v1118 = vunpack.c.h.b16 %v326
    %v1119 = vunpack.c.l.b16 %v327
    %v1120 = vunpack.c.h.b16 %v327
    %v1121 = vunpack.c.l.b16 %v328
    %v1122 = vunpack.c.h.b16 %v328
    %v1123 = vunpack.c.l.b16 %v329
    %v1124 = vunpack.c.h.b16 %v329
    %v1125 = vunpack.c.l.b16 %v330
    %v1126 = vunpack.c.h.b16 %v330
    %v1127 = vunpack.c.l.b16 %v331
    %v1128 = vunpack.c.h.b16 %v331
    %v1129 = vunpack.c.l.b16 %v332
    %v1130 = vunpack.c.h.b16 %v332
    %v1131 = vunpack.c.l.b16 %v333
    %v1132 = vunpack.c.h.b16 %v333
    %v1133 = vunpack.c.l.b16 %v334
    %v1134 = vunpack.c.h.b16 %v334
    %v1135 = vunpack.c.l.b16 %v335
    %v1136 = vunpack.c.h.b16 %v335
    %v1137 = vunpack.c.l.b16 %v336
    %v1138 = vunpack.c.h.b16 %v336
    %v1139 = vunpack.c.l.b16 %v337
    %v1140 = vunpack.c.h.b16 %v337
    %v1141 = vunpack.c.l.b16 %v338
    %v1142 = vunpack.c.h.b16 %v338
    %v1143 = vunpack.c.l.b16 %v339
    %v1144 = vunpack.c.h.b16 %v339
    %v1145 = vunpack.c.l.b16 %v340
    %v1146 = vunpack.c.h.b16 %v340
    %v1147 = vunpack.c.l.b16 %v341
    %v1148 = vunpack.c.h.b16 %v341
    %v1149 = vunpack.c.l.b16 %v342
    %v1150 = vunpack.c.h.b16 %v342
    %v1151 = vunpack.c.l.b16 %v343
    %v1152 = vunpack.c.h.b16 %v343
    %v1153 = vunpack.c.l.b16 %v344
    %v1154 = vunpack.c.h.b16 %v344
    %v1155 = vunpack.c.l.b16 %v345
    %v1156 = vunpack.c.h.b16 %v345
    %v1157 = vunpack.c.l.b16 %v346
    %v1158 = vunpack.c.h.b16 %v346
    %v1159 = vunpack.c.l.b16 %v347
    %v1160 = vunpack.c.h.b16 %v347
    %v1161 = vunpack.c.l.b16 %v348
    %v1162 = vunpack.c.h.b16 %v348
    %v1163 = vunpack.c.l.b16 %v349
    %v1164 = vunpack.c.h.b16 %v349
    %v1165 = vunpack.c.l.b16 %v350
    %v1166 = vunpack.c.h.b16 %v350
    %v1167 = vunpack.c.l.b16 %v351
    %v1168 = vunpack.c.h.b16 %v351
    %v1169 = vunpack.c.l.b16 %v352
    %v1170 = vunpack.c.h.b16 %v352
    %v1171 = vunpack.c.l.b16 %v353
    %v1172 = vunpack.c.h.b16 %v353
    %v1173 = vunpack.c.l.b16 %v354
    %v1174 = vunpack.c.h.b16 %v354
    %v1175 = vunpack.c.l.b16 %v355
    %v1176 = vunpack.c.h.b16 %v355
    %v1177 = vunpack.c.l.b16 %v356
    %v1178 = vunpack.c.h.b16 %v356
    %v1179 = vunpack.c.l.b16 %v357
    %v1180 = vunpack.c.h.b16 %v357
    %v1181 = vunpack.c.l.b16 %v358
    %v1182 = vunpack.c.h.b16 %v358
    %v1183 = vunpack.c.l.b16 %v359
    %v1184 = vunpack.c.h.b16 %v359
    %v1185 = vunpack.c.l.b16 %v360
    %v1186 = vunpack.c.h.b16 %v360
    %v1187 = vunpack.c.l.b16 %v361
    %v1188 = vunpack.c.h.b16 %v361
    %v1189 = vunpack.c.l.b16 %v362
    %v1190 = vunpack.c.h.b16 %v362
    %v1191 = vunpack.c.l.b16 %v363
    %v1192 = vunpack.c.h.b16 %v363
    %v1193 = vunpack.c.l.b16 %v364
    %v1194 = vunpack.c.h.b16 %v364
    %v1195 = vunpack.c.l.b16 %v365
    %v1196 = vunpack.c.h.b16 %v365
    %v1197 = vunpack.c.l.b16 %v366
    %v1198 = vunpack.c.h.b16 %v366
    %v1199 = vunpack.c.l.b16 %v367
    %v1200 = vunpack.c.h.b16 %v367
    %v1201 = vunpack.c.l.b16 %v368
    %v1202 = vunpack.c.h.b16 %v368
    %v1203 = vunpack.c.l.b16 %v369
    %v1204 = vunpack.c.h.b16 %v369
    %v1205 = vunpack.c.l.b16 %v370
    %v1206 = vunpack.c.h.b16 %v370
    %v1207 = vunpack.c.l.b16 %v371
    %v1208 = vunpack.c.h.b16 %v371
    %v1209 = vunpack.c.l.b16 %v372
    %v1210 = vunpack.c.h.b16 %v372
    %v1211 = vpack.c.b16 %v767, %v763
    %v1212 = vpack.c.b16 %v768, %v764
    %v1213 = vpack.c.b16 %v769, %v765
    %v1214 = vpack.c.b16 %v770, %v766
    %v1215 = vpack.c.b16 %v775, %v771
    %v1216 = vpack.c.b16 %v776, %v772
    %v1217 = vpack.c.b16 %v777, %v773
    %v1218 = vpack.c.b16 %v778, %v774
    %v1219 = vpack.c.b16 %v783, %v779
    %v1220 = vpack.c.b16 %v784, %v780
    %v1221 = vpack.c.b16 %v785, %v781
    %v1222 = vpack.c.b16 %v786, %v782
    %v1223 = vpack.c.b16 %v791, %v787
    %v1224 = vpack.c.b16 %v792, %v788
    %v1225 = vpack.c.b16 %v793, %v789
    %v1226 = vpack.c.b16 %v794, %v790
    %v1227 = vpack.c.b16 %v799, %v795
    %v1228 = vpack.c.b16 %v800, %v796
    %v1229 = vpack.c.b16 %v801, %v797
    %v1230 = vpack.c.b16 %v802, %v798
    %v1231 = vpack.c.b16 %v807, %v803
    %v1232 = vpack.c.b16 %v808, %v804
    %v1233 = vpack.c.b16 %v809, %v805
    %v1234 = vpack.c.b16 %v810, %v806
    %v1235 = vpack.c.b16 %v815, %v811
    %v1236 = vpack.c.b16 %v816, %v812
    %v1237 = vpack.c.b16 %v817, %v813
    %v1238 = vpack.c.b16 %v818, %v814
    %v1239 = vpack.c.b16 %v823, %v819
    %v1240 = vpack.c.b16 %v824, %v820
    %v1241 = vpack.c.b16 %v825, %v821
    %v1242 = vpack.c.b16 %v826, %v822
    %v1243 = vpack.c.b16 %v831, %v827
    %v1244 = vpack.c.b16 %v832, %v828
    %v1245 = vpack.c.b16 %v833, %v829
    %v1246 = vpack.c.b16 %v834, %v830
    %v1247 = vpack.c.b16 %v839, %v835
    %v1248 = vpack.c.b16 %v840, %v836
    %v1249 = vpack.c.b16 %v841, %v837
    %v1250 = vpack.c.b16 %v842, %v838
    %v1251 = vpack.c.b16 %v847, %v843
    %v1252 = vpack.c.b16 %v848, %v844
    %v1253 = vpack.c.b16 %v849, %v845
    %v1254 = vpack.c.b16 %v850, %v846
    %v1255 = vpack.c.b16 %v855, %v851
    %v1256 = vpack.c.b16 %v856, %v852
    %v1257 = vpack.c.b16 %v857, %v853
    %v1258 = vpack.c.b16 %v858, %v854
    %v1259 = vpack.c.b16 %v863, %v859
    %v1260 = vpack.c.b16 %v864, %v860
    %v1261 = vpack.c.b16 %v865, %v861
    %v1262 = vpack.c.b16 %v866, %v862
    %v1263 = vpack.c.b16 %v871, %v867
    %v1264 = vpack.c.b16 %v872, %v868
    %v1265 = vpack.c.b16 %v873, %v869
    %v1266 = vpack.c.b16 %v874, %v870
    %v1267 = vpack.c.b16 %v879, %v875
    %v1268 = vpack.c.b16 %v880, %v876
    %v1269 = vpack.c.b16 %v881, %v877
    %v1270 = vpack.c.b16 %v882, %v878
    %v1271 = vpack.c.b16 %v887, %v883
    %v1272 = vpack.c.b16 %v888, %v884
    %v1273 = vpack.c.b16 %v889, %v885
    %v1274 = vpack.c.b16 %v890, %v886
    %v1275 = vpack.c.b16 %v895, %v891
    %v1276 = vpack.c.b16 %v896, %v892
    %v1277 = vpack.c.b16 %v897, %v893
    %v1278 = vpack.c.b16 %v898, %v894
    %v1279 = vpack.c.b16 %v903, %v899
    %v1280 = vpack.c.b16 %v904, %v900
    %v1281 = vpack.c.b16 %v905, %v901
    %v1282 = vpack.c.b16 %v906, %v902
    %v1283 = vpack.c.b16 %v911, %v907
    %v1284 = vpack.c.b16 %v912, %v908
    %v1285 = vpack.c.b16 %v913, %v909
    %v1286 = vpack.c.b16 %v914, %v910
    %v1287 = vpack.c.b16 %v919, %v915
    %v1288 = vpack.c.b16 %v920, %v916
    %v1289 = vpack.c.b16 %v921, %v917
    %v1290 = vpack.c.b16 %v922, %v918
    %v1291 = vpack.c.b16 %v927, %v923
    %v1292 = vpack.c.b16 %v928, %v924
    %v1293 = vpack.c.b16 %v929, %v925
    %v1294 = vpack.c.b16 %v930, %v926
    %v1295 = vpack.c.b16 %v935, %v931
    %v1296 = vpack.c.b16 %v936, %v932
    %v1297 = vpack.c.b16 %v937, %v933
    %v1298 = vpack.c.b16 %v938, %v934
    %v1299 = vpack.c.b16 %v943, %v939
    %v1300 = vpack.c.b16 %v944, %v940
    %v1301 = vpack.c.b16 %v945, %v941
    %v1302 = vpack.c.b16 %v946, %v942
    %v1303 = vpack.c.b16 %v951, %v947
    %v1304 = vpack.c.b16 %v952, %v948
    %v1305 = vpack.c.b16 %v953, %v949
    %v1306 = vpack.c.b16 %v954, %v950
    %v1307 = vpack.c.b16 %v959, %v955
    %v1308 = vpack.c.b16 %v960, %v956
    %v1309 = vpack.c.b16 %v961, %v957
    %v1310 = vpack.c.b16 %v962, %v958
    %v1311 = vpack.c.b16 %v967, %v963
    %v1312 = vpack.c.b16 %v968, %v964
    %v1313 = vpack.c.b16 %v969, %v965
    %v1314 = vpack.c.b16 %v970, %v966
    %v1315 = vpack.c.b16 %v975, %v971
    %v1316 = vpack.c.b16 %v976, %v972
    %v1317 = vpack.c.b16 %v977, %v973
    %v1318 = vpack.c.b16 %v978, %v974
    %v1319 = vpack.c.b16 %v983, %v979
    %v1320 = vpack.c.b16 %v984, %v980
    %v1321 = vpack.c.b16 %v985, %v981
    %v1322 = vpack.c.b16 %v986, %v982
    %v1323 = vpack.c.b16 %v991, %v987
    %v1324 = vpack.c.b16 %v992, %v988
    %v1325 = vpack.c.b16 %v993, %v989
    %v1326 = vpack.c.b16 %v994, %v990
    %v1327 = vpack.c.b16 %v999, %v995
    %v1328 = vpack.c.b16 %v1000, %v996
    %v1329 = vpack.c.b16 %v1001, %v997
    %v1330 = vpack.c.b16 %v1002, %v998
    %v1331 = vpack.c.b16 %v1007, %v1003
    %v1332 = vpack.c.b16 %v1008, %v1004
    %v1333 = vpack.c.b16 %v1009, %v1005
    %v1334 = vpack.c.b16 %v1010, %v1006
    %v1335 = vpack.c.b16 %v1015, %v1011
    %v1336 = vpack.c.b16 %v1016, %v1012
    %v1337 = vpack.c.b16 %v1017, %v1013
    %v1338 = vpack.c.b16 %v1018, %v1014
    %v1339 = vpack.c.b16 %v1023, %v1019
    %v1340 = vpack.c.b16 %v1024, %v1020
    %v1341 = vpack.c.b16 %v1025, %v1021
    %v1342 = vpack.c.b16 %v1026, %v1022
    %v1343 = vpack.c.b16 %v1031, %v1027
    %v1344 = vpack.c.b16 %v1032, %v1028
    %v1345 = vpack.c.b16 %v1033, %v1029
    %v1346 = vpack.c.b16 %v1034, %v1030
    %v1347 = vpack.c.b16 %v1039, %v1035
    %v1348 = vpack.c.b16 %v1040, %v1036
    %v1349 = vpack.c.b16 %v1041, %v1037
    %v1350 = vpack.c.b16 %v1042, %v1038
    %v1351 = vpack.c.b16 %v1047, %v1043
    %v1352 = vpack.c.b16 %v1048, %v1044
    %v1353 = vpack.c.b16 %v1049, %v1045
    %v1354 = vpack.c.b16 %v1050, %v1046
    %v1355 = vpack.c.b16 %v1055, %v1051
    %v1356 = vpack.c.b16 %v1056, %v1052
    %v1357 = vpack.c.b16 %v1057, %v1053
    %v1358 = vpack.c.b16 %v1058, %v1054
    %v1359 = vpack.c.b16 %v1063, %v1059
    %v1360 = vpack.c.b16 %v1064, %v1060
    %v1361 = vpack.c.b16 %v1065, %v1061
    %v1362 = vpack.c.b16 %v1066, %v1062
    %v1363 = vpack.c.b16 %v1071, %v1067
    %v1364 = vpack.c.b16 %v1072, %v1068
    %v1365 = vpack.c.b16 %v1073, %v1069
    %v1366 = vpack.c.b16 %v1074, %v1070
    %v1367 = vpack.c.b16 %v1079, %v1075
    %v1368 = vpack.c.b16 %v1080, %v1076
    %v1369 = vpack.c.b16 %v1081, %v1077
    %v1370 = vpack.c.b16 %v1082, %v1078
    %v1371 = vpack.c.b16 %v1087, %v1083
    %v1372 = vpack.c.b16 %v1088, %v1084
    %v1373 = vpack.c.b16 %v1089, %v1085
    %v1374 = vpack.c.b16 %v1090, %v1086
    %v1375 = vpack.c.b16 %v1095, %v1091
    %v1376 = vpack.c.b16 %v1096, %v1092
    %v1377 = vpack.c.b16 %v1097, %v1093
    %v1378 = vpack.c.b16 %v1098, %v1094
    %v1379 = vpack.c.b16 %v1103, %v1099
    %v1380 = vpack.c.b16 %v1104, %v1100
    %v1381 = vpack.c.b16 %v1105, %v1101
    %v1382 = vpack.c.b16 %v1106, %v1102
    %v1383 = vpack.c.b16 %v1111, %v1107
    %v1384 = vpack.c.b16 %v1112, %v1108
    %v1385 = vpack.c.b16 %v1113, %v1109
    %v1386 = vpack.c.b16 %v1114, %v1110
    %v1387 = vpack.c.b16 %v1119, %v1115
    %v1388 = vpack.c.b16 %v1120, %v1116
    %v1389 = vpack.c.b16 %v1121, %v1117
    %v1390 = vpack.c.b16 %v1122, %v1118
    %v1391 = vpack.c.b16 %v1127, %v1123
    %v1392 = vpack.c.b16 %v1128, %v1124
    %v1393 = vpack.c.b16 %v1129, %v1125
    %v1394 = vpack.c.b16 %v1130, %v1126
    %v1395 = vpack.c.b16 %v1135, %v1131
    %v1396 = vpack.c.b16 %v1136, %v1132
    %v1397 = vpack.c.b16 %v1137, %v1133
    %v1398 = vpack.c.b16 %v1138, %v1134
    %v1399 = vpack.c.b16 %v1143, %v1139
    %v1400 = vpack.c.b16 %v1144, %v1140
    %v1401 = vpack.c.b16 %v1145, %v1141
    %v1402 = vpack.c.b16 %v1146, %v1142
    %v1403 = vpack.c.b16 %v1151, %v1147
    %v1404 = vpack.c.b16 %v1152, %v1148
    %v1405 = vpack.c.b16 %v1153, %v1149
    %v1406 = vpack.c.b16 %v1154, %v1150
    %v1407 = vpack.c.b16 %v1159, %v1155
    %v1408 = vpack.c.b16 %v1160, %v1156
    %v1409 = vpack.c.b16 %v1161, %v1157
    %v1410 = vpack.c.b16 %v1162, %v1158
    %v1411 = vpack.c.b16 %v1167, %v1163
    %v1412 = vpack.c.b16 %v1168, %v1164
    %v1413 = vpack.c.b16 %v1169, %v1165
    %v1414 = vpack.c.b16 %v1170, %v1166
    %v1415 = vpack.c.b16 %v1175, %v1171
    %v1416 = vpack.c.b16 %v1176, %v1172
    %v1417 = vpack.c.b16 %v1177, %v1173
    %v1418 = vpack.c.b16 %v1178, %v1174
    %v1419 = vpack.c.b16 %v1183, %v1179
    %v1420 = vpack.c.b16 %v1184, %v1180
    %v1421 = vpack.c.b16 %v1185, %v1181
    %v1422 = vpack.c.b16 %v1186, %v1182
    %v1423 = vpack.c.b16 %v1191, %v1187
    %v1424 = vpack.c.b16 %v1192, %v1188
    %v1425 = vpack.c.b16 %v1193, %v1189
    %v1426 = vpack.c.b16 %v1194, %v1190
    %v1427 = vpack.c.b16 %v1199, %v1195
    %v1428 = vpack.c.b16 %v1200, %v1196
    %v1429 = vpack.c.b16 %v1201, %v1197
    %v1430 = vpack.c.b16 %v1202, %v1198
    %v1431 = vpack.c.b16 %v1207, %v1203
    %v1432 = vpack.c.b16 %v1208, %v1204
    %v1433 = vpack.c.b16 %v1209, %v1205
    %v1434 = vpack.c.b16 %v1210, %v1206
    %1659 = vmatprep.subr.bf16.mxu0 %v1212
    %1660 = vmatpush1.bf16.msra.mxu0 %v1211
    %1661 = vmatprep.subr.bf16.mxu0 %v1216
    %1662 = vmatpush1.bf16.msra.mxu0 %v1215
    %1663 = vmatprep.subr.bf16.mxu0 %v1220
    %1664 = vmatpush1.bf16.msra.mxu0 %v1219
    %1665 = vmatprep.subr.bf16.mxu0 %v1224
    %1666 = vmatpush1.bf16.msra.mxu0 %v1223
    %1667 = vmatprep.subr.bf16.mxu0 %v1228
    %1668 = vmatpush1.bf16.msra.mxu0 %v1227
    %1669 = vmatprep.subr.bf16.mxu0 %v1232
    %1670 = vmatpush1.bf16.msra.mxu0 %v1231
    %1671 = vmatprep.subr.bf16.mxu0 %v1236
    %1672 = vmatpush1.bf16.msra.mxu0 %v1235
    %1673 = vmatprep.subr.bf16.mxu0 %v1240
    %1674 = vmatpush1.bf16.msra.mxu0 %v1239
    %1675 = vmatprep.subr.bf16.mxu0 %v1244
    %1676 = vmatpush1.bf16.msra.mxu0 %v1243
    %1677 = vmatprep.subr.bf16.mxu0 %v1248
    %1678 = vmatpush1.bf16.msra.mxu0 %v1247
    %1679 = vmatprep.subr.bf16.mxu0 %v1252
    %1680 = vmatpush1.bf16.msra.mxu0 %v1251
    %1681 = vmatprep.subr.bf16.mxu0 %v1256
    %1682 = vmatpush1.bf16.msra.mxu0 %v1255
    %1683 = vmatprep.subr.bf16.mxu0 %v1260
    %1684 = vmatpush1.bf16.msra.mxu0 %v1259
    %1685 = vmatprep.subr.bf16.mxu0 %v1264
    %1686 = vmatpush1.bf16.msra.mxu0 %v1263
    %1687 = vmatprep.subr.bf16.mxu0 %v1268
    %1688 = vmatpush1.bf16.msra.mxu0 %v1267
    %1689 = vmatprep.subr.bf16.mxu0 %v1272
    %1690 = vmatpush1.bf16.msra.mxu0 %v1271
    %1691 = vmatprep.mubr.bf16.mxu0 %v484
    %1692 = vmatmul.mubr.bf16.gmra.mrb[0].mxu0 %v483
    %v1693 = vpop.f32.mrb[0].mxu0
    %v1694 = vadd.f32 %v378, %v1693
    %v1695 = vpop.f32.mrb[0].mxu0
    %v1696 = vadd.f32 %v382, %v1695
    %v1697 = vpop.f32.mrb[0].mxu0
    %v1698 = vadd.f32 %v378, %v1697
    %v1699 = vpop.f32.mrb[0].mxu0
    %v1700 = vadd.f32 %v382, %v1699
    %1701 = vmatprep.mubr.bf16.mxu0 %v491
    %1702 = vmatmul.mubr.bf16.gmra.mrb[0].mxu0 %v490
    %v1703 = vpop.f32.mrb[0].mxu0
    %v1704 = vadd.f32 %v378, %v1703
    %v1705 = vpop.f32.mrb[0].mxu0
    %v1706 = vadd.f32 %v382, %v1705
    %v1707 = vpop.f32.mrb[0].mxu0
    %v1708 = vadd.f32 %v378, %v1707
    %v1709 = vpop.f32.mrb[0].mxu0
    %v1710 = vadd.f32 %v382, %v1709
    %1711 = vmatprep.mubr.bf16.mxu0 %v498
    %1712 = vmatmul.mubr.bf16.gmra.mrb[0].mxu0 %v497
    %v1713 = vpop.f32.mrb[0].mxu0
    %v1714 = vadd.f32 %v378, %v1713
    %v1715 = vpop.f32.mrb[0].mxu0
    %v1716 = vadd.f32 %v382, %v1715
    %v1717 = vpop.f32.mrb[0].mxu0
    %v1718 = vadd.f32 %v378, %v1717
    %v1719 = vpop.f32.mrb[0].mxu0
    %v1720 = vadd.f32 %v382, %v1719
    %1721 = vmatprep.mubr.bf16.mxu0 %v505
    %1722 = vmatmul.mubr.bf16.gmra.mrb[0].mxu0 %v504
    %v1723 = vpop.f32.mrb[0].mxu0
    %v1724 = vadd.f32 %v378, %v1723
    %v1725 = vpop.f32.mrb[0].mxu0
    %v1726 = vadd.f32 %v382, %v1725
    %v1727 = vpop.f32.mrb[0].mxu0
    %v1728 = vadd.f32 %v378, %v1727
    %v1729 = vpop.f32.mrb[0].mxu0
    %v1730 = vadd.f32 %v382, %v1729
    %1731 = vdwg.mxu0
    %1732 = vmatprep.subr.bf16.mxu0 %v1276
    %1733 = vmatpush1.bf16.msra.mxu0 %v1275
    %1734 = vmatprep.subr.bf16.mxu0 %v1280
    %1735 = vmatpush1.bf16.msra.mxu0 %v1279
    %1736 = vmatprep.subr.bf16.mxu0 %v1284
    %1737 = vmatpush1.bf16.msra.mxu0 %v1283
    %1738 = vmatprep.subr.bf16.mxu0 %v1288
    %1739 = vmatpush1.bf16.msra.mxu0 %v1287
    %1740 = vmatprep.subr.bf16.mxu0 %v1292
    %1741 = vmatpush1.bf16.msra.mxu0 %v1291
    %1742 = vmatprep.subr.bf16.mxu0 %v1296
    %1743 = vmatpush1.bf16.msra.mxu0 %v1295
    %1744 = vmatprep.subr.bf16.mxu0 %v1300
    %1745 = vmatpush1.bf16.msra.mxu0 %v1299
    %1746 = vmatprep.subr.bf16.mxu0 %v1304
    %1747 = vmatpush1.bf16.msra.mxu0 %v1303
    %1748 = vmatprep.subr.bf16.mxu0 %v1308
    %1749 = vmatpush1.bf16.msra.mxu0 %v1307
    %1750 = vmatprep.subr.bf16.mxu0 %v1312
    %1751 = vmatpush1.bf16.msra.mxu0 %v1311
    %1752 = vmatprep.subr.bf16.mxu0 %v1316
    %1753 = vmatpush1.bf16.msra.mxu0 %v1315
    %1754 = vmatprep.subr.bf16.mxu0 %v1320
    %1755 = vmatpush1.bf16.msra.mxu0 %v1319
    %1756 = vmatprep.subr.bf16.mxu0 %v1324
    %1757 = vmatpush1.bf16.msra.mxu0 %v1323
    %1758 = vmatprep.subr.bf16.mxu0 %v1328
    %1759 = vmatpush1.bf16.msra.mxu0 %v1327
    %1760 = vmatprep.subr.bf16.mxu0 %v1332
    %1761 = vmatpush1.bf16.msra.mxu0 %v1331
    %1762 = vmatprep.subr.bf16.mxu0 %v1336
    %1763 = vmatpush1.bf16.msra.mxu0 %v1335
    %1764 = vmatprep.mubr.bf16.mxu0 %v486
    %1765 = vmatmul.mubr.bf16.gmra.mrb[0].mxu0 %v485
    %v1766 = vpop.f32.mrb[0].mxu0
    %v1767 = vadd.f32 %v1694, %v1766
    %v1768 = vpop.f32.mrb[0].mxu0
    %v1769 = vadd.f32 %v1696, %v1768
    %v1770 = vpop.f32.mrb[0].mxu0
    %v1771 = vadd.f32 %v1698, %v1770
    %v1772 = vpop.f32.mrb[0].mxu0
    %v1773 = vadd.f32 %v1700, %v1772
    %1774 = vmatprep.mubr.bf16.mxu0 %v493
    %1775 = vmatmul.mubr.bf16.gmra.mrb[0].mxu0 %v492
    %v1776 = vpop.f32.mrb[0].mxu0
    %v1777 = vadd.f32 %v1704, %v1776
    %v1778 = vpop.f32.mrb[0].mxu0
    %v1779 = vadd.f32 %v1706, %v1778
    %v1780 = vpop.f32.mrb[0].mxu0
    %v1781 = vadd.f32 %v1708, %v1780
    %v1782 = vpop.f32.mrb[0].mxu0
    %v1783 = vadd.f32 %v1710, %v1782
    %1784 = vmatprep.mubr.bf16.mxu0 %v500
    %1785 = vmatmul.mubr.bf16.gmra.mrb[0].mxu0 %v499
    %v1786 = vpop.f32.mrb[0].mxu0
    %v1787 = vadd.f32 %v1714, %v1786
    %v1788 = vpop.f32.mrb[0].mxu0
    %v1789 = vadd.f32 %v1716, %v1788
    %v1790 = vpop.f32.mrb[0].mxu0
    %v1791 = vadd.f32 %v1718, %v1790
    %v1792 = vpop.f32.mrb[0].mxu0
    %v1793 = vadd.f32 %v1720, %v1792
    %1794 = vmatprep.mubr.bf16.mxu0 %v507
    %1795 = vmatmul.mubr.bf16.gmra.mrb[0].mxu0 %v506
    %v1796 = vpop.f32.mrb[0].mxu0
    %v1797 = vadd.f32 %v1724, %v1796
    %v1798 = vpop.f32.mrb[0].mxu0
    %v1799 = vadd.f32 %v1726, %v1798
    %v1800 = vpop.f32.mrb[0].mxu0
    %v1801 = vadd.f32 %v1728, %v1800
    %v1802 = vpop.f32.mrb[0].mxu0
    %v1803 = vadd.f32 %v1730, %v1802
    %1804 = vdwg.mxu0
    %1805 = vmatprep.subr.bf16.mxu0 %v1340
    %1806 = vmatpush1.bf16.msra.mxu0 %v1339
    %1807 = vmatprep.subr.bf16.mxu0 %v1344
    %1808 = vmatpush1.bf16.msra.mxu0 %v1343
    %1809 = vmatprep.subr.bf16.mxu0 %v1348
    %1810 = vmatpush1.bf16.msra.mxu0 %v1347
    %1811 = vmatprep.subr.bf16.mxu0 %v1352
    %1812 = vmatpush1.bf16.msra.mxu0 %v1351
    %1813 = vmatprep.subr.bf16.mxu0 %v1356
    %1814 = vmatpush1.bf16.msra.mxu0 %v1355
    %1815 = vmatprep.subr.bf16.mxu0 %v1360
    %1816 = vmatpush1.bf16.msra.mxu0 %v1359
    %1817 = vmatprep.subr.bf16.mxu0 %v1364
    %1818 = vmatpush1.bf16.msra.mxu0 %v1363
    %1819 = vmatprep.subr.bf16.mxu0 %v1368
    %1820 = vmatpush1.bf16.msra.mxu0 %v1367
    %1821 = vmatprep.subr.bf16.mxu0 %v1372
    %1822 = vmatpush1.bf16.msra.mxu0 %v1371
    %1823 = vmatprep.subr.bf16.mxu0 %v1376
    %1824 = vmatpush1.bf16.msra.mxu0 %v1375
    %1825 = vmatprep.subr.bf16.mxu0 %v1380
    %1826 = vmatpush1.bf16.msra.mxu0 %v1379
    %1827 = vmatprep.subr.bf16.mxu0 %v1384
    %1828 = vmatpush1.bf16.msra.mxu0 %v1383
    %1829 = vmatprep.subr.bf16.mxu0 %v1388
    %1830 = vmatpush1.bf16.msra.mxu0 %v1387
    %1831 = vmatprep.subr.bf16.mxu0 %v1392
    %1832 = vmatpush1.bf16.msra.mxu0 %v1391
    %1833 = vmatprep.subr.bf16.mxu0 %v1396
    %1834 = vmatpush1.bf16.msra.mxu0 %v1395
    %1835 = vmatprep.subr.bf16.mxu0 %v1400
    %1836 = vmatpush1.bf16.msra.mxu0 %v1399
    %1837 = vmatprep.mubr.bf16.mxu0 %v488
    %1838 = vmatmul.mubr.bf16.gmra.mrb[0].mxu0 %v487
    %v1839 = vpop.f32.mrb[0].mxu0
    %v1840 = vadd.f32 %v1767, %v1839
    %v1841 = vpop.f32.mrb[0].mxu0
    %v1842 = vadd.f32 %v1769, %v1841
    %v1843 = vpop.f32.mrb[0].mxu0
    %v1844 = vadd.f32 %v1771, %v1843
    %v1845 = vpop.f32.mrb[0].mxu0
    %v1846 = vadd.f32 %v1773, %v1845
    %1847 = vmatprep.mubr.bf16.mxu0 %v495
    %1848 = vmatmul.mubr.bf16.gmra.mrb[0].mxu0 %v494
    %v1849 = vpop.f32.mrb[0].mxu0
    %v1850 = vadd.f32 %v1777, %v1849
    %v1851 = vpop.f32.mrb[0].mxu0
    %v1852 = vadd.f32 %v1779, %v1851
    %v1853 = vpop.f32.mrb[0].mxu0
    %v1854 = vadd.f32 %v1781, %v1853
    %v1855 = vpop.f32.mrb[0].mxu0
    %v1856 = vadd.f32 %v1783, %v1855
    %1857 = vmatprep.mubr.bf16.mxu0 %v502
    %1858 = vmatmul.mubr.bf16.gmra.mrb[0].mxu0 %v501
    %v1859 = vpop.f32.mrb[0].mxu0
    %v1860 = vadd.f32 %v1787, %v1859
    %v1861 = vpop.f32.mrb[0].mxu0
    %v1862 = vadd.f32 %v1789, %v1861
    %v1863 = vpop.f32.mrb[0].mxu0
    %v1864 = vadd.f32 %v1791, %v1863
    %v1865 = vpop.f32.mrb[0].mxu0
    %v1866 = vadd.f32 %v1793, %v1865
    %1867 = vmatprep.mubr.bf16.mxu0 %v509
    %1868 = vmatmul.mubr.bf16.gmra.mrb[0].mxu0 %v508
    %v1869 = vpop.f32.mrb[0].mxu0
    %v1870 = vadd.f32 %v1797, %v1869
    %v1871 = vpop.f32.mrb[0].mxu0
    %v1872 = vadd.f32 %v1799, %v1871
    %v1873 = vpop.f32.mrb[0].mxu0
    %v1874 = vadd.f32 %v1801, %v1873
    %v1875 = vpop.f32.mrb[0].mxu0
    %v1876 = vadd.f32 %v1803, %v1875
    %1877 = vdwg.mxu0
    %1878 = vmatprep.subr.bf16.mxu0 %v1404
    %1879 = vmatpush1.bf16.msra.mxu0 %v1403
    %1880 = vmatprep.subr.bf16.mxu0 %v1408
    %1881 = vmatpush1.bf16.msra.mxu0 %v1407
    %1882 = vmatprep.subr.bf16.mxu0 %v1412
    %1883 = vmatpush1.bf16.msra.mxu0 %v1411
    %1884 = vmatprep.subr.bf16.mxu0 %v1416
    %1885 = vmatpush1.bf16.msra.mxu0 %v1415
    %1886 = vmatprep.subr.bf16.mxu0 %v1420
    %1887 = vmatpush1.bf16.msra.mxu0 %v1419
    %1888 = vmatprep.subr.bf16.mxu0 %v1424
    %1889 = vmatpush1.bf16.msra.mxu0 %v1423
    %1890 = vmatprep.subr.bf16.mxu0 %v1428
    %1891 = vmatpush1.bf16.msra.mxu0 %v1427
    %1892 = vmatprep.subr.bf16.mxu0 %v1432
    %1893 = vmatpush1.bf16.msra.mxu0 %v1431
    %1894 = vmatprep.subr.bf16.mxu0 0
    %1895 = vmatpush1.bf16.msra.mxu0 0
    %1896 = vmatprep.subr.bf16.mxu0 0
    %1897 = vmatpush1.bf16.msra.mxu0 0
    %1898 = vmatprep.subr.bf16.mxu0 0
    %1899 = vmatpush1.bf16.msra.mxu0 0
    %1900 = vmatprep.subr.bf16.mxu0 0
    %1901 = vmatpush1.bf16.msra.mxu0 0
    %1902 = vmatprep.subr.bf16.mxu0 0
    %1903 = vmatpush1.bf16.msra.mxu0 0
    %1904 = vmatprep.subr.bf16.mxu0 0
    %1905 = vmatpush1.bf16.msra.mxu0 0
    %1906 = vmatprep.subr.bf16.mxu0 0
    %1907 = vmatpush1.bf16.msra.mxu0 0
    %1908 = vmatprep.subr.bf16.mxu0 0
    %1909 = vmatpush1.bf16.msra.mxu0 0
    %1910 = vmatprep.mubr.bf16.mxu0 0
    %1911 = vmatmul.mubr.bf16.gmra.mrb[0].mxu0 %v489
    %v1912 = vpop.f32.mrb[0].mxu0
    %v1913 = vadd.f32 %v1840, %v1912
    %v1914 = vpop.f32.mrb[0].mxu0
    %v1915 = vadd.f32 %v1842, %v1914
    %v1916 = vpop.f32.mrb[0].mxu0
    %v1917 = vadd.f32 %v1844, %v1916
    %v1918 = vpop.f32.mrb[0].mxu0
    %v1919 = vadd.f32 %v1846, %v1918
    %1920 = vmatprep.mubr.bf16.mxu0 0
    %1921 = vmatmul.mubr.bf16.gmra.mrb[0].mxu0 %v496
    %v1922 = vpop.f32.mrb[0].mxu0
    %v1923 = vadd.f32 %v1850, %v1922
    %v1924 = vpop.f32.mrb[0].mxu0
    %v1925 = vadd.f32 %v1852, %v1924
    %v1926 = vpop.f32.mrb[0].mxu0
    %v1927 = vadd.f32 %v1854, %v1926
    %v1928 = vpop.f32.mrb[0].mxu0
    %v1929 = vadd.f32 %v1856, %v1928
    %1930 = vmatprep.mubr.bf16.mxu0 0
    %1931 = vmatmul.mubr.bf16.gmra.mrb[0].mxu0 %v503
    %v1932 = vpop.f32.mrb[0].mxu0
    %v1933 = vadd.f32 %v1860, %v1932
    %v1934 = vpop.f32.mrb[0].mxu0
    %v1935 = vadd.f32 %v1862, %v1934
    %v1936 = vpop.f32.mrb[0].mxu0
    %v1937 = vadd.f32 %v1864, %v1936
    %v1938 = vpop.f32.mrb[0].mxu0
    %v1939 = vadd.f32 %v1866, %v1938
    %1940 = vmatprep.mubr.bf16.mxu0 0
    %1941 = vmatmul.mubr.bf16.gmra.mrb[0].mxu0 %v510
    %v1942 = vpop.f32.mrb[0].mxu0
    %v1943 = vadd.f32 %v1870, %v1942
    %v1944 = vpop.f32.mrb[0].mxu0
    %v1945 = vadd.f32 %v1872, %v1944
    %v1946 = vpop.f32.mrb[0].mxu0
    %v1947 = vadd.f32 %v1874, %v1946
    %v1948 = vpop.f32.mrb[0].mxu0
    %v1949 = vadd.f32 %v1876, %v1948
    %1950 = vdwg.mxu0
    %1951 = vmatprep.subr.bf16.mxu0 %v1214
    %1952 = vmatpush1.bf16.msra.mxu0 %v1213
    %1953 = vmatprep.subr.bf16.mxu0 %v1218
    %1954 = vmatpush1.bf16.msra.mxu0 %v1217
    %1955 = vmatprep.subr.bf16.mxu0 %v1222
    %1956 = vmatpush1.bf16.msra.mxu0 %v1221
    %1957 = vmatprep.subr.bf16.mxu0 %v1226
    %1958 = vmatpush1.bf16.msra.mxu0 %v1225
    %1959 = vmatprep.subr.bf16.mxu0 %v1230
    %1960 = vmatpush1.bf16.msra.mxu0 %v1229
    %1961 = vmatprep.subr.bf16.mxu0 %v1234
    %1962 = vmatpush1.bf16.msra.mxu0 %v1233
    %1963 = vmatprep.subr.bf16.mxu0 %v1238
    %1964 = vmatpush1.bf16.msra.mxu0 %v1237
    %1965 = vmatprep.subr.bf16.mxu0 %v1242
    %1966 = vmatpush1.bf16.msra.mxu0 %v1241
    %1967 = vmatprep.subr.bf16.mxu0 %v1246
    %1968 = vmatpush1.bf16.msra.mxu0 %v1245
    %1969 = vmatprep.subr.bf16.mxu0 %v1250
    %1970 = vmatpush1.bf16.msra.mxu0 %v1249
    %1971 = vmatprep.subr.bf16.mxu0 %v1254
    %1972 = vmatpush1.bf16.msra.mxu0 %v1253
    %1973 = vmatprep.subr.bf16.mxu0 %v1258
    %1974 = vmatpush1.bf16.msra.mxu0 %v1257
    %1975 = vmatprep.subr.bf16.mxu0 %v1262
    %1976 = vmatpush1.bf16.msra.mxu0 %v1261
    %1977 = vmatprep.subr.bf16.mxu0 %v1266
    %1978 = vmatpush1.bf16.msra.mxu0 %v1265
    %1979 = vmatprep.subr.bf16.mxu0 %v1270
    %1980 = vmatpush1.bf16.msra.mxu0 %v1269
    %1981 = vmatprep.subr.bf16.mxu0 %v1274
    %1982 = vmatpush1.bf16.msra.mxu0 %v1273
    %1983 = vmatprep.mubr.bf16.mxu0 %v484
    %1984 = vmatmul.mubr.bf16.gmra.mrb[0].mxu0 %v483
    %v1985 = vpop.f32.mrb[0].mxu0
    %v1986 = vadd.f32 %v386, %v1985
    %v1987 = vpop.f32.mrb[0].mxu0
    %v1988 = vadd.f32 %v390, %v1987
    %v1989 = vpop.f32.mrb[0].mxu0
    %v1990 = vadd.f32 %v386, %v1989
    %v1991 = vpop.f32.mrb[0].mxu0
    %v1992 = vadd.f32 %v390, %v1991
    %1993 = vmatprep.mubr.bf16.mxu0 %v491
    %1994 = vmatmul.mubr.bf16.gmra.mrb[0].mxu0 %v490
    %v1995 = vpop.f32.mrb[0].mxu0
    %v1996 = vadd.f32 %v386, %v1995
    %v1997 = vpop.f32.mrb[0].mxu0
    %v1998 = vadd.f32 %v390, %v1997
    %v1999 = vpop.f32.mrb[0].mxu0
    %v2000 = vadd.f32 %v386, %v1999
    %v2001 = vpop.f32.mrb[0].mxu0
    %v2002 = vadd.f32 %v390, %v2001
    %2003 = vmatprep.mubr.bf16.mxu0 %v498
    %2004 = vmatmul.mubr.bf16.gmra.mrb[0].mxu0 %v497
    %v2005 = vpop.f32.mrb[0].mxu0
    %v2006 = vadd.f32 %v386, %v2005
    %v2007 = vpop.f32.mrb[0].mxu0
    %v2008 = vadd.f32 %v390, %v2007
    %v2009 = vpop.f32.mrb[0].mxu0
    %v2010 = vadd.f32 %v386, %v2009
    %v2011 = vpop.f32.mrb[0].mxu0
    %v2012 = vadd.f32 %v390, %v2011
    %2013 = vmatprep.mubr.bf16.mxu0 %v505
    %2014 = vmatmul.mubr.bf16.gmra.mrb[0].mxu0 %v504
    %v2015 = vpop.f32.mrb[0].mxu0
    %v2016 = vadd.f32 %v386, %v2015
    %v2017 = vpop.f32.mrb[0].mxu0
    %v2018 = vadd.f32 %v390, %v2017
    %v2019 = vpop.f32.mrb[0].mxu0
    %v2020 = vadd.f32 %v386, %v2019
    %v2021 = vpop.f32.mrb[0].mxu0
    %v2022 = vadd.f32 %v390, %v2021
    %2023 = vdwg.mxu0
    %2024 = vmatprep.subr.bf16.mxu0 %v1278
    %2025 = vmatpush1.bf16.msra.mxu0 %v1277
    %2026 = vmatprep.subr.bf16.mxu0 %v1282
    %2027 = vmatpush1.bf16.msra.mxu0 %v1281
    %2028 = vmatprep.subr.bf16.mxu0 %v1286
    %2029 = vmatpush1.bf16.msra.mxu0 %v1285
    %2030 = vmatprep.subr.bf16.mxu0 %v1290
    %2031 = vmatpush1.bf16.msra.mxu0 %v1289
    %2032 = vmatprep.subr.bf16.mxu0 %v1294
    %2033 = vmatpush1.bf16.msra.mxu0 %v1293
    %2034 = vmatprep.subr.bf16.mxu0 %v1298
    %2035 = vmatpush1.bf16.msra.mxu0 %v1297
    %2036 = vmatprep.subr.bf16.mxu0 %v1302
    %2037 = vmatpush1.bf16.msra.mxu0 %v1301
    %2038 = vmatprep.subr.bf16.mxu0 %v1306
    %2039 = vmatpush1.bf16.msra.mxu0 %v1305
    %2040 = vmatprep.subr.bf16.mxu0 %v1310
    %2041 = vmatpush1.bf16.msra.mxu0 %v1309
    %2042 = vmatprep.subr.bf16.mxu0 %v1314
    %2043 = vmatpush1.bf16.msra.mxu0 %v1313
    %2044 = vmatprep.subr.bf16.mxu0 %v1318
    %2045 = vmatpush1.bf16.msra.mxu0 %v1317
    %2046 = vmatprep.subr.bf16.mxu0 %v1322
    %2047 = vmatpush1.bf16.msra.mxu0 %v1321
    %2048 = vmatprep.subr.bf16.mxu0 %v1326
    %2049 = vmatpush1.bf16.msra.mxu0 %v1325
    %2050 = vmatprep.subr.bf16.mxu0 %v1330
    %2051 = vmatpush1.bf16.msra.mxu0 %v1329
    %2052 = vmatprep.subr.bf16.mxu0 %v1334
    %2053 = vmatpush1.bf16.msra.mxu0 %v1333
    %2054 = vmatprep.subr.bf16.mxu0 %v1338
    %2055 = vmatpush1.bf16.msra.mxu0 %v1337
    %2056 = vmatprep.mubr.bf16.mxu0 %v486
    %2057 = vmatmul.mubr.bf16.gmra.mrb[0].mxu0 %v485
    %v2058 = vpop.f32.mrb[0].mxu0
    %v2059 = vadd.f32 %v1986, %v2058
    %v2060 = vpop.f32.mrb[0].mxu0
    %v2061 = vadd.f32 %v1988, %v2060
    %v2062 = vpop.f32.mrb[0].mxu0
    %v2063 = vadd.f32 %v1990, %v2062
    %v2064 = vpop.f32.mrb[0].mxu0
    %v2065 = vadd.f32 %v1992, %v2064
    %2066 = vmatprep.mubr.bf16.mxu0 %v493
    %2067 = vmatmul.mubr.bf16.gmra.mrb[0].mxu0 %v492
    %v2068 = vpop.f32.mrb[0].mxu0
    %v2069 = vadd.f32 %v1996, %v2068
    %v2070 = vpop.f32.mrb[0].mxu0
    %v2071 = vadd.f32 %v1998, %v2070
    %v2072 = vpop.f32.mrb[0].mxu0
    %v2073 = vadd.f32 %v2000, %v2072
    %v2074 = vpop.f32.mrb[0].mxu0
    %v2075 = vadd.f32 %v2002, %v2074
    %2076 = vmatprep.mubr.bf16.mxu0 %v500
    %2077 = vmatmul.mubr.bf16.gmra.mrb[0].mxu0 %v499
    %v2078 = vpop.f32.mrb[0].mxu0
    %v2079 = vadd.f32 %v2006, %v2078
    %v2080 = vpop.f32.mrb[0].mxu0
    %v2081 = vadd.f32 %v2008, %v2080
    %v2082 = vpop.f32.mrb[0].mxu0
    %v2083 = vadd.f32 %v2010, %v2082
    %v2084 = vpop.f32.mrb[0].mxu0
    %v2085 = vadd.f32 %v2012, %v2084
    %2086 = vmatprep.mubr.bf16.mxu0 %v507
    %2087 = vmatmul.mubr.bf16.gmra.mrb[0].mxu0 %v506
    %v2088 = vpop.f32.mrb[0].mxu0
    %v2089 = vadd.f32 %v2016, %v2088
    %v2090 = vpop.f32.mrb[0].mxu0
    %v2091 = vadd.f32 %v2018, %v2090
    %v2092 = vpop.f32.mrb[0].mxu0
    %v2093 = vadd.f32 %v2020, %v2092
    %v2094 = vpop.f32.mrb[0].mxu0
    %v2095 = vadd.f32 %v2022, %v2094
    %2096 = vdwg.mxu0
    %2097 = vmatprep.subr.bf16.mxu0 %v1342
    %2098 = vmatpush1.bf16.msra.mxu0 %v1341
    %2099 = vmatprep.subr.bf16.mxu0 %v1346
    %2100 = vmatpush1.bf16.msra.mxu0 %v1345
    %2101 = vmatprep.subr.bf16.mxu0 %v1350
    %2102 = vmatpush1.bf16.msra.mxu0 %v1349
    %2103 = vmatprep.subr.bf16.mxu0 %v1354
    %2104 = vmatpush1.bf16.msra.mxu0 %v1353
    %2105 = vmatprep.subr.bf16.mxu0 %v1358
    %2106 = vmatpush1.bf16.msra.mxu0 %v1357
    %2107 = vmatprep.subr.bf16.mxu0 %v1362
    %2108 = vmatpush1.bf16.msra.mxu0 %v1361
    %2109 = vmatprep.subr.bf16.mxu0 %v1366
    %2110 = vmatpush1.bf16.msra.mxu0 %v1365
    %2111 = vmatprep.subr.bf16.mxu0 %v1370
    %2112 = vmatpush1.bf16.msra.mxu0 %v1369
    %2113 = vmatprep.subr.bf16.mxu0 %v1374
    %2114 = vmatpush1.bf16.msra.mxu0 %v1373
    %2115 = vmatprep.subr.bf16.mxu0 %v1378
    %2116 = vmatpush1.bf16.msra.mxu0 %v1377
    %2117 = vmatprep.subr.bf16.mxu0 %v1382
    %2118 = vmatpush1.bf16.msra.mxu0 %v1381
    %2119 = vmatprep.subr.bf16.mxu0 %v1386
    %2120 = vmatpush1.bf16.msra.mxu0 %v1385
    %2121 = vmatprep.subr.bf16.mxu0 %v1390
    %2122 = vmatpush1.bf16.msra.mxu0 %v1389
    %2123 = vmatprep.subr.bf16.mxu0 %v1394
    %2124 = vmatpush1.bf16.msra.mxu0 %v1393
    %2125 = vmatprep.subr.bf16.mxu0 %v1398
    %2126 = vmatpush1.bf16.msra.mxu0 %v1397
    %2127 = vmatprep.subr.bf16.mxu0 %v1402
    %2128 = vmatpush1.bf16.msra.mxu0 %v1401
    %2129 = vmatprep.mubr.bf16.mxu0 %v488
    %2130 = vmatmul.mubr.bf16.gmra.mrb[0].mxu0 %v487
    %v2131 = vpop.f32.mrb[0].mxu0
    %v2132 = vadd.f32 %v2059, %v2131
    %v2133 = vpop.f32.mrb[0].mxu0
    %v2134 = vadd.f32 %v2061, %v2133
    %v2135 = vpop.f32.mrb[0].mxu0
    %v2136 = vadd.f32 %v2063, %v2135
    %v2137 = vpop.f32.mrb[0].mxu0
    %v2138 = vadd.f32 %v2065, %v2137
    %2139 = vmatprep.mubr.bf16.mxu0 %v495
    %2140 = vmatmul.mubr.bf16.gmra.mrb[0].mxu0 %v494
    %v2141 = vpop.f32.mrb[0].mxu0
    %v2142 = vadd.f32 %v2069, %v2141
    %v2143 = vpop.f32.mrb[0].mxu0
    %v2144 = vadd.f32 %v2071, %v2143
    %v2145 = vpop.f32.mrb[0].mxu0
    %v2146 = vadd.f32 %v2073, %v2145
    %v2147 = vpop.f32.mrb[0].mxu0
    %v2148 = vadd.f32 %v2075, %v2147
    %2149 = vmatprep.mubr.bf16.mxu0 %v502
    %2150 = vmatmul.mubr.bf16.gmra.mrb[0].mxu0 %v501
    %v2151 = vpop.f32.mrb[0].mxu0
    %v2152 = vadd.f32 %v2079, %v2151
    %v2153 = vpop.f32.mrb[0].mxu0
    %v2154 = vadd.f32 %v2081, %v2153
    %v2155 = vpop.f32.mrb[0].mxu0
    %v2156 = vadd.f32 %v2083, %v2155
    %v2157 = vpop.f32.mrb[0].mxu0
    %v2158 = vadd.f32 %v2085, %v2157
    %2159 = vmatprep.mubr.bf16.mxu0 %v509
    %2160 = vmatmul.mubr.bf16.gmra.mrb[0].mxu0 %v508
    %v2161 = vpop.f32.mrb[0].mxu0
    %v2162 = vadd.f32 %v2089, %v2161
    %v2163 = vpop.f32.mrb[0].mxu0
    %v2164 = vadd.f32 %v2091, %v2163
    %v2165 = vpop.f32.mrb[0].mxu0
    %v2166 = vadd.f32 %v2093, %v2165
    %v2167 = vpop.f32.mrb[0].mxu0
    %v2168 = vadd.f32 %v2095, %v2167
    %2169 = vdwg.mxu0
    %2170 = vmatprep.subr.bf16.mxu0 %v1406
    %2171 = vmatpush1.bf16.msra.mxu0 %v1405
    %2172 = vmatprep.subr.bf16.mxu0 %v1410
    %2173 = vmatpush1.bf16.msra.mxu0 %v1409
    %2174 = vmatprep.subr.bf16.mxu0 %v1414
    %2175 = vmatpush1.bf16.msra.mxu0 %v1413
    %2176 = vmatprep.subr.bf16.mxu0 %v1418
    %2177 = vmatpush1.bf16.msra.mxu0 %v1417
    %2178 = vmatprep.subr.bf16.mxu0 %v1422
    %2179 = vmatpush1.bf16.msra.mxu0 %v1421
    %2180 = vmatprep.subr.bf16.mxu0 %v1426
    %2181 = vmatpush1.bf16.msra.mxu0 %v1425
    %2182 = vmatprep.subr.bf16.mxu0 %v1430
    %2183 = vmatpush1.bf16.msra.mxu0 %v1429
    %2184 = vmatprep.subr.bf16.mxu0 %v1434
    %2185 = vmatpush1.bf16.msra.mxu0 %v1433
    %2186 = vmatprep.subr.bf16.mxu0 0
    %2187 = vmatpush1.bf16.msra.mxu0 0
    %2188 = vmatprep.subr.bf16.mxu0 0
    %2189 = vmatpush1.bf16.msra.mxu0 0
    %2190 = vmatprep.subr.bf16.mxu0 0
    %2191 = vmatpush1.bf16.msra.mxu0 0
    %2192 = vmatprep.subr.bf16.mxu0 0
    %2193 = vmatpush1.bf16.msra.mxu0 0
    %2194 = vmatprep.subr.bf16.mxu0 0
    %2195 = vmatpush1.bf16.msra.mxu0 0
    %2196 = vmatprep.subr.bf16.mxu0 0
    %2197 = vmatpush1.bf16.msra.mxu0 0
    %2198 = vmatprep.subr.bf16.mxu0 0
    %2199 = vmatpush1.bf16.msra.mxu0 0
    %2200 = vmatprep.subr.bf16.mxu0 0
    %2201 = vmatpush1.bf16.msra.mxu0 0
    %2202 = vmatprep.mubr.bf16.mxu0 0
    %2203 = vmatmul.mubr.bf16.gmra.mrb[0].mxu0 %v489
    %v2204 = vpop.f32.mrb[0].mxu0
    %v2205 = vadd.f32 %v2132, %v2204
    %v2206 = vpop.f32.mrb[0].mxu0
    %v2207 = vadd.f32 %v2134, %v2206
    %v2208 = vpop.f32.mrb[0].mxu0
    %v2209 = vadd.f32 %v2136, %v2208
    %v2210 = vpop.f32.mrb[0].mxu0
    %v2211 = vadd.f32 %v2138, %v2210
    %2212 = vmatprep.mubr.bf16.mxu0 0
    %2213 = vmatmul.mubr.bf16.gmra.mrb[0].mxu0 %v496
    %v2214 = vpop.f32.mrb[0].mxu0
    %v2215 = vadd.f32 %v2142, %v2214
    %v2216 = vpop.f32.mrb[0].mxu0
    %v2217 = vadd.f32 %v2144, %v2216
    %v2218 = vpop.f32.mrb[0].mxu0
    %v2219 = vadd.f32 %v2146, %v2218
    %v2220 = vpop.f32.mrb[0].mxu0
    %v2221 = vadd.f32 %v2148, %v2220
    %2222 = vmatprep.mubr.bf16.mxu0 0
    %2223 = vmatmul.mubr.bf16.gmra.mrb[0].mxu0 %v503
    %v2224 = vpop.f32.mrb[0].mxu0
    %v2225 = vadd.f32 %v2152, %v2224
    %v2226 = vpop.f32.mrb[0].mxu0
    %v2227 = vadd.f32 %v2154, %v2226
    %v2228 = vpop.f32.mrb[0].mxu0
    %v2229 = vadd.f32 %v2156, %v2228
    %v2230 = vpop.f32.mrb[0].mxu0
    %v2231 = vadd.f32 %v2158, %v2230
    %2232 = vmatprep.mubr.bf16.mxu0 0
    %2233 = vmatmul.mubr.bf16.gmra.mrb[0].mxu0 %v510
    %v2234 = vpop.f32.mrb[0].mxu0
    %v2235 = vadd.f32 %v2162, %v2234
    %v2236 = vpop.f32.mrb[0].mxu0
    %v2237 = vadd.f32 %v2164, %v2236
    %v2238 = vpop.f32.mrb[0].mxu0
    %v2239 = vadd.f32 %v2166, %v2238
    %v2240 = vpop.f32.mrb[0].mxu0
    %v2241 = vadd.f32 %v2168, %v2240
    %2242 = vdwg.mxu0
    %v2243 = vmul.f32 %v1913, 0.01
    %v2244 = vmul.f32 %v1915, 0.01
    %v2245 = vmul.f32 %v2205, 0.01
    %v2246 = vmul.f32 %v2207, 0.01
    %v2247 = vmul.f32 %v1917, 0.01
    %v2248 = vmul.f32 %v1919, 0.01
    %v2249 = vmul.f32 %v2209, 0.01
    %v2250 = vmul.f32 %v2211, 0.01
    %v2251 = vmul.f32 %v1923, 0.01
    %v2252 = vmul.f32 %v1925, 0.01
    %v2253 = vmul.f32 %v2215, 0.01
    %v2254 = vmul.f32 %v2217, 0.01
    %v2255 = vmul.f32 %v1927, 0.01
    %v2256 = vmul.f32 %v1929, 0.01
    %v2257 = vmul.f32 %v2219, 0.01
    %v2258 = vmul.f32 %v2221, 0.01
    %v2259 = vmul.f32 %v1933, 0.01
    %v2260 = vmul.f32 %v1935, 0.01
    %v2261 = vmul.f32 %v2225, 0.01
    %v2262 = vmul.f32 %v2227, 0.01
    %v2263 = vmul.f32 %v1937, 0.01
    %v2264 = vmul.f32 %v1939, 0.01
    %v2265 = vmul.f32 %v2229, 0.01
    %v2266 = vmul.f32 %v2231, 0.01
    %v2267 = vmul.f32 %v1943, 0.01
    %v2268 = vmul.f32 %v1945, 0.01
    %v2269 = vmul.f32 %v2235, 0.01
    %v2270 = vmul.f32 %v2237, 0.01
    %v2271 = vmul.f32 %v1947, 0.01
    %v2272 = vmul.f32 %v1949, 0.01
    %v2273 = vmul.f32 %v2239, 0.01
    %v2274 = vmul.f32 %v2241, 0.01
    %v2275 = vmax.f32 %v1913, %v2243
    %v2276 = vmax.f32 %v1915, %v2244
    %v2277 = vmax.f32 %v2205, %v2245
    %v2278 = vmax.f32 %v2207, %v2246
    %v2279 = vmax.f32 %v1917, %v2247
    %v2280 = vmax.f32 %v1919, %v2248
    %v2281 = vmax.f32 %v2209, %v2249
    %v2282 = vmax.f32 %v2211, %v2250
    %v2283 = vmax.f32 %v1923, %v2251
    %v2284 = vmax.f32 %v1925, %v2252
    %v2285 = vmax.f32 %v2215, %v2253
    %v2286 = vmax.f32 %v2217, %v2254
    %v2287 = vmax.f32 %v1927, %v2255
    %v2288 = vmax.f32 %v1929, %v2256
    %v2289 = vmax.f32 %v2219, %v2257
    %v2290 = vmax.f32 %v2221, %v2258
    %v2291 = vmax.f32 %v1933, %v2259
    %v2292 = vmax.f32 %v1935, %v2260
    %v2293 = vmax.f32 %v2225, %v2261
    %v2294 = vmax.f32 %v2227, %v2262
    %v2295 = vmax.f32 %v1937, %v2263
    %v2296 = vmax.f32 %v1939, %v2264
    %v2297 = vmax.f32 %v2229, %v2265
    %v2298 = vmax.f32 %v2231, %v2266
    %v2299 = vmax.f32 %v1943, %v2267
    %v2300 = vmax.f32 %v1945, %v2268
    %v2301 = vmax.f32 %v2235, %v2269
    %v2302 = vmax.f32 %v2237, %v2270
    %v2303 = vmax.f32 %v1947, %v2271
    %v2304 = vmax.f32 %v1949, %v2272
    %v2305 = vmax.f32 %v2239, %v2273
    %v2306 = vmax.f32 %v2241, %v2274
    %v2307 = vpack.c.bf16 %v2279, %v2275
    %v2308 = vpack.c.bf16 %v2280, %v2276
    %v2309 = vpack.c.bf16 %v2281, %v2277
    %v2310 = vpack.c.bf16 %v2282, %v2278
    %v2311 = vpack.c.bf16 %v2287, %v2283
    %v2312 = vpack.c.bf16 %v2288, %v2284
    %v2313 = vpack.c.bf16 %v2289, %v2285
    %v2314 = vpack.c.bf16 %v2290, %v2286
    %v2315 = vpack.c.bf16 %v2295, %v2291
    %v2316 = vpack.c.bf16 %v2296, %v2292
    %v2317 = vpack.c.bf16 %v2297, %v2293
    %v2318 = vpack.c.bf16 %v2298, %v2294
    %v2319 = vpack.c.bf16 %v2303, %v2299
    %v2320 = vpack.c.bf16 %v2304, %v2300
    %v2321 = vpack.c.bf16 %v2305, %v2301
    %v2322 = vpack.c.bf16 %v2306, %v2302
    %v2323 = vld [vmem:[#allocation7] sm:$0xf]
    %v2324 = vld [vmem:[#allocation7 + $0x4] sm:$0xf]
    %v2325 = vld [vmem:[#allocation7 + $0x8] sm:$0xf]
    %v2326 = vld [vmem:[#allocation7 + $0xc] sm:$0xf]
    %v2327 = vld [vmem:[#allocation7 + $0x10] sm:$0xf]
    %v2328 = vld [vmem:[#allocation7 + $0x14] sm:$0xf]
    %v2329 = vld [vmem:[#allocation7 + $0x18] sm:$0xf]
    %v2330 = vld [vmem:[#allocation7 + $0x1c] sm:$0xf]
    %v2331 = vld [vmem:[#allocation7 + $0x20] sm:$0xf]
    %v2332 = vld [vmem:[#allocation7 + $0x24] sm:$0xf]
    %v2333 = vld [vmem:[#allocation7 + $0x28] sm:$0xf]
    %v2334 = vld [vmem:[#allocation7 + $0x2c] sm:$0xf]
    %v2335 = vld [vmem:[#allocation7 + $0x30] sm:$0xf]
    %v2336 = vld [vmem:[#allocation7 + $0x34] sm:$0xf]
    %v2337 = vld [vmem:[#allocation7 + $0x38] sm:$0xf]
    %v2338 = vld [vmem:[#allocation7 + $0x3c] sm:$0xf]
    %v2339 = vld [vmem:[#allocation7 + $0x40] sm:$0xf]
    %v2340 = vld [vmem:[#allocation7 + $0x44] sm:$0xf]
    %v2341 = vld [vmem:[#allocation7 + $0x48] sm:$0xf]
    %v2342 = vld [vmem:[#allocation7 + $0x4c] sm:$0xf]
    %v2343 = vld [vmem:[#allocation7 + $0x50] sm:$0xf]
    %v2344 = vld [vmem:[#allocation7 + $0x54] sm:$0xf]
    %v2345 = vld [vmem:[#allocation7 + $0x58] sm:$0xf]
    %v2346 = vld [vmem:[#allocation7 + $0x5c] sm:$0xf]
    %v2347 = vld [vmem:[#allocation7 + $0x60] sm:$0xf]
    %v2348 = vld [vmem:[#allocation7 + $0x64] sm:$0xf]
    %v2349 = vld [vmem:[#allocation7 + $0x68] sm:$0xf]
    %v2350 = vld [vmem:[#allocation7 + $0x6c] sm:$0xf]
    %v2351 = vld [vmem:[#allocation7 + $0x70] sm:$0xf]
    %v2352 = vld [vmem:[#allocation7 + $0x74] sm:$0xf]
    %v2353 = vld [vmem:[#allocation7 + $0x78] sm:$0xf]
    %v2354 = vld [vmem:[#allocation7 + $0x7c] sm:$0xf]
    %v2355 = vld [vmem:[#allocation7 + $0x80] sm:$0xf]
    %v2356 = vld [vmem:[#allocation7 + $0x84] sm:$0xf]
    %v2357 = vld [vmem:[#allocation7 + $0x88] sm:$0xf]
    %v2358 = vld [vmem:[#allocation7 + $0x8c] sm:$0xf]
    %v2359 = vld [vmem:[#allocation7 + $0x90] sm:$0xf]
    %v2360 = vld [vmem:[#allocation7 + $0x94] sm:$0xf]
    %v2361 = vld [vmem:[#allocation7 + $0x98] sm:$0xf]
    %v2362 = vld [vmem:[#allocation7 + $0x9c] sm:$0xf]
    %v2363 = vld [vmem:[#allocation7 + $0xa0] sm:$0xf]
    %v2364 = vld [vmem:[#allocation7 + $0xa4] sm:$0xf]
    %v2365 = vld [vmem:[#allocation7 + $0xa8] sm:$0xf]
    %v2366 = vld [vmem:[#allocation7 + $0xac] sm:$0xf]
    %v2367 = vld [vmem:[#allocation7 + $0xb0] sm:$0xf]
    %v2368 = vld [vmem:[#allocation7 + $0xb4] sm:$0xf]
    %v2369 = vld [vmem:[#allocation7 + $0xb8] sm:$0xf]
    %v2370 = vld [vmem:[#allocation7 + $0xbc] sm:$0xf]
    %v2371 = vld [vmem:[#allocation7 + $0xc0] sm:$0xf]
    %v2372 = vld [vmem:[#allocation7 + $0xc4] sm:$0xf]
    %v2373 = vld [vmem:[#allocation7 + $0xc8] sm:$0xf]
    %v2374 = vld [vmem:[#allocation7 + $0xcc] sm:$0xf]
    %v2375 = vld [vmem:[#allocation7 + $0xd0] sm:$0xf]
    %v2376 = vld [vmem:[#allocation7 + $0xd4] sm:$0xf]
    %v2377 = vld [vmem:[#allocation7 + $0xd8] sm:$0xf]
    %v2378 = vld [vmem:[#allocation7 + $0xdc] sm:$0xf]
    %v2379 = vld [vmem:[#allocation7 + $0xe0] sm:$0xf]
    %v2380 = vld [vmem:[#allocation7 + $0xe4] sm:$0xf]
    %v2381 = vld [vmem:[#allocation7 + $0xe8] sm:$0xf]
    %v2382 = vld [vmem:[#allocation7 + $0xec] sm:$0xf]
    %v2383 = vld [vmem:[#allocation7 + $0xf0] sm:$0xf]
    %v2384 = vld [vmem:[#allocation7 + $0xf4] sm:$0xf]
    %v2385 = vld [vmem:[#allocation7 + $0xf8] sm:$0xf]
    %v2386 = vld [vmem:[#allocation7 + $0xfc] sm:$0xf]
    %v2387 = vld [vmem:[#allocation8] sm:$0x1]
    %v2389 = vlaneseq
    %v2390 = vshrl.u32 %v2389, 7
    %v2391 = vsub.s32 0, %v2390
    %v2392 = vrot.slane %v2387, %v2391
    %v2458 = vunpack.c.l.b16 %v2323
    %v2459 = vunpack.c.l.b16 %v2324
    %v2460 = vunpack.c.l.b16 %v2325
    %v2461 = vunpack.c.l.b16 %v2326
    %v2462 = vunpack.c.l.b16 %v2327
    %v2463 = vunpack.c.l.b16 %v2328
    %v2464 = vunpack.c.l.b16 %v2329
    %v2465 = vunpack.c.l.b16 %v2330
    %v2466 = vunpack.c.l.b16 %v2331
    %v2467 = vunpack.c.l.b16 %v2332
    %v2468 = vunpack.c.l.b16 %v2333
    %v2469 = vunpack.c.l.b16 %v2334
    %v2470 = vunpack.c.l.b16 %v2335
    %v2471 = vunpack.c.l.b16 %v2336
    %v2472 = vunpack.c.l.b16 %v2337
    %v2473 = vunpack.c.l.b16 %v2338
    %v2474 = vunpack.c.l.b16 %v2339
    %v2475 = vunpack.c.l.b16 %v2340
    %v2476 = vunpack.c.l.b16 %v2341
    %v2477 = vunpack.c.l.b16 %v2342
    %v2478 = vunpack.c.l.b16 %v2343
    %v2479 = vunpack.c.l.b16 %v2344
    %v2480 = vunpack.c.l.b16 %v2345
    %v2481 = vunpack.c.l.b16 %v2346
    %v2482 = vunpack.c.l.b16 %v2347
    %v2483 = vunpack.c.l.b16 %v2348
    %v2484 = vunpack.c.l.b16 %v2349
    %v2485 = vunpack.c.l.b16 %v2350
    %v2486 = vunpack.c.l.b16 %v2351
    %v2487 = vunpack.c.l.b16 %v2352
    %v2488 = vunpack.c.l.b16 %v2353
    %v2489 = vunpack.c.l.b16 %v2354
    %v2490 = vunpack.c.l.b16 %v2355
    %v2491 = vunpack.c.l.b16 %v2356
    %v2492 = vunpack.c.l.b16 %v2357
    %v2493 = vunpack.c.l.b16 %v2358
    %v2494 = vunpack.c.l.b16 %v2359
    %v2495 = vunpack.c.l.b16 %v2360
    %v2496 = vunpack.c.l.b16 %v2361
    %v2497 = vunpack.c.l.b16 %v2362
    %v2498 = vunpack.c.l.b16 %v2363
    %v2499 = vunpack.c.l.b16 %v2364
    %v2500 = vunpack.c.l.b16 %v2365
    %v2501 = vunpack.c.l.b16 %v2366
    %v2502 = vunpack.c.l.b16 %v2367
    %v2503 = vunpack.c.l.b16 %v2368
    %v2504 = vunpack.c.l.b16 %v2369
    %v2505 = vunpack.c.l.b16 %v2370
    %v2506 = vunpack.c.l.b16 %v2371
    %v2507 = vunpack.c.l.b16 %v2372
    %v2508 = vunpack.c.l.b16 %v2373
    %v2509 = vunpack.c.l.b16 %v2374
    %v2510 = vunpack.c.l.b16 %v2375
    %v2511 = vunpack.c.l.b16 %v2376
    %v2512 = vunpack.c.l.b16 %v2377
    %v2513 = vunpack.c.l.b16 %v2378
    %v2514 = vunpack.c.l.b16 %v2379
    %v2515 = vunpack.c.l.b16 %v2380
    %v2516 = vunpack.c.l.b16 %v2381
    %v2517 = vunpack.c.l.b16 %v2382
    %v2518 = vunpack.c.l.b16 %v2383
    %v2519 = vunpack.c.l.b16 %v2384
    %v2520 = vunpack.c.l.b16 %v2385
    %v2521 = vunpack.c.l.b16 %v2386
    %v2522 = vpack.c.b16 %v2459, %v2458
    %v2523 = vpack.c.b16 %v2461, %v2460
    %v2524 = vpack.c.b16 %v2463, %v2462
    %v2525 = vpack.c.b16 %v2465, %v2464
    %v2526 = vpack.c.b16 %v2467, %v2466
    %v2527 = vpack.c.b16 %v2469, %v2468
    %v2528 = vpack.c.b16 %v2471, %v2470
    %v2529 = vpack.c.b16 %v2473, %v2472
    %v2530 = vpack.c.b16 %v2475, %v2474
    %v2531 = vpack.c.b16 %v2477, %v2476
    %v2532 = vpack.c.b16 %v2479, %v2478
    %v2533 = vpack.c.b16 %v2481, %v2480
    %v2534 = vpack.c.b16 %v2483, %v2482
    %v2535 = vpack.c.b16 %v2485, %v2484
    %v2536 = vpack.c.b16 %v2487, %v2486
    %v2537 = vpack.c.b16 %v2489, %v2488
    %v2538 = vpack.c.b16 %v2491, %v2490
    %v2539 = vpack.c.b16 %v2493, %v2492
    %v2540 = vpack.c.b16 %v2495, %v2494
    %v2541 = vpack.c.b16 %v2497, %v2496
    %v2542 = vpack.c.b16 %v2499, %v2498
    %v2543 = vpack.c.b16 %v2501, %v2500
    %v2544 = vpack.c.b16 %v2503, %v2502
    %v2545 = vpack.c.b16 %v2505, %v2504
    %v2546 = vpack.c.b16 %v2507, %v2506
    %v2547 = vpack.c.b16 %v2509, %v2508
    %v2548 = vpack.c.b16 %v2511, %v2510
    %v2549 = vpack.c.b16 %v2513, %v2512
    %v2550 = vpack.c.b16 %v2515, %v2514
    %v2551 = vpack.c.b16 %v2517, %v2516
    %v2552 = vpack.c.b16 %v2519, %v2518
    %v2553 = vpack.c.b16 %v2521, %v2520
    %2586 = vmatprep.subr.bf16.mxu0 0
    %2587 = vmatpush1.bf16.msra.mxu0 %v2522
    %2588 = vmatprep.subr.bf16.mxu0 0
    %2589 = vmatpush1.bf16.msra.mxu0 %v2523
    %2590 = vmatprep.subr.bf16.mxu0 0
    %2591 = vmatpush1.bf16.msra.mxu0 %v2524
    %2592 = vmatprep.subr.bf16.mxu0 0
    %2593 = vmatpush1.bf16.msra.mxu0 %v2525
    %2594 = vmatprep.subr.bf16.mxu0 0
    %2595 = vmatpush1.bf16.msra.mxu0 %v2526
    %2596 = vmatprep.subr.bf16.mxu0 0
    %2597 = vmatpush1.bf16.msra.mxu0 %v2527
    %2598 = vmatprep.subr.bf16.mxu0 0
    %2599 = vmatpush1.bf16.msra.mxu0 %v2528
    %2600 = vmatprep.subr.bf16.mxu0 0
    %2601 = vmatpush1.bf16.msra.mxu0 %v2529
    %2602 = vmatprep.subr.bf16.mxu0 0
    %2603 = vmatpush1.bf16.msra.mxu0 %v2530
    %2604 = vmatprep.subr.bf16.mxu0 0
    %2605 = vmatpush1.bf16.msra.mxu0 %v2531
    %2606 = vmatprep.subr.bf16.mxu0 0
    %2607 = vmatpush1.bf16.msra.mxu0 %v2532
    %2608 = vmatprep.subr.bf16.mxu0 0
    %2609 = vmatpush1.bf16.msra.mxu0 %v2533
    %2610 = vmatprep.subr.bf16.mxu0 0
    %2611 = vmatpush1.bf16.msra.mxu0 %v2534
    %2612 = vmatprep.subr.bf16.mxu0 0
    %2613 = vmatpush1.bf16.msra.mxu0 %v2535
    %2614 = vmatprep.subr.bf16.mxu0 0
    %2615 = vmatpush1.bf16.msra.mxu0 %v2536
    %2616 = vmatprep.subr.bf16.mxu0 0
    %2617 = vmatpush1.bf16.msra.mxu0 %v2537
    %2618 = vmatprep.mubr.bf16.mxu0 %v2308
    %2619 = vmatmul.mubr.bf16.gmra.mrb[0].mxu0 %v2307
    %v2620 = vpop.f32.mrb[0].mxu0
    %v2621 = vadd.f32 %v2392, %v2620
    %v2622 = vpop.f32.mrb[0].mxu0
    %v2623 = vpop.f32.mrb[0].mxu0
    %v2624 = vadd.f32 %v2392, %v2623
    %v2625 = vpop.f32.mrb[0].mxu0
    %2626 = vmatprep.mubr.bf16.mxu0 %v2312
    %2627 = vmatmul.mubr.bf16.gmra.mrb[0].mxu0 %v2311
    %v2628 = vpop.f32.mrb[0].mxu0
    %v2629 = vadd.f32 %v2392, %v2628
    %v2630 = vpop.f32.mrb[0].mxu0
    %v2631 = vpop.f32.mrb[0].mxu0
    %v2632 = vadd.f32 %v2392, %v2631
    %v2633 = vpop.f32.mrb[0].mxu0
    %2634 = vmatprep.mubr.bf16.mxu0 %v2316
    %2635 = vmatmul.mubr.bf16.gmra.mrb[0].mxu0 %v2315
    %v2636 = vpop.f32.mrb[0].mxu0
    %v2637 = vadd.f32 %v2392, %v2636
    %v2638 = vpop.f32.mrb[0].mxu0
    %v2639 = vpop.f32.mrb[0].mxu0
    %v2640 = vadd.f32 %v2392, %v2639
    %v2641 = vpop.f32.mrb[0].mxu0
    %2642 = vmatprep.mubr.bf16.mxu0 %v2320
    %2643 = vmatmul.mubr.bf16.gmra.mrb[0].mxu0 %v2319
    %v2644 = vpop.f32.mrb[0].mxu0
    %v2645 = vadd.f32 %v2392, %v2644
    %v2646 = vpop.f32.mrb[0].mxu0
    %v2647 = vpop.f32.mrb[0].mxu0
    %v2648 = vadd.f32 %v2392, %v2647
    %v2649 = vpop.f32.mrb[0].mxu0
    %2650 = vdwg.mxu0
    %2651 = vmatprep.subr.bf16.mxu0 0
    %2652 = vmatpush1.bf16.msra.mxu0 %v2538
    %2653 = vmatprep.subr.bf16.mxu0 0
    %2654 = vmatpush1.bf16.msra.mxu0 %v2539
    %2655 = vmatprep.subr.bf16.mxu0 0
    %2656 = vmatpush1.bf16.msra.mxu0 %v2540
    %2657 = vmatprep.subr.bf16.mxu0 0
    %2658 = vmatpush1.bf16.msra.mxu0 %v2541
    %2659 = vmatprep.subr.bf16.mxu0 0
    %2660 = vmatpush1.bf16.msra.mxu0 %v2542
    %2661 = vmatprep.subr.bf16.mxu0 0
    %2662 = vmatpush1.bf16.msra.mxu0 %v2543
    %2663 = vmatprep.subr.bf16.mxu0 0
    %2664 = vmatpush1.bf16.msra.mxu0 %v2544
    %2665 = vmatprep.subr.bf16.mxu0 0
    %2666 = vmatpush1.bf16.msra.mxu0 %v2545
    %2667 = vmatprep.subr.bf16.mxu0 0
    %2668 = vmatpush1.bf16.msra.mxu0 %v2546
    %2669 = vmatprep.subr.bf16.mxu0 0
    %2670 = vmatpush1.bf16.msra.mxu0 %v2547
    %2671 = vmatprep.subr.bf16.mxu0 0
    %2672 = vmatpush1.bf16.msra.mxu0 %v2548
    %2673 = vmatprep.subr.bf16.mxu0 0
    %2674 = vmatpush1.bf16.msra.mxu0 %v2549
    %2675 = vmatprep.subr.bf16.mxu0 0
    %2676 = vmatpush1.bf16.msra.mxu0 %v2550
    %2677 = vmatprep.subr.bf16.mxu0 0
    %2678 = vmatpush1.bf16.msra.mxu0 %v2551
    %2679 = vmatprep.subr.bf16.mxu0 0
    %2680 = vmatpush1.bf16.msra.mxu0 %v2552
    %2681 = vmatprep.subr.bf16.mxu0 0
    %2682 = vmatpush1.bf16.msra.mxu0 %v2553
    %2683 = vmatprep.mubr.bf16.mxu0 %v2310
    %2684 = vmatmul.mubr.bf16.gmra.mrb[0].mxu0 %v2309
    %v2685 = vpop.f32.mrb[0].mxu0
    %v2686 = vadd.f32 %v2621, %v2685
    %v2687 = vpop.f32.mrb[0].mxu0
    %v2688 = vpop.f32.mrb[0].mxu0
    %v2689 = vadd.f32 %v2624, %v2688
    %v2690 = vpop.f32.mrb[0].mxu0
    %2691 = vmatprep.mubr.bf16.mxu0 %v2314
    %2692 = vmatmul.mubr.bf16.gmra.mrb[0].mxu0 %v2313
    %v2693 = vpop.f32.mrb[0].mxu0
    %v2694 = vadd.f32 %v2629, %v2693
    %v2695 = vpop.f32.mrb[0].mxu0
    %v2696 = vpop.f32.mrb[0].mxu0
    %v2697 = vadd.f32 %v2632, %v2696
    %v2698 = vpop.f32.mrb[0].mxu0
    %2699 = vmatprep.mubr.bf16.mxu0 %v2318
    %2700 = vmatmul.mubr.bf16.gmra.mrb[0].mxu0 %v2317
    %v2701 = vpop.f32.mrb[0].mxu0
    %v2702 = vadd.f32 %v2637, %v2701
    %v2703 = vpop.f32.mrb[0].mxu0
    %v2704 = vpop.f32.mrb[0].mxu0
    %v2705 = vadd.f32 %v2640, %v2704
    %v2706 = vpop.f32.mrb[0].mxu0
    %2707 = vmatprep.mubr.bf16.mxu0 %v2322
    %2708 = vmatmul.mubr.bf16.gmra.mrb[0].mxu0 %v2321
    %v2709 = vpop.f32.mrb[0].mxu0
    %v2710 = vadd.f32 %v2645, %v2709
    %v2711 = vpop.f32.mrb[0].mxu0
    %v2712 = vpop.f32.mrb[0].mxu0
    %v2713 = vadd.f32 %v2648, %v2712
    %v2714 = vpop.f32.mrb[0].mxu0
    %2715 = vdwg.mxu0
    %v2716 = vmul.f32 %v2686, 0.01
    %v2717 = vmul.f32 %v2689, 0.01
    %v2718 = vmul.f32 %v2694, 0.01
    %v2719 = vmul.f32 %v2697, 0.01
    %v2720 = vmul.f32 %v2702, 0.01
    %v2721 = vmul.f32 %v2705, 0.01
    %v2722 = vmul.f32 %v2710, 0.01
    %v2723 = vmul.f32 %v2713, 0.01
    %v2724 = vmax.f32 %v2686, %v2716
    %v2725 = vmax.f32 %v2689, %v2717
    %v2726 = vmax.f32 %v2694, %v2718
    %v2727 = vmax.f32 %v2697, %v2719
    %v2728 = vmax.f32 %v2702, %v2720
    %v2729 = vmax.f32 %v2705, %v2721
    %v2730 = vmax.f32 %v2710, %v2722
    %v2731 = vmax.f32 %v2713, %v2723
    %v2732 = vpack.c.bf16 %v2725, %v2724
    %v2733 = vpack.c.bf16 %v2727, %v2726
    %v2734 = vpack.c.bf16 %v2729, %v2728
    %v2735 = vpack.c.bf16 %v2731, %v2730
    %v2740 = vunpack.c.l.b16 %v2732
    %v2741 = vunpack.c.h.b16 %v2732
    %v2742 = vunpack.c.l.b16 %v2733
    %v2743 = vunpack.c.h.b16 %v2733
    %v2744 = vunpack.c.l.b16 %v2734
    %v2745 = vunpack.c.h.b16 %v2734
    %v2746 = vunpack.c.l.b16 %v2735
    %v2747 = vunpack.c.h.b16 %v2735
    %v2748 = vpack.c.b16 %v2740, %v2740
    %v2749 = vpack.c.b16 %v2741, %v2741
    %v2750 = vpack.c.b16 %v2742, %v2742
    %v2751 = vpack.c.b16 %v2743, %v2743
    %v2752 = vpack.c.b16 %v2744, %v2744
    %v2753 = vpack.c.b16 %v2745, %v2745
    %v2754 = vpack.c.b16 %v2746, %v2746
    %v2755 = vpack.c.b16 %v2747, %v2747
    %2764 = vst [vmem:[#allocation14] sm:$0xf] %v2748
    %2765 = vst [vmem:[#allocation14 + $0x4] sm:$0xf] %v2749
    %2766 = vst [vmem:[#allocation14 + $0x8] sm:$0xf] %v2750
    %2767 = vst [vmem:[#allocation14 + $0xc] sm:$0xf] %v2751
    %2768 = vst [vmem:[#allocation14 + $0x10] sm:$0xf] %v2752
    %2769 = vst [vmem:[#allocation14 + $0x14] sm:$0xf] %v2753
    %2770 = vst [vmem:[#allocation14 + $0x18] sm:$0xf] %v2754
    %2771 = vst [vmem:[#allocation14 + $0x1c] sm:$0xf] %v2755
    %v2772 = vld [vmem:[#allocation10] sm:$0xff]
    %v2773 = vld [vmem:[#allocation10 + $0x8] sm:$0xff]
    %v2774 = vld [vmem:[#allocation10 + $0x10] sm:$0xff]
    %v2775 = vld [vmem:[#allocation10 + $0x18] sm:$0xff]
    %v2776 = vld [vmem:[#allocation10 + $0x20] sm:$0xff]
    %v2777 = vld [vmem:[#allocation10 + $0x28] sm:$0xff]
    %v2778 = vld [vmem:[#allocation10 + $0x30] sm:$0xff]
    %v2779 = vld [vmem:[#allocation10 + $0x38] sm:$0xff]
    %v2780 = vld [vmem:[#allocation10 + $0x40] sm:$0xff]
    %v2781 = vld [vmem:[#allocation10 + $0x48] sm:$0xff]
    %v2782 = vld [vmem:[#allocation10 + $0x50] sm:$0xff]
    %v2783 = vld [vmem:[#allocation10 + $0x58] sm:$0xff]
    %v2784 = vld [vmem:[#allocation10 + $0x60] sm:$0xff]
    %v2785 = vld [vmem:[#allocation10 + $0x68] sm:$0xff]
    %v2786 = vld [vmem:[#allocation10 + $0x70] sm:$0xff]
    %v2787 = vld [vmem:[#allocation10 + $0x78] sm:$0xff]
    %v2788 = vld [vmem:[#allocation10 + $0x80] sm:$0xff]
    %v2789 = vld [vmem:[#allocation10 + $0x88] sm:$0xff]
    %v2790 = vld [vmem:[#allocation10 + $0x90] sm:$0xff]
    %v2791 = vld [vmem:[#allocation10 + $0x98] sm:$0xff]
    %v2792 = vld [vmem:[#allocation10 + $0xa0] sm:$0xff]
    %v2793 = vld [vmem:[#allocation10 + $0xa8] sm:$0xff]
    %v2794 = vld [vmem:[#allocation10 + $0xb0] sm:$0xff]
    %v2795 = vld [vmem:[#allocation10 + $0xb8] sm:$0xff]
    %v2796 = vld [vmem:[#allocation10 + $0xc0] sm:$0xff]
    %v2797 = vld [vmem:[#allocation10 + $0xc8] sm:$0xff]
    %v2798 = vld [vmem:[#allocation10 + $0xd0] sm:$0xff]
    %v2799 = vld [vmem:[#allocation10 + $0xd8] sm:$0xff]
    %v2800 = vld [vmem:[#allocation10 + $0xe0] sm:$0xff]
    %v2801 = vld [vmem:[#allocation10 + $0xe8] sm:$0xff]
    %v2802 = vld [vmem:[#allocation10 + $0xf0] sm:$0xff]
    %v2803 = vld [vmem:[#allocation10 + $0xf8] sm:$0xff]
    %v2804 = vld [vmem:[%s6] sm:$0xf]
    %v2806 = vlaneseq
    %v2807 = vshrl.u32 %v2806, 7
    %v2808 = vsub.s32 0, %v2807
    %v2809 = vrot.slane %v2804, %v2808
    %v2810 = vlaneseq
    %v2811 = vshrl.u32 %v2810, 7
    %v2812 = vsub.s32 1, %v2811
    %v2813 = vrot.slane %v2804, %v2812
    %v2814 = vlaneseq
    %v2815 = vshrl.u32 %v2814, 7
    %v2816 = vsub.s32 2, %v2815
    %v2817 = vrot.slane %v2804, %v2816
    %v2818 = vlaneseq
    %v2819 = vshrl.u32 %v2818, 7
    %v2820 = vsub.s32 3, %v2819
    %v2821 = vrot.slane %v2804, %v2820
    %v2858 = vunpack.c.l.b16 %v2772
    %v2859 = vunpack.c.h.b16 %v2772
    %v2860 = vunpack.c.l.b16 %v2773
    %v2861 = vunpack.c.h.b16 %v2773
    %v2862 = vunpack.c.l.b16 %v2774
    %v2863 = vunpack.c.h.b16 %v2774
    %v2864 = vunpack.c.l.b16 %v2775
    %v2865 = vunpack.c.h.b16 %v2775
    %v2866 = vunpack.c.l.b16 %v2776
    %v2867 = vunpack.c.h.b16 %v2776
    %v2868 = vunpack.c.l.b16 %v2777
    %v2869 = vunpack.c.h.b16 %v2777
    %v2870 = vunpack.c.l.b16 %v2778
    %v2871 = vunpack.c.h.b16 %v2778
    %v2872 = vunpack.c.l.b16 %v2779
    %v2873 = vunpack.c.h.b16 %v2779
    %v2874 = vunpack.c.l.b16 %v2780
    %v2875 = vunpack.c.h.b16 %v2780
    %v2876 = vunpack.c.l.b16 %v2781
    %v2877 = vunpack.c.h.b16 %v2781
    %v2878 = vunpack.c.l.b16 %v2782
    %v2879 = vunpack.c.h.b16 %v2782
    %v2880 = vunpack.c.l.b16 %v2783
    %v2881 = vunpack.c.h.b16 %v2783
    %v2882 = vunpack.c.l.b16 %v2784
    %v2883 = vunpack.c.h.b16 %v2784
    %v2884 = vunpack.c.l.b16 %v2785
    %v2885 = vunpack.c.h.b16 %v2785
    %v2886 = vunpack.c.l.b16 %v2786
    %v2887 = vunpack.c.h.b16 %v2786
    %v2888 = vunpack.c.l.b16 %v2787
    %v2889 = vunpack.c.h.b16 %v2787
    %v2890 = vunpack.c.l.b16 %v2788
    %v2891 = vunpack.c.h.b16 %v2788
    %v2892 = vunpack.c.l.b16 %v2789
    %v2893 = vunpack.c.h.b16 %v2789
    %v2894 = vunpack.c.l.b16 %v2790
    %v2895 = vunpack.c.h.b16 %v2790
    %v2896 = vunpack.c.l.b16 %v2791
    %v2897 = vunpack.c.h.b16 %v2791
    %v2898 = vunpack.c.l.b16 %v2792
    %v2899 = vunpack.c.h.b16 %v2792
    %v2900 = vunpack.c.l.b16 %v2793
    %v2901 = vunpack.c.h.b16 %v2793
    %v2902 = vunpack.c.l.b16 %v2794
    %v2903 = vunpack.c.h.b16 %v2794
    %v2904 = vunpack.c.l.b16 %v2795
    %v2905 = vunpack.c.h.b16 %v2795
    %v2906 = vunpack.c.l.b16 %v2796
    %v2907 = vunpack.c.h.b16 %v2796
    %v2908 = vunpack.c.l.b16 %v2797
    %v2909 = vunpack.c.h.b16 %v2797
    %v2910 = vunpack.c.l.b16 %v2798
    %v2911 = vunpack.c.h.b16 %v2798
    %v2912 = vunpack.c.l.b16 %v2799
    %v2913 = vunpack.c.h.b16 %v2799
    %v2914 = vunpack.c.l.b16 %v2800
    %v2915 = vunpack.c.h.b16 %v2800
    %v2916 = vunpack.c.l.b16 %v2801
    %v2917 = vunpack.c.h.b16 %v2801
    %v2918 = vunpack.c.l.b16 %v2802
    %v2919 = vunpack.c.h.b16 %v2802
    %v2920 = vunpack.c.l.b16 %v2803
    %v2921 = vunpack.c.h.b16 %v2803
    %v2922 = vpack.c.b16 %v2862, %v2858
    %v2923 = vpack.c.b16 %v2863, %v2859
    %v2924 = vpack.c.b16 %v2864, %v2860
    %v2925 = vpack.c.b16 %v2865, %v2861
    %v2926 = vpack.c.b16 %v2870, %v2866
    %v2927 = vpack.c.b16 %v2871, %v2867
    %v2928 = vpack.c.b16 %v2872, %v2868
    %v2929 = vpack.c.b16 %v2873, %v2869
    %v2930 = vpack.c.b16 %v2878, %v2874
    %v2931 = vpack.c.b16 %v2879, %v2875
    %v2932 = vpack.c.b16 %v2880, %v2876
    %v2933 = vpack.c.b16 %v2881, %v2877
    %v2934 = vpack.c.b16 %v2886, %v2882
    %v2935 = vpack.c.b16 %v2887, %v2883
    %v2936 = vpack.c.b16 %v2888, %v2884
    %v2937 = vpack.c.b16 %v2889, %v2885
    %v2938 = vpack.c.b16 %v2894, %v2890
    %v2939 = vpack.c.b16 %v2895, %v2891
    %v2940 = vpack.c.b16 %v2896, %v2892
    %v2941 = vpack.c.b16 %v2897, %v2893
    %v2942 = vpack.c.b16 %v2902, %v2898
    %v2943 = vpack.c.b16 %v2903, %v2899
    %v2944 = vpack.c.b16 %v2904, %v2900
    %v2945 = vpack.c.b16 %v2905, %v2901
    %v2946 = vpack.c.b16 %v2910, %v2906
    %v2947 = vpack.c.b16 %v2911, %v2907
    %v2948 = vpack.c.b16 %v2912, %v2908
    %v2949 = vpack.c.b16 %v2913, %v2909
    %v2950 = vpack.c.b16 %v2918, %v2914
    %v2951 = vpack.c.b16 %v2919, %v2915
    %v2952 = vpack.c.b16 %v2920, %v2916
    %v2953 = vpack.c.b16 %v2921, %v2917
    %2986 = vmatprep.subr.bf16.mxu0 %v2923
    %2987 = vmatpush1.bf16.msra.mxu0 %v2922
    %2988 = vmatprep.subr.bf16.mxu0 %v2927
    %2989 = vmatpush1.bf16.msra.mxu0 %v2926
    %2990 = vmatprep.subr.bf16.mxu0 %v2931
    %2991 = vmatpush1.bf16.msra.mxu0 %v2930
    %2992 = vmatprep.subr.bf16.mxu0 %v2935
    %2993 = vmatpush1.bf16.msra.mxu0 %v2934
    %2994 = vmatprep.subr.bf16.mxu0 %v2939
    %2995 = vmatpush1.bf16.msra.mxu0 %v2938
    %2996 = vmatprep.subr.bf16.mxu0 %v2943
    %2997 = vmatpush1.bf16.msra.mxu0 %v2942
    %2998 = vmatprep.subr.bf16.mxu0 %v2947
    %2999 = vmatpush1.bf16.msra.mxu0 %v2946
    %3000 = vmatprep.subr.bf16.mxu0 %v2951
    %3001 = vmatpush1.bf16.msra.mxu0 %v2950
    %3002 = vmatprep.subr.bf16.mxu0 0
    %3003 = vmatpush1.bf16.msra.mxu0 0
    %3004 = vmatprep.subr.bf16.mxu0 0
    %3005 = vmatpush1.bf16.msra.mxu0 0
    %3006 = vmatprep.subr.bf16.mxu0 0
    %3007 = vmatpush1.bf16.msra.mxu0 0
    %3008 = vmatprep.subr.bf16.mxu0 0
    %3009 = vmatpush1.bf16.msra.mxu0 0
    %3010 = vmatprep.subr.bf16.mxu0 0
    %3011 = vmatpush1.bf16.msra.mxu0 0
    %3012 = vmatprep.subr.bf16.mxu0 0
    %3013 = vmatpush1.bf16.msra.mxu0 0
    %3014 = vmatprep.subr.bf16.mxu0 0
    %3015 = vmatpush1.bf16.msra.mxu0 0
    %3016 = vmatprep.subr.bf16.mxu0 0
    %3017 = vmatpush1.bf16.msra.mxu0 0
    %3018 = vmatprep.mubr.bf16.mxu0 0
    %3019 = vmatmul.mubr.bf16.gmra.mrb[0].mxu0 %v2732
    %v3020 = vpop.f32.mrb[0].mxu0
    %v3021 = vadd.f32 %v2809, %v3020
    %v3022 = vpop.f32.mrb[0].mxu0
    %v3023 = vadd.f32 %v2813, %v3022
    %v3024 = vpop.f32.mrb[0].mxu0
    %v3025 = vadd.f32 %v2809, %v3024
    %v3026 = vpop.f32.mrb[0].mxu0
    %v3027 = vadd.f32 %v2813, %v3026
    %3028 = vmatprep.mubr.bf16.mxu0 0
    %3029 = vmatmul.mubr.bf16.gmra.mrb[0].mxu0 %v2733
    %v3030 = vpop.f32.mrb[0].mxu0
    %v3031 = vadd.f32 %v2809, %v3030
    %v3032 = vpop.f32.mrb[0].mxu0
    %v3033 = vadd.f32 %v2813, %v3032
    %v3034 = vpop.f32.mrb[0].mxu0
    %v3035 = vadd.f32 %v2809, %v3034
    %v3036 = vpop.f32.mrb[0].mxu0
    %v3037 = vadd.f32 %v2813, %v3036
    %3038 = vmatprep.mubr.bf16.mxu0 0
    %3039 = vmatmul.mubr.bf16.gmra.mrb[0].mxu0 %v2734
    %v3040 = vpop.f32.mrb[0].mxu0
    %v3041 = vadd.f32 %v2809, %v3040
    %v3042 = vpop.f32.mrb[0].mxu0
    %v3043 = vadd.f32 %v2813, %v3042
    %v3044 = vpop.f32.mrb[0].mxu0
    %v3045 = vadd.f32 %v2809, %v3044
    %v3046 = vpop.f32.mrb[0].mxu0
    %v3047 = vadd.f32 %v2813, %v3046
    %3048 = vmatprep.mubr.bf16.mxu0 0
    %3049 = vmatmul.mubr.bf16.gmra.mrb[0].mxu0 %v2735
    %v3050 = vpop.f32.mrb[0].mxu0
    %v3051 = vadd.f32 %v2809, %v3050
    %v3052 = vpop.f32.mrb[0].mxu0
    %v3053 = vadd.f32 %v2813, %v3052
    %v3054 = vpop.f32.mrb[0].mxu0
    %v3055 = vadd.f32 %v2809, %v3054
    %v3056 = vpop.f32.mrb[0].mxu0
    %v3057 = vadd.f32 %v2813, %v3056
    %3058 = vdwg.mxu0
    %3059 = vmatprep.subr.bf16.mxu0 %v2925
    %3060 = vmatpush1.bf16.msra.mxu0 %v2924
    %3061 = vmatprep.subr.bf16.mxu0 %v2929
    %3062 = vmatpush1.bf16.msra.mxu0 %v2928
    %3063 = vmatprep.subr.bf16.mxu0 %v2933
    %3064 = vmatpush1.bf16.msra.mxu0 %v2932
    %3065 = vmatprep.subr.bf16.mxu0 %v2937
    %3066 = vmatpush1.bf16.msra.mxu0 %v2936
    %3067 = vmatprep.subr.bf16.mxu0 %v2941
    %3068 = vmatpush1.bf16.msra.mxu0 %v2940
    %3069 = vmatprep.subr.bf16.mxu0 %v2945
    %3070 = vmatpush1.bf16.msra.mxu0 %v2944
    %3071 = vmatprep.subr.bf16.mxu0 %v2949
    %3072 = vmatpush1.bf16.msra.mxu0 %v2948
    %3073 = vmatprep.subr.bf16.mxu0 %v2953
    %3074 = vmatpush1.bf16.msra.mxu0 %v2952
    %3075 = vmatprep.subr.bf16.mxu0 0
    %3076 = vmatpush1.bf16.msra.mxu0 0
    %3077 = vmatprep.subr.bf16.mxu0 0
    %3078 = vmatpush1.bf16.msra.mxu0 0
    %3079 = vmatprep.subr.bf16.mxu0 0
    %3080 = vmatpush1.bf16.msra.mxu0 0
    %3081 = vmatprep.subr.bf16.mxu0 0
    %3082 = vmatpush1.bf16.msra.mxu0 0
    %3083 = vmatprep.subr.bf16.mxu0 0
    %3084 = vmatpush1.bf16.msra.mxu0 0
    %3085 = vmatprep.subr.bf16.mxu0 0
    %3086 = vmatpush1.bf16.msra.mxu0 0
    %3087 = vmatprep.subr.bf16.mxu0 0
    %3088 = vmatpush1.bf16.msra.mxu0 0
    %3089 = vmatprep.subr.bf16.mxu0 0
    %3090 = vmatpush1.bf16.msra.mxu0 0
    %3091 = vmatprep.mubr.bf16.mxu0 0
    %3092 = vmatmul.mubr.bf16.gmra.mrb[0].mxu0 %v2732
    %v3093 = vpop.f32.mrb[0].mxu0
    %v3094 = vadd.f32 %v2817, %v3093
    %v3095 = vpop.f32.mrb[0].mxu0
    %v3096 = vadd.f32 %v2821, %v3095
    %v3097 = vpop.f32.mrb[0].mxu0
    %v3098 = vadd.f32 %v2817, %v3097
    %v3099 = vpop.f32.mrb[0].mxu0
    %v3100 = vadd.f32 %v2821, %v3099
    %3101 = vmatprep.mubr.bf16.mxu0 0
    %3102 = vmatmul.mubr.bf16.gmra.mrb[0].mxu0 %v2733
    %v3103 = vpop.f32.mrb[0].mxu0
    %v3104 = vadd.f32 %v2817, %v3103
    %v3105 = vpop.f32.mrb[0].mxu0
    %v3106 = vadd.f32 %v2821, %v3105
    %v3107 = vpop.f32.mrb[0].mxu0
    %v3108 = vadd.f32 %v2817, %v3107
    %v3109 = vpop.f32.mrb[0].mxu0
    %v3110 = vadd.f32 %v2821, %v3109
    %3111 = vmatprep.mubr.bf16.mxu0 0
    %3112 = vmatmul.mubr.bf16.gmra.mrb[0].mxu0 %v2734
    %v3113 = vpop.f32.mrb[0].mxu0
    %v3114 = vadd.f32 %v2817, %v3113
    %v3115 = vpop.f32.mrb[0].mxu0
    %v3116 = vadd.f32 %v2821, %v3115
    %v3117 = vpop.f32.mrb[0].mxu0
    %v3118 = vadd.f32 %v2817, %v3117
    %v3119 = vpop.f32.mrb[0].mxu0
    %v3120 = vadd.f32 %v2821, %v3119
    %3121 = vmatprep.mubr.bf16.mxu0 0
    %3122 = vmatmul.mubr.bf16.gmra.mrb[0].mxu0 %v2735
    %v3123 = vpop.f32.mrb[0].mxu0
    %v3124 = vadd.f32 %v2817, %v3123
    %v3125 = vpop.f32.mrb[0].mxu0
    %v3126 = vadd.f32 %v2821, %v3125
    %v3127 = vpop.f32.mrb[0].mxu0
    %v3128 = vadd.f32 %v2817, %v3127
    %v3129 = vpop.f32.mrb[0].mxu0
    %v3130 = vadd.f32 %v2821, %v3129
    %3131 = vdwg.mxu0
    %v3132 = vmul.f32 %v3021, 0.01
    %v3133 = vmul.f32 %v3023, 0.01
    %v3134 = vmul.f32 %v3094, 0.01
    %v3135 = vmul.f32 %v3096, 0.01
    %v3136 = vmul.f32 %v3025, 0.01
    %v3137 = vmul.f32 %v3027, 0.01
    %v3138 = vmul.f32 %v3098, 0.01
    %v3139 = vmul.f32 %v3100, 0.01
    %v3140 = vmul.f32 %v3031, 0.01
    %v3141 = vmul.f32 %v3033, 0.01
    %v3142 = vmul.f32 %v3104, 0.01
    %v3143 = vmul.f32 %v3106, 0.01
    %v3144 = vmul.f32 %v3035, 0.01
    %v3145 = vmul.f32 %v3037, 0.01
    %v3146 = vmul.f32 %v3108, 0.01
    %v3147 = vmul.f32 %v3110, 0.01
    %v3148 = vmul.f32 %v3041, 0.01
    %v3149 = vmul.f32 %v3043, 0.01
    %v3150 = vmul.f32 %v3114, 0.01
    %v3151 = vmul.f32 %v3116, 0.01
    %v3152 = vmul.f32 %v3045, 0.01
    %v3153 = vmul.f32 %v3047, 0.01
    %v3154 = vmul.f32 %v3118, 0.01
    %v3155 = vmul.f32 %v3120, 0.01
    %v3156 = vmul.f32 %v3051, 0.01
    %v3157 = vmul.f32 %v3053, 0.01
    %v3158 = vmul.f32 %v3124, 0.01
    %v3159 = vmul.f32 %v3126, 0.01
    %v3160 = vmul.f32 %v3055, 0.01
    %v3161 = vmul.f32 %v3057, 0.01
    %v3162 = vmul.f32 %v3128, 0.01
    %v3163 = vmul.f32 %v3130, 0.01
    %v3164 = vmax.f32 %v3021, %v3132
    %v3165 = vmax.f32 %v3023, %v3133
    %v3166 = vmax.f32 %v3094, %v3134
    %v3167 = vmax.f32 %v3096, %v3135
    %v3168 = vmax.f32 %v3025, %v3136
    %v3169 = vmax.f32 %v3027, %v3137
    %v3170 = vmax.f32 %v3098, %v3138
    %v3171 = vmax.f32 %v3100, %v3139
    %v3172 = vmax.f32 %v3031, %v3140
    %v3173 = vmax.f32 %v3033, %v3141
    %v3174 = vmax.f32 %v3104, %v3142
    %v3175 = vmax.f32 %v3106, %v3143
    %v3176 = vmax.f32 %v3035, %v3144
    %v3177 = vmax.f32 %v3037, %v3145
    %v3178 = vmax.f32 %v3108, %v3146
    %v3179 = vmax.f32 %v3110, %v3147
    %v3180 = vmax.f32 %v3041, %v3148
    %v3181 = vmax.f32 %v3043, %v3149
    %v3182 = vmax.f32 %v3114, %v3150
    %v3183 = vmax.f32 %v3116, %v3151
    %v3184 = vmax.f32 %v3045, %v3152
    %v3185 = vmax.f32 %v3047, %v3153
    %v3186 = vmax.f32 %v3118, %v3154
    %v3187 = vmax.f32 %v3120, %v3155
    %v3188 = vmax.f32 %v3051, %v3156
    %v3189 = vmax.f32 %v3053, %v3157
    %v3190 = vmax.f32 %v3124, %v3158
    %v3191 = vmax.f32 %v3126, %v3159
    %v3192 = vmax.f32 %v3055, %v3160
    %v3193 = vmax.f32 %v3057, %v3161
    %v3194 = vmax.f32 %v3128, %v3162
    %v3195 = vmax.f32 %v3130, %v3163
    %v3196 = vpack.c.bf16 %v3168, %v3164
    %v3197 = vpack.c.bf16 %v3169, %v3165
    %v3198 = vpack.c.bf16 %v3170, %v3166
    %v3199 = vpack.c.bf16 %v3171, %v3167
    %v3200 = vpack.c.bf16 %v3176, %v3172
    %v3201 = vpack.c.bf16 %v3177, %v3173
    %v3202 = vpack.c.bf16 %v3178, %v3174
    %v3203 = vpack.c.bf16 %v3179, %v3175
    %v3204 = vpack.c.bf16 %v3184, %v3180
    %v3205 = vpack.c.bf16 %v3185, %v3181
    %v3206 = vpack.c.bf16 %v3186, %v3182
    %v3207 = vpack.c.bf16 %v3187, %v3183
    %v3208 = vpack.c.bf16 %v3192, %v3188
    %v3209 = vpack.c.bf16 %v3193, %v3189
    %v3210 = vpack.c.bf16 %v3194, %v3190
    %v3211 = vpack.c.bf16 %v3195, %v3191
    %v3212 = vld [vmem:[#allocation11] sm:$0xff]
    %v3213 = vld [vmem:[#allocation11 + $0x8] sm:$0xff]
    %v3214 = vld [vmem:[#allocation11 + $0x10] sm:$0xff]
    %v3215 = vld [vmem:[#allocation11 + $0x18] sm:$0xf]
    %v3216 = vld [vmem:[#allocation11 + $0x1c] sm:$0xff]
    %v3217 = vld [vmem:[#allocation11 + $0x24] sm:$0xff]
    %v3218 = vld [vmem:[#allocation11 + $0x2c] sm:$0xff]
    %v3219 = vld [vmem:[#allocation11 + $0x34] sm:$0xf]
    %v3220 = vld [vmem:[#allocation11 + $0x38] sm:$0xff]
    %v3221 = vld [vmem:[#allocation11 + $0x40] sm:$0xff]
    %v3222 = vld [vmem:[#allocation11 + $0x48] sm:$0xff]
    %v3223 = vld [vmem:[#allocation11 + $0x50] sm:$0xf]
    %v3224 = vld [vmem:[#allocation11 + $0x54] sm:$0xff]
    %v3225 = vld [vmem:[#allocation11 + $0x5c] sm:$0xff]
    %v3226 = vld [vmem:[#allocation11 + $0x64] sm:$0xff]
    %v3227 = vld [vmem:[#allocation11 + $0x6c] sm:$0xf]
    %v3228 = vld [vmem:[#allocation11 + $0x70] sm:$0xff]
    %v3229 = vld [vmem:[#allocation11 + $0x78] sm:$0xff]
    %v3230 = vld [vmem:[#allocation11 + $0x80] sm:$0xff]
    %v3231 = vld [vmem:[#allocation11 + $0x88] sm:$0xf]
    %v3232 = vld [vmem:[#allocation11 + $0x8c] sm:$0xff]
    %v3233 = vld [vmem:[#allocation11 + $0x94] sm:$0xff]
    %v3234 = vld [vmem:[#allocation11 + $0x9c] sm:$0xff]
    %v3235 = vld [vmem:[#allocation11 + $0xa4] sm:$0xf]
    %v3236 = vld [vmem:[#allocation11 + $0xa8] sm:$0xff]
    %v3237 = vld [vmem:[#allocation11 + $0xb0] sm:$0xff]
    %v3238 = vld [vmem:[#allocation11 + $0xb8] sm:$0xff]
    %v3239 = vld [vmem:[#allocation11 + $0xc0] sm:$0xf]
    %v3240 = vld [vmem:[#allocation11 + $0xc4] sm:$0xff]
    %v3241 = vld [vmem:[#allocation11 + $0xcc] sm:$0xff]
    %v3242 = vld [vmem:[#allocation11 + $0xd4] sm:$0xff]
    %v3243 = vld [vmem:[#allocation11 + $0xdc] sm:$0xf]
    %v3244 = vld [vmem:[#allocation11 + $0xe0] sm:$0xff]
    %v3245 = vld [vmem:[#allocation11 + $0xe8] sm:$0xff]
    %v3246 = vld [vmem:[#allocation11 + $0xf0] sm:$0xff]
    %v3247 = vld [vmem:[#allocation11 + $0xf8] sm:$0xf]
    %v3248 = vld [vmem:[#allocation11 + $0xfc] sm:$0xff]
    %v3249 = vld [vmem:[#allocation11 + $0x104] sm:$0xff]
    %v3250 = vld [vmem:[#allocation11 + $0x10c] sm:$0xff]
    %v3251 = vld [vmem:[#allocation11 + $0x114] sm:$0xf]
    %v3252 = vld [vmem:[#allocation11 + $0x118] sm:$0xff]
    %v3253 = vld [vmem:[#allocation11 + $0x120] sm:$0xff]
    %v3254 = vld [vmem:[#allocation11 + $0x128] sm:$0xff]
    %v3255 = vld [vmem:[#allocation11 + $0x130] sm:$0xf]
    %v3256 = vld [vmem:[#allocation11 + $0x134] sm:$0xff]
    %v3257 = vld [vmem:[#allocation11 + $0x13c] sm:$0xff]
    %v3258 = vld [vmem:[#allocation11 + $0x144] sm:$0xff]
    %v3259 = vld [vmem:[#allocation11 + $0x14c] sm:$0xf]
    %v3260 = vld [vmem:[#allocation11 + $0x150] sm:$0xff]
    %v3261 = vld [vmem:[#allocation11 + $0x158] sm:$0xff]
    %v3262 = vld [vmem:[#allocation11 + $0x160] sm:$0xff]
    %v3263 = vld [vmem:[#allocation11 + $0x168] sm:$0xf]
    %v3264 = vld [vmem:[#allocation11 + $0x16c] sm:$0xff]
    %v3265 = vld [vmem:[#allocation11 + $0x174] sm:$0xff]
    %v3266 = vld [vmem:[#allocation11 + $0x17c] sm:$0xff]
    %v3267 = vld [vmem:[#allocation11 + $0x184] sm:$0xf]
    %v3268 = vld [vmem:[#allocation11 + $0x188] sm:$0xff]
    %v3269 = vld [vmem:[#allocation11 + $0x190] sm:$0xff]
    %v3270 = vld [vmem:[#allocation11 + $0x198] sm:$0xff]
    %v3271 = vld [vmem:[#allocation11 + $0x1a0] sm:$0xf]
    %v3272 = vld [vmem:[#allocation11 + $0x1a4] sm:$0xff]
    %v3273 = vld [vmem:[#allocation11 + $0x1ac] sm:$0xff]
    %v3274 = vld [vmem:[#allocation11 + $0x1b4] sm:$0xff]
    %v3275 = vld [vmem:[#allocation11 + $0x1bc] sm:$0xf]
    %v3276 = vld [vmem:[#allocation11 + $0x1c0] sm:$0xff]
    %v3277 = vld [vmem:[#allocation11 + $0x1c8] sm:$0xff]
    %v3278 = vld [vmem:[#allocation11 + $0x1d0] sm:$0xff]
    %v3279 = vld [vmem:[#allocation11 + $0x1d8] sm:$0xf]
    %v3280 = vld [vmem:[#allocation11 + $0x1dc] sm:$0xff]
    %v3281 = vld [vmem:[#allocation11 + $0x1e4] sm:$0xff]
    %v3282 = vld [vmem:[#allocation11 + $0x1ec] sm:$0xff]
    %v3283 = vld [vmem:[#allocation11 + $0x1f4] sm:$0xf]
    %v3284 = vld [vmem:[#allocation11 + $0x1f8] sm:$0xff]
    %v3285 = vld [vmem:[#allocation11 + $0x200] sm:$0xff]
    %v3286 = vld [vmem:[#allocation11 + $0x208] sm:$0xff]
    %v3287 = vld [vmem:[#allocation11 + $0x210] sm:$0xf]
    %v3288 = vld [vmem:[#allocation11 + $0x214] sm:$0xff]
    %v3289 = vld [vmem:[#allocation11 + $0x21c] sm:$0xff]
    %v3290 = vld [vmem:[#allocation11 + $0x224] sm:$0xff]
    %v3291 = vld [vmem:[#allocation11 + $0x22c] sm:$0xf]
    %v3292 = vld [vmem:[#allocation11 + $0x230] sm:$0xff]
    %v3293 = vld [vmem:[#allocation11 + $0x238] sm:$0xff]
    %v3294 = vld [vmem:[#allocation11 + $0x240] sm:$0xff]
    %v3295 = vld [vmem:[#allocation11 + $0x248] sm:$0xf]
    %v3296 = vld [vmem:[#allocation11 + $0x24c] sm:$0xff]
    %v3297 = vld [vmem:[#allocation11 + $0x254] sm:$0xff]
    %v3298 = vld [vmem:[#allocation11 + $0x25c] sm:$0xff]
    %v3299 = vld [vmem:[#allocation11 + $0x264] sm:$0xf]
    %v3300 = vld [vmem:[#allocation11 + $0x268] sm:$0xff]
    %v3301 = vld [vmem:[#allocation11 + $0x270] sm:$0xff]
    %v3302 = vld [vmem:[#allocation11 + $0x278] sm:$0xff]
    %v3303 = vld [vmem:[#allocation11 + $0x280] sm:$0xf]
    %v3304 = vld [vmem:[#allocation11 + $0x284] sm:$0xff]
    %v3305 = vld [vmem:[#allocation11 + $0x28c] sm:$0xff]
    %v3306 = vld [vmem:[#allocation11 + $0x294] sm:$0xff]
    %v3307 = vld [vmem:[#allocation11 + $0x29c] sm:$0xf]
    %v3308 = vld [vmem:[#allocation11 + $0x2a0] sm:$0xff]
    %v3309 = vld [vmem:[#allocation11 + $0x2a8] sm:$0xff]
    %v3310 = vld [vmem:[#allocation11 + $0x2b0] sm:$0xff]
    %v3311 = vld [vmem:[#allocation11 + $0x2b8] sm:$0xf]
    %v3312 = vld [vmem:[#allocation11 + $0x2bc] sm:$0xff]
    %v3313 = vld [vmem:[#allocation11 + $0x2c4] sm:$0xff]
    %v3314 = vld [vmem:[#allocation11 + $0x2cc] sm:$0xff]
    %v3315 = vld [vmem:[#allocation11 + $0x2d4] sm:$0xf]
    %v3316 = vld [vmem:[#allocation11 + $0x2d8] sm:$0xff]
    %v3317 = vld [vmem:[#allocation11 + $0x2e0] sm:$0xff]
    %v3318 = vld [vmem:[#allocation11 + $0x2e8] sm:$0xff]
    %v3319 = vld [vmem:[#allocation11 + $0x2f0] sm:$0xf]
    %v3320 = vld [vmem:[#allocation11 + $0x2f4] sm:$0xff]
    %v3321 = vld [vmem:[#allocation11 + $0x2fc] sm:$0xff]
    %v3322 = vld [vmem:[#allocation11 + $0x304] sm:$0xff]
    %v3323 = vld [vmem:[#allocation11 + $0x30c] sm:$0xf]
    %v3324 = vld [vmem:[#allocation11 + $0x310] sm:$0xff]
    %v3325 = vld [vmem:[#allocation11 + $0x318] sm:$0xff]
    %v3326 = vld [vmem:[#allocation11 + $0x320] sm:$0xff]
    %v3327 = vld [vmem:[#allocation11 + $0x328] sm:$0xf]
    %v3328 = vld [vmem:[#allocation11 + $0x32c] sm:$0xff]
    %v3329 = vld [vmem:[#allocation11 + $0x334] sm:$0xff]
    %v3330 = vld [vmem:[#allocation11 + $0x33c] sm:$0xff]
    %v3331 = vld [vmem:[#allocation11 + $0x344] sm:$0xf]
    %v3332 = vld [vmem:[#allocation11 + $0x348] sm:$0xff]
    %v3333 = vld [vmem:[#allocation11 + $0x350] sm:$0xff]
    %v3334 = vld [vmem:[#allocation11 + $0x358] sm:$0xff]
    %v3335 = vld [vmem:[#allocation11 + $0x360] sm:$0xf]
    %v3336 = vld [vmem:[#allocation11 + $0x364] sm:$0xff]
    %v3337 = vld [vmem:[#allocation11 + $0x36c] sm:$0xff]
    %v3338 = vld [vmem:[#allocation11 + $0x374] sm:$0xff]
    %v3339 = vld [vmem:[#allocation11 + $0x37c] sm:$0xf]
    %v3340 = vld [vmem:[#allocation11 + $0x380] sm:$0xff]
    %v3341 = vld [vmem:[#allocation11 + $0x388] sm:$0xff]
    %v3342 = vld [vmem:[#allocation11 + $0x390] sm:$0xff]
    %v3343 = vld [vmem:[#allocation11 + $0x398] sm:$0xf]
    %v3344 = vld [vmem:[#allocation11 + $0x39c] sm:$0xff]
    %v3345 = vld [vmem:[#allocation11 + $0x3a4] sm:$0xff]
    %v3346 = vld [vmem:[#allocation11 + $0x3ac] sm:$0xff]
    %v3347 = vld [vmem:[#allocation11 + $0x3b4] sm:$0xf]
    %v3348 = vld [vmem:[#allocation11 + $0x3b8] sm:$0xff]
    %v3349 = vld [vmem:[#allocation11 + $0x3c0] sm:$0xff]
    %v3350 = vld [vmem:[#allocation11 + $0x3c8] sm:$0xff]
    %v3351 = vld [vmem:[#allocation11 + $0x3d0] sm:$0xf]
    %v3352 = vld [vmem:[#allocation11 + $0x3d4] sm:$0xff]
    %v3353 = vld [vmem:[#allocation11 + $0x3dc] sm:$0xff]
    %v3354 = vld [vmem:[#allocation11 + $0x3e4] sm:$0xff]
    %v3355 = vld [vmem:[#allocation11 + $0x3ec] sm:$0xf]
    %v3356 = vld [vmem:[#allocation11 + $0x3f0] sm:$0xff]
    %v3357 = vld [vmem:[#allocation11 + $0x3f8] sm:$0xff]
    %v3358 = vld [vmem:[#allocation11 + $0x400] sm:$0xff]
    %v3359 = vld [vmem:[#allocation11 + $0x408] sm:$0xf]
    %v3360 = vld [vmem:[#allocation11 + $0x40c] sm:$0xff]
    %v3361 = vld [vmem:[#allocation11 + $0x414] sm:$0xff]
    %v3362 = vld [vmem:[#allocation11 + $0x41c] sm:$0xff]
    %v3363 = vld [vmem:[#allocation11 + $0x424] sm:$0xf]
    %v3364 = vld [vmem:[#allocation11 + $0x428] sm:$0xff]
    %v3365 = vld [vmem:[#allocation11 + $0x430] sm:$0xff]
    %v3366 = vld [vmem:[#allocation11 + $0x438] sm:$0xff]
    %v3367 = vld [vmem:[#allocation11 + $0x440] sm:$0xf]
    %v3368 = vld [vmem:[#allocation11 + $0x444] sm:$0xff]
    %v3369 = vld [vmem:[#allocation11 + $0x44c] sm:$0xff]
    %v3370 = vld [vmem:[#allocation11 + $0x454] sm:$0xff]
    %v3371 = vld [vmem:[#allocation11 + $0x45c] sm:$0xf]
    %v3372 = vld [vmem:[#allocation11 + $0x460] sm:$0xff]
    %v3373 = vld [vmem:[#allocation11 + $0x468] sm:$0xff]
    %v3374 = vld [vmem:[#allocation11 + $0x470] sm:$0xff]
    %v3375 = vld [vmem:[#allocation11 + $0x478] sm:$0xf]
    %v3376 = vld [vmem:[#allocation11 + $0x47c] sm:$0xff]
    %v3377 = vld [vmem:[#allocation11 + $0x484] sm:$0xff]
    %v3378 = vld [vmem:[#allocation11 + $0x48c] sm:$0xff]
    %v3379 = vld [vmem:[#allocation11 + $0x494] sm:$0xf]
    %v3380 = vld [vmem:[#allocation11 + $0x498] sm:$0xff]
    %v3381 = vld [vmem:[#allocation11 + $0x4a0] sm:$0xff]
    %v3382 = vld [vmem:[#allocation11 + $0x4a8] sm:$0xff]
    %v3383 = vld [vmem:[#allocation11 + $0x4b0] sm:$0xf]
    %v3384 = vld [vmem:[#allocation11 + $0x4b4] sm:$0xff]
    %v3385 = vld [vmem:[#allocation11 + $0x4bc] sm:$0xff]
    %v3386 = vld [vmem:[#allocation11 + $0x4c4] sm:$0xff]
    %v3387 = vld [vmem:[#allocation11 + $0x4cc] sm:$0xf]
    %v3388 = vld [vmem:[#allocation11 + $0x4d0] sm:$0xff]
    %v3389 = vld [vmem:[#allocation11 + $0x4d8] sm:$0xff]
    %v3390 = vld [vmem:[#allocation11 + $0x4e0] sm:$0xff]
    %v3391 = vld [vmem:[#allocation11 + $0x4e8] sm:$0xf]
    %v3392 = vld [vmem:[#allocation11 + $0x4ec] sm:$0xff]
    %v3393 = vld [vmem:[#allocation11 + $0x4f4] sm:$0xff]
    %v3394 = vld [vmem:[#allocation11 + $0x4fc] sm:$0xff]
    %v3395 = vld [vmem:[#allocation11 + $0x504] sm:$0xf]
    %v3396 = vld [vmem:[#allocation11 + $0x508] sm:$0xff]
    %v3397 = vld [vmem:[#allocation11 + $0x510] sm:$0xff]
    %v3398 = vld [vmem:[#allocation11 + $0x518] sm:$0xff]
    %v3399 = vld [vmem:[#allocation11 + $0x520] sm:$0xf]
    %v3400 = vld [vmem:[#allocation11 + $0x524] sm:$0xff]
    %v3401 = vld [vmem:[#allocation11 + $0x52c] sm:$0xff]
    %v3402 = vld [vmem:[#allocation11 + $0x534] sm:$0xff]
    %v3403 = vld [vmem:[#allocation11 + $0x53c] sm:$0xf]
    %v3404 = vld [vmem:[#allocation11 + $0x540] sm:$0xff]
    %v3405 = vld [vmem:[#allocation11 + $0x548] sm:$0xff]
    %v3406 = vld [vmem:[#allocation11 + $0x550] sm:$0xff]
    %v3407 = vld [vmem:[#allocation11 + $0x558] sm:$0xf]
    %v3408 = vld [vmem:[#allocation11 + $0x55c] sm:$0xff]
    %v3409 = vld [vmem:[#allocation11 + $0x564] sm:$0xff]
    %v3410 = vld [vmem:[#allocation11 + $0x56c] sm:$0xff]
    %v3411 = vld [vmem:[#allocation11 + $0x574] sm:$0xf]
    %v3412 = vld [vmem:[#allocation11 + $0x578] sm:$0xff]
    %v3413 = vld [vmem:[#allocation11 + $0x580] sm:$0xff]
    %v3414 = vld [vmem:[#allocation11 + $0x588] sm:$0xff]
    %v3415 = vld [vmem:[#allocation11 + $0x590] sm:$0xf]
    %v3416 = vld [vmem:[#allocation11 + $0x594] sm:$0xff]
    %v3417 = vld [vmem:[#allocation11 + $0x59c] sm:$0xff]
    %v3418 = vld [vmem:[#allocation11 + $0x5a4] sm:$0xff]
    %v3419 = vld [vmem:[#allocation11 + $0x5ac] sm:$0xf]
    %v3420 = vld [vmem:[#allocation11 + $0x5b0] sm:$0xff]
    %v3421 = vld [vmem:[#allocation11 + $0x5b8] sm:$0xff]
    %v3422 = vld [vmem:[#allocation11 + $0x5c0] sm:$0xff]
    %v3423 = vld [vmem:[#allocation11 + $0x5c8] sm:$0xf]
    %v3424 = vld [vmem:[#allocation11 + $0x5cc] sm:$0xff]
    %v3425 = vld [vmem:[#allocation11 + $0x5d4] sm:$0xff]
    %v3426 = vld [vmem:[#allocation11 + $0x5dc] sm:$0xff]
    %v3427 = vld [vmem:[#allocation11 + $0x5e4] sm:$0xf]
    %v3428 = vld [vmem:[#allocation11 + $0x5e8] sm:$0xff]
    %v3429 = vld [vmem:[#allocation11 + $0x5f0] sm:$0xff]
    %v3430 = vld [vmem:[#allocation11 + $0x5f8] sm:$0xff]
    %v3431 = vld [vmem:[#allocation11 + $0x600] sm:$0xf]
    %v3432 = vld [vmem:[#allocation11 + $0x604] sm:$0xff]
    %v3433 = vld [vmem:[#allocation11 + $0x60c] sm:$0xff]
    %v3434 = vld [vmem:[#allocation11 + $0x614] sm:$0xff]
    %v3435 = vld [vmem:[#allocation11 + $0x61c] sm:$0xf]
    %v3436 = vld [vmem:[#allocation11 + $0x620] sm:$0xff]
    %v3437 = vld [vmem:[#allocation11 + $0x628] sm:$0xff]
    %v3438 = vld [vmem:[#allocation11 + $0x630] sm:$0xff]
    %v3439 = vld [vmem:[#allocation11 + $0x638] sm:$0xf]
    %v3440 = vld [vmem:[#allocation11 + $0x63c] sm:$0xff]
    %v3441 = vld [vmem:[#allocation11 + $0x644] sm:$0xff]
    %v3442 = vld [vmem:[#allocation11 + $0x64c] sm:$0xff]
    %v3443 = vld [vmem:[#allocation11 + $0x654] sm:$0xf]
    %v3444 = vld [vmem:[#allocation11 + $0x658] sm:$0xff]
    %v3445 = vld [vmem:[#allocation11 + $0x660] sm:$0xff]
    %v3446 = vld [vmem:[#allocation11 + $0x668] sm:$0xff]
    %v3447 = vld [vmem:[#allocation11 + $0x670] sm:$0xf]
    %v3448 = vld [vmem:[#allocation11 + $0x674] sm:$0xff]
    %v3449 = vld [vmem:[#allocation11 + $0x67c] sm:$0xff]
    %v3450 = vld [vmem:[#allocation11 + $0x684] sm:$0xff]
    %v3451 = vld [vmem:[#allocation11 + $0x68c] sm:$0xf]
    %v3452 = vld [vmem:[#allocation11 + $0x690] sm:$0xff]
    %v3453 = vld [vmem:[#allocation11 + $0x698] sm:$0xff]
    %v3454 = vld [vmem:[#allocation11 + $0x6a0] sm:$0xff]
    %v3455 = vld [vmem:[#allocation11 + $0x6a8] sm:$0xf]
    %v3456 = vld [vmem:[#allocation11 + $0x6ac] sm:$0xff]
    %v3457 = vld [vmem:[#allocation11 + $0x6b4] sm:$0xff]
    %v3458 = vld [vmem:[#allocation11 + $0x6bc] sm:$0xff]
    %v3459 = vld [vmem:[#allocation11 + $0x6c4] sm:$0xf]
    %v3460 = vld [vmem:[#allocation11 + $0x6c8] sm:$0xff]
    %v3461 = vld [vmem:[#allocation11 + $0x6d0] sm:$0xff]
    %v3462 = vld [vmem:[#allocation11 + $0x6d8] sm:$0xff]
    %v3463 = vld [vmem:[#allocation11 + $0x6e0] sm:$0xf]
    %v3464 = vld [vmem:[#allocation11 + $0x6e4] sm:$0xff]
    %v3465 = vld [vmem:[#allocation11 + $0x6ec] sm:$0xff]
    %v3466 = vld [vmem:[#allocation11 + $0x6f4] sm:$0xff]
    %v3467 = vld [vmem:[#allocation11 + $0x6fc] sm:$0xf]
    %v3468 = vld [vmem:[%s8] sm:$0xff]
    %v3470 = vlaneseq
    %v3471 = vshrl.u32 %v3470, 7
    %v3472 = vsub.s32 0, %v3471
    %v3473 = vrot.slane %v3468, %v3472
    %v3474 = vlaneseq
    %v3475 = vshrl.u32 %v3474, 7
    %v3476 = vsub.s32 1, %v3475
    %v3477 = vrot.slane %v3468, %v3476
    %v3478 = vlaneseq
    %v3479 = vshrl.u32 %v3478, 7
    %v3480 = vsub.s32 2, %v3479
    %v3481 = vrot.slane %v3468, %v3480
    %v3482 = vlaneseq
    %v3483 = vshrl.u32 %v3482, 7
    %v3484 = vsub.s32 3, %v3483
    %v3485 = vrot.slane %v3468, %v3484
    %v3486 = vlaneseq
    %v3487 = vshrl.u32 %v3486, 7
    %v3488 = vsub.s32 4, %v3487
    %v3489 = vrot.slane %v3468, %v3488
    %v3490 = vlaneseq
    %v3491 = vshrl.u32 %v3490, 7
    %v3492 = vsub.s32 5, %v3491
    %v3493 = vrot.slane %v3468, %v3492
    %v3494 = vlaneseq
    %v3495 = vshrl.u32 %v3494, 7
    %v3496 = vsub.s32 6, %v3495
    %v3497 = vrot.slane %v3468, %v3496
    %v3761 = vunpack.c.l.b16 %v3212
    %v3762 = vunpack.c.h.b16 %v3212
    %v3763 = vunpack.c.l.b16 %v3213
    %v3764 = vunpack.c.h.b16 %v3213
    %v3765 = vunpack.c.l.b16 %v3214
    %v3766 = vunpack.c.h.b16 %v3214
    %v3767 = vunpack.c.l.b16 %v3215
    %v3768 = vunpack.c.l.b16 %v3216
    %v3769 = vunpack.c.h.b16 %v3216
    %v3770 = vunpack.c.l.b16 %v3217
    %v3771 = vunpack.c.h.b16 %v3217
    %v3772 = vunpack.c.l.b16 %v3218
    %v3773 = vunpack.c.h.b16 %v3218
    %v3774 = vunpack.c.l.b16 %v3219
    %v3775 = vunpack.c.l.b16 %v3220
    %v3776 = vunpack.c.h.b16 %v3220
    %v3777 = vunpack.c.l.b16 %v3221
    %v3778 = vunpack.c.h.b16 %v3221
    %v3779 = vunpack.c.l.b16 %v3222
    %v3780 = vunpack.c.h.b16 %v3222
    %v3781 = vunpack.c.l.b16 %v3223
    %v3782 = vunpack.c.l.b16 %v3224
    %v3783 = vunpack.c.h.b16 %v3224
    %v3784 = vunpack.c.l.b16 %v3225
    %v3785 = vunpack.c.h.b16 %v3225
    %v3786 = vunpack.c.l.b16 %v3226
    %v3787 = vunpack.c.h.b16 %v3226
    %v3788 = vunpack.c.l.b16 %v3227
    %v3789 = vunpack.c.l.b16 %v3228
    %v3790 = vunpack.c.h.b16 %v3228
    %v3791 = vunpack.c.l.b16 %v3229
    %v3792 = vunpack.c.h.b16 %v3229
    %v3793 = vunpack.c.l.b16 %v3230
    %v3794 = vunpack.c.h.b16 %v3230
    %v3795 = vunpack.c.l.b16 %v3231
    %v3796 = vunpack.c.l.b16 %v3232
    %v3797 = vunpack.c.h.b16 %v3232
    %v3798 = vunpack.c.l.b16 %v3233
    %v3799 = vunpack.c.h.b16 %v3233
    %v3800 = vunpack.c.l.b16 %v3234
    %v3801 = vunpack.c.h.b16 %v3234
    %v3802 = vunpack.c.l.b16 %v3235
    %v3803 = vunpack.c.l.b16 %v3236
    %v3804 = vunpack.c.h.b16 %v3236
    %v3805 = vunpack.c.l.b16 %v3237
    %v3806 = vunpack.c.h.b16 %v3237
    %v3807 = vunpack.c.l.b16 %v3238
    %v3808 = vunpack.c.h.b16 %v3238
    %v3809 = vunpack.c.l.b16 %v3239
    %v3810 = vunpack.c.l.b16 %v3240
    %v3811 = vunpack.c.h.b16 %v3240
    %v3812 = vunpack.c.l.b16 %v3241
    %v3813 = vunpack.c.h.b16 %v3241
    %v3814 = vunpack.c.l.b16 %v3242
    %v3815 = vunpack.c.h.b16 %v3242
    %v3816 = vunpack.c.l.b16 %v3243
    %v3817 = vunpack.c.l.b16 %v3244
    %v3818 = vunpack.c.h.b16 %v3244
    %v3819 = vunpack.c.l.b16 %v3245
    %v3820 = vunpack.c.h.b16 %v3245
    %v3821 = vunpack.c.l.b16 %v3246
    %v3822 = vunpack.c.h.b16 %v3246
    %v3823 = vunpack.c.l.b16 %v3247
    %v3824 = vunpack.c.l.b16 %v3248
    %v3825 = vunpack.c.h.b16 %v3248
    %v3826 = vunpack.c.l.b16 %v3249
    %v3827 = vunpack.c.h.b16 %v3249
    %v3828 = vunpack.c.l.b16 %v3250
    %v3829 = vunpack.c.h.b16 %v3250
    %v3830 = vunpack.c.l.b16 %v3251
    %v3831 = vunpack.c.l.b16 %v3252
    %v3832 = vunpack.c.h.b16 %v3252
    %v3833 = vunpack.c.l.b16 %v3253
    %v3834 = vunpack.c.h.b16 %v3253
    %v3835 = vunpack.c.l.b16 %v3254
    %v3836 = vunpack.c.h.b16 %v3254
    %v3837 = vunpack.c.l.b16 %v3255
    %v3838 = vunpack.c.l.b16 %v3256
    %v3839 = vunpack.c.h.b16 %v3256
    %v3840 = vunpack.c.l.b16 %v3257
    %v3841 = vunpack.c.h.b16 %v3257
    %v3842 = vunpack.c.l.b16 %v3258
    %v3843 = vunpack.c.h.b16 %v3258
    %v3844 = vunpack.c.l.b16 %v3259
    %v3845 = vunpack.c.l.b16 %v3260
    %v3846 = vunpack.c.h.b16 %v3260
    %v3847 = vunpack.c.l.b16 %v3261
    %v3848 = vunpack.c.h.b16 %v3261
    %v3849 = vunpack.c.l.b16 %v3262
    %v3850 = vunpack.c.h.b16 %v3262
    %v3851 = vunpack.c.l.b16 %v3263
    %v3852 = vunpack.c.l.b16 %v3264
    %v3853 = vunpack.c.h.b16 %v3264
    %v3854 = vunpack.c.l.b16 %v3265
    %v3855 = vunpack.c.h.b16 %v3265
    %v3856 = vunpack.c.l.b16 %v3266
    %v3857 = vunpack.c.h.b16 %v3266
    %v3858 = vunpack.c.l.b16 %v3267
    %v3859 = vunpack.c.l.b16 %v3268
    %v3860 = vunpack.c.h.b16 %v3268
    %v3861 = vunpack.c.l.b16 %v3269
    %v3862 = vunpack.c.h.b16 %v3269
    %v3863 = vunpack.c.l.b16 %v3270
    %v3864 = vunpack.c.h.b16 %v3270
    %v3865 = vunpack.c.l.b16 %v3271
    %v3866 = vunpack.c.l.b16 %v3272
    %v3867 = vunpack.c.h.b16 %v3272
    %v3868 = vunpack.c.l.b16 %v3273
    %v3869 = vunpack.c.h.b16 %v3273
    %v3870 = vunpack.c.l.b16 %v3274
    %v3871 = vunpack.c.h.b16 %v3274
    %v3872 = vunpack.c.l.b16 %v3275
    %v3873 = vunpack.c.l.b16 %v3276
    %v3874 = vunpack.c.h.b16 %v3276
    %v3875 = vunpack.c.l.b16 %v3277
    %v3876 = vunpack.c.h.b16 %v3277
    %v3877 = vunpack.c.l.b16 %v3278
    %v3878 = vunpack.c.h.b16 %v3278
    %v3879 = vunpack.c.l.b16 %v3279
    %v3880 = vunpack.c.l.b16 %v3280
    %v3881 = vunpack.c.h.b16 %v3280
    %v3882 = vunpack.c.l.b16 %v3281
    %v3883 = vunpack.c.h.b16 %v3281
    %v3884 = vunpack.c.l.b16 %v3282
    %v3885 = vunpack.c.h.b16 %v3282
    %v3886 = vunpack.c.l.b16 %v3283
    %v3887 = vunpack.c.l.b16 %v3284
    %v3888 = vunpack.c.h.b16 %v3284
    %v3889 = vunpack.c.l.b16 %v3285
    %v3890 = vunpack.c.h.b16 %v3285
    %v3891 = vunpack.c.l.b16 %v3286
    %v3892 = vunpack.c.h.b16 %v3286
    %v3893 = vunpack.c.l.b16 %v3287
    %v3894 = vunpack.c.l.b16 %v3288
    %v3895 = vunpack.c.h.b16 %v3288
    %v3896 = vunpack.c.l.b16 %v3289
    %v3897 = vunpack.c.h.b16 %v3289
    %v3898 = vunpack.c.l.b16 %v3290
    %v3899 = vunpack.c.h.b16 %v3290
    %v3900 = vunpack.c.l.b16 %v3291
    %v3901 = vunpack.c.l.b16 %v3292
    %v3902 = vunpack.c.h.b16 %v3292
    %v3903 = vunpack.c.l.b16 %v3293
    %v3904 = vunpack.c.h.b16 %v3293
    %v3905 = vunpack.c.l.b16 %v3294
    %v3906 = vunpack.c.h.b16 %v3294
    %v3907 = vunpack.c.l.b16 %v3295
    %v3908 = vunpack.c.l.b16 %v3296
    %v3909 = vunpack.c.h.b16 %v3296
    %v3910 = vunpack.c.l.b16 %v3297
    %v3911 = vunpack.c.h.b16 %v3297
    %v3912 = vunpack.c.l.b16 %v3298
    %v3913 = vunpack.c.h.b16 %v3298
    %v3914 = vunpack.c.l.b16 %v3299
    %v3915 = vunpack.c.l.b16 %v3300
    %v3916 = vunpack.c.h.b16 %v3300
    %v3917 = vunpack.c.l.b16 %v3301
    %v3918 = vunpack.c.h.b16 %v3301
    %v3919 = vunpack.c.l.b16 %v3302
    %v3920 = vunpack.c.h.b16 %v3302
    %v3921 = vunpack.c.l.b16 %v3303
    %v3922 = vunpack.c.l.b16 %v3304
    %v3923 = vunpack.c.h.b16 %v3304
    %v3924 = vunpack.c.l.b16 %v3305
    %v3925 = vunpack.c.h.b16 %v3305
    %v3926 = vunpack.c.l.b16 %v3306
    %v3927 = vunpack.c.h.b16 %v3306
    %v3928 = vunpack.c.l.b16 %v3307
    %v3929 = vunpack.c.l.b16 %v3308
    %v3930 = vunpack.c.h.b16 %v3308
    %v3931 = vunpack.c.l.b16 %v3309
    %v3932 = vunpack.c.h.b16 %v3309
    %v3933 = vunpack.c.l.b16 %v3310
    %v3934 = vunpack.c.h.b16 %v3310
    %v3935 = vunpack.c.l.b16 %v3311
    %v3936 = vunpack.c.l.b16 %v3312
    %v3937 = vunpack.c.h.b16 %v3312
    %v3938 = vunpack.c.l.b16 %v3313
    %v3939 = vunpack.c.h.b16 %v3313
    %v3940 = vunpack.c.l.b16 %v3314
    %v3941 = vunpack.c.h.b16 %v3314
    %v3942 = vunpack.c.l.b16 %v3315
    %v3943 = vunpack.c.l.b16 %v3316
    %v3944 = vunpack.c.h.b16 %v3316
    %v3945 = vunpack.c.l.b16 %v3317
    %v3946 = vunpack.c.h.b16 %v3317
    %v3947 = vunpack.c.l.b16 %v3318
    %v3948 = vunpack.c.h.b16 %v3318
    %v3949 = vunpack.c.l.b16 %v3319
    %v3950 = vunpack.c.l.b16 %v3320
    %v3951 = vunpack.c.h.b16 %v3320
    %v3952 = vunpack.c.l.b16 %v3321
    %v3953 = vunpack.c.h.b16 %v3321
    %v3954 = vunpack.c.l.b16 %v3322
    %v3955 = vunpack.c.h.b16 %v3322
    %v3956 = vunpack.c.l.b16 %v3323
    %v3957 = vunpack.c.l.b16 %v3324
    %v3958 = vunpack.c.h.b16 %v3324
    %v3959 = vunpack.c.l.b16 %v3325
    %v3960 = vunpack.c.h.b16 %v3325
    %v3961 = vunpack.c.l.b16 %v3326
    %v3962 = vunpack.c.h.b16 %v3326
    %v3963 = vunpack.c.l.b16 %v3327
    %v3964 = vunpack.c.l.b16 %v3328
    %v3965 = vunpack.c.h.b16 %v3328
    %v3966 = vunpack.c.l.b16 %v3329
    %v3967 = vunpack.c.h.b16 %v3329
    %v3968 = vunpack.c.l.b16 %v3330
    %v3969 = vunpack.c.h.b16 %v3330
    %v3970 = vunpack.c.l.b16 %v3331
    %v3971 = vunpack.c.l.b16 %v3332
    %v3972 = vunpack.c.h.b16 %v3332
    %v3973 = vunpack.c.l.b16 %v3333
    %v3974 = vunpack.c.h.b16 %v3333
    %v3975 = vunpack.c.l.b16 %v3334
    %v3976 = vunpack.c.h.b16 %v3334
    %v3977 = vunpack.c.l.b16 %v3335
    %v3978 = vunpack.c.l.b16 %v3336
    %v3979 = vunpack.c.h.b16 %v3336
    %v3980 = vunpack.c.l.b16 %v3337
    %v3981 = vunpack.c.h.b16 %v3337
    %v3982 = vunpack.c.l.b16 %v3338
    %v3983 = vunpack.c.h.b16 %v3338
    %v3984 = vunpack.c.l.b16 %v3339
    %v3985 = vunpack.c.l.b16 %v3340
    %v3986 = vunpack.c.h.b16 %v3340
    %v3987 = vunpack.c.l.b16 %v3341
    %v3988 = vunpack.c.h.b16 %v3341
    %v3989 = vunpack.c.l.b16 %v3342
    %v3990 = vunpack.c.h.b16 %v3342
    %v3991 = vunpack.c.l.b16 %v3343
    %v3992 = vunpack.c.l.b16 %v3344
    %v3993 = vunpack.c.h.b16 %v3344
    %v3994 = vunpack.c.l.b16 %v3345
    %v3995 = vunpack.c.h.b16 %v3345
    %v3996 = vunpack.c.l.b16 %v3346
    %v3997 = vunpack.c.h.b16 %v3346
    %v3998 = vunpack.c.l.b16 %v3347
    %v3999 = vunpack.c.l.b16 %v3348
    %v4000 = vunpack.c.h.b16 %v3348
    %v4001 = vunpack.c.l.b16 %v3349
    %v4002 = vunpack.c.h.b16 %v3349
    %v4003 = vunpack.c.l.b16 %v3350
    %v4004 = vunpack.c.h.b16 %v3350
    %v4005 = vunpack.c.l.b16 %v3351
    %v4006 = vunpack.c.l.b16 %v3352
    %v4007 = vunpack.c.h.b16 %v3352
    %v4008 = vunpack.c.l.b16 %v3353
    %v4009 = vunpack.c.h.b16 %v3353
    %v4010 = vunpack.c.l.b16 %v3354
    %v4011 = vunpack.c.h.b16 %v3354
    %v4012 = vunpack.c.l.b16 %v3355
    %v4013 = vunpack.c.l.b16 %v3356
    %v4014 = vunpack.c.h.b16 %v3356
    %v4015 = vunpack.c.l.b16 %v3357
    %v4016 = vunpack.c.h.b16 %v3357
    %v4017 = vunpack.c.l.b16 %v3358
    %v4018 = vunpack.c.h.b16 %v3358
    %v4019 = vunpack.c.l.b16 %v3359
    %v4020 = vunpack.c.l.b16 %v3360
    %v4021 = vunpack.c.h.b16 %v3360
    %v4022 = vunpack.c.l.b16 %v3361
    %v4023 = vunpack.c.h.b16 %v3361
    %v4024 = vunpack.c.l.b16 %v3362
    %v4025 = vunpack.c.h.b16 %v3362
    %v4026 = vunpack.c.l.b16 %v3363
    %v4027 = vunpack.c.l.b16 %v3364
    %v4028 = vunpack.c.h.b16 %v3364
    %v4029 = vunpack.c.l.b16 %v3365
    %v4030 = vunpack.c.h.b16 %v3365
    %v4031 = vunpack.c.l.b16 %v3366
    %v4032 = vunpack.c.h.b16 %v3366
    %v4033 = vunpack.c.l.b16 %v3367
    %v4034 = vunpack.c.l.b16 %v3368
    %v4035 = vunpack.c.h.b16 %v3368
    %v4036 = vunpack.c.l.b16 %v3369
    %v4037 = vunpack.c.h.b16 %v3369
    %v4038 = vunpack.c.l.b16 %v3370
    %v4039 = vunpack.c.h.b16 %v3370
    %v4040 = vunpack.c.l.b16 %v3371
    %v4041 = vunpack.c.l.b16 %v3372
    %v4042 = vunpack.c.h.b16 %v3372
    %v4043 = vunpack.c.l.b16 %v3373
    %v4044 = vunpack.c.h.b16 %v3373
    %v4045 = vunpack.c.l.b16 %v3374
    %v4046 = vunpack.c.h.b16 %v3374
    %v4047 = vunpack.c.l.b16 %v3375
    %v4048 = vunpack.c.l.b16 %v3376
    %v4049 = vunpack.c.h.b16 %v3376
    %v4050 = vunpack.c.l.b16 %v3377
    %v4051 = vunpack.c.h.b16 %v3377
    %v4052 = vunpack.c.l.b16 %v3378
    %v4053 = vunpack.c.h.b16 %v3378
    %v4054 = vunpack.c.l.b16 %v3379
    %v4055 = vunpack.c.l.b16 %v3380
    %v4056 = vunpack.c.h.b16 %v3380
    %v4057 = vunpack.c.l.b16 %v3381
    %v4058 = vunpack.c.h.b16 %v3381
    %v4059 = vunpack.c.l.b16 %v3382
    %v4060 = vunpack.c.h.b16 %v3382
    %v4061 = vunpack.c.l.b16 %v3383
    %v4062 = vunpack.c.l.b16 %v3384
    %v4063 = vunpack.c.h.b16 %v3384
    %v4064 = vunpack.c.l.b16 %v3385
    %v4065 = vunpack.c.h.b16 %v3385
    %v4066 = vunpack.c.l.b16 %v3386
    %v4067 = vunpack.c.h.b16 %v3386
    %v4068 = vunpack.c.l.b16 %v3387
    %v4069 = vunpack.c.l.b16 %v3388
    %v4070 = vunpack.c.h.b16 %v3388
    %v4071 = vunpack.c.l.b16 %v3389
    %v4072 = vunpack.c.h.b16 %v3389
    %v4073 = vunpack.c.l.b16 %v3390
    %v4074 = vunpack.c.h.b16 %v3390
    %v4075 = vunpack.c.l.b16 %v3391
    %v4076 = vunpack.c.l.b16 %v3392
    %v4077 = vunpack.c.h.b16 %v3392
    %v4078 = vunpack.c.l.b16 %v3393
    %v4079 = vunpack.c.h.b16 %v3393
    %v4080 = vunpack.c.l.b16 %v3394
    %v4081 = vunpack.c.h.b16 %v3394
    %v4082 = vunpack.c.l.b16 %v3395
    %v4083 = vunpack.c.l.b16 %v3396
    %v4084 = vunpack.c.h.b16 %v3396
    %v4085 = vunpack.c.l.b16 %v3397
    %v4086 = vunpack.c.h.b16 %v3397
    %v4087 = vunpack.c.l.b16 %v3398
    %v4088 = vunpack.c.h.b16 %v3398
    %v4089 = vunpack.c.l.b16 %v3399
    %v4090 = vunpack.c.l.b16 %v3400
    %v4091 = vunpack.c.h.b16 %v3400
    %v4092 = vunpack.c.l.b16 %v3401
    %v4093 = vunpack.c.h.b16 %v3401
    %v4094 = vunpack.c.l.b16 %v3402
    %v4095 = vunpack.c.h.b16 %v3402
    %v4096 = vunpack.c.l.b16 %v3403
    %v4097 = vunpack.c.l.b16 %v3404
    %v4098 = vunpack.c.h.b16 %v3404
    %v4099 = vunpack.c.l.b16 %v3405
    %v4100 = vunpack.c.h.b16 %v3405
    %v4101 = vunpack.c.l.b16 %v3406
    %v4102 = vunpack.c.h.b16 %v3406
    %v4103 = vunpack.c.l.b16 %v3407
    %v4104 = vunpack.c.l.b16 %v3408
    %v4105 = vunpack.c.h.b16 %v3408
    %v4106 = vunpack.c.l.b16 %v3409
    %v4107 = vunpack.c.h.b16 %v3409
    %v4108 = vunpack.c.l.b16 %v3410
    %v4109 = vunpack.c.h.b16 %v3410
    %v4110 = vunpack.c.l.b16 %v3411
    %v4111 = vunpack.c.l.b16 %v3412
    %v4112 = vunpack.c.h.b16 %v3412
    %v4113 = vunpack.c.l.b16 %v3413
    %v4114 = vunpack.c.h.b16 %v3413
    %v4115 = vunpack.c.l.b16 %v3414
    %v4116 = vunpack.c.h.b16 %v3414
    %v4117 = vunpack.c.l.b16 %v3415
    %v4118 = vunpack.c.l.b16 %v3416
    %v4119 = vunpack.c.h.b16 %v3416
    %v4120 = vunpack.c.l.b16 %v3417
    %v4121 = vunpack.c.h.b16 %v3417
    %v4122 = vunpack.c.l.b16 %v3418
    %v4123 = vunpack.c.h.b16 %v3418
    %v4124 = vunpack.c.l.b16 %v3419
    %v4125 = vunpack.c.l.b16 %v3420
    %v4126 = vunpack.c.h.b16 %v3420
    %v4127 = vunpack.c.l.b16 %v3421
    %v4128 = vunpack.c.h.b16 %v3421
    %v4129 = vunpack.c.l.b16 %v3422
    %v4130 = vunpack.c.h.b16 %v3422
    %v4131 = vunpack.c.l.b16 %v3423
    %v4132 = vunpack.c.l.b16 %v3424
    %v4133 = vunpack.c.h.b16 %v3424
    %v4134 = vunpack.c.l.b16 %v3425
    %v4135 = vunpack.c.h.b16 %v3425
    %v4136 = vunpack.c.l.b16 %v3426
    %v4137 = vunpack.c.h.b16 %v3426
    %v4138 = vunpack.c.l.b16 %v3427
    %v4139 = vunpack.c.l.b16 %v3428
    %v4140 = vunpack.c.h.b16 %v3428
    %v4141 = vunpack.c.l.b16 %v3429
    %v4142 = vunpack.c.h.b16 %v3429
    %v4143 = vunpack.c.l.b16 %v3430
    %v4144 = vunpack.c.h.b16 %v3430
    %v4145 = vunpack.c.l.b16 %v3431
    %v4146 = vunpack.c.l.b16 %v3432
    %v4147 = vunpack.c.h.b16 %v3432
    %v4148 = vunpack.c.l.b16 %v3433
    %v4149 = vunpack.c.h.b16 %v3433
    %v4150 = vunpack.c.l.b16 %v3434
    %v4151 = vunpack.c.h.b16 %v3434
    %v4152 = vunpack.c.l.b16 %v3435
    %v4153 = vunpack.c.l.b16 %v3436
    %v4154 = vunpack.c.h.b16 %v3436
    %v4155 = vunpack.c.l.b16 %v3437
    %v4156 = vunpack.c.h.b16 %v3437
    %v4157 = vunpack.c.l.b16 %v3438
    %v4158 = vunpack.c.h.b16 %v3438
    %v4159 = vunpack.c.l.b16 %v3439
    %v4160 = vunpack.c.l.b16 %v3440
    %v4161 = vunpack.c.h.b16 %v3440
    %v4162 = vunpack.c.l.b16 %v3441
    %v4163 = vunpack.c.h.b16 %v3441
    %v4164 = vunpack.c.l.b16 %v3442
    %v4165 = vunpack.c.h.b16 %v3442
    %v4166 = vunpack.c.l.b16 %v3443
    %v4167 = vunpack.c.l.b16 %v3444
    %v4168 = vunpack.c.h.b16 %v3444
    %v4169 = vunpack.c.l.b16 %v3445
    %v4170 = vunpack.c.h.b16 %v3445
    %v4171 = vunpack.c.l.b16 %v3446
    %v4172 = vunpack.c.h.b16 %v3446
    %v4173 = vunpack.c.l.b16 %v3447
    %v4174 = vunpack.c.l.b16 %v3448
    %v4175 = vunpack.c.h.b16 %v3448
    %v4176 = vunpack.c.l.b16 %v3449
    %v4177 = vunpack.c.h.b16 %v3449
    %v4178 = vunpack.c.l.b16 %v3450
    %v4179 = vunpack.c.h.b16 %v3450
    %v4180 = vunpack.c.l.b16 %v3451
    %v4181 = vunpack.c.l.b16 %v3452
    %v4182 = vunpack.c.h.b16 %v3452
    %v4183 = vunpack.c.l.b16 %v3453
    %v4184 = vunpack.c.h.b16 %v3453
    %v4185 = vunpack.c.l.b16 %v3454
    %v4186 = vunpack.c.h.b16 %v3454
    %v4187 = vunpack.c.l.b16 %v3455
    %v4188 = vunpack.c.l.b16 %v3456
    %v4189 = vunpack.c.h.b16 %v3456
    %v4190 = vunpack.c.l.b16 %v3457
    %v4191 = vunpack.c.h.b16 %v3457
    %v4192 = vunpack.c.l.b16 %v3458
    %v4193 = vunpack.c.h.b16 %v3458
    %v4194 = vunpack.c.l.b16 %v3459
    %v4195 = vunpack.c.l.b16 %v3460
    %v4196 = vunpack.c.h.b16 %v3460
    %v4197 = vunpack.c.l.b16 %v3461
    %v4198 = vunpack.c.h.b16 %v3461
    %v4199 = vunpack.c.l.b16 %v3462
    %v4200 = vunpack.c.h.b16 %v3462
    %v4201 = vunpack.c.l.b16 %v3463
    %v4202 = vunpack.c.l.b16 %v3464
    %v4203 = vunpack.c.h.b16 %v3464
    %v4204 = vunpack.c.l.b16 %v3465
    %v4205 = vunpack.c.h.b16 %v3465
    %v4206 = vunpack.c.l.b16 %v3466
    %v4207 = vunpack.c.h.b16 %v3466
    %v4208 = vunpack.c.l.b16 %v3467
    %v4209 = vpack.c.b16 %v3768, %v3761
    %v4210 = vpack.c.b16 %v3769, %v3762
    %v4211 = vpack.c.b16 %v3770, %v3763
    %v4212 = vpack.c.b16 %v3771, %v3764
    %v4213 = vpack.c.b16 %v3772, %v3765
    %v4214 = vpack.c.b16 %v3773, %v3766
    %v4215 = vpack.c.b16 %v3774, %v3767
    %v4216 = vpack.c.b16 %v3782, %v3775
    %v4217 = vpack.c.b16 %v3783, %v3776
    %v4218 = vpack.c.b16 %v3784, %v3777
    %v4219 = vpack.c.b16 %v3785, %v3778
    %v4220 = vpack.c.b16 %v3786, %v3779
    %v4221 = vpack.c.b16 %v3787, %v3780
    %v4222 = vpack.c.b16 %v3788, %v3781
    %v4223 = vpack.c.b16 %v3796, %v3789
    %v4224 = vpack.c.b16 %v3797, %v3790
    %v4225 = vpack.c.b16 %v3798, %v3791
    %v4226 = vpack.c.b16 %v3799, %v3792
    %v4227 = vpack.c.b16 %v3800, %v3793
    %v4228 = vpack.c.b16 %v3801, %v3794
    %v4229 = vpack.c.b16 %v3802, %v3795
    %v4230 = vpack.c.b16 %v3810, %v3803
    %v4231 = vpack.c.b16 %v3811, %v3804
    %v4232 = vpack.c.b16 %v3812, %v3805
    %v4233 = vpack.c.b16 %v3813, %v3806
    %v4234 = vpack.c.b16 %v3814, %v3807
    %v4235 = vpack.c.b16 %v3815, %v3808
    %v4236 = vpack.c.b16 %v3816, %v3809
    %v4237 = vpack.c.b16 %v3824, %v3817
    %v4238 = vpack.c.b16 %v3825, %v3818
    %v4239 = vpack.c.b16 %v3826, %v3819
    %v4240 = vpack.c.b16 %v3827, %v3820
    %v4241 = vpack.c.b16 %v3828, %v3821
    %v4242 = vpack.c.b16 %v3829, %v3822
    %v4243 = vpack.c.b16 %v3830, %v3823
    %v4244 = vpack.c.b16 %v3838, %v3831
    %v4245 = vpack.c.b16 %v3839, %v3832
    %v4246 = vpack.c.b16 %v3840, %v3833
    %v4247 = vpack.c.b16 %v3841, %v3834
    %v4248 = vpack.c.b16 %v3842, %v3835
    %v4249 = vpack.c.b16 %v3843, %v3836
    %v4250 = vpack.c.b16 %v3844, %v3837
    %v4251 = vpack.c.b16 %v3852, %v3845
    %v4252 = vpack.c.b16 %v3853, %v3846
    %v4253 = vpack.c.b16 %v3854, %v3847
    %v4254 = vpack.c.b16 %v3855, %v3848
    %v4255 = vpack.c.b16 %v3856, %v3849
    %v4256 = vpack.c.b16 %v3857, %v3850
    %v4257 = vpack.c.b16 %v3858, %v3851
    %v4258 = vpack.c.b16 %v3866, %v3859
    %v4259 = vpack.c.b16 %v3867, %v3860
    %v4260 = vpack.c.b16 %v3868, %v3861
    %v4261 = vpack.c.b16 %v3869, %v3862
    %v4262 = vpack.c.b16 %v3870, %v3863
    %v4263 = vpack.c.b16 %v3871, %v3864
    %v4264 = vpack.c.b16 %v3872, %v3865
    %v4265 = vpack.c.b16 %v3880, %v3873
    %v4266 = vpack.c.b16 %v3881, %v3874
    %v4267 = vpack.c.b16 %v3882, %v3875
    %v4268 = vpack.c.b16 %v3883, %v3876
    %v4269 = vpack.c.b16 %v3884, %v3877
    %v4270 = vpack.c.b16 %v3885, %v3878
    %v4271 = vpack.c.b16 %v3886, %v3879
    %v4272 = vpack.c.b16 %v3894, %v3887
    %v4273 = vpack.c.b16 %v3895, %v3888
    %v4274 = vpack.c.b16 %v3896, %v3889
    %v4275 = vpack.c.b16 %v3897, %v3890
    %v4276 = vpack.c.b16 %v3898, %v3891
    %v4277 = vpack.c.b16 %v3899, %v3892
    %v4278 = vpack.c.b16 %v3900, %v3893
    %v4279 = vpack.c.b16 %v3908, %v3901
    %v4280 = vpack.c.b16 %v3909, %v3902
    %v4281 = vpack.c.b16 %v3910, %v3903
    %v4282 = vpack.c.b16 %v3911, %v3904
    %v4283 = vpack.c.b16 %v3912, %v3905
    %v4284 = vpack.c.b16 %v3913, %v3906
    %v4285 = vpack.c.b16 %v3914, %v3907
    %v4286 = vpack.c.b16 %v3922, %v3915
    %v4287 = vpack.c.b16 %v3923, %v3916
    %v4288 = vpack.c.b16 %v3924, %v3917
    %v4289 = vpack.c.b16 %v3925, %v3918
    %v4290 = vpack.c.b16 %v3926, %v3919
    %v4291 = vpack.c.b16 %v3927, %v3920
    %v4292 = vpack.c.b16 %v3928, %v3921
    %v4293 = vpack.c.b16 %v3936, %v3929
    %v4294 = vpack.c.b16 %v3937, %v3930
    %v4295 = vpack.c.b16 %v3938, %v3931
    %v4296 = vpack.c.b16 %v3939, %v3932
    %v4297 = vpack.c.b16 %v3940, %v3933
    %v4298 = vpack.c.b16 %v3941, %v3934
    %v4299 = vpack.c.b16 %v3942, %v3935
    %v4300 = vpack.c.b16 %v3950, %v3943
    %v4301 = vpack.c.b16 %v3951, %v3944
    %v4302 = vpack.c.b16 %v3952, %v3945
    %v4303 = vpack.c.b16 %v3953, %v3946
    %v4304 = vpack.c.b16 %v3954, %v3947
    %v4305 = vpack.c.b16 %v3955, %v3948
    %v4306 = vpack.c.b16 %v3956, %v3949
    %v4307 = vpack.c.b16 %v3964, %v3957
    %v4308 = vpack.c.b16 %v3965, %v3958
    %v4309 = vpack.c.b16 %v3966, %v3959
    %v4310 = vpack.c.b16 %v3967, %v3960
    %v4311 = vpack.c.b16 %v3968, %v3961
    %v4312 = vpack.c.b16 %v3969, %v3962
    %v4313 = vpack.c.b16 %v3970, %v3963
    %v4314 = vpack.c.b16 %v3978, %v3971
    %v4315 = vpack.c.b16 %v3979, %v3972
    %v4316 = vpack.c.b16 %v3980, %v3973
    %v4317 = vpack.c.b16 %v3981, %v3974
    %v4318 = vpack.c.b16 %v3982, %v3975
    %v4319 = vpack.c.b16 %v3983, %v3976
    %v4320 = vpack.c.b16 %v3984, %v3977
    %v4321 = vpack.c.b16 %v3992, %v3985
    %v4322 = vpack.c.b16 %v3993, %v3986
    %v4323 = vpack.c.b16 %v3994, %v3987
    %v4324 = vpack.c.b16 %v3995, %v3988
    %v4325 = vpack.c.b16 %v3996, %v3989
    %v4326 = vpack.c.b16 %v3997, %v3990
    %v4327 = vpack.c.b16 %v3998, %v3991
    %v4328 = vpack.c.b16 %v4006, %v3999
    %v4329 = vpack.c.b16 %v4007, %v4000
    %v4330 = vpack.c.b16 %v4008, %v4001
    %v4331 = vpack.c.b16 %v4009, %v4002
    %v4332 = vpack.c.b16 %v4010, %v4003
    %v4333 = vpack.c.b16 %v4011, %v4004
    %v4334 = vpack.c.b16 %v4012, %v4005
    %v4335 = vpack.c.b16 %v4020, %v4013
    %v4336 = vpack.c.b16 %v4021, %v4014
    %v4337 = vpack.c.b16 %v4022, %v4015
    %v4338 = vpack.c.b16 %v4023, %v4016
    %v4339 = vpack.c.b16 %v4024, %v4017
    %v4340 = vpack.c.b16 %v4025, %v4018
    %v4341 = vpack.c.b16 %v4026, %v4019
    %v4342 = vpack.c.b16 %v4034, %v4027
    %v4343 = vpack.c.b16 %v4035, %v4028
    %v4344 = vpack.c.b16 %v4036, %v4029
    %v4345 = vpack.c.b16 %v4037, %v4030
    %v4346 = vpack.c.b16 %v4038, %v4031
    %v4347 = vpack.c.b16 %v4039, %v4032
    %v4348 = vpack.c.b16 %v4040, %v4033
    %v4349 = vpack.c.b16 %v4048, %v4041
    %v4350 = vpack.c.b16 %v4049, %v4042
    %v4351 = vpack.c.b16 %v4050, %v4043
    %v4352 = vpack.c.b16 %v4051, %v4044
    %v4353 = vpack.c.b16 %v4052, %v4045
    %v4354 = vpack.c.b16 %v4053, %v4046
    %v4355 = vpack.c.b16 %v4054, %v4047
    %v4356 = vpack.c.b16 %v4062, %v4055
    %v4357 = vpack.c.b16 %v4063, %v4056
    %v4358 = vpack.c.b16 %v4064, %v4057
    %v4359 = vpack.c.b16 %v4065, %v4058
    %v4360 = vpack.c.b16 %v4066, %v4059
    %v4361 = vpack.c.b16 %v4067, %v4060
    %v4362 = vpack.c.b16 %v4068, %v4061
    %v4363 = vpack.c.b16 %v4076, %v4069
    %v4364 = vpack.c.b16 %v4077, %v4070
    %v4365 = vpack.c.b16 %v4078, %v4071
    %v4366 = vpack.c.b16 %v4079, %v4072
    %v4367 = vpack.c.b16 %v4080, %v4073
    %v4368 = vpack.c.b16 %v4081, %v4074
    %v4369 = vpack.c.b16 %v4082, %v4075
    %v4370 = vpack.c.b16 %v4090, %v4083
    %v4371 = vpack.c.b16 %v4091, %v4084
    %v4372 = vpack.c.b16 %v4092, %v4085
    %v4373 = vpack.c.b16 %v4093, %v4086
    %v4374 = vpack.c.b16 %v4094, %v4087
    %v4375 = vpack.c.b16 %v4095, %v4088
    %v4376 = vpack.c.b16 %v4096, %v4089
    %v4377 = vpack.c.b16 %v4104, %v4097
    %v4378 = vpack.c.b16 %v4105, %v4098
    %v4379 = vpack.c.b16 %v4106, %v4099
    %v4380 = vpack.c.b16 %v4107, %v4100
    %v4381 = vpack.c.b16 %v4108, %v4101
    %v4382 = vpack.c.b16 %v4109, %v4102
    %v4383 = vpack.c.b16 %v4110, %v4103
    %v4384 = vpack.c.b16 %v4118, %v4111
    %v4385 = vpack.c.b16 %v4119, %v4112
    %v4386 = vpack.c.b16 %v4120, %v4113
    %v4387 = vpack.c.b16 %v4121, %v4114
    %v4388 = vpack.c.b16 %v4122, %v4115
    %v4389 = vpack.c.b16 %v4123, %v4116
    %v4390 = vpack.c.b16 %v4124, %v4117
    %v4391 = vpack.c.b16 %v4132, %v4125
    %v4392 = vpack.c.b16 %v4133, %v4126
    %v4393 = vpack.c.b16 %v4134, %v4127
    %v4394 = vpack.c.b16 %v4135, %v4128
    %v4395 = vpack.c.b16 %v4136, %v4129
    %v4396 = vpack.c.b16 %v4137, %v4130
    %v4397 = vpack.c.b16 %v4138, %v4131
    %v4398 = vpack.c.b16 %v4146, %v4139
    %v4399 = vpack.c.b16 %v4147, %v4140
    %v4400 = vpack.c.b16 %v4148, %v4141
    %v4401 = vpack.c.b16 %v4149, %v4142
    %v4402 = vpack.c.b16 %v4150, %v4143
    %v4403 = vpack.c.b16 %v4151, %v4144
    %v4404 = vpack.c.b16 %v4152, %v4145
    %v4405 = vpack.c.b16 %v4160, %v4153
    %v4406 = vpack.c.b16 %v4161, %v4154
    %v4407 = vpack.c.b16 %v4162, %v4155
    %v4408 = vpack.c.b16 %v4163, %v4156
    %v4409 = vpack.c.b16 %v4164, %v4157
    %v4410 = vpack.c.b16 %v4165, %v4158
    %v4411 = vpack.c.b16 %v4166, %v4159
    %v4412 = vpack.c.b16 %v4174, %v4167
    %v4413 = vpack.c.b16 %v4175, %v4168
    %v4414 = vpack.c.b16 %v4176, %v4169
    %v4415 = vpack.c.b16 %v4177, %v4170
    %v4416 = vpack.c.b16 %v4178, %v4171
    %v4417 = vpack.c.b16 %v4179, %v4172
    %v4418 = vpack.c.b16 %v4180, %v4173
    %v4419 = vpack.c.b16 %v4188, %v4181
    %v4420 = vpack.c.b16 %v4189, %v4182
    %v4421 = vpack.c.b16 %v4190, %v4183
    %v4422 = vpack.c.b16 %v4191, %v4184
    %v4423 = vpack.c.b16 %v4192, %v4185
    %v4424 = vpack.c.b16 %v4193, %v4186
    %v4425 = vpack.c.b16 %v4194, %v4187
    %v4426 = vpack.c.b16 %v4202, %v4195
    %v4427 = vpack.c.b16 %v4203, %v4196
    %v4428 = vpack.c.b16 %v4204, %v4197
    %v4429 = vpack.c.b16 %v4205, %v4198
    %v4430 = vpack.c.b16 %v4206, %v4199
    %v4431 = vpack.c.b16 %v4207, %v4200
    %v4432 = vpack.c.b16 %v4208, %v4201
    %4657 = vmatprep.subr.bf16.mxu0 %v4210
    %4658 = vmatpush1.bf16.msra.mxu0 %v4209
    %4659 = vmatprep.subr.bf16.mxu0 %v4217
    %4660 = vmatpush1.bf16.msra.mxu0 %v4216
    %4661 = vmatprep.subr.bf16.mxu0 %v4224
    %4662 = vmatpush1.bf16.msra.mxu0 %v4223
    %4663 = vmatprep.subr.bf16.mxu0 %v4231
    %4664 = vmatpush1.bf16.msra.mxu0 %v4230
    %4665 = vmatprep.subr.bf16.mxu0 %v4238
    %4666 = vmatpush1.bf16.msra.mxu0 %v4237
    %4667 = vmatprep.subr.bf16.mxu0 %v4245
    %4668 = vmatpush1.bf16.msra.mxu0 %v4244
    %4669 = vmatprep.subr.bf16.mxu0 %v4252
    %4670 = vmatpush1.bf16.msra.mxu0 %v4251
    %4671 = vmatprep.subr.bf16.mxu0 %v4259
    %4672 = vmatpush1.bf16.msra.mxu0 %v4258
    %4673 = vmatprep.subr.bf16.mxu0 %v4266
    %4674 = vmatpush1.bf16.msra.mxu0 %v4265
    %4675 = vmatprep.subr.bf16.mxu0 %v4273
    %4676 = vmatpush1.bf16.msra.mxu0 %v4272
    %4677 = vmatprep.subr.bf16.mxu0 %v4280
    %4678 = vmatpush1.bf16.msra.mxu0 %v4279
    %4679 = vmatprep.subr.bf16.mxu0 %v4287
    %4680 = vmatpush1.bf16.msra.mxu0 %v4286
    %4681 = vmatprep.subr.bf16.mxu0 %v4294
    %4682 = vmatpush1.bf16.msra.mxu0 %v4293
    %4683 = vmatprep.subr.bf16.mxu0 %v4301
    %4684 = vmatpush1.bf16.msra.mxu0 %v4300
    %4685 = vmatprep.subr.bf16.mxu0 %v4308
    %4686 = vmatpush1.bf16.msra.mxu0 %v4307
    %4687 = vmatprep.subr.bf16.mxu0 %v4315
    %4688 = vmatpush1.bf16.msra.mxu0 %v4314
    %4689 = vmatprep.mubr.bf16.mxu0 %v3197
    %4690 = vmatmul.mubr.bf16.gmra.mrb[0].mxu0 %v3196
    %v4691 = vpop.f32.mrb[0].mxu0
    %v4692 = vadd.f32 %v3473, %v4691
    %v4693 = vpop.f32.mrb[0].mxu0
    %v4694 = vadd.f32 %v3477, %v4693
    %v4695 = vpop.f32.mrb[0].mxu0
    %v4696 = vadd.f32 %v3473, %v4695
    %v4697 = vpop.f32.mrb[0].mxu0
    %v4698 = vadd.f32 %v3477, %v4697
    %4699 = vmatprep.mubr.bf16.mxu0 %v3201
    %4700 = vmatmul.mubr.bf16.gmra.mrb[0].mxu0 %v3200
    %v4701 = vpop.f32.mrb[0].mxu0
    %v4702 = vadd.f32 %v3473, %v4701
    %v4703 = vpop.f32.mrb[0].mxu0
    %v4704 = vadd.f32 %v3477, %v4703
    %v4705 = vpop.f32.mrb[0].mxu0
    %v4706 = vadd.f32 %v3473, %v4705
    %v4707 = vpop.f32.mrb[0].mxu0
    %v4708 = vadd.f32 %v3477, %v4707
    %4709 = vmatprep.mubr.bf16.mxu0 %v3205
    %4710 = vmatmul.mubr.bf16.gmra.mrb[0].mxu0 %v3204
    %v4711 = vpop.f32.mrb[0].mxu0
    %v4712 = vadd.f32 %v3473, %v4711
    %v4713 = vpop.f32.mrb[0].mxu0
    %v4714 = vadd.f32 %v3477, %v4713
    %v4715 = vpop.f32.mrb[0].mxu0
    %v4716 = vadd.f32 %v3473, %v4715
    %v4717 = vpop.f32.mrb[0].mxu0
    %v4718 = vadd.f32 %v3477, %v4717
    %4719 = vmatprep.mubr.bf16.mxu0 %v3209
    %4720 = vmatmul.mubr.bf16.gmra.mrb[0].mxu0 %v3208
    %v4721 = vpop.f32.mrb[0].mxu0
    %v4722 = vadd.f32 %v3473, %v4721
    %v4723 = vpop.f32.mrb[0].mxu0
    %v4724 = vadd.f32 %v3477, %v4723
    %v4725 = vpop.f32.mrb[0].mxu0
    %v4726 = vadd.f32 %v3473, %v4725
    %v4727 = vpop.f32.mrb[0].mxu0
    %v4728 = vadd.f32 %v3477, %v4727
    %4729 = vdwg.mxu0
    %4730 = vmatprep.subr.bf16.mxu0 %v4322
    %4731 = vmatpush1.bf16.msra.mxu0 %v4321
    %4732 = vmatprep.subr.bf16.mxu0 %v4329
    %4733 = vmatpush1.bf16.msra.mxu0 %v4328
    %4734 = vmatprep.subr.bf16.mxu0 %v4336
    %4735 = vmatpush1.bf16.msra.mxu0 %v4335
    %4736 = vmatprep.subr.bf16.mxu0 %v4343
    %4737 = vmatpush1.bf16.msra.mxu0 %v4342
    %4738 = vmatprep.subr.bf16.mxu0 %v4350
    %4739 = vmatpush1.bf16.msra.mxu0 %v4349
    %4740 = vmatprep.subr.bf16.mxu0 %v4357
    %4741 = vmatpush1.bf16.msra.mxu0 %v4356
    %4742 = vmatprep.subr.bf16.mxu0 %v4364
    %4743 = vmatpush1.bf16.msra.mxu0 %v4363
    %4744 = vmatprep.subr.bf16.mxu0 %v4371
    %4745 = vmatpush1.bf16.msra.mxu0 %v4370
    %4746 = vmatprep.subr.bf16.mxu0 %v4378
    %4747 = vmatpush1.bf16.msra.mxu0 %v4377
    %4748 = vmatprep.subr.bf16.mxu0 %v4385
    %4749 = vmatpush1.bf16.msra.mxu0 %v4384
    %4750 = vmatprep.subr.bf16.mxu0 %v4392
    %4751 = vmatpush1.bf16.msra.mxu0 %v4391
    %4752 = vmatprep.subr.bf16.mxu0 %v4399
    %4753 = vmatpush1.bf16.msra.mxu0 %v4398
    %4754 = vmatprep.subr.bf16.mxu0 %v4406
    %4755 = vmatpush1.bf16.msra.mxu0 %v4405
    %4756 = vmatprep.subr.bf16.mxu0 %v4413
    %4757 = vmatpush1.bf16.msra.mxu0 %v4412
    %4758 = vmatprep.subr.bf16.mxu0 %v4420
    %4759 = vmatpush1.bf16.msra.mxu0 %v4419
    %4760 = vmatprep.subr.bf16.mxu0 %v4427
    %4761 = vmatpush1.bf16.msra.mxu0 %v4426
    %4762 = vmatprep.mubr.bf16.mxu0 %v3199
    %4763 = vmatmul.mubr.bf16.gmra.mrb[0].mxu0 %v3198
    %v4764 = vpop.f32.mrb[0].mxu0
    %v4765 = vadd.f32 %v4692, %v4764
    %v4766 = vpop.f32.mrb[0].mxu0
    %v4767 = vadd.f32 %v4694, %v4766
    %v4768 = vpop.f32.mrb[0].mxu0
    %v4769 = vadd.f32 %v4696, %v4768
    %v4770 = vpop.f32.mrb[0].mxu0
    %v4771 = vadd.f32 %v4698, %v4770
    %4772 = vmatprep.mubr.bf16.mxu0 %v3203
    %4773 = vmatmul.mubr.bf16.gmra.mrb[0].mxu0 %v3202
    %v4774 = vpop.f32.mrb[0].mxu0
    %v4775 = vadd.f32 %v4702, %v4774
    %v4776 = vpop.f32.mrb[0].mxu0
    %v4777 = vadd.f32 %v4704, %v4776
    %v4778 = vpop.f32.mrb[0].mxu0
    %v4779 = vadd.f32 %v4706, %v4778
    %v4780 = vpop.f32.mrb[0].mxu0
    %v4781 = vadd.f32 %v4708, %v4780
    %4782 = vmatprep.mubr.bf16.mxu0 %v3207
    %4783 = vmatmul.mubr.bf16.gmra.mrb[0].mxu0 %v3206
    %v4784 = vpop.f32.mrb[0].mxu0
    %v4785 = vadd.f32 %v4712, %v4784
    %v4786 = vpop.f32.mrb[0].mxu0
    %v4787 = vadd.f32 %v4714, %v4786
    %v4788 = vpop.f32.mrb[0].mxu0
    %v4789 = vadd.f32 %v4716, %v4788
    %v4790 = vpop.f32.mrb[0].mxu0
    %v4791 = vadd.f32 %v4718, %v4790
    %4792 = vmatprep.mubr.bf16.mxu0 %v3211
    %4793 = vmatmul.mubr.bf16.gmra.mrb[0].mxu0 %v3210
    %v4794 = vpop.f32.mrb[0].mxu0
    %v4795 = vadd.f32 %v4722, %v4794
    %v4796 = vpop.f32.mrb[0].mxu0
    %v4797 = vadd.f32 %v4724, %v4796
    %v4798 = vpop.f32.mrb[0].mxu0
    %v4799 = vadd.f32 %v4726, %v4798
    %v4800 = vpop.f32.mrb[0].mxu0
    %v4801 = vadd.f32 %v4728, %v4800
    %4802 = vdwg.mxu0
    %4803 = vmatprep.subr.bf16.mxu0 %v4212
    %4804 = vmatpush1.bf16.msra.mxu0 %v4211
    %4805 = vmatprep.subr.bf16.mxu0 %v4219
    %4806 = vmatpush1.bf16.msra.mxu0 %v4218
    %4807 = vmatprep.subr.bf16.mxu0 %v4226
    %4808 = vmatpush1.bf16.msra.mxu0 %v4225
    %4809 = vmatprep.subr.bf16.mxu0 %v4233
    %4810 = vmatpush1.bf16.msra.mxu0 %v4232
    %4811 = vmatprep.subr.bf16.mxu0 %v4240
    %4812 = vmatpush1.bf16.msra.mxu0 %v4239
    %4813 = vmatprep.subr.bf16.mxu0 %v4247
    %4814 = vmatpush1.bf16.msra.mxu0 %v4246
    %4815 = vmatprep.subr.bf16.mxu0 %v4254
    %4816 = vmatpush1.bf16.msra.mxu0 %v4253
    %4817 = vmatprep.subr.bf16.mxu0 %v4261
    %4818 = vmatpush1.bf16.msra.mxu0 %v4260
    %4819 = vmatprep.subr.bf16.mxu0 %v4268
    %4820 = vmatpush1.bf16.msra.mxu0 %v4267
    %4821 = vmatprep.subr.bf16.mxu0 %v4275
    %4822 = vmatpush1.bf16.msra.mxu0 %v4274
    %4823 = vmatprep.subr.bf16.mxu0 %v4282
    %4824 = vmatpush1.bf16.msra.mxu0 %v4281
    %4825 = vmatprep.subr.bf16.mxu0 %v4289
    %4826 = vmatpush1.bf16.msra.mxu0 %v4288
    %4827 = vmatprep.subr.bf16.mxu0 %v4296
    %4828 = vmatpush1.bf16.msra.mxu0 %v4295
    %4829 = vmatprep.subr.bf16.mxu0 %v4303
    %4830 = vmatpush1.bf16.msra.mxu0 %v4302
    %4831 = vmatprep.subr.bf16.mxu0 %v4310
    %4832 = vmatpush1.bf16.msra.mxu0 %v4309
    %4833 = vmatprep.subr.bf16.mxu0 %v4317
    %4834 = vmatpush1.bf16.msra.mxu0 %v4316
    %4835 = vmatprep.mubr.bf16.mxu0 %v3197
    %4836 = vmatmul.mubr.bf16.gmra.mrb[0].mxu0 %v3196
    %v4837 = vpop.f32.mrb[0].mxu0
    %v4838 = vadd.f32 %v3481, %v4837
    %v4839 = vpop.f32.mrb[0].mxu0
    %v4840 = vadd.f32 %v3485, %v4839
    %v4841 = vpop.f32.mrb[0].mxu0
    %v4842 = vadd.f32 %v3481, %v4841
    %v4843 = vpop.f32.mrb[0].mxu0
    %v4844 = vadd.f32 %v3485, %v4843
    %4845 = vmatprep.mubr.bf16.mxu0 %v3201
    %4846 = vmatmul.mubr.bf16.gmra.mrb[0].mxu0 %v3200
    %v4847 = vpop.f32.mrb[0].mxu0
    %v4848 = vadd.f32 %v3481, %v4847
    %v4849 = vpop.f32.mrb[0].mxu0
    %v4850 = vadd.f32 %v3485, %v4849
    %v4851 = vpop.f32.mrb[0].mxu0
    %v4852 = vadd.f32 %v3481, %v4851
    %v4853 = vpop.f32.mrb[0].mxu0
    %v4854 = vadd.f32 %v3485, %v4853
    %4855 = vmatprep.mubr.bf16.mxu0 %v3205
    %4856 = vmatmul.mubr.bf16.gmra.mrb[0].mxu0 %v3204
    %v4857 = vpop.f32.mrb[0].mxu0
    %v4858 = vadd.f32 %v3481, %v4857
    %v4859 = vpop.f32.mrb[0].mxu0
    %v4860 = vadd.f32 %v3485, %v4859
    %v4861 = vpop.f32.mrb[0].mxu0
    %v4862 = vadd.f32 %v3481, %v4861
    %v4863 = vpop.f32.mrb[0].mxu0
    %v4864 = vadd.f32 %v3485, %v4863
    %4865 = vmatprep.mubr.bf16.mxu0 %v3209
    %4866 = vmatmul.mubr.bf16.gmra.mrb[0].mxu0 %v3208
    %v4867 = vpop.f32.mrb[0].mxu0
    %v4868 = vadd.f32 %v3481, %v4867
    %v4869 = vpop.f32.mrb[0].mxu0
    %v4870 = vadd.f32 %v3485, %v4869
    %v4871 = vpop.f32.mrb[0].mxu0
    %v4872 = vadd.f32 %v3481, %v4871
    %v4873 = vpop.f32.mrb[0].mxu0
    %v4874 = vadd.f32 %v3485, %v4873
    %4875 = vdwg.mxu0
    %4876 = vmatprep.subr.bf16.mxu0 %v4324
    %4877 = vmatpush1.bf16.msra.mxu0 %v4323
    %4878 = vmatprep.subr.bf16.mxu0 %v4331
    %4879 = vmatpush1.bf16.msra.mxu0 %v4330
    %4880 = vmatprep.subr.bf16.mxu0 %v4338
    %4881 = vmatpush1.bf16.msra.mxu0 %v4337
    %4882 = vmatprep.subr.bf16.mxu0 %v4345
    %4883 = vmatpush1.bf16.msra.mxu0 %v4344
    %4884 = vmatprep.subr.bf16.mxu0 %v4352
    %4885 = vmatpush1.bf16.msra.mxu0 %v4351
    %4886 = vmatprep.subr.bf16.mxu0 %v4359
    %4887 = vmatpush1.bf16.msra.mxu0 %v4358
    %4888 = vmatprep.subr.bf16.mxu0 %v4366
    %4889 = vmatpush1.bf16.msra.mxu0 %v4365
    %4890 = vmatprep.subr.bf16.mxu0 %v4373
    %4891 = vmatpush1.bf16.msra.mxu0 %v4372
    %4892 = vmatprep.subr.bf16.mxu0 %v4380
    %4893 = vmatpush1.bf16.msra.mxu0 %v4379
    %4894 = vmatprep.subr.bf16.mxu0 %v4387
    %4895 = vmatpush1.bf16.msra.mxu0 %v4386
    %4896 = vmatprep.subr.bf16.mxu0 %v4394
    %4897 = vmatpush1.bf16.msra.mxu0 %v4393
    %4898 = vmatprep.subr.bf16.mxu0 %v4401
    %4899 = vmatpush1.bf16.msra.mxu0 %v4400
    %4900 = vmatprep.subr.bf16.mxu0 %v4408
    %4901 = vmatpush1.bf16.msra.mxu0 %v4407
    %4902 = vmatprep.subr.bf16.mxu0 %v4415
    %4903 = vmatpush1.bf16.msra.mxu0 %v4414
    %4904 = vmatprep.subr.bf16.mxu0 %v4422
    %4905 = vmatpush1.bf16.msra.mxu0 %v4421
    %4906 = vmatprep.subr.bf16.mxu0 %v4429
    %4907 = vmatpush1.bf16.msra.mxu0 %v4428
    %4908 = vmatprep.mubr.bf16.mxu0 %v3199
    %4909 = vmatmul.mubr.bf16.gmra.mrb[0].mxu0 %v3198
    %v4910 = vpop.f32.mrb[0].mxu0
    %v4911 = vadd.f32 %v4838, %v4910
    %v4912 = vpop.f32.mrb[0].mxu0
    %v4913 = vadd.f32 %v4840, %v4912
    %v4914 = vpop.f32.mrb[0].mxu0
    %v4915 = vadd.f32 %v4842, %v4914
    %v4916 = vpop.f32.mrb[0].mxu0
    %v4917 = vadd.f32 %v4844, %v4916
    %4918 = vmatprep.mubr.bf16.mxu0 %v3203
    %4919 = vmatmul.mubr.bf16.gmra.mrb[0].mxu0 %v3202
    %v4920 = vpop.f32.mrb[0].mxu0
    %v4921 = vadd.f32 %v4848, %v4920
    %v4922 = vpop.f32.mrb[0].mxu0
    %v4923 = vadd.f32 %v4850, %v4922
    %v4924 = vpop.f32.mrb[0].mxu0
    %v4925 = vadd.f32 %v4852, %v4924
    %v4926 = vpop.f32.mrb[0].mxu0
    %v4927 = vadd.f32 %v4854, %v4926
    %4928 = vmatprep.mubr.bf16.mxu0 %v3207
    %4929 = vmatmul.mubr.bf16.gmra.mrb[0].mxu0 %v3206
    %v4930 = vpop.f32.mrb[0].mxu0
    %v4931 = vadd.f32 %v4858, %v4930
    %v4932 = vpop.f32.mrb[0].mxu0
    %v4933 = vadd.f32 %v4860, %v4932
    %v4934 = vpop.f32.mrb[0].mxu0
    %v4935 = vadd.f32 %v4862, %v4934
    %v4936 = vpop.f32.mrb[0].mxu0
    %v4937 = vadd.f32 %v4864, %v4936
    %4938 = vmatprep.mubr.bf16.mxu0 %v3211
    %4939 = vmatmul.mubr.bf16.gmra.mrb[0].mxu0 %v3210
    %v4940 = vpop.f32.mrb[0].mxu0
    %v4941 = vadd.f32 %v4868, %v4940
    %v4942 = vpop.f32.mrb[0].mxu0
    %v4943 = vadd.f32 %v4870, %v4942
    %v4944 = vpop.f32.mrb[0].mxu0
    %v4945 = vadd.f32 %v4872, %v4944
    %v4946 = vpop.f32.mrb[0].mxu0
    %v4947 = vadd.f32 %v4874, %v4946
    %4948 = vdwg.mxu0
    %4949 = vmatprep.subr.bf16.mxu0 %v4214
    %4950 = vmatpush1.bf16.msra.mxu0 %v4213
    %4951 = vmatprep.subr.bf16.mxu0 %v4221
    %4952 = vmatpush1.bf16.msra.mxu0 %v4220
    %4953 = vmatprep.subr.bf16.mxu0 %v4228
    %4954 = vmatpush1.bf16.msra.mxu0 %v4227
    %4955 = vmatprep.subr.bf16.mxu0 %v4235
    %4956 = vmatpush1.bf16.msra.mxu0 %v4234
    %4957 = vmatprep.subr.bf16.mxu0 %v4242
    %4958 = vmatpush1.bf16.msra.mxu0 %v4241
    %4959 = vmatprep.subr.bf16.mxu0 %v4249
    %4960 = vmatpush1.bf16.msra.mxu0 %v4248
    %4961 = vmatprep.subr.bf16.mxu0 %v4256
    %4962 = vmatpush1.bf16.msra.mxu0 %v4255
    %4963 = vmatprep.subr.bf16.mxu0 %v4263
    %4964 = vmatpush1.bf16.msra.mxu0 %v4262
    %4965 = vmatprep.subr.bf16.mxu0 %v4270
    %4966 = vmatpush1.bf16.msra.mxu0 %v4269
    %4967 = vmatprep.subr.bf16.mxu0 %v4277
    %4968 = vmatpush1.bf16.msra.mxu0 %v4276
    %4969 = vmatprep.subr.bf16.mxu0 %v4284
    %4970 = vmatpush1.bf16.msra.mxu0 %v4283
    %4971 = vmatprep.subr.bf16.mxu0 %v4291
    %4972 = vmatpush1.bf16.msra.mxu0 %v4290
    %4973 = vmatprep.subr.bf16.mxu0 %v4298
    %4974 = vmatpush1.bf16.msra.mxu0 %v4297
    %4975 = vmatprep.subr.bf16.mxu0 %v4305
    %4976 = vmatpush1.bf16.msra.mxu0 %v4304
    %4977 = vmatprep.subr.bf16.mxu0 %v4312
    %4978 = vmatpush1.bf16.msra.mxu0 %v4311
    %4979 = vmatprep.subr.bf16.mxu0 %v4319
    %4980 = vmatpush1.bf16.msra.mxu0 %v4318
    %4981 = vmatprep.mubr.bf16.mxu0 %v3197
    %4982 = vmatmul.mubr.bf16.gmra.mrb[0].mxu0 %v3196
    %v4983 = vpop.f32.mrb[0].mxu0
    %v4984 = vadd.f32 %v3489, %v4983
    %v4985 = vpop.f32.mrb[0].mxu0
    %v4986 = vadd.f32 %v3493, %v4985
    %v4987 = vpop.f32.mrb[0].mxu0
    %v4988 = vadd.f32 %v3489, %v4987
    %v4989 = vpop.f32.mrb[0].mxu0
    %v4990 = vadd.f32 %v3493, %v4989
    %4991 = vmatprep.mubr.bf16.mxu0 %v3201
    %4992 = vmatmul.mubr.bf16.gmra.mrb[0].mxu0 %v3200
    %v4993 = vpop.f32.mrb[0].mxu0
    %v4994 = vadd.f32 %v3489, %v4993
    %v4995 = vpop.f32.mrb[0].mxu0
    %v4996 = vadd.f32 %v3493, %v4995
    %v4997 = vpop.f32.mrb[0].mxu0
    %v4998 = vadd.f32 %v3489, %v4997
    %v4999 = vpop.f32.mrb[0].mxu0
    %v5000 = vadd.f32 %v3493, %v4999
    %5001 = vmatprep.mubr.bf16.mxu0 %v3205
    %5002 = vmatmul.mubr.bf16.gmra.mrb[0].mxu0 %v3204
    %v5003 = vpop.f32.mrb[0].mxu0
    %v5004 = vadd.f32 %v3489, %v5003
    %v5005 = vpop.f32.mrb[0].mxu0
    %v5006 = vadd.f32 %v3493, %v5005
    %v5007 = vpop.f32.mrb[0].mxu0
    %v5008 = vadd.f32 %v3489, %v5007
    %v5009 = vpop.f32.mrb[0].mxu0
    %v5010 = vadd.f32 %v3493, %v5009
    %5011 = vmatprep.mubr.bf16.mxu0 %v3209
    %5012 = vmatmul.mubr.bf16.gmra.mrb[0].mxu0 %v3208
    %v5013 = vpop.f32.mrb[0].mxu0
    %v5014 = vadd.f32 %v3489, %v5013
    %v5015 = vpop.f32.mrb[0].mxu0
    %v5016 = vadd.f32 %v3493, %v5015
    %v5017 = vpop.f32.mrb[0].mxu0
    %v5018 = vadd.f32 %v3489, %v5017
    %v5019 = vpop.f32.mrb[0].mxu0
    %v5020 = vadd.f32 %v3493, %v5019
    %5021 = vdwg.mxu0
    %5022 = vmatprep.subr.bf16.mxu0 %v4326
    %5023 = vmatpush1.bf16.msra.mxu0 %v4325
    %5024 = vmatprep.subr.bf16.mxu0 %v4333
    %5025 = vmatpush1.bf16.msra.mxu0 %v4332
    %5026 = vmatprep.subr.bf16.mxu0 %v4340
    %5027 = vmatpush1.bf16.msra.mxu0 %v4339
    %5028 = vmatprep.subr.bf16.mxu0 %v4347
    %5029 = vmatpush1.bf16.msra.mxu0 %v4346
    %5030 = vmatprep.subr.bf16.mxu0 %v4354
    %5031 = vmatpush1.bf16.msra.mxu0 %v4353
    %5032 = vmatprep.subr.bf16.mxu0 %v4361
    %5033 = vmatpush1.bf16.msra.mxu0 %v4360
    %5034 = vmatprep.subr.bf16.mxu0 %v4368
    %5035 = vmatpush1.bf16.msra.mxu0 %v4367
    %5036 = vmatprep.subr.bf16.mxu0 %v4375
    %5037 = vmatpush1.bf16.msra.mxu0 %v4374
    %5038 = vmatprep.subr.bf16.mxu0 %v4382
    %5039 = vmatpush1.bf16.msra.mxu0 %v4381
    %5040 = vmatprep.subr.bf16.mxu0 %v4389
    %5041 = vmatpush1.bf16.msra.mxu0 %v4388
    %5042 = vmatprep.subr.bf16.mxu0 %v4396
    %5043 = vmatpush1.bf16.msra.mxu0 %v4395
    %5044 = vmatprep.subr.bf16.mxu0 %v4403
    %5045 = vmatpush1.bf16.msra.mxu0 %v4402
    %5046 = vmatprep.subr.bf16.mxu0 %v4410
    %5047 = vmatpush1.bf16.msra.mxu0 %v4409
    %5048 = vmatprep.subr.bf16.mxu0 %v4417
    %5049 = vmatpush1.bf16.msra.mxu0 %v4416
    %5050 = vmatprep.subr.bf16.mxu0 %v4424
    %5051 = vmatpush1.bf16.msra.mxu0 %v4423
    %5052 = vmatprep.subr.bf16.mxu0 %v4431
    %5053 = vmatpush1.bf16.msra.mxu0 %v4430
    %5054 = vmatprep.mubr.bf16.mxu0 %v3199
    %5055 = vmatmul.mubr.bf16.gmra.mrb[0].mxu0 %v3198
    %v5056 = vpop.f32.mrb[0].mxu0
    %v5057 = vadd.f32 %v4984, %v5056
    %v5058 = vpop.f32.mrb[0].mxu0
    %v5059 = vadd.f32 %v4986, %v5058
    %v5060 = vpop.f32.mrb[0].mxu0
    %v5061 = vadd.f32 %v4988, %v5060
    %v5062 = vpop.f32.mrb[0].mxu0
    %v5063 = vadd.f32 %v4990, %v5062
    %5064 = vmatprep.mubr.bf16.mxu0 %v3203
    %5065 = vmatmul.mubr.bf16.gmra.mrb[0].mxu0 %v3202
    %v5066 = vpop.f32.mrb[0].mxu0
    %v5067 = vadd.f32 %v4994, %v5066
    %v5068 = vpop.f32.mrb[0].mxu0
    %v5069 = vadd.f32 %v4996, %v5068
    %v5070 = vpop.f32.mrb[0].mxu0
    %v5071 = vadd.f32 %v4998, %v5070
    %v5072 = vpop.f32.mrb[0].mxu0
    %v5073 = vadd.f32 %v5000, %v5072
    %5074 = vmatprep.mubr.bf16.mxu0 %v3207
    %5075 = vmatmul.mubr.bf16.gmra.mrb[0].mxu0 %v3206
    %v5076 = vpop.f32.mrb[0].mxu0
    %v5077 = vadd.f32 %v5004, %v5076
    %v5078 = vpop.f32.mrb[0].mxu0
    %v5079 = vadd.f32 %v5006, %v5078
    %v5080 = vpop.f32.mrb[0].mxu0
    %v5081 = vadd.f32 %v5008, %v5080
    %v5082 = vpop.f32.mrb[0].mxu0
    %v5083 = vadd.f32 %v5010, %v5082
    %5084 = vmatprep.mubr.bf16.mxu0 %v3211
    %5085 = vmatmul.mubr.bf16.gmra.mrb[0].mxu0 %v3210
    %v5086 = vpop.f32.mrb[0].mxu0
    %v5087 = vadd.f32 %v5014, %v5086
    %v5088 = vpop.f32.mrb[0].mxu0
    %v5089 = vadd.f32 %v5016, %v5088
    %v5090 = vpop.f32.mrb[0].mxu0
    %v5091 = vadd.f32 %v5018, %v5090
    %v5092 = vpop.f32.mrb[0].mxu0
    %v5093 = vadd.f32 %v5020, %v5092
    %5094 = vdwg.mxu0
    %5095 = vmatprep.subr.bf16.mxu0 0
    %5096 = vmatpush1.bf16.msra.mxu0 %v4215
    %5097 = vmatprep.subr.bf16.mxu0 0
    %5098 = vmatpush1.bf16.msra.mxu0 %v4222
    %5099 = vmatprep.subr.bf16.mxu0 0
    %5100 = vmatpush1.bf16.msra.mxu0 %v4229
    %5101 = vmatprep.subr.bf16.mxu0 0
    %5102 = vmatpush1.bf16.msra.mxu0 %v4236
    %5103 = vmatprep.subr.bf16.mxu0 0
    %5104 = vmatpush1.bf16.msra.mxu0 %v4243
    %5105 = vmatprep.subr.bf16.mxu0 0
    %5106 = vmatpush1.bf16.msra.mxu0 %v4250
    %5107 = vmatprep.subr.bf16.mxu0 0
    %5108 = vmatpush1.bf16.msra.mxu0 %v4257
    %5109 = vmatprep.subr.bf16.mxu0 0
    %5110 = vmatpush1.bf16.msra.mxu0 %v4264
    %5111 = vmatprep.subr.bf16.mxu0 0
    %5112 = vmatpush1.bf16.msra.mxu0 %v4271
    %5113 = vmatprep.subr.bf16.mxu0 0
    %5114 = vmatpush1.bf16.msra.mxu0 %v4278
    %5115 = vmatprep.subr.bf16.mxu0 0
    %5116 = vmatpush1.bf16.msra.mxu0 %v4285
    %5117 = vmatprep.subr.bf16.mxu0 0
    %5118 = vmatpush1.bf16.msra.mxu0 %v4292
    %5119 = vmatprep.subr.bf16.mxu0 0
    %5120 = vmatpush1.bf16.msra.mxu0 %v4299
    %5121 = vmatprep.subr.bf16.mxu0 0
    %5122 = vmatpush1.bf16.msra.mxu0 %v4306
    %5123 = vmatprep.subr.bf16.mxu0 0
    %5124 = vmatpush1.bf16.msra.mxu0 %v4313
    %5125 = vmatprep.subr.bf16.mxu0 0
    %5126 = vmatpush1.bf16.msra.mxu0 %v4320
    %5127 = vmatprep.mubr.bf16.mxu0 %v3197
    %5128 = vmatmul.mubr.bf16.gmra.mrb[0].mxu0 %v3196
    %v5129 = vpop.f32.mrb[0].mxu0
    %v5130 = vadd.f32 %v3497, %v5129
    %v5131 = vpop.f32.mrb[0].mxu0
    %v5132 = vpop.f32.mrb[0].mxu0
    %v5133 = vadd.f32 %v3497, %v5132
    %v5134 = vpop.f32.mrb[0].mxu0
    %5135 = vmatprep.mubr.bf16.mxu0 %v3201
    %5136 = vmatmul.mubr.bf16.gmra.mrb[0].mxu0 %v3200
    %v5137 = vpop.f32.mrb[0].mxu0
    %v5138 = vadd.f32 %v3497, %v5137
    %v5139 = vpop.f32.mrb[0].mxu0
    %v5140 = vpop.f32.mrb[0].mxu0
    %v5141 = vadd.f32 %v3497, %v5140
    %v5142 = vpop.f32.mrb[0].mxu0
    %5143 = vmatprep.mubr.bf16.mxu0 %v3205
    %5144 = vmatmul.mubr.bf16.gmra.mrb[0].mxu0 %v3204
    %v5145 = vpop.f32.mrb[0].mxu0
    %v5146 = vadd.f32 %v3497, %v5145
    %v5147 = vpop.f32.mrb[0].mxu0
    %v5148 = vpop.f32.mrb[0].mxu0
    %v5149 = vadd.f32 %v3497, %v5148
    %v5150 = vpop.f32.mrb[0].mxu0
    %5151 = vmatprep.mubr.bf16.mxu0 %v3209
    %5152 = vmatmul.mubr.bf16.gmra.mrb[0].mxu0 %v3208
    %v5153 = vpop.f32.mrb[0].mxu0
    %v5154 = vadd.f32 %v3497, %v5153
    %v5155 = vpop.f32.mrb[0].mxu0
    %v5156 = vpop.f32.mrb[0].mxu0
    %v5157 = vadd.f32 %v3497, %v5156
    %v5158 = vpop.f32.mrb[0].mxu0
    %5159 = vdwg.mxu0
    %5160 = vmatprep.subr.bf16.mxu0 0
    %5161 = vmatpush1.bf16.msra.mxu0 %v4327
    %5162 = vmatprep.subr.bf16.mxu0 0
    %5163 = vmatpush1.bf16.msra.mxu0 %v4334
    %5164 = vmatprep.subr.bf16.mxu0 0
    %5165 = vmatpush1.bf16.msra.mxu0 %v4341
    %5166 = vmatprep.subr.bf16.mxu0 0
    %5167 = vmatpush1.bf16.msra.mxu0 %v4348
    %5168 = vmatprep.subr.bf16.mxu0 0
    %5169 = vmatpush1.bf16.msra.mxu0 %v4355
    %5170 = vmatprep.subr.bf16.mxu0 0
    %5171 = vmatpush1.bf16.msra.mxu0 %v4362
    %5172 = vmatprep.subr.bf16.mxu0 0
    %5173 = vmatpush1.bf16.msra.mxu0 %v4369
    %5174 = vmatprep.subr.bf16.mxu0 0
    %5175 = vmatpush1.bf16.msra.mxu0 %v4376
    %5176 = vmatprep.subr.bf16.mxu0 0
    %5177 = vmatpush1.bf16.msra.mxu0 %v4383
    %5178 = vmatprep.subr.bf16.mxu0 0
    %5179 = vmatpush1.bf16.msra.mxu0 %v4390
    %5180 = vmatprep.subr.bf16.mxu0 0
    %5181 = vmatpush1.bf16.msra.mxu0 %v4397
    %5182 = vmatprep.subr.bf16.mxu0 0
    %5183 = vmatpush1.bf16.msra.mxu0 %v4404
    %5184 = vmatprep.subr.bf16.mxu0 0
    %5185 = vmatpush1.bf16.msra.mxu0 %v4411
    %5186 = vmatprep.subr.bf16.mxu0 0
    %5187 = vmatpush1.bf16.msra.mxu0 %v4418
    %5188 = vmatprep.subr.bf16.mxu0 0
    %5189 = vmatpush1.bf16.msra.mxu0 %v4425
    %5190 = vmatprep.subr.bf16.mxu0 0
    %5191 = vmatpush1.bf16.msra.mxu0 %v4432
    %5192 = vmatprep.mubr.bf16.mxu0 %v3199
    %5193 = vmatmul.mubr.bf16.gmra.mrb[0].mxu0 %v3198
    %v5194 = vpop.f32.mrb[0].mxu0
    %v5195 = vadd.f32 %v5130, %v5194
    %v5196 = vpop.f32.mrb[0].mxu0
    %v5197 = vpop.f32.mrb[0].mxu0
    %v5198 = vadd.f32 %v5133, %v5197
    %v5199 = vpop.f32.mrb[0].mxu0
    %5200 = vmatprep.mubr.bf16.mxu0 %v3203
    %5201 = vmatmul.mubr.bf16.gmra.mrb[0].mxu0 %v3202
    %v5202 = vpop.f32.mrb[0].mxu0
    %v5203 = vadd.f32 %v5138, %v5202
    %v5204 = vpop.f32.mrb[0].mxu0
    %v5205 = vpop.f32.mrb[0].mxu0
    %v5206 = vadd.f32 %v5141, %v5205
    %v5207 = vpop.f32.mrb[0].mxu0
    %5208 = vmatprep.mubr.bf16.mxu0 %v3207
    %5209 = vmatmul.mubr.bf16.gmra.mrb[0].mxu0 %v3206
    %v5210 = vpop.f32.mrb[0].mxu0
    %v5211 = vadd.f32 %v5146, %v5210
    %v5212 = vpop.f32.mrb[0].mxu0
    %v5213 = vpop.f32.mrb[0].mxu0
    %v5214 = vadd.f32 %v5149, %v5213
    %v5215 = vpop.f32.mrb[0].mxu0
    %5216 = vmatprep.mubr.bf16.mxu0 %v3211
    %5217 = vmatmul.mubr.bf16.gmra.mrb[0].mxu0 %v3210
    %v5218 = vpop.f32.mrb[0].mxu0
    %v5219 = vadd.f32 %v5154, %v5218
    %v5220 = vpop.f32.mrb[0].mxu0
    %v5221 = vpop.f32.mrb[0].mxu0
    %v5222 = vadd.f32 %v5157, %v5221
    %v5223 = vpop.f32.mrb[0].mxu0
    %5224 = vdwg.mxu0
    %v5225 = vsub.f32 0.0, %v4765
    %v5226 = vsub.f32 0.0, %v4767
    %v5227 = vsub.f32 0.0, %v4911
    %v5228 = vsub.f32 0.0, %v4913
    %v5229 = vsub.f32 0.0, %v5057
    %v5230 = vsub.f32 0.0, %v5059
    %v5231 = vsub.f32 0.0, %v5195
    %v5232 = vsub.f32 0.0, %v4769
    %v5233 = vsub.f32 0.0, %v4771
    %v5234 = vsub.f32 0.0, %v4915
    %v5235 = vsub.f32 0.0, %v4917
    %v5236 = vsub.f32 0.0, %v5061
    %v5237 = vsub.f32 0.0, %v5063
    %v5238 = vsub.f32 0.0, %v5198
    %v5239 = vsub.f32 0.0, %v4775
    %v5240 = vsub.f32 0.0, %v4777
    %v5241 = vsub.f32 0.0, %v4921
    %v5242 = vsub.f32 0.0, %v4923
    %v5243 = vsub.f32 0.0, %v5067
    %v5244 = vsub.f32 0.0, %v5069
    %v5245 = vsub.f32 0.0, %v5203
    %v5246 = vsub.f32 0.0, %v4779
    %v5247 = vsub.f32 0.0, %v4781
    %v5248 = vsub.f32 0.0, %v4925
    %v5249 = vsub.f32 0.0, %v4927
    %v5250 = vsub.f32 0.0, %v5071
    %v5251 = vsub.f32 0.0, %v5073
    %v5252 = vsub.f32 0.0, %v5206
    %v5253 = vsub.f32 0.0, %v4785
    %v5254 = vsub.f32 0.0, %v4787
    %v5255 = vsub.f32 0.0, %v4931
    %v5256 = vsub.f32 0.0, %v4933
    %v5257 = vsub.f32 0.0, %v5077
    %v5258 = vsub.f32 0.0, %v5079
    %v5259 = vsub.f32 0.0, %v5211
    %v5260 = vsub.f32 0.0, %v4789
    %v5261 = vsub.f32 0.0, %v4791
    %v5262 = vsub.f32 0.0, %v4935
    %v5263 = vsub.f32 0.0, %v4937
    %v5264 = vsub.f32 0.0, %v5081
    %v5265 = vsub.f32 0.0, %v5083
    %v5266 = vsub.f32 0.0, %v5214
    %v5267 = vsub.f32 0.0, %v4795
    %v5268 = vsub.f32 0.0, %v4797
    %v5269 = vsub.f32 0.0, %v4941
    %v5270 = vsub.f32 0.0, %v4943
    %v5271 = vsub.f32 0.0, %v5087
    %v5272 = vsub.f32 0.0, %v5089
    %v5273 = vsub.f32 0.0, %v5219
    %v5274 = vsub.f32 0.0, %v4799
    %v5275 = vsub.f32 0.0, %v4801
    %v5276 = vsub.f32 0.0, %v4945
    %v5277 = vsub.f32 0.0, %v4947
    %v5278 = vsub.f32 0.0, %v5091
    %v5279 = vsub.f32 0.0, %v5093
    %v5280 = vsub.f32 0.0, %v5222
    %v5281 = vmul.f32 %v5225, 1.442695
    %v5282 = vpow.pop %v5281
    %v5283 = vmul.f32 %v5226, 1.442695
    %v5284 = vpow.pop %v5283
    %v5285 = vmul.f32 %v5227, 1.442695
    %v5286 = vpow.pop %v5285
    %v5287 = vmul.f32 %v5228, 1.442695
    %v5288 = vpow.pop %v5287
    %v5289 = vmul.f32 %v5229, 1.442695
    %v5290 = vpow.pop %v5289
    %v5291 = vmul.f32 %v5230, 1.442695
    %v5292 = vpow.pop %v5291
    %v5293 = vmul.f32 %v5231, 1.442695
    %v5294 = vpow.pop %v5293
    %v5295 = vmul.f32 %v5232, 1.442695
    %v5296 = vpow.pop %v5295
    %v5297 = vmul.f32 %v5233, 1.442695
    %v5298 = vpow.pop %v5297
    %v5299 = vmul.f32 %v5234, 1.442695
    %v5300 = vpow.pop %v5299
    %v5301 = vmul.f32 %v5235, 1.442695
    %v5302 = vpow.pop %v5301
    %v5303 = vmul.f32 %v5236, 1.442695
    %v5304 = vpow.pop %v5303
    %v5305 = vmul.f32 %v5237, 1.442695
    %v5306 = vpow.pop %v5305
    %v5307 = vmul.f32 %v5238, 1.442695
    %v5308 = vpow.pop %v5307
    %v5309 = vmul.f32 %v5239, 1.442695
    %v5310 = vpow.pop %v5309
    %v5311 = vmul.f32 %v5240, 1.442695
    %v5312 = vpow.pop %v5311
    %v5313 = vmul.f32 %v5241, 1.442695
    %v5314 = vpow.pop %v5313
    %v5315 = vmul.f32 %v5242, 1.442695
    %v5316 = vpow.pop %v5315
    %v5317 = vmul.f32 %v5243, 1.442695
    %v5318 = vpow.pop %v5317
    %v5319 = vmul.f32 %v5244, 1.442695
    %v5320 = vpow.pop %v5319
    %v5321 = vmul.f32 %v5245, 1.442695
    %v5322 = vpow.pop %v5321
    %v5323 = vmul.f32 %v5246, 1.442695
    %v5324 = vpow.pop %v5323
    %v5325 = vmul.f32 %v5247, 1.442695
    %v5326 = vpow.pop %v5325
    %v5327 = vmul.f32 %v5248, 1.442695
    %v5328 = vpow.pop %v5327
    %v5329 = vmul.f32 %v5249, 1.442695
    %v5330 = vpow.pop %v5329
    %v5331 = vmul.f32 %v5250, 1.442695
    %v5332 = vpow.pop %v5331
    %v5333 = vmul.f32 %v5251, 1.442695
    %v5334 = vpow.pop %v5333
    %v5335 = vmul.f32 %v5252, 1.442695
    %v5336 = vpow.pop %v5335
    %v5337 = vmul.f32 %v5253, 1.442695
    %v5338 = vpow.pop %v5337
    %v5339 = vmul.f32 %v5254, 1.442695
    %v5340 = vpow.pop %v5339
    %v5341 = vmul.f32 %v5255, 1.442695
    %v5342 = vpow.pop %v5341
    %v5343 = vmul.f32 %v5256, 1.442695
    %v5344 = vpow.pop %v5343
    %v5345 = vmul.f32 %v5257, 1.442695
    %v5346 = vpow.pop %v5345
    %v5347 = vmul.f32 %v5258, 1.442695
    %v5348 = vpow.pop %v5347
    %v5349 = vmul.f32 %v5259, 1.442695
    %v5350 = vpow.pop %v5349
    %v5351 = vmul.f32 %v5260, 1.442695
    %v5352 = vpow.pop %v5351
    %v5353 = vmul.f32 %v5261, 1.442695
    %v5354 = vpow.pop %v5353
    %v5355 = vmul.f32 %v5262, 1.442695
    %v5356 = vpow.pop %v5355
    %v5357 = vmul.f32 %v5263, 1.442695
    %v5358 = vpow.pop %v5357
    %v5359 = vmul.f32 %v5264, 1.442695
    %v5360 = vpow.pop %v5359
    %v5361 = vmul.f32 %v5265, 1.442695
    %v5362 = vpow.pop %v5361
    %v5363 = vmul.f32 %v5266, 1.442695
    %v5364 = vpow.pop %v5363
    %v5365 = vmul.f32 %v5267, 1.442695
    %v5366 = vpow.pop %v5365
    %v5367 = vmul.f32 %v5268, 1.442695
    %v5368 = vpow.pop %v5367
    %v5369 = vmul.f32 %v5269, 1.442695
    %v5370 = vpow.pop %v5369
    %v5371 = vmul.f32 %v5270, 1.442695
    %v5372 = vpow.pop %v5371
    %v5373 = vmul.f32 %v5271, 1.442695
    %v5374 = vpow.pop %v5373
    %v5375 = vmul.f32 %v5272, 1.442695
    %v5376 = vpow.pop %v5375
    %v5377 = vmul.f32 %v5273, 1.442695
    %v5378 = vpow.pop %v5377
    %v5379 = vmul.f32 %v5274, 1.442695
    %v5380 = vpow.pop %v5379
    %v5381 = vmul.f32 %v5275, 1.442695
    %v5382 = vpow.pop %v5381
    %v5383 = vmul.f32 %v5276, 1.442695
    %v5384 = vpow.pop %v5383
    %v5385 = vmul.f32 %v5277, 1.442695
    %v5386 = vpow.pop %v5385
    %v5387 = vmul.f32 %v5278, 1.442695
    %v5388 = vpow.pop %v5387
    %v5389 = vmul.f32 %v5279, 1.442695
    %v5390 = vpow.pop %v5389
    %v5391 = vmul.f32 %v5280, 1.442695
    %v5392 = vpow.pop %v5391
    %v5393 = vadd.f32 %v5282, 1.0
    %v5394 = vadd.f32 %v5284, 1.0
    %v5395 = vadd.f32 %v5286, 1.0
    %v5396 = vadd.f32 %v5288, 1.0
    %v5397 = vadd.f32 %v5290, 1.0
    %v5398 = vadd.f32 %v5292, 1.0
    %v5399 = vadd.f32 %v5294, 1.0
    %v5400 = vadd.f32 %v5296, 1.0
    %v5401 = vadd.f32 %v5298, 1.0
    %v5402 = vadd.f32 %v5300, 1.0
    %v5403 = vadd.f32 %v5302, 1.0
    %v5404 = vadd.f32 %v5304, 1.0
    %v5405 = vadd.f32 %v5306, 1.0
    %v5406 = vadd.f32 %v5308, 1.0
    %v5407 = vadd.f32 %v5310, 1.0
    %v5408 = vadd.f32 %v5312, 1.0
    %v5409 = vadd.f32 %v5314, 1.0
    %v5410 = vadd.f32 %v5316, 1.0
    %v5411 = vadd.f32 %v5318, 1.0
    %v5412 = vadd.f32 %v5320, 1.0
    %v5413 = vadd.f32 %v5322, 1.0
    %v5414 = vadd.f32 %v5324, 1.0
    %v5415 = vadd.f32 %v5326, 1.0
    %v5416 = vadd.f32 %v5328, 1.0
    %v5417 = vadd.f32 %v5330, 1.0
    %v5418 = vadd.f32 %v5332, 1.0
    %v5419 = vadd.f32 %v5334, 1.0
    %v5420 = vadd.f32 %v5336, 1.0
    %v5421 = vadd.f32 %v5338, 1.0
    %v5422 = vadd.f32 %v5340, 1.0
    %v5423 = vadd.f32 %v5342, 1.0
    %v5424 = vadd.f32 %v5344, 1.0
    %v5425 = vadd.f32 %v5346, 1.0
    %v5426 = vadd.f32 %v5348, 1.0
    %v5427 = vadd.f32 %v5350, 1.0
    %v5428 = vadd.f32 %v5352, 1.0
    %v5429 = vadd.f32 %v5354, 1.0
    %v5430 = vadd.f32 %v5356, 1.0
    %v5431 = vadd.f32 %v5358, 1.0
    %v5432 = vadd.f32 %v5360, 1.0
    %v5433 = vadd.f32 %v5362, 1.0
    %v5434 = vadd.f32 %v5364, 1.0
    %v5435 = vadd.f32 %v5366, 1.0
    %v5436 = vadd.f32 %v5368, 1.0
    %v5437 = vadd.f32 %v5370, 1.0
    %v5438 = vadd.f32 %v5372, 1.0
    %v5439 = vadd.f32 %v5374, 1.0
    %v5440 = vadd.f32 %v5376, 1.0
    %v5441 = vadd.f32 %v5378, 1.0
    %v5442 = vadd.f32 %v5380, 1.0
    %v5443 = vadd.f32 %v5382, 1.0
    %v5444 = vadd.f32 %v5384, 1.0
    %v5445 = vadd.f32 %v5386, 1.0
    %v5446 = vadd.f32 %v5388, 1.0
    %v5447 = vadd.f32 %v5390, 1.0
    %v5448 = vadd.f32 %v5392, 1.0
    %v5449 = vrcp.pop %v5393
    %v5450 = vrcp.pop %v5394
    %v5451 = vrcp.pop %v5395
    %v5452 = vrcp.pop %v5396
    %v5453 = vrcp.pop %v5397
    %v5454 = vrcp.pop %v5398
    %v5455 = vrcp.pop %v5399
    %v5456 = vrcp.pop %v5400
    %v5457 = vrcp.pop %v5401
    %v5458 = vrcp.pop %v5402
    %v5459 = vrcp.pop %v5403
    %v5460 = vrcp.pop %v5404
    %v5461 = vrcp.pop %v5405
    %v5462 = vrcp.pop %v5406
    %v5463 = vrcp.pop %v5407
    %v5464 = vrcp.pop %v5408
    %v5465 = vrcp.pop %v5409
    %v5466 = vrcp.pop %v5410
    %v5467 = vrcp.pop %v5411
    %v5468 = vrcp.pop %v5412
    %v5469 = vrcp.pop %v5413
    %v5470 = vrcp.pop %v5414
    %v5471 = vrcp.pop %v5415
    %v5472 = vrcp.pop %v5416
    %v5473 = vrcp.pop %v5417
    %v5474 = vrcp.pop %v5418
    %v5475 = vrcp.pop %v5419
    %v5476 = vrcp.pop %v5420
    %v5477 = vrcp.pop %v5421
    %v5478 = vrcp.pop %v5422
    %v5479 = vrcp.pop %v5423
    %v5480 = vrcp.pop %v5424
    %v5481 = vrcp.pop %v5425
    %v5482 = vrcp.pop %v5426
    %v5483 = vrcp.pop %v5427
    %v5484 = vrcp.pop %v5428
    %v5485 = vrcp.pop %v5429
    %v5486 = vrcp.pop %v5430
    %v5487 = vrcp.pop %v5431
    %v5488 = vrcp.pop %v5432
    %v5489 = vrcp.pop %v5433
    %v5490 = vrcp.pop %v5434
    %v5491 = vrcp.pop %v5435
    %v5492 = vrcp.pop %v5436
    %v5493 = vrcp.pop %v5437
    %v5494 = vrcp.pop %v5438
    %v5495 = vrcp.pop %v5439
    %v5496 = vrcp.pop %v5440
    %v5497 = vrcp.pop %v5441
    %v5498 = vrcp.pop %v5442
    %v5499 = vrcp.pop %v5443
    %v5500 = vrcp.pop %v5444
    %v5501 = vrcp.pop %v5445
    %v5502 = vrcp.pop %v5446
    %v5503 = vrcp.pop %v5447
    %v5504 = vrcp.pop %v5448
    %v5505 = vpack.c.bf16 %v5456, %v5449
    %v5506 = vpack.c.bf16 %v5457, %v5450
    %v5507 = vpack.c.bf16 %v5458, %v5451
    %v5508 = vpack.c.bf16 %v5459, %v5452
    %v5509 = vpack.c.bf16 %v5460, %v5453
    %v5510 = vpack.c.bf16 %v5461, %v5454
    %v5511 = vpack.c.bf16 %v5462, %v5455
    %v5512 = vpack.c.bf16 %v5470, %v5463
    %v5513 = vpack.c.bf16 %v5471, %v5464
    %v5514 = vpack.c.bf16 %v5472, %v5465
    %v5515 = vpack.c.bf16 %v5473, %v5466
    %v5516 = vpack.c.bf16 %v5474, %v5467
    %v5517 = vpack.c.bf16 %v5475, %v5468
    %v5518 = vpack.c.bf16 %v5476, %v5469
    %v5519 = vpack.c.bf16 %v5484, %v5477
    %v5520 = vpack.c.bf16 %v5485, %v5478
    %v5521 = vpack.c.bf16 %v5486, %v5479
    %v5522 = vpack.c.bf16 %v5487, %v5480
    %v5523 = vpack.c.bf16 %v5488, %v5481
    %v5524 = vpack.c.bf16 %v5489, %v5482
    %v5525 = vpack.c.bf16 %v5490, %v5483
    %v5526 = vpack.c.bf16 %v5498, %v5491
    %v5527 = vpack.c.bf16 %v5499, %v5492
    %v5528 = vpack.c.bf16 %v5500, %v5493
    %v5529 = vpack.c.bf16 %v5501, %v5494
    %v5530 = vpack.c.bf16 %v5502, %v5495
    %v5531 = vpack.c.bf16 %v5503, %v5496
    %v5532 = vpack.c.bf16 %v5504, %v5497
    %v5561 = vunpack.c.l.b16 %v5505
    %v5562 = vunpack.c.l.b16 %v5506
    %v5563 = vunpack.c.l.b16 %v5507
    %v5564 = vunpack.c.l.b16 %v5508
    %v5565 = vunpack.c.l.b16 %v5509
    %v5566 = vunpack.c.l.b16 %v5510
    %v5567 = vunpack.c.l.b16 %v5511
    %v5568 = vunpack.c.h.b16 %v5505
    %v5569 = vunpack.c.h.b16 %v5506
    %v5570 = vunpack.c.h.b16 %v5507
    %v5571 = vunpack.c.h.b16 %v5508
    %v5572 = vunpack.c.h.b16 %v5509
    %v5573 = vunpack.c.h.b16 %v5510
    %v5574 = vunpack.c.h.b16 %v5511
    %v5575 = vunpack.c.l.b16 %v5512
    %v5576 = vunpack.c.l.b16 %v5513
    %v5577 = vunpack.c.l.b16 %v5514
    %v5578 = vunpack.c.l.b16 %v5515
    %v5579 = vunpack.c.l.b16 %v5516
    %v5580 = vunpack.c.l.b16 %v5517
    %v5581 = vunpack.c.l.b16 %v5518
    %v5582 = vunpack.c.h.b16 %v5512
    %v5583 = vunpack.c.h.b16 %v5513
    %v5584 = vunpack.c.h.b16 %v5514
    %v5585 = vunpack.c.h.b16 %v5515
    %v5586 = vunpack.c.h.b16 %v5516
    %v5587 = vunpack.c.h.b16 %v5517
    %v5588 = vunpack.c.h.b16 %v5518
    %v5589 = vunpack.c.l.b16 %v5519
    %v5590 = vunpack.c.l.b16 %v5520
    %v5591 = vunpack.c.l.b16 %v5521
    %v5592 = vunpack.c.l.b16 %v5522
    %v5593 = vunpack.c.l.b16 %v5523
    %v5594 = vunpack.c.l.b16 %v5524
    %v5595 = vunpack.c.l.b16 %v5525
    %v5596 = vunpack.c.h.b16 %v5519
    %v5597 = vunpack.c.h.b16 %v5520
    %v5598 = vunpack.c.h.b16 %v5521
    %v5599 = vunpack.c.h.b16 %v5522
    %v5600 = vunpack.c.h.b16 %v5523
    %v5601 = vunpack.c.h.b16 %v5524
    %v5602 = vunpack.c.h.b16 %v5525
    %v5603 = vunpack.c.l.b16 %v5526
    %v5604 = vunpack.c.l.b16 %v5527
    %v5605 = vunpack.c.l.b16 %v5528
    %v5606 = vunpack.c.l.b16 %v5529
    %v5607 = vunpack.c.l.b16 %v5530
    %v5608 = vunpack.c.l.b16 %v5531
    %v5609 = vunpack.c.l.b16 %v5532
    %v5610 = vunpack.c.h.b16 %v5526
    %v5611 = vunpack.c.h.b16 %v5527
    %v5612 = vunpack.c.h.b16 %v5528
    %v5613 = vunpack.c.h.b16 %v5529
    %v5614 = vunpack.c.h.b16 %v5530
    %v5615 = vunpack.c.h.b16 %v5531
    %v5616 = vunpack.c.h.b16 %v5532
    %v5617 = vpack.c.b16 %v5562, %v5561
    %v5618 = vpack.c.b16 %v5564, %v5563
    %v5619 = vpack.c.b16 %v5566, %v5565
    %v5620 = vpack.c.b16 %v5567, %v5567
    %v5621 = vpack.c.b16 %v5569, %v5568
    %v5622 = vpack.c.b16 %v5571, %v5570
    %v5623 = vpack.c.b16 %v5573, %v5572
    %v5624 = vpack.c.b16 %v5574, %v5574
    %v5625 = vpack.c.b16 %v5576, %v5575
    %v5626 = vpack.c.b16 %v5578, %v5577
    %v5627 = vpack.c.b16 %v5580, %v5579
    %v5628 = vpack.c.b16 %v5581, %v5581
    %v5629 = vpack.c.b16 %v5583, %v5582
    %v5630 = vpack.c.b16 %v5585, %v5584
    %v5631 = vpack.c.b16 %v5587, %v5586
    %v5632 = vpack.c.b16 %v5588, %v5588
    %v5633 = vpack.c.b16 %v5590, %v5589
    %v5634 = vpack.c.b16 %v5592, %v5591
    %v5635 = vpack.c.b16 %v5594, %v5593
    %v5636 = vpack.c.b16 %v5595, %v5595
    %v5637 = vpack.c.b16 %v5597, %v5596
    %v5638 = vpack.c.b16 %v5599, %v5598
    %v5639 = vpack.c.b16 %v5601, %v5600
    %v5640 = vpack.c.b16 %v5602, %v5602
    %v5641 = vpack.c.b16 %v5604, %v5603
    %v5642 = vpack.c.b16 %v5606, %v5605
    %v5643 = vpack.c.b16 %v5608, %v5607
    %v5644 = vpack.c.b16 %v5609, %v5609
    %v5645 = vpack.c.b16 %v5611, %v5610
    %v5646 = vpack.c.b16 %v5613, %v5612
    %v5647 = vpack.c.b16 %v5615, %v5614
    %v5648 = vpack.c.b16 %v5616, %v5616
    %5681 = vst [vmem:[#allocation13] sm:$0xff] %v5617
    %5682 = vst [vmem:[#allocation13 + $0x8] sm:$0xff] %v5618
    %5683 = vst [vmem:[#allocation13 + $0x10] sm:$0xff] %v5619
    %5684 = vst [vmem:[#allocation13 + $0x18] sm:$0xf] %v5620
    %5685 = vst [vmem:[#allocation13 + $0x1c] sm:$0xff] %v5621
    %5686 = vst [vmem:[#allocation13 + $0x24] sm:$0xff] %v5622
    %5687 = vst [vmem:[#allocation13 + $0x2c] sm:$0xff] %v5623
    %5688 = vst [vmem:[#allocation13 + $0x34] sm:$0xf] %v5624
    %5689 = vst [vmem:[#allocation13 + $0x38] sm:$0xff] %v5625
    %5690 = vst [vmem:[#allocation13 + $0x40] sm:$0xff] %v5626
    %5691 = vst [vmem:[#allocation13 + $0x48] sm:$0xff] %v5627
    %5692 = vst [vmem:[#allocation13 + $0x50] sm:$0xf] %v5628
    %5693 = vst [vmem:[#allocation13 + $0x54] sm:$0xff] %v5629
    %5694 = vst [vmem:[#allocation13 + $0x5c] sm:$0xff] %v5630
    %5695 = vst [vmem:[#allocation13 + $0x64] sm:$0xff] %v5631
    %5696 = vst [vmem:[#allocation13 + $0x6c] sm:$0xf] %v5632
    %5697 = vst [vmem:[#allocation13 + $0x70] sm:$0xff] %v5633
    %5698 = vst [vmem:[#allocation13 + $0x78] sm:$0xff] %v5634
    %5699 = vst [vmem:[#allocation13 + $0x80] sm:$0xff] %v5635
    %5700 = vst [vmem:[#allocation13 + $0x88] sm:$0xf] %v5636
    %5701 = vst [vmem:[#allocation13 + $0x8c] sm:$0xff] %v5637
    %5702 = vst [vmem:[#allocation13 + $0x94] sm:$0xff] %v5638
    %5703 = vst [vmem:[#allocation13 + $0x9c] sm:$0xff] %v5639
    %5704 = vst [vmem:[#allocation13 + $0xa4] sm:$0xf] %v5640
    %5705 = vst [vmem:[#allocation13 + $0xa8] sm:$0xff] %v5641
    %5706 = vst [vmem:[#allocation13 + $0xb0] sm:$0xff] %v5642
    %5707 = vst [vmem:[#allocation13 + $0xb8] sm:$0xff] %v5643
    %5708 = vst [vmem:[#allocation13 + $0xc0] sm:$0xf] %v5644
    %5709 = vst [vmem:[#allocation13 + $0xc4] sm:$0xff] %v5645
    %5710 = vst [vmem:[#allocation13 + $0xcc] sm:$0xff] %v5646
    %5711 = vst [vmem:[#allocation13 + $0xd4] sm:$0xff] %v5647
    %5712 = vst [vmem:[#allocation13 + $0xdc] sm:$0xf] %v5648
    // Predicated region
    $region62: #{tpu_custom_call.1} parent=1 // pred_check
      _
    $region63: #{tpu_custom_call.1} parent=1 // pred_check_branch
      %5714 = sbr.rel (0) target = $region65
    $region64: #{tpu_custom_call.1} parent=1 // pred_region
      %s5716 = ssub.s32 3584, 3584
      %5717 = vsyncadd [#allocation4], %s5716
      %s5718 = sshll.u32 [#allocation13], 4
      %s5719 = int_to_ptr.vmem [resolvable:$true] %s5718
      %5724 = dma.vmem_to_hbm [thread:$0]  %s5719, 3584, %s9, [#allocation4], 448, 448, 28
    $region65: #{tpu_custom_call.1} parent=1 // pred_fallthru
      _
    // Predicated region
    $region66: #{tpu_custom_call.1} parent=1 // pred_check
      _
    $region67: #{tpu_custom_call.1} parent=1 // pred_check_branch
      %5726 = sbr.rel (0) target = $region69
    $region68: #{tpu_custom_call.1} parent=1 // pred_region
      %s5728 = ssub.s32 512, 512
      %5729 = vsyncadd [#allocation15], %s5728
      %s5730 = sshll.u32 [#allocation14], 4
      %s5731 = int_to_ptr.vmem [resolvable:$true] %s5730
      %5736 = dma.vmem_to_hbm [thread:$0]  %s5731, 512, %s10, [#allocation15], 64, 64, 4
    $region69: #{tpu_custom_call.1} parent=1 // pred_fallthru
      _
    // Predicated region
    $region70: #{tpu_custom_call.1} parent=1 // pred_check
      _
    $region71: #{tpu_custom_call.1} parent=1 // pred_check_branch
      %5738 = sbr.rel (0) target = $region73
    $region72: #{tpu_custom_call.1} parent=1 // pred_region
      %5739 = dma.done [#allocation4], 3584
    $region73: #{tpu_custom_call.1} parent=1 // pred_fallthru
      _
    // Predicated region
    $region74: #{tpu_custom_call.1} parent=1 // pred_check
      _
    $region75: #{tpu_custom_call.1} parent=1 // pred_check_branch
      %5741 = sbr.rel (0) target = $region77
    $region76: #{tpu_custom_call.1} parent=1 // pred_region
      %5742 = dma.done [#allocation15], 512
    $region77: #{tpu_custom_call.1} parent=1 // pred_fallthru
      _
    %5743 = vsyncpa [#allocation3], 1
    %5744 = vsyncpa [#allocation6], 1
    %5745 = vsyncpa [#allocation9], 1
    %5746 = vsyncpa [#allocation12], 1
    %5747 = vsyncpa [#allocation4], 1
    %5748 = vsyncpa [#allocation15], 1

</llo_original>
